<compile_context>
chip_gen: v7x
topology: tpu7x:2x2x1
jax: 0.10.0
libtpu: 0.0.40
codegen_flags: <defaults>
</compile_context>

<pallas_src>
import functools

import jax
import jax.numpy as jnp
from jax.experimental import pallas as pl
from jax.experimental.pallas import tpu as pltpu

C_PAD = 128           # lane-dense channel padding carried through the whole net
HEAD_CH = 64          # valid channels of the returned feature map (num_features analog)
_BN_EPS = 1e-3        # tf_efficientnetv2 uses BatchNorm eps=1e-3

_COMPILER_PARAMS = pltpu.CompilerParams(
    dimension_semantics=("parallel",),
    vmem_limit_bytes=16 * 1024 * 1024,
)


# ---------------------------------------------------------------------------
# The single fused backbone kernel (one grid step == one image)
# ---------------------------------------------------------------------------
def _backbone_kernel(patch_ref, sel_ref, w_stem_ref, b_stem_ref,
                     w_b1e_ref, b_b1e_ref, w_b1p_ref, b_b1p_ref,
                     w_b2e_ref, b_b2e_ref, w_b2p_ref, b_b2p_ref,
                     w_head_ref, b_head_ref,
                     o_ref, pad_ref, *, H1, W1):
    C = C_PAD
    M1 = H1 * W1
    H2, W2 = H1 // 2, W1 // 2

    def silu(v):
        return v * jax.nn.sigmoid(v)          # SiLU, f32 (EUP)

    def conv3x3(w_ref, b_ref):
        # 3 column(W)-shifted copies of the halo buffer, lane-concatenated to K=3*C
        # (whole-tile concat, C=128), then the three row(H) offsets are free slices of
        # the untiled leading axis -> 3 K=384 MXU matmuls instead of 9 K=128 repacks.
        xcat = jnp.concatenate(
            [pad_ref[:, d:d + W1, :] for d in range(3)], axis=-1)       # (H1+2, W1, 3C)
        acc = jnp.dot(xcat[0:H1].reshape(M1, 3 * C), w_ref[0],
                      preferred_element_type=jnp.float32)
        acc = acc + jnp.dot(xcat[1:H1 + 1].reshape(M1, 3 * C), w_ref[1],
                            preferred_element_type=jnp.float32)
        acc = acc + jnp.dot(xcat[2:H1 + 2].reshape(M1, 3 * C), w_ref[2],
                            preferred_element_type=jnp.float32)
        return silu(acc + b_ref[...])                                    # (M1, C) f32

    def pointwise(v, w_ref, b_ref):
        return jnp.dot(v.astype(jnp.bfloat16), w_ref[...],
                       preferred_element_type=jnp.float32) + b_ref[...]

    # ---- conv_stem (3x3 s2, pre-packed im2col) + bn1 + SiLU: one K=128 matmul ----
    y = jnp.dot(patch_ref[0], w_stem_ref[...], preferred_element_type=jnp.float32)
    stem = silu(y + b_stem_ref[...])                                     # (M1, C) f32

    # ---- block 1: EdgeResidual (3x3 s1 + SiLU, 1x1 linear, + skip) ----
    # Halo buffer: zero once per image (border == conv zero padding), store the interior.
    pad_ref[...] = jnp.zeros_like(pad_ref)
    pad_ref[1:H1 + 1, 1:W1 + 1, :] = stem.astype(jnp.bfloat16).reshape(H1, W1, C)
    y = conv3x3(w_b1e_ref, b_b1e_ref)                                    # expand 3x3 + SiLU
    y = pointwise(y, w_b1p_ref, b_b1p_ref) + stem                        # 1x1 linear + residual

    # ---- block 2 (3x3 s2 + SiLU, 1x1 linear) fused with conv_head + bn2 + SiLU ----
    pad_ref[1:H1 + 1, 1:W1 + 1, :] = y.astype(jnp.bfloat16).reshape(H1, W1, C)
    y = conv3x3(w_b2e_ref, b_b2e_ref)                                    # stride-1 eval (M1, C)
    # exact stride-2 subsample via a 0/1 selection matmul (no strided access anywhere)
    y = jnp.dot(sel_ref[...], y.astype(jnp.bfloat16),
                preferred_element_type=jnp.float32)                      # (M2, C)
    y = pointwise(y, w_b2p_ref, b_b2p_ref)                               # 1x1 linear
    y = silu(pointwise(y, w_head_ref, b_head_ref))                       # conv_head + bn2 + SiLU

    o_ref[0] = y.reshape(H2, W2, C)                                      # lane-dense f32 store


# ---------------------------------------------------------------------------
# Wrapper: stem im2col + one pallas_call for the whole backbone
# ---------------------------------------------------------------------------
def _stem_patches(x_nchw):
    """NCHW -> NHWC once, spatial pad 1, 9-tap stride-2 im2col packed lane-dense to C_PAD."""
    N, cin, H, W = x_nchw.shape
    x = jnp.transpose(x_nchw, (0, 2, 3, 1))
    xp = jnp.pad(x, ((0, 0), (1, 1), (1, 1), (0, 0)))
    taps = [xp[:, di:di + H:2, dj:dj + W:2, :] for di in range(3) for dj in range(3)]
    p = jnp.concatenate(taps, axis=-1)                                   # (N, H/2, W/2, 9*cin)
    p = jnp.pad(p, ((0, 0), (0, 0), (0, 0), (0, C_PAD - 9 * cin)))
    return p.reshape(N, (H // 2) * (W // 2), C_PAD).astype(jnp.bfloat16)


def _subsample_matrix(h, w):
    """(h//2 * w//2, h*w) exact 0/1 matrix selecting even rows/cols of a row-major h x w map."""
    ho, wo = h // 2, w // 2
    rows = jnp.arange(ho * wo)
    src = (rows // wo) * 2 * w + (rows % wo) * 2
    return jax.nn.one_hot(src, h * w, dtype=jnp.bfloat16)


def backbone_forward(packed, x_nchw):
    N, cin, H, W = x_nchw.shape
    assert H % 4 == 0 and W % 4 == 0 and (W // 2) % 8 == 0 and 9 * cin <= C_PAD
    H1, W1 = H // 2, W // 2
    H2, W2 = H1 // 2, W1 // 2

    patches = _stem_patches(x_nchw)
    sel = _subsample_matrix(H1, W1)

    weights = [packed[k] for k in (
        "w_stem", "b_stem", "w_b1e", "b_b1e", "w_b1p", "b_b1p",
        "w_b2e", "b_b2e", "w_b2p", "b_b2p", "w_head", "b_head")]

    def const_spec(a):
        if a.ndim == 2:
            return pl.BlockSpec(a.shape, lambda n: (0, 0))
        assert a.ndim == 3
        return pl.BlockSpec(a.shape, lambda n: (0, 0, 0))

    kernel = functools.partial(_backbone_kernel, H1=H1, W1=W1)
    return pl.pallas_call(
        kernel,
        out_shape=jax.ShapeDtypeStruct((N, H2, W2, C_PAD), jnp.float32),
        grid=(N,),
        in_specs=[pl.BlockSpec((1, H1 * W1, C_PAD), lambda n: (n, 0, 0)),
                  const_spec(sel)] + [const_spec(wgt) for wgt in weights],
        out_specs=pl.BlockSpec((1, H2, W2, C_PAD), lambda n: (n, 0, 0, 0)),
        scratch_shapes=[pltpu.VMEM((H1 + 2, W1 + 2, C_PAD), jnp.bfloat16)],
        compiler_params=_COMPILER_PARAMS,
    )(patches, sel, *weights)


def timm_wrapper_forward(params, x_nchw):
    """TimmModelsWrapper.forward(x, return_featuremaps=True) == forward_features(x)."""
    y = backbone_forward(params["packed"], x_nchw)        # (N, H/4, W/4, C_PAD) f32
    return jnp.transpose(y[..., :HEAD_CH], (0, 3, 1, 2))  # strip lane padding, back to NCHW


# ---------------------------------------------------------------------------
# Deterministic synthetic parameters (shapes mirror a tiny efficientnetv2)
# ---------------------------------------------------------------------------
def _conv_w(key, cout, cin, kh, kw):
    fan_in = cin * kh * kw
    return jax.random.normal(key, (cout, cin, kh, kw), jnp.float32) / jnp.sqrt(fan_in)


def _bn(key, c):
    k1, k2, k3, k4 = jax.random.split(key, 4)
    gamma = 1.0 + 0.1 * jax.random.normal(k1, (c,), jnp.float32)
    beta = 0.05 * jax.random.normal(k2, (c,), jnp.float32)
    mean = 0.01 * jax.random.normal(k3, (c,), jnp.float32)
    var = jnp.abs(1.0 + 0.1 * jax.random.normal(k4, (c,), jnp.float32))
    scale = gamma / jnp.sqrt(var + _BN_EPS)
    bias = beta - mean * scale
    return scale, bias


def _pack_bias(b):
    return jnp.pad(b, (0, C_PAD - b.shape[0])).reshape(1, C_PAD).astype(jnp.float32)


def _fold_pack_stem(w, scale):
    """(cout,cin,3,3)+BN scale -> (C_PAD, C_PAD): row = di*9 + dj*3 + cin (matches im2col)."""
    cout, cin, kh, kw = w.shape
    wf = w * scale[:, None, None, None]
    rows = jnp.transpose(wf, (2, 3, 1, 0)).reshape(kh * kw * cin, cout)
    rows = jnp.pad(rows, ((0, C_PAD - kh * kw * cin), (0, C_PAD - cout)))
    return rows.astype(jnp.bfloat16)


def _fold_pack_3x3(w, scale):
    """(cout,cin,3,3)+BN scale -> (3, 3*C_PAD, C_PAD); per-di rows are [dj=0 | dj=1 | dj=2]."""
    cout, cin, kh, kw = w.shape
    wf = w * scale[:, None, None, None]
    wt = jnp.transpose(wf, (2, 3, 1, 0))                                 # (3,3,cin,cout)
    wt = jnp.pad(wt, ((0, 0), (0, 0), (0, C_PAD - cin), (0, C_PAD - cout)))
    return wt.reshape(kh, kw * C_PAD, C_PAD).astype(jnp.bfloat16)


def _fold_pack_1x1(w, scale):
    cout, cin = w.shape[:2]
    wf = (w[:, :, 0, 0] * scale[:, None]).T                              # (cin, cout), BN-folded
    wf = jnp.pad(wf, ((0, C_PAD - cin), (0, C_PAD - cout)))
    return wf.astype(jnp.bfloat16)


def make_params(key):
    ks = jax.random.split(key, 12)
    raw = {
        "stem_w": _conv_w(ks[0], 16, 3, 3, 3), "stem_bn": _bn(ks[1], 16),
        "b1e_w": _conv_w(ks[2], 32, 16, 3, 3), "b1e_bn": _bn(ks[3], 32),
        "b1p_w": _conv_w(ks[4], 16, 32, 1, 1), "b1p_bn": _bn(ks[5], 16),
        "b2e_w": _conv_w(ks[6], 32, 16, 3, 3), "b2e_bn": _bn(ks[7], 32),
        "b2p_w": _conv_w(ks[8], 48, 32, 1, 1), "b2p_bn": _bn(ks[9], 48),
        "head_w": _conv_w(ks[10], 64, 48, 1, 1), "head_bn": _bn(ks[11], 64),
    }
    packed = {
        "w_stem": _fold_pack_stem(raw["stem_w"], raw["stem_bn"][0]),
        "b_stem": _pack_bias(raw["stem_bn"][1]),
        "w_b1e": _fold_pack_3x3(raw["b1e_w"], raw["b1e_bn"][0]),
        "b_b1e": _pack_bias(raw["b1e_bn"][1]),
        "w_b1p": _fold_pack_1x1(raw["b1p_w"], raw["b1p_bn"][0]),
        "b_b1p": _pack_bias(raw["b1p_bn"][1]),
        "w_b2e": _fold_pack_3x3(raw["b2e_w"], raw["b2e_bn"][0]),
        "b_b2e": _pack_bias(raw["b2e_bn"][1]),
        "w_b2p": _fold_pack_1x1(raw["b2p_w"], raw["b2p_bn"][0]),
        "b_b2p": _pack_bias(raw["b2p_bn"][1]),
        "w_head": _fold_pack_1x1(raw["head_w"], raw["head_bn"][0]),
        "b_head": _pack_bias(raw["head_bn"][1]),
    }
    return {"raw": raw, "packed": packed}


# ---------------------------------------------------------------------------
# Pure-JAX f32 reference (tolerance check for the bf16 kernel path)
# ---------------------------------------------------------------------------
def _conv2d_nhwc(x, w, stride, pad):
    return jax.lax.conv_general_dilated(
        x, jnp.transpose(w, (2, 3, 1, 0)), (stride, stride),
        ((pad, pad), (pad, pad)), dimension_numbers=("NHWC", "HWIO", "NHWC"),
        precision=jax.lax.Precision.HIGHEST)


def reference_forward(raw, x_nchw):
    silu = lambda v: v * jax.nn.sigmoid(v)
    bn = lambda v, p: v * p[0] + p[1]
    x = jnp.transpose(x_nchw, (0, 2, 3, 1))
    y = silu(bn(_conv2d_nhwc(x, raw["stem_w"], 2, 1), raw["stem_bn"]))
    skip = y
    y = silu(bn(_conv2d_nhwc(y, raw["b1e_w"], 1, 1), raw["b1e_bn"]))
    y = bn(_conv2d_nhwc(y, raw["b1p_w"], 1, 0), raw["b1p_bn"]) + skip
    y = silu(bn(_conv2d_nhwc(y, raw["b2e_w"], 2, 1), raw["b2e_bn"]))
    y = bn(_conv2d_nhwc(y, raw["b2p_w"], 1, 0), raw["b2p_bn"])
    y = silu(bn(_conv2d_nhwc(y, raw["head_w"], 1, 0), raw["head_bn"]))
    return jnp.transpose(y, (0, 3, 1, 2))


if __name__ == "__main__":
    key = jax.random.PRNGKey(0)
    kx, kp = jax.random.split(key)
    # small NCHW input (PyTorch convention): batch=2, 3 channels, 32x32 spatial
    x = jax.random.normal(kx, (2, 3, 32, 32), jnp.float32)
    params = make_params(kp)

    fwd = jax.jit(timm_wrapper_forward)
    feats = fwd(params, x)
    jax.block_until_ready(feats)

    assert feats.shape == (2, HEAD_CH, 8, 8), feats.shape
    assert bool(jnp.all(jnp.isfinite(feats)))

    ref = reference_forward(params["raw"], x)
    err = float(jnp.max(jnp.abs(feats - ref)))
    rel = float(jnp.linalg.norm(feats - ref) / jnp.linalg.norm(ref))
    assert err < 0.15 and rel < 0.05, (err, rel)
    print("KERNEL_OK")
</pallas_src>

<mosaic_0001>
module attributes {stable_mosaic.version = 11 : i64} {
  func.func @_backbone_kernel(%arg0: i32, %arg1: memref<1x256x128xbf16, #tpu.memory_space<vmem>>, %arg2: memref<64x256xbf16, #tpu.memory_space<vmem>>, %arg3: memref<128x128xbf16, #tpu.memory_space<vmem>>, %arg4: memref<1x128xf32, #tpu.memory_space<vmem>>, %arg5: memref<3x384x128xbf16, #tpu.memory_space<vmem>>, %arg6: memref<1x128xf32, #tpu.memory_space<vmem>>, %arg7: memref<128x128xbf16, #tpu.memory_space<vmem>>, %arg8: memref<1x128xf32, #tpu.memory_space<vmem>>, %arg9: memref<3x384x128xbf16, #tpu.memory_space<vmem>>, %arg10: memref<1x128xf32, #tpu.memory_space<vmem>>, %arg11: memref<128x128xbf16, #tpu.memory_space<vmem>>, %arg12: memref<1x128xf32, #tpu.memory_space<vmem>>, %arg13: memref<128x128xbf16, #tpu.memory_space<vmem>>, %arg14: memref<1x128xf32, #tpu.memory_space<vmem>>, %arg15: memref<1x8x8x128xf32, #tpu.memory_space<vmem>>, %arg16: memref<18x18x128xbf16, #tpu.memory_space<vmem>>) attributes {dimension_semantics = [#tpu.dimension_semantics<parallel>], iteration_bounds = array<i64: 2>, scalar_prefetch = 0 : i64, scratch_operands = 1 : i64, tpu.core_type = #tpu.core_type<tc>, window_params = [{transform_indices = @transform_0, window_bounds = array<i64: 1, 256, 128>}, {pipeline_mode = #tpu.pipeline_mode<synchronous>, transform_indices = @transform_1, window_bounds = array<i64: 64, 256>}, {pipeline_mode = #tpu.pipeline_mode<synchronous>, transform_indices = @transform_2, window_bounds = array<i64: 128, 128>}, {pipeline_mode = #tpu.pipeline_mode<synchronous>, transform_indices = @transform_3, window_bounds = array<i64: 1, 128>}, {pipeline_mode = #tpu.pipeline_mode<synchronous>, transform_indices = @transform_4, window_bounds = array<i64: 3, 384, 128>}, {pipeline_mode = #tpu.pipeline_mode<synchronous>, transform_indices = @transform_5, window_bounds = array<i64: 1, 128>}, {pipeline_mode = #tpu.pipeline_mode<synchronous>, transform_indices = @transform_6, window_bounds = array<i64: 128, 128>}, {pipeline_mode = #tpu.pipeline_mode<synchronous>, transform_indices = @transform_7, window_bounds = array<i64: 1, 128>}, {pipeline_mode = #tpu.pipeline_mode<synchronous>, transform_indices = @transform_8, window_bounds = array<i64: 3, 384, 128>}, {pipeline_mode = #tpu.pipeline_mode<synchronous>, transform_indices = @transform_9, window_bounds = array<i64: 1, 128>}, {pipeline_mode = #tpu.pipeline_mode<synchronous>, transform_indices = @transform_10, window_bounds = array<i64: 128, 128>}, {pipeline_mode = #tpu.pipeline_mode<synchronous>, transform_indices = @transform_11, window_bounds = array<i64: 1, 128>}, {pipeline_mode = #tpu.pipeline_mode<synchronous>, transform_indices = @transform_12, window_bounds = array<i64: 128, 128>}, {pipeline_mode = #tpu.pipeline_mode<synchronous>, transform_indices = @transform_13, window_bounds = array<i64: 1, 128>}, {transform_indices = @transform_14, window_bounds = array<i64: 1, 8, 8, 128>}]} {
    %c0 = arith.constant 0 : index
    %c0_0 = arith.constant 0 : index
    %c0_1 = arith.constant 0 : index
    %0 = vector.load %arg1[%c0, %c0_0, %c0_1] : memref<1x256x128xbf16, #tpu.memory_space<vmem>>, vector<1x256x128xbf16>
    %1 = vector.shape_cast %0 : vector<1x256x128xbf16> to vector<256x128xbf16>
    %c0_2 = arith.constant 0 : index
    %c0_3 = arith.constant 0 : index
    %2 = vector.load %arg3[%c0_2, %c0_3] : memref<128x128xbf16, #tpu.memory_space<vmem>>, vector<128x128xbf16>
    %cst = arith.constant dense<0.000000e+00> : vector<256x128xf32>
    %3 = tpu.matmul %1, %2, %cst {dimension_numbers = #tpu.dot_dimension_numbers<[1], [0], [0], [1], [0, 0, 1, 1], [], []>} : vector<256x128xbf16>, vector<128x128xbf16>, vector<256x128xf32> -> vector<256x128xf32>
    %c0_4 = arith.constant 0 : index
    %c0_5 = arith.constant 0 : index
    %4 = vector.load %arg4[%c0_4, %c0_5] : memref<1x128xf32, #tpu.memory_space<vmem>>, vector<1x128xf32>
    %5 = vector.broadcast %4 : vector<1x128xf32> to vector<256x128xf32>
    %6 = arith.addf %3, %5 : vector<256x128xf32>
    %7 = arith.negf %6 : vector<256x128xf32>
    %8 = math.exp %7 : vector<256x128xf32>
    %cst_6 = arith.constant 1.000000e+00 : f32
    %9 = vector.broadcast %cst_6 : f32 to vector<256x128xf32>
    %10 = arith.addf %9, %8 : vector<256x128xf32>
    %11 = arith.divf %9, %10 : vector<256x128xf32>
    %12 = arith.mulf %6, %11 : vector<256x128xf32>
    %cst_7 = arith.constant 0.000000e+00 : bf16
    %13 = vector.broadcast %cst_7 : bf16 to vector<18x18x128xbf16>
    %c0_8 = arith.constant 0 : index
    %c0_9 = arith.constant 0 : index
    %c0_10 = arith.constant 0 : index
    %14 = vector.load %arg16[%c0_8, %c0_9, %c0_10] : memref<18x18x128xbf16, #tpu.memory_space<vmem>>, vector<18x18x128xbf16>
    tpu.vector_store %arg16[%c0_8, %c0_9, %c0_10], %13 {strides = array<i32>} : memref<18x18x128xbf16, #tpu.memory_space<vmem>>, vector<18x18x128xbf16>,
    %15 = arith.truncf %12 : vector<256x128xf32> to vector<256x128xbf16>
    %16 = vector.shape_cast %15 : vector<256x128xbf16> to vector<16x16x128xbf16>
    %c1 = arith.constant 1 : index
    %c1_11 = arith.constant 1 : index
    %c0_12 = arith.constant 0 : index
    %17 = vector.load %arg16[%c1, %c1_11, %c0_12] : memref<18x18x128xbf16, #tpu.memory_space<vmem>>, vector<16x16x128xbf16>
    tpu.vector_store %arg16[%c1, %c1_11, %c0_12], %16 {strides = array<i32>} : memref<18x18x128xbf16, #tpu.memory_space<vmem>>, vector<16x16x128xbf16>,
    %c0_13 = arith.constant 0 : index
    %c0_14 = arith.constant 0 : index
    %c0_15 = arith.constant 0 : index
    %18 = vector.load %arg16[%c0_13, %c0_14, %c0_15] : memref<18x18x128xbf16, #tpu.memory_space<vmem>>, vector<18x16x128xbf16>
    %c0_16 = arith.constant 0 : index
    %c1_17 = arith.constant 1 : index
    %c0_18 = arith.constant 0 : index
    %19 = vector.load %arg16[%c0_16, %c1_17, %c0_18] : memref<18x18x128xbf16, #tpu.memory_space<vmem>>, vector<18x16x128xbf16>
    %c0_19 = arith.constant 0 : index
    %c2 = arith.constant 2 : index
    %c0_20 = arith.constant 0 : index
    %20 = vector.load %arg16[%c0_19, %c2, %c0_20] : memref<18x18x128xbf16, #tpu.memory_space<vmem>>, vector<18x16x128xbf16>
    %21 = tpu.concatenate %18, %19, %20 in 2 : vector<18x16x128xbf16>, vector<18x16x128xbf16>, vector<18x16x128xbf16> -> vector<18x16x384xbf16>
    %22 = vector.extract_strided_slice %21 {offsets = [0, 0, 0], sizes = [16, 16, 384], strides = [1, 1, 1]} : vector<18x16x384xbf16> to vector<16x16x384xbf16>
    %23 = vector.shape_cast %22 : vector<16x16x384xbf16> to vector<256x384xbf16>
    %c0_21 = arith.constant 0 : index
    %c0_22 = arith.constant 0 : index
    %c0_23 = arith.constant 0 : index
    %24 = vector.load %arg5[%c0_21, %c0_22, %c0_23] : memref<3x384x128xbf16, #tpu.memory_space<vmem>>, vector<1x384x128xbf16>
    %25 = vector.shape_cast %24 : vector<1x384x128xbf16> to vector<384x128xbf16>
    %cst_24 = arith.constant dense<0.000000e+00> : vector<256x128xf32>
    %26 = tpu.matmul %23, %25, %cst_24 {dimension_numbers = #tpu.dot_dimension_numbers<[1], [0], [0], [1], [0, 0, 1, 1], [], []>} : vector<256x384xbf16>, vector<384x128xbf16>, vector<256x128xf32> -> vector<256x128xf32>
    %27 = vector.extract_strided_slice %21 {offsets = [1, 0, 0], sizes = [16, 16, 384], strides = [1, 1, 1]} : vector<18x16x384xbf16> to vector<16x16x384xbf16>
    %28 = vector.shape_cast %27 : vector<16x16x384xbf16> to vector<256x384xbf16>
    %c1_25 = arith.constant 1 : index
    %c0_26 = arith.constant 0 : index
    %c0_27 = arith.constant 0 : index
    %29 = vector.load %arg5[%c1_25, %c0_26, %c0_27] : memref<3x384x128xbf16, #tpu.memory_space<vmem>>, vector<1x384x128xbf16>
    %30 = vector.shape_cast %29 : vector<1x384x128xbf16> to vector<384x128xbf16>
    %cst_28 = arith.constant dense<0.000000e+00> : vector<256x128xf32>
    %31 = tpu.matmul %28, %30, %cst_28 {dimension_numbers = #tpu.dot_dimension_numbers<[1], [0], [0], [1], [0, 0, 1, 1], [], []>} : vector<256x384xbf16>, vector<384x128xbf16>, vector<256x128xf32> -> vector<256x128xf32>
    %32 = arith.addf %26, %31 : vector<256x128xf32>
    %33 = vector.extract_strided_slice %21 {offsets = [2, 0, 0], sizes = [16, 16, 384], strides = [1, 1, 1]} : vector<18x16x384xbf16> to vector<16x16x384xbf16>
    %34 = vector.shape_cast %33 : vector<16x16x384xbf16> to vector<256x384xbf16>
    %c2_29 = arith.constant 2 : index
    %c0_30 = arith.constant 0 : index
    %c0_31 = arith.constant 0 : index
    %35 = vector.load %arg5[%c2_29, %c0_30, %c0_31] : memref<3x384x128xbf16, #tpu.memory_space<vmem>>, vector<1x384x128xbf16>
    %36 = vector.shape_cast %35 : vector<1x384x128xbf16> to vector<384x128xbf16>
    %cst_32 = arith.constant dense<0.000000e+00> : vector<256x128xf32>
    %37 = tpu.matmul %34, %36, %cst_32 {dimension_numbers = #tpu.dot_dimension_numbers<[1], [0], [0], [1], [0, 0, 1, 1], [], []>} : vector<256x384xbf16>, vector<384x128xbf16>, vector<256x128xf32> -> vector<256x128xf32>
    %38 = arith.addf %32, %37 : vector<256x128xf32>
    %c0_33 = arith.constant 0 : index
    %c0_34 = arith.constant 0 : index
    %39 = vector.load %arg6[%c0_33, %c0_34] : memref<1x128xf32, #tpu.memory_space<vmem>>, vector<1x128xf32>
    %40 = vector.broadcast %39 : vector<1x128xf32> to vector<256x128xf32>
    %41 = arith.addf %38, %40 : vector<256x128xf32>
    %42 = arith.negf %41 : vector<256x128xf32>
    %43 = math.exp %42 : vector<256x128xf32>
    %cst_35 = arith.constant 1.000000e+00 : f32
    %44 = vector.broadcast %cst_35 : f32 to vector<256x128xf32>
    %45 = arith.addf %44, %43 : vector<256x128xf32>
    %46 = arith.divf %44, %45 : vector<256x128xf32>
    %47 = arith.mulf %41, %46 : vector<256x128xf32>
    %48 = arith.truncf %47 : vector<256x128xf32> to vector<256x128xbf16>
    %c0_36 = arith.constant 0 : index
    %c0_37 = arith.constant 0 : index
    %49 = vector.load %arg7[%c0_36, %c0_37] : memref<128x128xbf16, #tpu.memory_space<vmem>>, vector<128x128xbf16>
    %cst_38 = arith.constant dense<0.000000e+00> : vector<256x128xf32>
    %50 = tpu.matmul %48, %49, %cst_38 {dimension_numbers = #tpu.dot_dimension_numbers<[1], [0], [0], [1], [0, 0, 1, 1], [], []>} : vector<256x128xbf16>, vector<128x128xbf16>, vector<256x128xf32> -> vector<256x128xf32>
    %c0_39 = arith.constant 0 : index
    %c0_40 = arith.constant 0 : index
    %51 = vector.load %arg8[%c0_39, %c0_40] : memref<1x128xf32, #tpu.memory_space<vmem>>, vector<1x128xf32>
    %52 = vector.broadcast %51 : vector<1x128xf32> to vector<256x128xf32>
    %53 = arith.addf %50, %52 : vector<256x128xf32>
    %54 = arith.addf %53, %12 : vector<256x128xf32>
    %55 = arith.truncf %54 : vector<256x128xf32> to vector<256x128xbf16>
    %56 = vector.shape_cast %55 : vector<256x128xbf16> to vector<16x16x128xbf16>
    %c1_41 = arith.constant 1 : index
    %c1_42 = arith.constant 1 : index
    %c0_43 = arith.constant 0 : index
    %57 = vector.load %arg16[%c1_41, %c1_42, %c0_43] : memref<18x18x128xbf16, #tpu.memory_space<vmem>>, vector<16x16x128xbf16>
    tpu.vector_store %arg16[%c1_41, %c1_42, %c0_43], %56 {strides = array<i32>} : memref<18x18x128xbf16, #tpu.memory_space<vmem>>, vector<16x16x128xbf16>,
    %c0_44 = arith.constant 0 : index
    %c0_45 = arith.constant 0 : index
    %c0_46 = arith.constant 0 : index
    %58 = vector.load %arg16[%c0_44, %c0_45, %c0_46] : memref<18x18x128xbf16, #tpu.memory_space<vmem>>, vector<18x16x128xbf16>
    %c0_47 = arith.constant 0 : index
    %c1_48 = arith.constant 1 : index
    %c0_49 = arith.constant 0 : index
    %59 = vector.load %arg16[%c0_47, %c1_48, %c0_49] : memref<18x18x128xbf16, #tpu.memory_space<vmem>>, vector<18x16x128xbf16>
    %c0_50 = arith.constant 0 : index
    %c2_51 = arith.constant 2 : index
    %c0_52 = arith.constant 0 : index
    %60 = vector.load %arg16[%c0_50, %c2_51, %c0_52] : memref<18x18x128xbf16, #tpu.memory_space<vmem>>, vector<18x16x128xbf16>
    %61 = tpu.concatenate %58, %59, %60 in 2 : vector<18x16x128xbf16>, vector<18x16x128xbf16>, vector<18x16x128xbf16> -> vector<18x16x384xbf16>
    %62 = vector.extract_strided_slice %61 {offsets = [0, 0, 0], sizes = [16, 16, 384], strides = [1, 1, 1]} : vector<18x16x384xbf16> to vector<16x16x384xbf16>
    %63 = vector.shape_cast %62 : vector<16x16x384xbf16> to vector<256x384xbf16>
    %c0_53 = arith.constant 0 : index
    %c0_54 = arith.constant 0 : index
    %c0_55 = arith.constant 0 : index
    %64 = vector.load %arg9[%c0_53, %c0_54, %c0_55] : memref<3x384x128xbf16, #tpu.memory_space<vmem>>, vector<1x384x128xbf16>
    %65 = vector.shape_cast %64 : vector<1x384x128xbf16> to vector<384x128xbf16>
    %cst_56 = arith.constant dense<0.000000e+00> : vector<256x128xf32>
    %66 = tpu.matmul %63, %65, %cst_56 {dimension_numbers = #tpu.dot_dimension_numbers<[1], [0], [0], [1], [0, 0, 1, 1], [], []>} : vector<256x384xbf16>, vector<384x128xbf16>, vector<256x128xf32> -> vector<256x128xf32>
    %67 = vector.extract_strided_slice %61 {offsets = [1, 0, 0], sizes = [16, 16, 384], strides = [1, 1, 1]} : vector<18x16x384xbf16> to vector<16x16x384xbf16>
    %68 = vector.shape_cast %67 : vector<16x16x384xbf16> to vector<256x384xbf16>
    %c1_57 = arith.constant 1 : index
    %c0_58 = arith.constant 0 : index
    %c0_59 = arith.constant 0 : index
    %69 = vector.load %arg9[%c1_57, %c0_58, %c0_59] : memref<3x384x128xbf16, #tpu.memory_space<vmem>>, vector<1x384x128xbf16>
    %70 = vector.shape_cast %69 : vector<1x384x128xbf16> to vector<384x128xbf16>
    %cst_60 = arith.constant dense<0.000000e+00> : vector<256x128xf32>
    %71 = tpu.matmul %68, %70, %cst_60 {dimension_numbers = #tpu.dot_dimension_numbers<[1], [0], [0], [1], [0, 0, 1, 1], [], []>} : vector<256x384xbf16>, vector<384x128xbf16>, vector<256x128xf32> -> vector<256x128xf32>
    %72 = arith.addf %66, %71 : vector<256x128xf32>
    %73 = vector.extract_strided_slice %61 {offsets = [2, 0, 0], sizes = [16, 16, 384], strides = [1, 1, 1]} : vector<18x16x384xbf16> to vector<16x16x384xbf16>
    %74 = vector.shape_cast %73 : vector<16x16x384xbf16> to vector<256x384xbf16>
    %c2_61 = arith.constant 2 : index
    %c0_62 = arith.constant 0 : index
    %c0_63 = arith.constant 0 : index
    %75 = vector.load %arg9[%c2_61, %c0_62, %c0_63] : memref<3x384x128xbf16, #tpu.memory_space<vmem>>, vector<1x384x128xbf16>
    %76 = vector.shape_cast %75 : vector<1x384x128xbf16> to vector<384x128xbf16>
    %cst_64 = arith.constant dense<0.000000e+00> : vector<256x128xf32>
    %77 = tpu.matmul %74, %76, %cst_64 {dimension_numbers = #tpu.dot_dimension_numbers<[1], [0], [0], [1], [0, 0, 1, 1], [], []>} : vector<256x384xbf16>, vector<384x128xbf16>, vector<256x128xf32> -> vector<256x128xf32>
    %78 = arith.addf %72, %77 : vector<256x128xf32>
    %c0_65 = arith.constant 0 : index
    %c0_66 = arith.constant 0 : index
    %79 = vector.load %arg10[%c0_65, %c0_66] : memref<1x128xf32, #tpu.memory_space<vmem>>, vector<1x128xf32>
    %80 = vector.broadcast %79 : vector<1x128xf32> to vector<256x128xf32>
    %81 = arith.addf %78, %80 : vector<256x128xf32>
    %82 = arith.negf %81 : vector<256x128xf32>
    %83 = math.exp %82 : vector<256x128xf32>
    %cst_67 = arith.constant 1.000000e+00 : f32
    %84 = vector.broadcast %cst_67 : f32 to vector<256x128xf32>
    %85 = arith.addf %84, %83 : vector<256x128xf32>
    %86 = arith.divf %84, %85 : vector<256x128xf32>
    %87 = arith.mulf %81, %86 : vector<256x128xf32>
    %c0_68 = arith.constant 0 : index
    %c0_69 = arith.constant 0 : index
    %88 = vector.load %arg2[%c0_68, %c0_69] : memref<64x256xbf16, #tpu.memory_space<vmem>>, vector<64x256xbf16>
    %89 = arith.truncf %87 : vector<256x128xf32> to vector<256x128xbf16>
    %cst_70 = arith.constant dense<0.000000e+00> : vector<64x128xf32>
    %90 = tpu.matmul %88, %89, %cst_70 {dimension_numbers = #tpu.dot_dimension_numbers<[1], [0], [0], [1], [0, 0, 1, 1], [], []>} : vector<64x256xbf16>, vector<256x128xbf16>, vector<64x128xf32> -> vector<64x128xf32>
    %91 = arith.truncf %90 : vector<64x128xf32> to vector<64x128xbf16>
    %c0_71 = arith.constant 0 : index
    %c0_72 = arith.constant 0 : index
    %92 = vector.load %arg11[%c0_71, %c0_72] : memref<128x128xbf16, #tpu.memory_space<vmem>>, vector<128x128xbf16>
    %cst_73 = arith.constant dense<0.000000e+00> : vector<64x128xf32>
    %93 = tpu.matmul %91, %92, %cst_73 {dimension_numbers = #tpu.dot_dimension_numbers<[1], [0], [0], [1], [0, 0, 1, 1], [], []>} : vector<64x128xbf16>, vector<128x128xbf16>, vector<64x128xf32> -> vector<64x128xf32>
    %c0_74 = arith.constant 0 : index
    %c0_75 = arith.constant 0 : index
    %94 = vector.load %arg12[%c0_74, %c0_75] : memref<1x128xf32, #tpu.memory_space<vmem>>, vector<1x128xf32>
    %95 = vector.broadcast %94 : vector<1x128xf32> to vector<64x128xf32>
    %96 = arith.addf %93, %95 : vector<64x128xf32>
    %97 = arith.truncf %96 : vector<64x128xf32> to vector<64x128xbf16>
    %c0_76 = arith.constant 0 : index
    %c0_77 = arith.constant 0 : index
    %98 = vector.load %arg13[%c0_76, %c0_77] : memref<128x128xbf16, #tpu.memory_space<vmem>>, vector<128x128xbf16>
    %cst_78 = arith.constant dense<0.000000e+00> : vector<64x128xf32>
    %99 = tpu.matmul %97, %98, %cst_78 {dimension_numbers = #tpu.dot_dimension_numbers<[1], [0], [0], [1], [0, 0, 1, 1], [], []>} : vector<64x128xbf16>, vector<128x128xbf16>, vector<64x128xf32> -> vector<64x128xf32>
    %c0_79 = arith.constant 0 : index
    %c0_80 = arith.constant 0 : index
    %100 = vector.load %arg14[%c0_79, %c0_80] : memref<1x128xf32, #tpu.memory_space<vmem>>, vector<1x128xf32>
    %101 = vector.broadcast %100 : vector<1x128xf32> to vector<64x128xf32>
    %102 = arith.addf %99, %101 : vector<64x128xf32>
    %103 = arith.negf %102 : vector<64x128xf32>
    %104 = math.exp %103 : vector<64x128xf32>
    %cst_81 = arith.constant 1.000000e+00 : f32
    %105 = vector.broadcast %cst_81 : f32 to vector<64x128xf32>
    %106 = arith.addf %105, %104 : vector<64x128xf32>
    %107 = arith.divf %105, %106 : vector<64x128xf32>
    %108 = arith.mulf %102, %107 : vector<64x128xf32>
    %109 = vector.shape_cast %108 : vector<64x128xf32> to vector<8x8x128xf32>
    %c0_82 = arith.constant 0 : index
    %c0_83 = arith.constant 0 : index
    %c0_84 = arith.constant 0 : index
    %c0_85 = arith.constant 0 : index
    %110 = vector.load %arg15[%c0_82, %c0_83, %c0_84, %c0_85] : memref<1x8x8x128xf32, #tpu.memory_space<vmem>>, vector<1x8x8x128xf32>
    %111 = vector.shape_cast %110 : vector<1x8x8x128xf32> to vector<8x8x128xf32>
    %112 = vector.shape_cast %109 : vector<8x8x128xf32> to vector<1x8x8x128xf32>
    tpu.vector_store %arg15[%c0_82, %c0_83, %c0_84, %c0_85], %112 {strides = array<i32>} : memref<1x8x8x128xf32, #tpu.memory_space<vmem>>, vector<1x8x8x128xf32>,
    return
  }
  func.func @transform_0(%arg0: i32) -> (i32, i32, i32) {
    %c0_i32 = arith.constant 0 : i32
    %c0_i32_0 = arith.constant 0 : i32
    %c0_i32_1 = arith.constant 0 : i32
    return %arg0, %c0_i32, %c0_i32_0 : i32, i32, i32
  }
  func.func @transform_1(%arg0: i32) -> (i32, i32) {
    %c0_i32 = arith.constant 0 : i32
    %c0_i32_0 = arith.constant 0 : i32
    %c0_i32_1 = arith.constant 0 : i32
    return %c0_i32, %c0_i32_0 : i32, i32
  }
  func.func @transform_2(%arg0: i32) -> (i32, i32) {
    %c0_i32 = arith.constant 0 : i32
    %c0_i32_0 = arith.constant 0 : i32
    %c0_i32_1 = arith.constant 0 : i32
    return %c0_i32, %c0_i32_0 : i32, i32
  }
  func.func @transform_3(%arg0: i32) -> (i32, i32) {
    %c0_i32 = arith.constant 0 : i32
    %c0_i32_0 = arith.constant 0 : i32
    %c0_i32_1 = arith.constant 0 : i32
    return %c0_i32, %c0_i32_0 : i32, i32
  }
  func.func @transform_4(%arg0: i32) -> (i32, i32, i32) {
    %c0_i32 = arith.constant 0 : i32
    %c0_i32_0 = arith.constant 0 : i32
    %c0_i32_1 = arith.constant 0 : i32
    %c0_i32_2 = arith.constant 0 : i32
    return %c0_i32, %c0_i32_0, %c0_i32_1 : i32, i32, i32
  }
  func.func @transform_5(%arg0: i32) -> (i32, i32) {
    %c0_i32 = arith.constant 0 : i32
    %c0_i32_0 = arith.constant 0 : i32
    %c0_i32_1 = arith.constant 0 : i32
    return %c0_i32, %c0_i32_0 : i32, i32
  }
  func.func @transform_6(%arg0: i32) -> (i32, i32) {
    %c0_i32 = arith.constant 0 : i32
    %c0_i32_0 = arith.constant 0 : i32
    %c0_i32_1 = arith.constant 0 : i32
    return %c0_i32, %c0_i32_0 : i32, i32
  }
  func.func @transform_7(%arg0: i32) -> (i32, i32) {
    %c0_i32 = arith.constant 0 : i32
    %c0_i32_0 = arith.constant 0 : i32
    %c0_i32_1 = arith.constant 0 : i32
    return %c0_i32, %c0_i32_0 : i32, i32
  }
  func.func @transform_8(%arg0: i32) -> (i32, i32, i32) {
    %c0_i32 = arith.constant 0 : i32
    %c0_i32_0 = arith.constant 0 : i32
    %c0_i32_1 = arith.constant 0 : i32
    %c0_i32_2 = arith.constant 0 : i32
    return %c0_i32, %c0_i32_0, %c0_i32_1 : i32, i32, i32
  }
  func.func @transform_9(%arg0: i32) -> (i32, i32) {
    %c0_i32 = arith.constant 0 : i32
    %c0_i32_0 = arith.constant 0 : i32
    %c0_i32_1 = arith.constant 0 : i32
    return %c0_i32, %c0_i32_0 : i32, i32
  }
  func.func @transform_10(%arg0: i32) -> (i32, i32) {
    %c0_i32 = arith.constant 0 : i32
    %c0_i32_0 = arith.constant 0 : i32
    %c0_i32_1 = arith.constant 0 : i32
    return %c0_i32, %c0_i32_0 : i32, i32
  }
  func.func @transform_11(%arg0: i32) -> (i32, i32) {
    %c0_i32 = arith.constant 0 : i32
    %c0_i32_0 = arith.constant 0 : i32
    %c0_i32_1 = arith.constant 0 : i32
    return %c0_i32, %c0_i32_0 : i32, i32
  }
  func.func @transform_12(%arg0: i32) -> (i32, i32) {
    %c0_i32 = arith.constant 0 : i32
    %c0_i32_0 = arith.constant 0 : i32
    %c0_i32_1 = arith.constant 0 : i32
    return %c0_i32, %c0_i32_0 : i32, i32
  }
  func.func @transform_13(%arg0: i32) -> (i32, i32) {
    %c0_i32 = arith.constant 0 : i32
    %c0_i32_0 = arith.constant 0 : i32
    %c0_i32_1 = arith.constant 0 : i32
    return %c0_i32, %c0_i32_0 : i32, i32
  }
  func.func @transform_14(%arg0: i32) -> (i32, i32, i32, i32) {
    %c0_i32 = arith.constant 0 : i32
    %c0_i32_0 = arith.constant 0 : i32
    %c0_i32_1 = arith.constant 0 : i32
    %c0_i32_2 = arith.constant 0 : i32
    return %arg0, %c0_i32, %c0_i32_0, %c0_i32_1 : i32, i32, i32, i32
  }
}

</mosaic_0001>

<llo_original>
// kernel: timm_wrapper_forward.1
$region0: #{timm_wrapper_forward.1}
  #allocation0 [shape = 'u32[]', space=smem, size = 0x4, offset = 0x4, fixed_abs, tag = 'smem constant byte address 0x4 - core index']
  #allocation1 [shape = 'u32[144,128]{1,0:T(1,128)}', space=vmem, size = 0x12000, scoped, tag = 'internal scratch']
  #allocation2 [shape = 'bf16[18,18,128]{2,1,0:T(8,128)(2,1)}', space=vmem, size = 0x1b000, scoped, tag = 'scratch operand']
  %s0 = inlined_call_operand.vmem [shape: bf16[2,256,128], index: 0, kind: input, shape index: {}]
  %s1 = inlined_call_operand.vmem [shape: bf16[64,256], index: 1, kind: input, shape index: {}]
  %s2 = inlined_call_operand.vmem [shape: bf16[128,128], index: 2, kind: input, shape index: {}]
  %s3 = inlined_call_operand.vmem [shape: f32[1,128], index: 3, kind: input, shape index: {}]
  %s4 = inlined_call_operand.vmem [shape: bf16[3,384,128], index: 4, kind: input, shape index: {}]
  %s5 = inlined_call_operand.vmem [shape: f32[1,128], index: 5, kind: input, shape index: {}]
  %s6 = inlined_call_operand.vmem [shape: bf16[128,128], index: 6, kind: input, shape index: {}]
  %s7 = inlined_call_operand.vmem [shape: f32[1,128], index: 7, kind: input, shape index: {}]
  %s8 = inlined_call_operand.vmem [shape: bf16[3,384,128], index: 8, kind: input, shape index: {}]
  %s9 = inlined_call_operand.vmem [shape: f32[1,128], index: 9, kind: input, shape index: {}]
  %s10 = inlined_call_operand.vmem [shape: bf16[128,128], index: 10, kind: input, shape index: {}]
  %s11 = inlined_call_operand.vmem [shape: f32[1,128], index: 11, kind: input, shape index: {}]
  %s12 = inlined_call_operand.vmem [shape: bf16[128,128], index: 12, kind: input, shape index: {}]
  %s13 = inlined_call_operand.vmem [shape: f32[1,128], index: 13, kind: input, shape index: {}]
  %s14 = inlined_call_operand.vmem [shape: f32[2,8,8,128], index: 14, kind: output, shape index: {}]
  %s15 = sld [smem:[#allocation0]]
  $region89: #{timm_wrapper_forward.1} parent=0
    _
  %s17 = ssub.s32 1, %s15
  %s18 = scalar_select 0, %s17, %s15
  loop: start=0, step=1, limit=4
  $region2: #{timm_wrapper_forward.1} parent=0 // loop_pre_header
    _
  $region3: #{timm_wrapper_forward.1} parent=0 // loop_header
    %s20 = sphi 0, %s24
    %p21 = scmp.ge.s32.totalorder %s20, 4
    %s30 = sphi 0, %s32
    %s33 = sphi 0, %s30
    %s34 = sphi 0, %s33
    %s50 = sphi 0, %s34
    %s54 = sphi 0, %s54
    %s56 = sphi 0, %s54
    %s57 = sphi 0, %s56
    %s71 = sphi 0, %s57
    %s75 = sphi 0, %s75
    %s77 = sphi 0, %s75
    %s78 = sphi 0, %s77
    %s92 = sphi 0, %s78
    %s96 = sphi 0, %s96
    %s98 = sphi 0, %s96
    %s99 = sphi 0, %s98
    %s113 = sphi 0, %s99
    %s117 = sphi 0, %s117
    %s119 = sphi 0, %s117
    %s120 = sphi 0, %s119
    %s134 = sphi 0, %s120
    %s138 = sphi 0, %s138
    %s140 = sphi 0, %s138
    %s141 = sphi 0, %s140
    %s155 = sphi 0, %s141
    %s159 = sphi 0, %s159
    %s161 = sphi 0, %s159
    %s162 = sphi 0, %s161
    %s176 = sphi 0, %s162
    %s180 = sphi 0, %s180
    %s182 = sphi 0, %s180
    %s183 = sphi 0, %s182
    %s197 = sphi 0, %s183
    %s201 = sphi 0, %s201
    %s203 = sphi 0, %s201
    %s204 = sphi 0, %s203
    %s218 = sphi 0, %s204
    %s222 = sphi 0, %s222
    %s224 = sphi 0, %s222
    %s225 = sphi 0, %s224
    %s239 = sphi 0, %s225
    %s243 = sphi 0, %s243
    %s245 = sphi 0, %s243
    %s246 = sphi 0, %s245
    %s260 = sphi 0, %s246
    %s264 = sphi 0, %s264
    %s266 = sphi 0, %s264
    %s267 = sphi 0, %s266
    %s281 = sphi 0, %s267
    %s285 = sphi 0, %s285
    %s287 = sphi 0, %s285
    %s288 = sphi 0, %s287
    %s302 = sphi 0, %s288
    %s306 = sphi 0, %s306
    %s308 = sphi 0, %s306
    %s309 = sphi 0, %s308
    %s323 = sphi 0, %s309
    %s329 = sphi 0, %s331
    %s332 = sphi 0, %s329
    %s333 = sphi 0, %s332
    %s349 = sphi 0, %s333
  $region4: #{timm_wrapper_forward.1} parent=0 // loop_header_branch
    %23 = sbr.rel (%p21) target = $region8
  $region5: #{timm_wrapper_forward.1} parent=0 // loop_body
    %s25 = ssub.s32 %s20, 1
    %s26 = ssub.s32 %s20, 2
    %s27 = sadd.s32 %s20, 1
    %s28 = ssub.s32 %s20, %s27
    %p29 = scmp.eq.s32.totalorder %s28, 0
    %s31 = sadd.s32 %s30, 1
    %s32 = scalar_select %p29, %s30, %s31
    %p35 = pneg %p29
    %p36 = scmp.eq.s32.totalorder %s20, 1
    %p37 = por %p35, %p36
    %p38 = scmp.ne.s32.totalorder %s30, %s33
    %p39 = scmp.eq.s32.totalorder %s20, 0
    %p40 = por %p38, %p39
    %p41 = scmp.ne.s32.totalorder %s30, %s33
    %p42 = scmp.eq.s32.totalorder %s25, 1
    %p43 = por %p41, %p42
    %p44 = scmp.ne.s32.totalorder %s33, %s34
    %p45 = scmp.eq.s32.totalorder %s25, 0
    %p46 = por %p44, %p45
    %p47 = scmp.ne.s32.totalorder %s33, %s34
    %p48 = scmp.eq.s32.totalorder %s26, 1
    %p49 = por %p47, %p48
    %p51 = scmp.ne.s32.totalorder %s34, %s50
    %p52 = scmp.eq.s32.totalorder %s26, 0
    %p53 = por %p51, %p52
    %s55 = sadd.s32 %s54, 1
    %p58 = scmp.eq.s32.totalorder %s20, 1
    %p59 = scmp.ne.s32.totalorder %s54, %s56
    %p60 = scmp.eq.s32.totalorder %s20, 0
    %p61 = por %p59, %p60
    %p62 = scmp.ne.s32.totalorder %s54, %s56
    %p63 = scmp.eq.s32.totalorder %s25, 1
    %p64 = por %p62, %p63
    %p65 = scmp.ne.s32.totalorder %s56, %s57
    %p66 = scmp.eq.s32.totalorder %s25, 0
    %p67 = por %p65, %p66
    %p68 = scmp.ne.s32.totalorder %s56, %s57
    %p69 = scmp.eq.s32.totalorder %s26, 1
    %p70 = por %p68, %p69
    %p72 = scmp.ne.s32.totalorder %s57, %s71
    %p73 = scmp.eq.s32.totalorder %s26, 0
    %p74 = por %p72, %p73
    %s76 = sadd.s32 %s75, 1
    %p79 = scmp.eq.s32.totalorder %s20, 1
    %p80 = scmp.ne.s32.totalorder %s75, %s77
    %p81 = scmp.eq.s32.totalorder %s20, 0
    %p82 = por %p80, %p81
    %p83 = scmp.ne.s32.totalorder %s75, %s77
    %p84 = scmp.eq.s32.totalorder %s25, 1
    %p85 = por %p83, %p84
    %p86 = scmp.ne.s32.totalorder %s77, %s78
    %p87 = scmp.eq.s32.totalorder %s25, 0
    %p88 = por %p86, %p87
    %p89 = scmp.ne.s32.totalorder %s77, %s78
    %p90 = scmp.eq.s32.totalorder %s26, 1
    %p91 = por %p89, %p90
    %p93 = scmp.ne.s32.totalorder %s78, %s92
    %p94 = scmp.eq.s32.totalorder %s26, 0
    %p95 = por %p93, %p94
    %s97 = sadd.s32 %s96, 1
    %p100 = scmp.eq.s32.totalorder %s20, 1
    %p101 = scmp.ne.s32.totalorder %s96, %s98
    %p102 = scmp.eq.s32.totalorder %s20, 0
    %p103 = por %p101, %p102
    %p104 = scmp.ne.s32.totalorder %s96, %s98
    %p105 = scmp.eq.s32.totalorder %s25, 1
    %p106 = por %p104, %p105
    %p107 = scmp.ne.s32.totalorder %s98, %s99
    %p108 = scmp.eq.s32.totalorder %s25, 0
    %p109 = por %p107, %p108
    %p110 = scmp.ne.s32.totalorder %s98, %s99
    %p111 = scmp.eq.s32.totalorder %s26, 1
    %p112 = por %p110, %p111
    %p114 = scmp.ne.s32.totalorder %s99, %s113
    %p115 = scmp.eq.s32.totalorder %s26, 0
    %p116 = por %p114, %p115
    %s118 = sadd.s32 %s117, 1
    %p121 = scmp.eq.s32.totalorder %s20, 1
    %p122 = scmp.ne.s32.totalorder %s117, %s119
    %p123 = scmp.eq.s32.totalorder %s20, 0
    %p124 = por %p122, %p123
    %p125 = scmp.ne.s32.totalorder %s117, %s119
    %p126 = scmp.eq.s32.totalorder %s25, 1
    %p127 = por %p125, %p126
    %p128 = scmp.ne.s32.totalorder %s119, %s120
    %p129 = scmp.eq.s32.totalorder %s25, 0
    %p130 = por %p128, %p129
    %p131 = scmp.ne.s32.totalorder %s119, %s120
    %p132 = scmp.eq.s32.totalorder %s26, 1
    %p133 = por %p131, %p132
    %p135 = scmp.ne.s32.totalorder %s120, %s134
    %p136 = scmp.eq.s32.totalorder %s26, 0
    %p137 = por %p135, %p136
    %s139 = sadd.s32 %s138, 1
    %p142 = scmp.eq.s32.totalorder %s20, 1
    %p143 = scmp.ne.s32.totalorder %s138, %s140
    %p144 = scmp.eq.s32.totalorder %s20, 0
    %p145 = por %p143, %p144
    %p146 = scmp.ne.s32.totalorder %s138, %s140
    %p147 = scmp.eq.s32.totalorder %s25, 1
    %p148 = por %p146, %p147
    %p149 = scmp.ne.s32.totalorder %s140, %s141
    %p150 = scmp.eq.s32.totalorder %s25, 0
    %p151 = por %p149, %p150
    %p152 = scmp.ne.s32.totalorder %s140, %s141
    %p153 = scmp.eq.s32.totalorder %s26, 1
    %p154 = por %p152, %p153
    %p156 = scmp.ne.s32.totalorder %s141, %s155
    %p157 = scmp.eq.s32.totalorder %s26, 0
    %p158 = por %p156, %p157
    %s160 = sadd.s32 %s159, 1
    %p163 = scmp.eq.s32.totalorder %s20, 1
    %p164 = scmp.ne.s32.totalorder %s159, %s161
    %p165 = scmp.eq.s32.totalorder %s20, 0
    %p166 = por %p164, %p165
    %p167 = scmp.ne.s32.totalorder %s159, %s161
    %p168 = scmp.eq.s32.totalorder %s25, 1
    %p169 = por %p167, %p168
    %p170 = scmp.ne.s32.totalorder %s161, %s162
    %p171 = scmp.eq.s32.totalorder %s25, 0
    %p172 = por %p170, %p171
    %p173 = scmp.ne.s32.totalorder %s161, %s162
    %p174 = scmp.eq.s32.totalorder %s26, 1
    %p175 = por %p173, %p174
    %p177 = scmp.ne.s32.totalorder %s162, %s176
    %p178 = scmp.eq.s32.totalorder %s26, 0
    %p179 = por %p177, %p178
    %s181 = sadd.s32 %s180, 1
    %p184 = scmp.eq.s32.totalorder %s20, 1
    %p185 = scmp.ne.s32.totalorder %s180, %s182
    %p186 = scmp.eq.s32.totalorder %s20, 0
    %p187 = por %p185, %p186
    %p188 = scmp.ne.s32.totalorder %s180, %s182
    %p189 = scmp.eq.s32.totalorder %s25, 1
    %p190 = por %p188, %p189
    %p191 = scmp.ne.s32.totalorder %s182, %s183
    %p192 = scmp.eq.s32.totalorder %s25, 0
    %p193 = por %p191, %p192
    %p194 = scmp.ne.s32.totalorder %s182, %s183
    %p195 = scmp.eq.s32.totalorder %s26, 1
    %p196 = por %p194, %p195
    %p198 = scmp.ne.s32.totalorder %s183, %s197
    %p199 = scmp.eq.s32.totalorder %s26, 0
    %p200 = por %p198, %p199
    %s202 = sadd.s32 %s201, 1
    %p205 = scmp.eq.s32.totalorder %s20, 1
    %p206 = scmp.ne.s32.totalorder %s201, %s203
    %p207 = scmp.eq.s32.totalorder %s20, 0
    %p208 = por %p206, %p207
    %p209 = scmp.ne.s32.totalorder %s201, %s203
    %p210 = scmp.eq.s32.totalorder %s25, 1
    %p211 = por %p209, %p210
    %p212 = scmp.ne.s32.totalorder %s203, %s204
    %p213 = scmp.eq.s32.totalorder %s25, 0
    %p214 = por %p212, %p213
    %p215 = scmp.ne.s32.totalorder %s203, %s204
    %p216 = scmp.eq.s32.totalorder %s26, 1
    %p217 = por %p215, %p216
    %p219 = scmp.ne.s32.totalorder %s204, %s218
    %p220 = scmp.eq.s32.totalorder %s26, 0
    %p221 = por %p219, %p220
    %s223 = sadd.s32 %s222, 1
    %p226 = scmp.eq.s32.totalorder %s20, 1
    %p227 = scmp.ne.s32.totalorder %s222, %s224
    %p228 = scmp.eq.s32.totalorder %s20, 0
    %p229 = por %p227, %p228
    %p230 = scmp.ne.s32.totalorder %s222, %s224
    %p231 = scmp.eq.s32.totalorder %s25, 1
    %p232 = por %p230, %p231
    %p233 = scmp.ne.s32.totalorder %s224, %s225
    %p234 = scmp.eq.s32.totalorder %s25, 0
    %p235 = por %p233, %p234
    %p236 = scmp.ne.s32.totalorder %s224, %s225
    %p237 = scmp.eq.s32.totalorder %s26, 1
    %p238 = por %p236, %p237
    %p240 = scmp.ne.s32.totalorder %s225, %s239
    %p241 = scmp.eq.s32.totalorder %s26, 0
    %p242 = por %p240, %p241
    %s244 = sadd.s32 %s243, 1
    %p247 = scmp.eq.s32.totalorder %s20, 1
    %p248 = scmp.ne.s32.totalorder %s243, %s245
    %p249 = scmp.eq.s32.totalorder %s20, 0
    %p250 = por %p248, %p249
    %p251 = scmp.ne.s32.totalorder %s243, %s245
    %p252 = scmp.eq.s32.totalorder %s25, 1
    %p253 = por %p251, %p252
    %p254 = scmp.ne.s32.totalorder %s245, %s246
    %p255 = scmp.eq.s32.totalorder %s25, 0
    %p256 = por %p254, %p255
    %p257 = scmp.ne.s32.totalorder %s245, %s246
    %p258 = scmp.eq.s32.totalorder %s26, 1
    %p259 = por %p257, %p258
    %p261 = scmp.ne.s32.totalorder %s246, %s260
    %p262 = scmp.eq.s32.totalorder %s26, 0
    %p263 = por %p261, %p262
    %s265 = sadd.s32 %s264, 1
    %p268 = scmp.eq.s32.totalorder %s20, 1
    %p269 = scmp.ne.s32.totalorder %s264, %s266
    %p270 = scmp.eq.s32.totalorder %s20, 0
    %p271 = por %p269, %p270
    %p272 = scmp.ne.s32.totalorder %s264, %s266
    %p273 = scmp.eq.s32.totalorder %s25, 1
    %p274 = por %p272, %p273
    %p275 = scmp.ne.s32.totalorder %s266, %s267
    %p276 = scmp.eq.s32.totalorder %s25, 0
    %p277 = por %p275, %p276
    %p278 = scmp.ne.s32.totalorder %s266, %s267
    %p279 = scmp.eq.s32.totalorder %s26, 1
    %p280 = por %p278, %p279
    %p282 = scmp.ne.s32.totalorder %s267, %s281
    %p283 = scmp.eq.s32.totalorder %s26, 0
    %p284 = por %p282, %p283
    %s286 = sadd.s32 %s285, 1
    %p289 = scmp.eq.s32.totalorder %s20, 1
    %p290 = scmp.ne.s32.totalorder %s285, %s287
    %p291 = scmp.eq.s32.totalorder %s20, 0
    %p292 = por %p290, %p291
    %p293 = scmp.ne.s32.totalorder %s285, %s287
    %p294 = scmp.eq.s32.totalorder %s25, 1
    %p295 = por %p293, %p294
    %p296 = scmp.ne.s32.totalorder %s287, %s288
    %p297 = scmp.eq.s32.totalorder %s25, 0
    %p298 = por %p296, %p297
    %p299 = scmp.ne.s32.totalorder %s287, %s288
    %p300 = scmp.eq.s32.totalorder %s26, 1
    %p301 = por %p299, %p300
    %p303 = scmp.ne.s32.totalorder %s288, %s302
    %p304 = scmp.eq.s32.totalorder %s26, 0
    %p305 = por %p303, %p304
    %s307 = sadd.s32 %s306, 1
    %p310 = scmp.eq.s32.totalorder %s20, 1
    %p311 = scmp.ne.s32.totalorder %s306, %s308
    %p312 = scmp.eq.s32.totalorder %s20, 0
    %p313 = por %p311, %p312
    %p314 = scmp.ne.s32.totalorder %s306, %s308
    %p315 = scmp.eq.s32.totalorder %s25, 1
    %p316 = por %p314, %p315
    %p317 = scmp.ne.s32.totalorder %s308, %s309
    %p318 = scmp.eq.s32.totalorder %s25, 0
    %p319 = por %p317, %p318
    %p320 = scmp.ne.s32.totalorder %s308, %s309
    %p321 = scmp.eq.s32.totalorder %s26, 1
    %p322 = por %p320, %p321
    %p324 = scmp.ne.s32.totalorder %s309, %s323
    %p325 = scmp.eq.s32.totalorder %s26, 0
    %p326 = por %p324, %p325
    %s327 = ssub.s32 %s20, %s27
    %p328 = scmp.eq.s32.totalorder %s327, 0
    %s330 = sadd.s32 %s329, 1
    %s331 = scalar_select %p328, %s329, %s330
    %p334 = pneg %p328
    %p335 = scmp.eq.s32.totalorder %s20, 1
    %p336 = por %p334, %p335
    %p337 = scmp.ne.s32.totalorder %s329, %s332
    %p338 = scmp.eq.s32.totalorder %s20, 0
    %p339 = por %p337, %p338
    %p340 = scmp.ne.s32.totalorder %s329, %s332
    %p341 = scmp.eq.s32.totalorder %s25, 1
    %p342 = por %p340, %p341
    %p343 = scmp.ne.s32.totalorder %s332, %s333
    %p344 = scmp.eq.s32.totalorder %s25, 0
    %p345 = por %p343, %p344
    %p346 = scmp.ne.s32.totalorder %s332, %s333
    %p347 = scmp.eq.s32.totalorder %s26, 1
    %p348 = por %p346, %p347
    %p350 = scmp.ne.s32.totalorder %s333, %s349
    %p351 = scmp.eq.s32.totalorder %s26, 0
    %p352 = por %p350, %p351
    %p353 = scmp.le.s32.totalorder 1, %s20
    %p354 = scmp.lt.s32.totalorder %s20, 3
    %p355 = pnand %p353, %p354
    %p356 = pneg %p355
    // Predicated region
    $region9: #{timm_wrapper_forward.1} parent=5 // pred_check
      _
    $region10: #{timm_wrapper_forward.1} parent=5 // pred_check_branch
      %358 = sbr.rel (%p355) target = $region12
    $region11: #{timm_wrapper_forward.1} parent=5 // pred_region
      %s359 = ssub.s32 %s20, 1
      // Predicated region
      $region13: #{timm_wrapper_forward.1} parent=11 // pred_check
        %p360 = pneg %p67
      $region14: #{timm_wrapper_forward.1} parent=11 // pred_check_branch
        %362 = sbr.rel (%p360) target = $region16
      $region15: #{timm_wrapper_forward.1} parent=11 // pred_region
        _
      $region16: #{timm_wrapper_forward.1} parent=11 // pred_fallthru
        _
      // Predicated region
      $region17: #{timm_wrapper_forward.1} parent=11 // pred_check
        %p363 = pneg %p88
      $region18: #{timm_wrapper_forward.1} parent=11 // pred_check_branch
        %365 = sbr.rel (%p363) target = $region20
      $region19: #{timm_wrapper_forward.1} parent=11 // pred_region
        _
      $region20: #{timm_wrapper_forward.1} parent=11 // pred_fallthru
        _
      // Predicated region
      $region21: #{timm_wrapper_forward.1} parent=11 // pred_check
        %p366 = pneg %p109
      $region22: #{timm_wrapper_forward.1} parent=11 // pred_check_branch
        %368 = sbr.rel (%p366) target = $region24
      $region23: #{timm_wrapper_forward.1} parent=11 // pred_region
        _
      $region24: #{timm_wrapper_forward.1} parent=11 // pred_fallthru
        _
      // Predicated region
      $region25: #{timm_wrapper_forward.1} parent=11 // pred_check
        %p369 = pneg %p130
      $region26: #{timm_wrapper_forward.1} parent=11 // pred_check_branch
        %371 = sbr.rel (%p369) target = $region28
      $region27: #{timm_wrapper_forward.1} parent=11 // pred_region
        _
      $region28: #{timm_wrapper_forward.1} parent=11 // pred_fallthru
        _
      // Predicated region
      $region29: #{timm_wrapper_forward.1} parent=11 // pred_check
        %p372 = pneg %p151
      $region30: #{timm_wrapper_forward.1} parent=11 // pred_check_branch
        %374 = sbr.rel (%p372) target = $region32
      $region31: #{timm_wrapper_forward.1} parent=11 // pred_region
        _
      $region32: #{timm_wrapper_forward.1} parent=11 // pred_fallthru
        _
      // Predicated region
      $region33: #{timm_wrapper_forward.1} parent=11 // pred_check
        %p375 = pneg %p172
      $region34: #{timm_wrapper_forward.1} parent=11 // pred_check_branch
        %377 = sbr.rel (%p375) target = $region36
      $region35: #{timm_wrapper_forward.1} parent=11 // pred_region
        _
      $region36: #{timm_wrapper_forward.1} parent=11 // pred_fallthru
        _
      // Predicated region
      $region37: #{timm_wrapper_forward.1} parent=11 // pred_check
        %p378 = pneg %p193
      $region38: #{timm_wrapper_forward.1} parent=11 // pred_check_branch
        %380 = sbr.rel (%p378) target = $region40
      $region39: #{timm_wrapper_forward.1} parent=11 // pred_region
        _
      $region40: #{timm_wrapper_forward.1} parent=11 // pred_fallthru
        _
      // Predicated region
      $region41: #{timm_wrapper_forward.1} parent=11 // pred_check
        %p381 = pneg %p214
      $region42: #{timm_wrapper_forward.1} parent=11 // pred_check_branch
        %383 = sbr.rel (%p381) target = $region44
      $region43: #{timm_wrapper_forward.1} parent=11 // pred_region
        _
      $region44: #{timm_wrapper_forward.1} parent=11 // pred_fallthru
        _
      // Predicated region
      $region45: #{timm_wrapper_forward.1} parent=11 // pred_check
        %p384 = pneg %p235
      $region46: #{timm_wrapper_forward.1} parent=11 // pred_check_branch
        %386 = sbr.rel (%p384) target = $region48
      $region47: #{timm_wrapper_forward.1} parent=11 // pred_region
        _
      $region48: #{timm_wrapper_forward.1} parent=11 // pred_fallthru
        _
      // Predicated region
      $region49: #{timm_wrapper_forward.1} parent=11 // pred_check
        %p387 = pneg %p256
      $region50: #{timm_wrapper_forward.1} parent=11 // pred_check_branch
        %389 = sbr.rel (%p387) target = $region52
      $region51: #{timm_wrapper_forward.1} parent=11 // pred_region
        _
      $region52: #{timm_wrapper_forward.1} parent=11 // pred_fallthru
        _
      // Predicated region
      $region53: #{timm_wrapper_forward.1} parent=11 // pred_check
        %p390 = pneg %p277
      $region54: #{timm_wrapper_forward.1} parent=11 // pred_check_branch
        %392 = sbr.rel (%p390) target = $region56
      $region55: #{timm_wrapper_forward.1} parent=11 // pred_region
        _
      $region56: #{timm_wrapper_forward.1} parent=11 // pred_fallthru
        _
      // Predicated region
      $region57: #{timm_wrapper_forward.1} parent=11 // pred_check
        %p393 = pneg %p298
      $region58: #{timm_wrapper_forward.1} parent=11 // pred_check_branch
        %395 = sbr.rel (%p393) target = $region60
      $region59: #{timm_wrapper_forward.1} parent=11 // pred_region
        _
      $region60: #{timm_wrapper_forward.1} parent=11 // pred_fallthru
        _
      // Predicated region
      $region61: #{timm_wrapper_forward.1} parent=11 // pred_check
        %p396 = pneg %p319
      $region62: #{timm_wrapper_forward.1} parent=11 // pred_check_branch
        %398 = sbr.rel (%p396) target = $region64
      $region63: #{timm_wrapper_forward.1} parent=11 // pred_region
        _
      $region64: #{timm_wrapper_forward.1} parent=11 // pred_fallthru
        _
    $region12: #{timm_wrapper_forward.1} parent=5 // pred_fallthru
      _
    %p399 = scmp.lt.s32.totalorder %s20, 2
    // Predicated region
    $region65: #{timm_wrapper_forward.1} parent=5 // pred_check
      %p400 = pneg %p399
    $region66: #{timm_wrapper_forward.1} parent=5 // pred_check_branch
      %402 = sbr.rel (%p400) target = $region68
    $region67: #{timm_wrapper_forward.1} parent=5 // pred_region
      // Predicated region
      $region69: #{timm_wrapper_forward.1} parent=67 // pred_check
        %p403 = pneg %p40
      $region70: #{timm_wrapper_forward.1} parent=67 // pred_check_branch
        %405 = sbr.rel (%p403) target = $region72
      $region71: #{timm_wrapper_forward.1} parent=67 // pred_region
        %p406 = scmp.lt.s32.totalorder %s20, 1
        %s407 = scalar_select %p406, %s20, 1
        %s408 = smul.addr %s407, 32
        %s409 = smul.addr %s408, 4
        %s410 = scalar_lea.vmem %s0, %s409
      $region72: #{timm_wrapper_forward.1} parent=67 // pred_fallthru
        _
    $region68: #{timm_wrapper_forward.1} parent=5 // pred_fallthru
      _
    %p411 = scmp.le.s32.totalorder 1, %s20
    %p412 = scmp.lt.s32.totalorder %s20, 3
    %p413 = pnand %p411, %p412
    %p414 = pneg %p413
    // Predicated region
    $region73: #{timm_wrapper_forward.1} parent=5 // pred_check
      _
    $region74: #{timm_wrapper_forward.1} parent=5 // pred_check_branch
      %416 = sbr.rel (%p413) target = $region76
    $region75: #{timm_wrapper_forward.1} parent=5 // pred_region
      %s417 = ssub.s32 %s20, 1
      %p418 = scmp.lt.s32.totalorder %s25, 1
      %s419 = scalar_select %p418, %s25, 1
      %s420 = smul.addr %s419, 32
      %s421 = smul.addr %s420, 4
      %s422 = scalar_lea.vmem %s0, %s421
      %p423 = pneg %p46
      %p424 = pneg %p43
      %p425 = pneg %p67
      %p426 = pneg %p64
      %p427 = pneg %p88
      %p428 = pneg %p85
      %p429 = pneg %p109
      %p430 = pneg %p106
      %p431 = pneg %p130
      %p432 = pneg %p127
      %p433 = pneg %p151
      %p434 = pneg %p148
      %p435 = pneg %p172
      %p436 = pneg %p169
      %p437 = pneg %p193
      %p438 = pneg %p190
      %p439 = pneg %p214
      %p440 = pneg %p211
      %p441 = pneg %p235
      %p442 = pneg %p232
      %p443 = pneg %p256
      %p444 = pneg %p253
      %p445 = pneg %p277
      %p446 = pneg %p274
      %p447 = pneg %p298
      %p448 = pneg %p295
      %p449 = pneg %p319
      %p450 = pneg %p316
      %p451 = pneg %p345
      %p452 = pneg %p342
      %p453 = scmp.lt.s32.totalorder %s25, 1
      %s454 = scalar_select %p453, %s25, 1
      %s455 = smul.addr %s454, 8
      %s456 = smul.addr %s455, 8
      %s457 = scalar_lea.vmem %s14, %s456
      %p458 = scmp.lt.s32.totalorder %s25, 1
      %s459 = scalar_select %p458, %s25, 1
      %s460 = smul.addr %s459, 32
      %s461 = smul.addr %s460, 4
      %s462 = scalar_lea.vmem %s0, %s461
      %p463 = scmp.lt.s32.totalorder %s25, 1
      %s464 = scalar_select %p463, %s25, 1
      %s465 = smul.addr %s464, 8
      %s466 = smul.addr %s465, 8
      %s467 = scalar_lea.vmem %s14, %s466
      %v469 = vld [vmem:[%s462] sm:$0xf]
      %v470 = vld [vmem:[%s462 + $0x4] sm:$0xf]
      %v471 = vld [vmem:[%s462 + $0x8] sm:$0xf]
      %v472 = vld [vmem:[%s462 + $0xc] sm:$0xf]
      %v473 = vld [vmem:[%s462 + $0x10] sm:$0xf]
      %v474 = vld [vmem:[%s462 + $0x14] sm:$0xf]
      %v475 = vld [vmem:[%s462 + $0x18] sm:$0xf]
      %v476 = vld [vmem:[%s462 + $0x1c] sm:$0xf]
      %v477 = vld [vmem:[%s462 + $0x20] sm:$0xf]
      %v478 = vld [vmem:[%s462 + $0x24] sm:$0xf]
      %v479 = vld [vmem:[%s462 + $0x28] sm:$0xf]
      %v480 = vld [vmem:[%s462 + $0x2c] sm:$0xf]
      %v481 = vld [vmem:[%s462 + $0x30] sm:$0xf]
      %v482 = vld [vmem:[%s462 + $0x34] sm:$0xf]
      %v483 = vld [vmem:[%s462 + $0x38] sm:$0xf]
      %v484 = vld [vmem:[%s462 + $0x3c] sm:$0xf]
      %v485 = vld [vmem:[%s462 + $0x40] sm:$0xf]
      %v486 = vld [vmem:[%s462 + $0x44] sm:$0xf]
      %v487 = vld [vmem:[%s462 + $0x48] sm:$0xf]
      %v488 = vld [vmem:[%s462 + $0x4c] sm:$0xf]
      %v489 = vld [vmem:[%s462 + $0x50] sm:$0xf]
      %v490 = vld [vmem:[%s462 + $0x54] sm:$0xf]
      %v491 = vld [vmem:[%s462 + $0x58] sm:$0xf]
      %v492 = vld [vmem:[%s462 + $0x5c] sm:$0xf]
      %v493 = vld [vmem:[%s462 + $0x60] sm:$0xf]
      %v494 = vld [vmem:[%s462 + $0x64] sm:$0xf]
      %v495 = vld [vmem:[%s462 + $0x68] sm:$0xf]
      %v496 = vld [vmem:[%s462 + $0x6c] sm:$0xf]
      %v497 = vld [vmem:[%s462 + $0x70] sm:$0xf]
      %v498 = vld [vmem:[%s462 + $0x74] sm:$0xf]
      %v499 = vld [vmem:[%s462 + $0x78] sm:$0xf]
      %v500 = vld [vmem:[%s462 + $0x7c] sm:$0xf]
      %v501 = vld [vmem:[%s2] sm:$0xf]
      %v502 = vld [vmem:[%s2 + $0x4] sm:$0xf]
      %v503 = vld [vmem:[%s2 + $0x8] sm:$0xf]
      %v504 = vld [vmem:[%s2 + $0xc] sm:$0xf]
      %v505 = vld [vmem:[%s2 + $0x10] sm:$0xf]
      %v506 = vld [vmem:[%s2 + $0x14] sm:$0xf]
      %v507 = vld [vmem:[%s2 + $0x18] sm:$0xf]
      %v508 = vld [vmem:[%s2 + $0x1c] sm:$0xf]
      %v509 = vld [vmem:[%s2 + $0x20] sm:$0xf]
      %v510 = vld [vmem:[%s2 + $0x24] sm:$0xf]
      %v511 = vld [vmem:[%s2 + $0x28] sm:$0xf]
      %v512 = vld [vmem:[%s2 + $0x2c] sm:$0xf]
      %v513 = vld [vmem:[%s2 + $0x30] sm:$0xf]
      %v514 = vld [vmem:[%s2 + $0x34] sm:$0xf]
      %v515 = vld [vmem:[%s2 + $0x38] sm:$0xf]
      %v516 = vld [vmem:[%s2 + $0x3c] sm:$0xf]
      %v517 = vld [vmem:[%s3] sm:$0x1]
      %v519 = vlaneseq
      %v520 = vshrl.u32 %v519, 7
      %v521 = vsub.s32 0, %v520
      %v522 = vrot.slane %v517, %v521
      %v556 = vunpack.c.l.b16 %v469
      %v557 = vunpack.c.l.b16 %v470
      %v558 = vunpack.c.l.b16 %v471
      %v559 = vunpack.c.l.b16 %v472
      %v560 = vunpack.c.l.b16 %v473
      %v561 = vunpack.c.l.b16 %v474
      %v562 = vunpack.c.l.b16 %v475
      %v563 = vunpack.c.l.b16 %v476
      %v564 = vunpack.c.l.b16 %v477
      %v565 = vunpack.c.l.b16 %v478
      %v566 = vunpack.c.l.b16 %v479
      %v567 = vunpack.c.l.b16 %v480
      %v568 = vunpack.c.l.b16 %v481
      %v569 = vunpack.c.l.b16 %v482
      %v570 = vunpack.c.l.b16 %v483
      %v571 = vunpack.c.l.b16 %v484
      %v572 = vunpack.c.l.b16 %v485
      %v573 = vunpack.c.l.b16 %v486
      %v574 = vunpack.c.l.b16 %v487
      %v575 = vunpack.c.l.b16 %v488
      %v576 = vunpack.c.l.b16 %v489
      %v577 = vunpack.c.l.b16 %v490
      %v578 = vunpack.c.l.b16 %v491
      %v579 = vunpack.c.l.b16 %v492
      %v580 = vunpack.c.l.b16 %v493
      %v581 = vunpack.c.l.b16 %v494
      %v582 = vunpack.c.l.b16 %v495
      %v583 = vunpack.c.l.b16 %v496
      %v584 = vunpack.c.l.b16 %v497
      %v585 = vunpack.c.l.b16 %v498
      %v586 = vunpack.c.l.b16 %v499
      %v587 = vunpack.c.l.b16 %v500
      %v588 = vpack.c.b16 %v557, %v556
      %v589 = vpack.c.b16 %v559, %v558
      %v590 = vpack.c.b16 %v561, %v560
      %v591 = vpack.c.b16 %v563, %v562
      %v592 = vpack.c.b16 %v565, %v564
      %v593 = vpack.c.b16 %v567, %v566
      %v594 = vpack.c.b16 %v569, %v568
      %v595 = vpack.c.b16 %v571, %v570
      %v596 = vpack.c.b16 %v573, %v572
      %v597 = vpack.c.b16 %v575, %v574
      %v598 = vpack.c.b16 %v577, %v576
      %v599 = vpack.c.b16 %v579, %v578
      %v600 = vpack.c.b16 %v581, %v580
      %v601 = vpack.c.b16 %v583, %v582
      %v602 = vpack.c.b16 %v585, %v584
      %v603 = vpack.c.b16 %v587, %v586
      %v636 = vunpack.c.l.b16 %v501
      %v637 = vunpack.c.l.b16 %v502
      %v638 = vunpack.c.l.b16 %v503
      %v639 = vunpack.c.l.b16 %v504
      %v640 = vunpack.c.l.b16 %v505
      %v641 = vunpack.c.l.b16 %v506
      %v642 = vunpack.c.l.b16 %v507
      %v643 = vunpack.c.l.b16 %v508
      %v644 = vunpack.c.l.b16 %v509
      %v645 = vunpack.c.l.b16 %v510
      %v646 = vunpack.c.l.b16 %v511
      %v647 = vunpack.c.l.b16 %v512
      %v648 = vunpack.c.l.b16 %v513
      %v649 = vunpack.c.l.b16 %v514
      %v650 = vunpack.c.l.b16 %v515
      %v651 = vunpack.c.l.b16 %v516
      %v652 = vpack.c.b16 %v637, %v636
      %v653 = vpack.c.b16 %v639, %v638
      %v654 = vpack.c.b16 %v641, %v640
      %v655 = vpack.c.b16 %v643, %v642
      %v656 = vpack.c.b16 %v645, %v644
      %v657 = vpack.c.b16 %v647, %v646
      %v658 = vpack.c.b16 %v649, %v648
      %v659 = vpack.c.b16 %v651, %v650
      %668 = vmatprep.subr.bf16.mxu0 0
      %669 = vmatpush1.bf16.msra.mxu0 %v652
      %670 = vmatprep.subr.bf16.mxu0 0
      %671 = vmatpush1.bf16.msra.mxu0 %v653
      %672 = vmatprep.subr.bf16.mxu0 0
      %673 = vmatpush1.bf16.msra.mxu0 %v654
      %674 = vmatprep.subr.bf16.mxu0 0
      %675 = vmatpush1.bf16.msra.mxu0 %v655
      %676 = vmatprep.subr.bf16.mxu0 0
      %677 = vmatpush1.bf16.msra.mxu0 %v656
      %678 = vmatprep.subr.bf16.mxu0 0
      %679 = vmatpush1.bf16.msra.mxu0 %v657
      %680 = vmatprep.subr.bf16.mxu0 0
      %681 = vmatpush1.bf16.msra.mxu0 %v658
      %682 = vmatprep.subr.bf16.mxu0 0
      %683 = vmatpush1.bf16.msra.mxu0 %v659
      %684 = vmatprep.subr.bf16.mxu0 0
      %685 = vmatpush1.bf16.msra.mxu0 0
      %686 = vmatprep.subr.bf16.mxu0 0
      %687 = vmatpush1.bf16.msra.mxu0 0
      %688 = vmatprep.subr.bf16.mxu0 0
      %689 = vmatpush1.bf16.msra.mxu0 0
      %690 = vmatprep.subr.bf16.mxu0 0
      %691 = vmatpush1.bf16.msra.mxu0 0
      %692 = vmatprep.subr.bf16.mxu0 0
      %693 = vmatpush1.bf16.msra.mxu0 0
      %694 = vmatprep.subr.bf16.mxu0 0
      %695 = vmatpush1.bf16.msra.mxu0 0
      %696 = vmatprep.subr.bf16.mxu0 0
      %697 = vmatpush1.bf16.msra.mxu0 0
      %698 = vmatprep.subr.bf16.mxu0 0
      %699 = vmatpush1.bf16.msra.mxu0 0
      %700 = vmatprep.mubr.bf16.mxu0 0
      %701 = vmatmul.mubr.bf16.gmra.mrb[0].mxu0 %v588
      %v702 = vpop.f32.mrb[0].mxu0
      %v703 = vadd.f32 %v522, %v702
      %v704 = vpop.f32.mrb[0].mxu0
      %v705 = vpop.f32.mrb[0].mxu0
      %v706 = vadd.f32 %v522, %v705
      %v707 = vpop.f32.mrb[0].mxu0
      %708 = vmatprep.mubr.bf16.mxu0 0
      %709 = vmatmul.mubr.bf16.gmra.mrb[0].mxu0 %v589
      %v710 = vpop.f32.mrb[0].mxu0
      %v711 = vadd.f32 %v522, %v710
      %v712 = vpop.f32.mrb[0].mxu0
      %v713 = vpop.f32.mrb[0].mxu0
      %v714 = vadd.f32 %v522, %v713
      %v715 = vpop.f32.mrb[0].mxu0
      %716 = vmatprep.mubr.bf16.mxu0 0
      %717 = vmatmul.mubr.bf16.gmra.mrb[0].mxu0 %v590
      %v718 = vpop.f32.mrb[0].mxu0
      %v719 = vadd.f32 %v522, %v718
      %v720 = vpop.f32.mrb[0].mxu0
      %v721 = vpop.f32.mrb[0].mxu0
      %v722 = vadd.f32 %v522, %v721
      %v723 = vpop.f32.mrb[0].mxu0
      %724 = vmatprep.mubr.bf16.mxu0 0
      %725 = vmatmul.mubr.bf16.gmra.mrb[0].mxu0 %v591
      %v726 = vpop.f32.mrb[0].mxu0
      %v727 = vadd.f32 %v522, %v726
      %v728 = vpop.f32.mrb[0].mxu0
      %v729 = vpop.f32.mrb[0].mxu0
      %v730 = vadd.f32 %v522, %v729
      %v731 = vpop.f32.mrb[0].mxu0
      %732 = vmatprep.mubr.bf16.mxu0 0
      %733 = vmatmul.mubr.bf16.gmra.mrb[0].mxu0 %v592
      %v734 = vpop.f32.mrb[0].mxu0
      %v735 = vadd.f32 %v522, %v734
      %v736 = vpop.f32.mrb[0].mxu0
      %v737 = vpop.f32.mrb[0].mxu0
      %v738 = vadd.f32 %v522, %v737
      %v739 = vpop.f32.mrb[0].mxu0
      %740 = vmatprep.mubr.bf16.mxu0 0
      %741 = vmatmul.mubr.bf16.gmra.mrb[0].mxu0 %v593
      %v742 = vpop.f32.mrb[0].mxu0
      %v743 = vadd.f32 %v522, %v742
      %v744 = vpop.f32.mrb[0].mxu0
      %v745 = vpop.f32.mrb[0].mxu0
      %v746 = vadd.f32 %v522, %v745
      %v747 = vpop.f32.mrb[0].mxu0
      %748 = vmatprep.mubr.bf16.mxu0 0
      %749 = vmatmul.mubr.bf16.gmra.mrb[0].mxu0 %v594
      %v750 = vpop.f32.mrb[0].mxu0
      %v751 = vadd.f32 %v522, %v750
      %v752 = vpop.f32.mrb[0].mxu0
      %v753 = vpop.f32.mrb[0].mxu0
      %v754 = vadd.f32 %v522, %v753
      %v755 = vpop.f32.mrb[0].mxu0
      %756 = vmatprep.mubr.bf16.mxu0 0
      %757 = vmatmul.mubr.bf16.gmra.mrb[0].mxu0 %v595
      %v758 = vpop.f32.mrb[0].mxu0
      %v759 = vadd.f32 %v522, %v758
      %v760 = vpop.f32.mrb[0].mxu0
      %v761 = vpop.f32.mrb[0].mxu0
      %v762 = vadd.f32 %v522, %v761
      %v763 = vpop.f32.mrb[0].mxu0
      %764 = vmatprep.mubr.bf16.mxu0 0
      %765 = vmatmul.mubr.bf16.gmra.mrb[0].mxu0 %v596
      %v766 = vpop.f32.mrb[0].mxu0
      %v767 = vadd.f32 %v522, %v766
      %v768 = vpop.f32.mrb[0].mxu0
      %v769 = vpop.f32.mrb[0].mxu0
      %v770 = vadd.f32 %v522, %v769
      %v771 = vpop.f32.mrb[0].mxu0
      %772 = vmatprep.mubr.bf16.mxu0 0
      %773 = vmatmul.mubr.bf16.gmra.mrb[0].mxu0 %v597
      %v774 = vpop.f32.mrb[0].mxu0
      %v775 = vadd.f32 %v522, %v774
      %v776 = vpop.f32.mrb[0].mxu0
      %v777 = vpop.f32.mrb[0].mxu0
      %v778 = vadd.f32 %v522, %v777
      %v779 = vpop.f32.mrb[0].mxu0
      %780 = vmatprep.mubr.bf16.mxu0 0
      %781 = vmatmul.mubr.bf16.gmra.mrb[0].mxu0 %v598
      %v782 = vpop.f32.mrb[0].mxu0
      %v783 = vadd.f32 %v522, %v782
      %v784 = vpop.f32.mrb[0].mxu0
      %v785 = vpop.f32.mrb[0].mxu0
      %v786 = vadd.f32 %v522, %v785
      %v787 = vpop.f32.mrb[0].mxu0
      %788 = vmatprep.mubr.bf16.mxu0 0
      %789 = vmatmul.mubr.bf16.gmra.mrb[0].mxu0 %v599
      %v790 = vpop.f32.mrb[0].mxu0
      %v791 = vadd.f32 %v522, %v790
      %v792 = vpop.f32.mrb[0].mxu0
      %v793 = vpop.f32.mrb[0].mxu0
      %v794 = vadd.f32 %v522, %v793
      %v795 = vpop.f32.mrb[0].mxu0
      %796 = vmatprep.mubr.bf16.mxu0 0
      %797 = vmatmul.mubr.bf16.gmra.mrb[0].mxu0 %v600
      %v798 = vpop.f32.mrb[0].mxu0
      %v799 = vadd.f32 %v522, %v798
      %v800 = vpop.f32.mrb[0].mxu0
      %v801 = vpop.f32.mrb[0].mxu0
      %v802 = vadd.f32 %v522, %v801
      %v803 = vpop.f32.mrb[0].mxu0
      %804 = vmatprep.mubr.bf16.mxu0 0
      %805 = vmatmul.mubr.bf16.gmra.mrb[0].mxu0 %v601
      %v806 = vpop.f32.mrb[0].mxu0
      %v807 = vadd.f32 %v522, %v806
      %v808 = vpop.f32.mrb[0].mxu0
      %v809 = vpop.f32.mrb[0].mxu0
      %v810 = vadd.f32 %v522, %v809
      %v811 = vpop.f32.mrb[0].mxu0
      %812 = vmatprep.mubr.bf16.mxu0 0
      %813 = vmatmul.mubr.bf16.gmra.mrb[0].mxu0 %v602
      %v814 = vpop.f32.mrb[0].mxu0
      %v815 = vadd.f32 %v522, %v814
      %v816 = vpop.f32.mrb[0].mxu0
      %v817 = vpop.f32.mrb[0].mxu0
      %v818 = vadd.f32 %v522, %v817
      %v819 = vpop.f32.mrb[0].mxu0
      %820 = vmatprep.mubr.bf16.mxu0 0
      %821 = vmatmul.mubr.bf16.gmra.mrb[0].mxu0 %v603
      %v822 = vpop.f32.mrb[0].mxu0
      %v823 = vadd.f32 %v522, %v822
      %v824 = vpop.f32.mrb[0].mxu0
      %v825 = vpop.f32.mrb[0].mxu0
      %v826 = vadd.f32 %v522, %v825
      %v827 = vpop.f32.mrb[0].mxu0
      %828 = vdwg.mxu0
      %v829 = vxor.u32 %v703, 2147483648
      %v830 = vxor.u32 %v706, 2147483648
      %v831 = vxor.u32 %v711, 2147483648
      %v832 = vxor.u32 %v714, 2147483648
      %v833 = vxor.u32 %v719, 2147483648
      %v834 = vxor.u32 %v722, 2147483648
      %v835 = vxor.u32 %v727, 2147483648
      %v836 = vxor.u32 %v730, 2147483648
      %v837 = vxor.u32 %v735, 2147483648
      %v838 = vxor.u32 %v738, 2147483648
      %v839 = vxor.u32 %v743, 2147483648
      %v840 = vxor.u32 %v746, 2147483648
      %v841 = vxor.u32 %v751, 2147483648
      %v842 = vxor.u32 %v754, 2147483648
      %v843 = vxor.u32 %v759, 2147483648
      %v844 = vxor.u32 %v762, 2147483648
      %v845 = vxor.u32 %v767, 2147483648
      %v846 = vxor.u32 %v770, 2147483648
      %v847 = vxor.u32 %v775, 2147483648
      %v848 = vxor.u32 %v778, 2147483648
      %v849 = vxor.u32 %v783, 2147483648
      %v850 = vxor.u32 %v786, 2147483648
      %v851 = vxor.u32 %v791, 2147483648
      %v852 = vxor.u32 %v794, 2147483648
      %v853 = vxor.u32 %v799, 2147483648
      %v854 = vxor.u32 %v802, 2147483648
      %v855 = vxor.u32 %v807, 2147483648
      %v856 = vxor.u32 %v810, 2147483648
      %v857 = vxor.u32 %v815, 2147483648
      %v858 = vxor.u32 %v818, 2147483648
      %v859 = vxor.u32 %v823, 2147483648
      %v860 = vxor.u32 %v826, 2147483648
      %v861 = vmul.f32 %v829, 1.442695
      %v862 = vpow.pop %v861
      %v863 = vmul.f32 %v830, 1.442695
      %v864 = vpow.pop %v863
      %v865 = vmul.f32 %v831, 1.442695
      %v866 = vpow.pop %v865
      %v867 = vmul.f32 %v832, 1.442695
      %v868 = vpow.pop %v867
      %v869 = vmul.f32 %v833, 1.442695
      %v870 = vpow.pop %v869
      %v871 = vmul.f32 %v834, 1.442695
      %v872 = vpow.pop %v871
      %v873 = vmul.f32 %v835, 1.442695
      %v874 = vpow.pop %v873
      %v875 = vmul.f32 %v836, 1.442695
      %v876 = vpow.pop %v875
      %v877 = vmul.f32 %v837, 1.442695
      %v878 = vpow.pop %v877
      %v879 = vmul.f32 %v838, 1.442695
      %v880 = vpow.pop %v879
      %v881 = vmul.f32 %v839, 1.442695
      %v882 = vpow.pop %v881
      %v883 = vmul.f32 %v840, 1.442695
      %v884 = vpow.pop %v883
      %v885 = vmul.f32 %v841, 1.442695
      %v886 = vpow.pop %v885
      %v887 = vmul.f32 %v842, 1.442695
      %v888 = vpow.pop %v887
      %v889 = vmul.f32 %v843, 1.442695
      %v890 = vpow.pop %v889
      %v891 = vmul.f32 %v844, 1.442695
      %v892 = vpow.pop %v891
      %v893 = vmul.f32 %v845, 1.442695
      %v894 = vpow.pop %v893
      %v895 = vmul.f32 %v846, 1.442695
      %v896 = vpow.pop %v895
      %v897 = vmul.f32 %v847, 1.442695
      %v898 = vpow.pop %v897
      %v899 = vmul.f32 %v848, 1.442695
      %v900 = vpow.pop %v899
      %v901 = vmul.f32 %v849, 1.442695
      %v902 = vpow.pop %v901
      %v903 = vmul.f32 %v850, 1.442695
      %v904 = vpow.pop %v903
      %v905 = vmul.f32 %v851, 1.442695
      %v906 = vpow.pop %v905
      %v907 = vmul.f32 %v852, 1.442695
      %v908 = vpow.pop %v907
      %v909 = vmul.f32 %v853, 1.442695
      %v910 = vpow.pop %v909
      %v911 = vmul.f32 %v854, 1.442695
      %v912 = vpow.pop %v911
      %v913 = vmul.f32 %v855, 1.442695
      %v914 = vpow.pop %v913
      %v915 = vmul.f32 %v856, 1.442695
      %v916 = vpow.pop %v915
      %v917 = vmul.f32 %v857, 1.442695
      %v918 = vpow.pop %v917
      %v919 = vmul.f32 %v858, 1.442695
      %v920 = vpow.pop %v919
      %v921 = vmul.f32 %v859, 1.442695
      %v922 = vpow.pop %v921
      %v923 = vmul.f32 %v860, 1.442695
      %v924 = vpow.pop %v923
      %v925 = vadd.f32 %v862, 1.0
      %v926 = vadd.f32 %v864, 1.0
      %v927 = vadd.f32 %v866, 1.0
      %v928 = vadd.f32 %v868, 1.0
      %v929 = vadd.f32 %v870, 1.0
      %v930 = vadd.f32 %v872, 1.0
      %v931 = vadd.f32 %v874, 1.0
      %v932 = vadd.f32 %v876, 1.0
      %v933 = vadd.f32 %v878, 1.0
      %v934 = vadd.f32 %v880, 1.0
      %v935 = vadd.f32 %v882, 1.0
      %v936 = vadd.f32 %v884, 1.0
      %v937 = vadd.f32 %v886, 1.0
      %v938 = vadd.f32 %v888, 1.0
      %v939 = vadd.f32 %v890, 1.0
      %v940 = vadd.f32 %v892, 1.0
      %v941 = vadd.f32 %v894, 1.0
      %v942 = vadd.f32 %v896, 1.0
      %v943 = vadd.f32 %v898, 1.0
      %v944 = vadd.f32 %v900, 1.0
      %v945 = vadd.f32 %v902, 1.0
      %v946 = vadd.f32 %v904, 1.0
      %v947 = vadd.f32 %v906, 1.0
      %v948 = vadd.f32 %v908, 1.0
      %v949 = vadd.f32 %v910, 1.0
      %v950 = vadd.f32 %v912, 1.0
      %v951 = vadd.f32 %v914, 1.0
      %v952 = vadd.f32 %v916, 1.0
      %v953 = vadd.f32 %v918, 1.0
      %v954 = vadd.f32 %v920, 1.0
      %v955 = vadd.f32 %v922, 1.0
      %v956 = vadd.f32 %v924, 1.0
      %v957 = vrcp.pop %v925
      %v958 = vmul.f32 1.0, %v957
      %v959 = vrcp.pop %v926
      %v960 = vmul.f32 1.0, %v959
      %v961 = vrcp.pop %v927
      %v962 = vmul.f32 1.0, %v961
      %v963 = vrcp.pop %v928
      %v964 = vmul.f32 1.0, %v963
      %v965 = vrcp.pop %v929
      %v966 = vmul.f32 1.0, %v965
      %v967 = vrcp.pop %v930
      %v968 = vmul.f32 1.0, %v967
      %v969 = vrcp.pop %v931
      %v970 = vmul.f32 1.0, %v969
      %v971 = vrcp.pop %v932
      %v972 = vmul.f32 1.0, %v971
      %v973 = vrcp.pop %v933
      %v974 = vmul.f32 1.0, %v973
      %v975 = vrcp.pop %v934
      %v976 = vmul.f32 1.0, %v975
      %v977 = vrcp.pop %v935
      %v978 = vmul.f32 1.0, %v977
      %v979 = vrcp.pop %v936
      %v980 = vmul.f32 1.0, %v979
      %v981 = vrcp.pop %v937
      %v982 = vmul.f32 1.0, %v981
      %v983 = vrcp.pop %v938
      %v984 = vmul.f32 1.0, %v983
      %v985 = vrcp.pop %v939
      %v986 = vmul.f32 1.0, %v985
      %v987 = vrcp.pop %v940
      %v988 = vmul.f32 1.0, %v987
      %v989 = vrcp.pop %v941
      %v990 = vmul.f32 1.0, %v989
      %v991 = vrcp.pop %v942
      %v992 = vmul.f32 1.0, %v991
      %v993 = vrcp.pop %v943
      %v994 = vmul.f32 1.0, %v993
      %v995 = vrcp.pop %v944
      %v996 = vmul.f32 1.0, %v995
      %v997 = vrcp.pop %v945
      %v998 = vmul.f32 1.0, %v997
      %v999 = vrcp.pop %v946
      %v1000 = vmul.f32 1.0, %v999
      %v1001 = vrcp.pop %v947
      %v1002 = vmul.f32 1.0, %v1001
      %v1003 = vrcp.pop %v948
      %v1004 = vmul.f32 1.0, %v1003
      %v1005 = vrcp.pop %v949
      %v1006 = vmul.f32 1.0, %v1005
      %v1007 = vrcp.pop %v950
      %v1008 = vmul.f32 1.0, %v1007
      %v1009 = vrcp.pop %v951
      %v1010 = vmul.f32 1.0, %v1009
      %v1011 = vrcp.pop %v952
      %v1012 = vmul.f32 1.0, %v1011
      %v1013 = vrcp.pop %v953
      %v1014 = vmul.f32 1.0, %v1013
      %v1015 = vrcp.pop %v954
      %v1016 = vmul.f32 1.0, %v1015
      %v1017 = vrcp.pop %v955
      %v1018 = vmul.f32 1.0, %v1017
      %v1019 = vrcp.pop %v956
      %v1020 = vmul.f32 1.0, %v1019
      %v1021 = vmul.f32 %v703, %v958
      %v1022 = vmul.f32 %v706, %v960
      %v1023 = vmul.f32 %v711, %v962
      %v1024 = vmul.f32 %v714, %v964
      %v1025 = vmul.f32 %v719, %v966
      %v1026 = vmul.f32 %v722, %v968
      %v1027 = vmul.f32 %v727, %v970
      %v1028 = vmul.f32 %v730, %v972
      %v1029 = vmul.f32 %v735, %v974
      %v1030 = vmul.f32 %v738, %v976
      %v1031 = vmul.f32 %v743, %v978
      %v1032 = vmul.f32 %v746, %v980
      %v1033 = vmul.f32 %v751, %v982
      %v1034 = vmul.f32 %v754, %v984
      %v1035 = vmul.f32 %v759, %v986
      %v1036 = vmul.f32 %v762, %v988
      %v1037 = vmul.f32 %v767, %v990
      %v1038 = vmul.f32 %v770, %v992
      %v1039 = vmul.f32 %v775, %v994
      %v1040 = vmul.f32 %v778, %v996
      %v1041 = vmul.f32 %v783, %v998
      %v1042 = vmul.f32 %v786, %v1000
      %v1043 = vmul.f32 %v791, %v1002
      %v1044 = vmul.f32 %v794, %v1004
      %v1045 = vmul.f32 %v799, %v1006
      %v1046 = vmul.f32 %v802, %v1008
      %v1047 = vmul.f32 %v807, %v1010
      %v1048 = vmul.f32 %v810, %v1012
      %v1049 = vmul.f32 %v815, %v1014
      %v1050 = vmul.f32 %v818, %v1016
      %v1051 = vmul.f32 %v823, %v1018
      %v1052 = vmul.f32 %v826, %v1020
      %1053 = vst [vmem:[#allocation2] sm:$0xf] 0
      %1054 = vst [vmem:[#allocation2 + $0x4] sm:$0xf] 0
      %1055 = vst [vmem:[#allocation2 + $0x8] sm:$0x1] 0
      %1056 = vst [vmem:[#allocation2 + $0xc] sm:$0xf] 0
      %1057 = vst [vmem:[#allocation2 + $0x10] sm:$0xf] 0
      %1058 = vst [vmem:[#allocation2 + $0x14] sm:$0x1] 0
      %1059 = vst [vmem:[#allocation2 + $0x18] sm:$0xf] 0
      %1060 = vst [vmem:[#allocation2 + $0x1c] sm:$0xf] 0
      %1061 = vst [vmem:[#allocation2 + $0x20] sm:$0x1] 0
      %1062 = vst [vmem:[#allocation2 + $0x24] sm:$0xf] 0
      %1063 = vst [vmem:[#allocation2 + $0x28] sm:$0xf] 0
      %1064 = vst [vmem:[#allocation2 + $0x2c] sm:$0x1] 0
      %1065 = vst [vmem:[#allocation2 + $0x30] sm:$0xf] 0
      %1066 = vst [vmem:[#allocation2 + $0x34] sm:$0xf] 0
      %1067 = vst [vmem:[#allocation2 + $0x38] sm:$0x1] 0
      %1068 = vst [vmem:[#allocation2 + $0x3c] sm:$0xf] 0
      %1069 = vst [vmem:[#allocation2 + $0x40] sm:$0xf] 0
      %1070 = vst [vmem:[#allocation2 + $0x44] sm:$0x1] 0
      %1071 = vst [vmem:[#allocation2 + $0x48] sm:$0xf] 0
      %1072 = vst [vmem:[#allocation2 + $0x4c] sm:$0xf] 0
      %1073 = vst [vmem:[#allocation2 + $0x50] sm:$0x1] 0
      %1074 = vst [vmem:[#allocation2 + $0x54] sm:$0xf] 0
      %1075 = vst [vmem:[#allocation2 + $0x58] sm:$0xf] 0
      %1076 = vst [vmem:[#allocation2 + $0x5c] sm:$0x1] 0
      %1077 = vst [vmem:[#allocation2 + $0x60] sm:$0xf] 0
      %1078 = vst [vmem:[#allocation2 + $0x64] sm:$0xf] 0
      %1079 = vst [vmem:[#allocation2 + $0x68] sm:$0x1] 0
      %1080 = vst [vmem:[#allocation2 + $0x6c] sm:$0xf] 0
      %1081 = vst [vmem:[#allocation2 + $0x70] sm:$0xf] 0
      %1082 = vst [vmem:[#allocation2 + $0x74] sm:$0x1] 0
      %1083 = vst [vmem:[#allocation2 + $0x78] sm:$0xf] 0
      %1084 = vst [vmem:[#allocation2 + $0x7c] sm:$0xf] 0
      %1085 = vst [vmem:[#allocation2 + $0x80] sm:$0x1] 0
      %1086 = vst [vmem:[#allocation2 + $0x84] sm:$0xf] 0
      %1087 = vst [vmem:[#allocation2 + $0x88] sm:$0xf] 0
      %1088 = vst [vmem:[#allocation2 + $0x8c] sm:$0x1] 0
      %1089 = vst [vmem:[#allocation2 + $0x90] sm:$0xf] 0
      %1090 = vst [vmem:[#allocation2 + $0x94] sm:$0xf] 0
      %1091 = vst [vmem:[#allocation2 + $0x98] sm:$0x1] 0
      %1092 = vst [vmem:[#allocation2 + $0x9c] sm:$0xf] 0
      %1093 = vst [vmem:[#allocation2 + $0xa0] sm:$0xf] 0
      %1094 = vst [vmem:[#allocation2 + $0xa4] sm:$0x1] 0
      %1095 = vst [vmem:[#allocation2 + $0xa8] sm:$0xf] 0
      %1096 = vst [vmem:[#allocation2 + $0xac] sm:$0xf] 0
      %1097 = vst [vmem:[#allocation2 + $0xb0] sm:$0x1] 0
      %1098 = vst [vmem:[#allocation2 + $0xb4] sm:$0xf] 0
      %1099 = vst [vmem:[#allocation2 + $0xb8] sm:$0xf] 0
      %1100 = vst [vmem:[#allocation2 + $0xbc] sm:$0x1] 0
      %1101 = vst [vmem:[#allocation2 + $0xc0] sm:$0xf] 0
      %1102 = vst [vmem:[#allocation2 + $0xc4] sm:$0xf] 0
      %1103 = vst [vmem:[#allocation2 + $0xc8] sm:$0x1] 0
      %1104 = vst [vmem:[#allocation2 + $0xcc] sm:$0xf] 0
      %1105 = vst [vmem:[#allocation2 + $0xd0] sm:$0xf] 0
      %1106 = vst [vmem:[#allocation2 + $0xd4] sm:$0x1] 0
      %v1107 = vpack.c.bf16 %v1022, %v1021
      %v1108 = vpack.c.bf16 %v1024, %v1023
      %v1109 = vpack.c.bf16 %v1026, %v1025
      %v1110 = vpack.c.bf16 %v1028, %v1027
      %v1111 = vpack.c.bf16 %v1030, %v1029
      %v1112 = vpack.c.bf16 %v1032, %v1031
      %v1113 = vpack.c.bf16 %v1034, %v1033
      %v1114 = vpack.c.bf16 %v1036, %v1035
      %v1115 = vpack.c.bf16 %v1038, %v1037
      %v1116 = vpack.c.bf16 %v1040, %v1039
      %v1117 = vpack.c.bf16 %v1042, %v1041
      %v1118 = vpack.c.bf16 %v1044, %v1043
      %v1119 = vpack.c.bf16 %v1046, %v1045
      %v1120 = vpack.c.bf16 %v1048, %v1047
      %v1121 = vpack.c.bf16 %v1050, %v1049
      %v1122 = vpack.c.bf16 %v1052, %v1051
      %v1139 = vunpack.c.l.b16 %v1107
      %v1140 = vunpack.c.h.b16 %v1107
      %v1141 = vunpack.c.l.b16 %v1108
      %v1142 = vunpack.c.h.b16 %v1108
      %v1143 = vunpack.c.l.b16 %v1109
      %v1144 = vunpack.c.h.b16 %v1109
      %v1145 = vunpack.c.l.b16 %v1110
      %v1146 = vunpack.c.h.b16 %v1110
      %v1147 = vunpack.c.l.b16 %v1111
      %v1148 = vunpack.c.h.b16 %v1111
      %v1149 = vunpack.c.l.b16 %v1112
      %v1150 = vunpack.c.h.b16 %v1112
      %v1151 = vunpack.c.l.b16 %v1113
      %v1152 = vunpack.c.h.b16 %v1113
      %v1153 = vunpack.c.l.b16 %v1114
      %v1154 = vunpack.c.h.b16 %v1114
      %v1155 = vunpack.c.l.b16 %v1115
      %v1156 = vunpack.c.h.b16 %v1115
      %v1157 = vunpack.c.l.b16 %v1116
      %v1158 = vunpack.c.h.b16 %v1116
      %v1159 = vunpack.c.l.b16 %v1117
      %v1160 = vunpack.c.h.b16 %v1117
      %v1161 = vunpack.c.l.b16 %v1118
      %v1162 = vunpack.c.h.b16 %v1118
      %v1163 = vunpack.c.l.b16 %v1119
      %v1164 = vunpack.c.h.b16 %v1119
      %v1165 = vunpack.c.l.b16 %v1120
      %v1166 = vunpack.c.h.b16 %v1120
      %v1167 = vunpack.c.l.b16 %v1121
      %v1168 = vunpack.c.h.b16 %v1121
      %v1169 = vunpack.c.l.b16 %v1122
      %v1170 = vunpack.c.h.b16 %v1122
      %v1171 = vpack.c.b16 %v1139, %v1139
      %v1172 = vpack.c.b16 %v1140, %v1140
      %v1173 = vpack.c.b16 %v1141, %v1141
      %v1174 = vpack.c.b16 %v1142, %v1142
      %v1175 = vpack.c.b16 %v1143, %v1143
      %v1176 = vpack.c.b16 %v1144, %v1144
      %v1177 = vpack.c.b16 %v1145, %v1145
      %v1178 = vpack.c.b16 %v1146, %v1146
      %v1179 = vpack.c.b16 %v1147, %v1147
      %v1180 = vpack.c.b16 %v1148, %v1148
      %v1181 = vpack.c.b16 %v1149, %v1149
      %v1182 = vpack.c.b16 %v1150, %v1150
      %v1183 = vpack.c.b16 %v1151, %v1151
      %v1184 = vpack.c.b16 %v1152, %v1152
      %v1185 = vpack.c.b16 %v1153, %v1153
      %v1186 = vpack.c.b16 %v1154, %v1154
      %v1187 = vpack.c.b16 %v1155, %v1155
      %v1188 = vpack.c.b16 %v1156, %v1156
      %v1189 = vpack.c.b16 %v1157, %v1157
      %v1190 = vpack.c.b16 %v1158, %v1158
      %v1191 = vpack.c.b16 %v1159, %v1159
      %v1192 = vpack.c.b16 %v1160, %v1160
      %v1193 = vpack.c.b16 %v1161, %v1161
      %v1194 = vpack.c.b16 %v1162, %v1162
      %v1195 = vpack.c.b16 %v1163, %v1163
      %v1196 = vpack.c.b16 %v1164, %v1164
      %v1197 = vpack.c.b16 %v1165, %v1165
      %v1198 = vpack.c.b16 %v1166, %v1166
      %v1199 = vpack.c.b16 %v1167, %v1167
      %v1200 = vpack.c.b16 %v1168, %v1168
      %v1201 = vpack.c.b16 %v1169, %v1169
      %v1202 = vpack.c.b16 %v1170, %v1170
      %vm1203 = vsmask.f32 256
      %vm1204 = vsmask.f32 4368
      %vm1205 = vmor %vm1203, %vm1204
      %v1207 = vshrl.u32 %v1171, 16
      %v1209 = vrot.slane %v1207, 7
      %v1210 = vshll.u32 %v1171, 16
      %v1212 = vor.u32 %v1209, %v1210
      %v1213 = vrot.slane %v1209, 4
      %v1215 = vshrl.u32 %v1172, 16
      %v1217 = vrot.slane %v1215, 7
      %v1218 = vshll.u32 %v1172, 16
      %v1220 = vor.u32 %v1217, %v1218
      %v1221 = vsel %vm1205, %v1213, %v1220
      %v1222 = vrot.slane %v1217, 4
      %v1224 = vshrl.u32 %v1173, 16
      %v1226 = vrot.slane %v1224, 7
      %v1227 = vshll.u32 %v1173, 16
      %v1229 = vor.u32 %v1226, %v1227
      %v1230 = vrot.slane %v1226, 4
      %v1232 = vshrl.u32 %v1174, 16
      %v1234 = vrot.slane %v1232, 7
      %v1235 = vshll.u32 %v1174, 16
      %v1237 = vor.u32 %v1234, %v1235
      %v1238 = vsel %vm1205, %v1230, %v1237
      %v1239 = vrot.slane %v1234, 4
      %v1241 = vshrl.u32 %v1175, 16
      %v1243 = vrot.slane %v1241, 7
      %v1244 = vshll.u32 %v1175, 16
      %v1246 = vor.u32 %v1243, %v1244
      %v1247 = vrot.slane %v1243, 4
      %v1249 = vshrl.u32 %v1176, 16
      %v1251 = vrot.slane %v1249, 7
      %v1252 = vshll.u32 %v1176, 16
      %v1254 = vor.u32 %v1251, %v1252
      %v1255 = vsel %vm1205, %v1247, %v1254
      %v1256 = vrot.slane %v1251, 4
      %v1258 = vshrl.u32 %v1177, 16
      %v1260 = vrot.slane %v1258, 7
      %v1261 = vshll.u32 %v1177, 16
      %v1263 = vor.u32 %v1260, %v1261
      %v1264 = vrot.slane %v1260, 4
      %v1266 = vshrl.u32 %v1178, 16
      %v1268 = vrot.slane %v1266, 7
      %v1269 = vshll.u32 %v1178, 16
      %v1271 = vor.u32 %v1268, %v1269
      %v1272 = vsel %vm1205, %v1264, %v1271
      %v1273 = vrot.slane %v1268, 4
      %v1275 = vshrl.u32 %v1179, 16
      %v1277 = vrot.slane %v1275, 7
      %v1278 = vshll.u32 %v1179, 16
      %v1280 = vor.u32 %v1277, %v1278
      %v1281 = vrot.slane %v1277, 4
      %v1283 = vshrl.u32 %v1180, 16
      %v1285 = vrot.slane %v1283, 7
      %v1286 = vshll.u32 %v1180, 16
      %v1288 = vor.u32 %v1285, %v1286
      %v1289 = vsel %vm1205, %v1281, %v1288
      %v1290 = vrot.slane %v1285, 4
      %v1292 = vshrl.u32 %v1181, 16
      %v1294 = vrot.slane %v1292, 7
      %v1295 = vshll.u32 %v1181, 16
      %v1297 = vor.u32 %v1294, %v1295
      %v1298 = vrot.slane %v1294, 4
      %v1300 = vshrl.u32 %v1182, 16
      %v1302 = vrot.slane %v1300, 7
      %v1303 = vshll.u32 %v1182, 16
      %v1305 = vor.u32 %v1302, %v1303
      %v1306 = vsel %vm1205, %v1298, %v1305
      %v1307 = vrot.slane %v1302, 4
      %v1309 = vshrl.u32 %v1183, 16
      %v1311 = vrot.slane %v1309, 7
      %v1312 = vshll.u32 %v1183, 16
      %v1314 = vor.u32 %v1311, %v1312
      %v1315 = vrot.slane %v1311, 4
      %v1317 = vshrl.u32 %v1184, 16
      %v1319 = vrot.slane %v1317, 7
      %v1320 = vshll.u32 %v1184, 16
      %v1322 = vor.u32 %v1319, %v1320
      %v1323 = vsel %vm1205, %v1315, %v1322
      %v1324 = vrot.slane %v1319, 4
      %v1326 = vshrl.u32 %v1185, 16
      %v1328 = vrot.slane %v1326, 7
      %v1329 = vshll.u32 %v1185, 16
      %v1331 = vor.u32 %v1328, %v1329
      %v1332 = vrot.slane %v1328, 4
      %v1334 = vshrl.u32 %v1186, 16
      %v1336 = vrot.slane %v1334, 7
      %v1337 = vshll.u32 %v1186, 16
      %v1339 = vor.u32 %v1336, %v1337
      %v1340 = vsel %vm1205, %v1332, %v1339
      %v1341 = vrot.slane %v1336, 4
      %v1343 = vshrl.u32 %v1187, 16
      %v1345 = vrot.slane %v1343, 7
      %v1346 = vshll.u32 %v1187, 16
      %v1348 = vor.u32 %v1345, %v1346
      %v1349 = vrot.slane %v1345, 4
      %v1351 = vshrl.u32 %v1188, 16
      %v1353 = vrot.slane %v1351, 7
      %v1354 = vshll.u32 %v1188, 16
      %v1356 = vor.u32 %v1353, %v1354
      %v1357 = vsel %vm1205, %v1349, %v1356
      %v1358 = vrot.slane %v1353, 4
      %v1360 = vshrl.u32 %v1189, 16
      %v1362 = vrot.slane %v1360, 7
      %v1363 = vshll.u32 %v1189, 16
      %v1365 = vor.u32 %v1362, %v1363
      %v1366 = vrot.slane %v1362, 4
      %v1368 = vshrl.u32 %v1190, 16
      %v1370 = vrot.slane %v1368, 7
      %v1371 = vshll.u32 %v1190, 16
      %v1373 = vor.u32 %v1370, %v1371
      %v1374 = vsel %vm1205, %v1366, %v1373
      %v1375 = vrot.slane %v1370, 4
      %v1377 = vshrl.u32 %v1191, 16
      %v1379 = vrot.slane %v1377, 7
      %v1380 = vshll.u32 %v1191, 16
      %v1382 = vor.u32 %v1379, %v1380
      %v1383 = vrot.slane %v1379, 4
      %v1385 = vshrl.u32 %v1192, 16
      %v1387 = vrot.slane %v1385, 7
      %v1388 = vshll.u32 %v1192, 16
      %v1390 = vor.u32 %v1387, %v1388
      %v1391 = vsel %vm1205, %v1383, %v1390
      %v1392 = vrot.slane %v1387, 4
      %v1394 = vshrl.u32 %v1193, 16
      %v1396 = vrot.slane %v1394, 7
      %v1397 = vshll.u32 %v1193, 16
      %v1399 = vor.u32 %v1396, %v1397
      %v1400 = vrot.slane %v1396, 4
      %v1402 = vshrl.u32 %v1194, 16
      %v1404 = vrot.slane %v1402, 7
      %v1405 = vshll.u32 %v1194, 16
      %v1407 = vor.u32 %v1404, %v1405
      %v1408 = vsel %vm1205, %v1400, %v1407
      %v1409 = vrot.slane %v1404, 4
      %v1411 = vshrl.u32 %v1195, 16
      %v1413 = vrot.slane %v1411, 7
      %v1414 = vshll.u32 %v1195, 16
      %v1416 = vor.u32 %v1413, %v1414
      %v1417 = vrot.slane %v1413, 4
      %v1419 = vshrl.u32 %v1196, 16
      %v1421 = vrot.slane %v1419, 7
      %v1422 = vshll.u32 %v1196, 16
      %v1424 = vor.u32 %v1421, %v1422
      %v1425 = vsel %vm1205, %v1417, %v1424
      %v1426 = vrot.slane %v1421, 4
      %v1428 = vshrl.u32 %v1197, 16
      %v1430 = vrot.slane %v1428, 7
      %v1431 = vshll.u32 %v1197, 16
      %v1433 = vor.u32 %v1430, %v1431
      %v1434 = vrot.slane %v1430, 4
      %v1436 = vshrl.u32 %v1198, 16
      %v1438 = vrot.slane %v1436, 7
      %v1439 = vshll.u32 %v1198, 16
      %v1441 = vor.u32 %v1438, %v1439
      %v1442 = vsel %vm1205, %v1434, %v1441
      %v1443 = vrot.slane %v1438, 4
      %v1445 = vshrl.u32 %v1199, 16
      %v1447 = vrot.slane %v1445, 7
      %v1448 = vshll.u32 %v1199, 16
      %v1450 = vor.u32 %v1447, %v1448
      %v1451 = vrot.slane %v1447, 4
      %v1453 = vshrl.u32 %v1200, 16
      %v1455 = vrot.slane %v1453, 7
      %v1456 = vshll.u32 %v1200, 16
      %v1458 = vor.u32 %v1455, %v1456
      %v1459 = vsel %vm1205, %v1451, %v1458
      %v1460 = vrot.slane %v1455, 4
      %v1462 = vshrl.u32 %v1201, 16
      %v1464 = vrot.slane %v1462, 7
      %v1465 = vshll.u32 %v1201, 16
      %v1467 = vor.u32 %v1464, %v1465
      %v1468 = vrot.slane %v1464, 4
      %v1470 = vshrl.u32 %v1202, 16
      %v1472 = vrot.slane %v1470, 7
      %v1473 = vshll.u32 %v1202, 16
      %v1475 = vor.u32 %v1472, %v1473
      %v1476 = vsel %vm1205, %v1468, %v1475
      %v1477 = vrot.slane %v1472, 4
      %s1526 = scalar_lea.vmem [#allocation2], 12
      %vm1527 = vcmask 1043456
      %vm1528 = vsmask.f32 7938
      %vm1529 = vmand %vm1527, %vm1528
      %v1530 = vld [vmem:[%s1526] sm:$0xf]
      %v1531 = vsel %vm1529, %v1212, %v1530
      %1532 = vst [vmem:[%s1526] sm:$0xf] %v1531
      %1533 = vst [vmem:[%s1526 + $0x4] sm:$0xf] %v1221
      %vm1534 = vcmask 1040384
      %vm1535 = vmand %vm1534, %vm1203
      %v1536 = vld [vmem:[%s1526 + $0x8] sm:$0x1]
      %v1537 = vsel %vm1535, %v1222, %v1536
      %1538 = vst [vmem:[%s1526 + $0x8] sm:$0x1] %v1537
      %v1539 = vld [vmem:[%s1526 + $0xc] sm:$0xf]
      %v1540 = vsel %vm1529, %v1229, %v1539
      %1541 = vst [vmem:[%s1526 + $0xc] sm:$0xf] %v1540
      %1542 = vst [vmem:[%s1526 + $0x10] sm:$0xf] %v1238
      %v1543 = vld [vmem:[%s1526 + $0x14] sm:$0x1]
      %v1544 = vsel %vm1535, %v1239, %v1543
      %1545 = vst [vmem:[%s1526 + $0x14] sm:$0x1] %v1544
      %v1546 = vld [vmem:[%s1526 + $0x18] sm:$0xf]
      %v1547 = vsel %vm1529, %v1246, %v1546
      %1548 = vst [vmem:[%s1526 + $0x18] sm:$0xf] %v1547
      %1549 = vst [vmem:[%s1526 + $0x1c] sm:$0xf] %v1255
      %v1550 = vld [vmem:[%s1526 + $0x20] sm:$0x1]
      %v1551 = vsel %vm1535, %v1256, %v1550
      %1552 = vst [vmem:[%s1526 + $0x20] sm:$0x1] %v1551
      %v1553 = vld [vmem:[%s1526 + $0x24] sm:$0xf]
      %v1554 = vsel %vm1529, %v1263, %v1553
      %1555 = vst [vmem:[%s1526 + $0x24] sm:$0xf] %v1554
      %1556 = vst [vmem:[%s1526 + $0x28] sm:$0xf] %v1272
      %v1557 = vld [vmem:[%s1526 + $0x2c] sm:$0x1]
      %v1558 = vsel %vm1535, %v1273, %v1557
      %1559 = vst [vmem:[%s1526 + $0x2c] sm:$0x1] %v1558
      %v1560 = vld [vmem:[%s1526 + $0x30] sm:$0xf]
      %v1561 = vsel %vm1529, %v1280, %v1560
      %1562 = vst [vmem:[%s1526 + $0x30] sm:$0xf] %v1561
      %1563 = vst [vmem:[%s1526 + $0x34] sm:$0xf] %v1289
      %v1564 = vld [vmem:[%s1526 + $0x38] sm:$0x1]
      %v1565 = vsel %vm1535, %v1290, %v1564
      %1566 = vst [vmem:[%s1526 + $0x38] sm:$0x1] %v1565
      %v1567 = vld [vmem:[%s1526 + $0x3c] sm:$0xf]
      %v1568 = vsel %vm1529, %v1297, %v1567
      %1569 = vst [vmem:[%s1526 + $0x3c] sm:$0xf] %v1568
      %1570 = vst [vmem:[%s1526 + $0x40] sm:$0xf] %v1306
      %v1571 = vld [vmem:[%s1526 + $0x44] sm:$0x1]
      %v1572 = vsel %vm1535, %v1307, %v1571
      %1573 = vst [vmem:[%s1526 + $0x44] sm:$0x1] %v1572
      %v1574 = vld [vmem:[%s1526 + $0x48] sm:$0xf]
      %v1575 = vsel %vm1529, %v1314, %v1574
      %1576 = vst [vmem:[%s1526 + $0x48] sm:$0xf] %v1575
      %1577 = vst [vmem:[%s1526 + $0x4c] sm:$0xf] %v1323
      %v1578 = vld [vmem:[%s1526 + $0x50] sm:$0x1]
      %v1579 = vsel %vm1535, %v1324, %v1578
      %1580 = vst [vmem:[%s1526 + $0x50] sm:$0x1] %v1579
      %v1581 = vld [vmem:[%s1526 + $0x54] sm:$0xf]
      %v1582 = vsel %vm1529, %v1331, %v1581
      %1583 = vst [vmem:[%s1526 + $0x54] sm:$0xf] %v1582
      %1584 = vst [vmem:[%s1526 + $0x58] sm:$0xf] %v1340
      %v1585 = vld [vmem:[%s1526 + $0x5c] sm:$0x1]
      %v1586 = vsel %vm1535, %v1341, %v1585
      %1587 = vst [vmem:[%s1526 + $0x5c] sm:$0x1] %v1586
      %v1588 = vld [vmem:[%s1526 + $0x60] sm:$0xf]
      %v1589 = vsel %vm1529, %v1348, %v1588
      %1590 = vst [vmem:[%s1526 + $0x60] sm:$0xf] %v1589
      %1591 = vst [vmem:[%s1526 + $0x64] sm:$0xf] %v1357
      %v1592 = vld [vmem:[%s1526 + $0x68] sm:$0x1]
      %v1593 = vsel %vm1535, %v1358, %v1592
      %1594 = vst [vmem:[%s1526 + $0x68] sm:$0x1] %v1593
      %v1595 = vld [vmem:[%s1526 + $0x6c] sm:$0xf]
      %v1596 = vsel %vm1529, %v1365, %v1595
      %1597 = vst [vmem:[%s1526 + $0x6c] sm:$0xf] %v1596
      %1598 = vst [vmem:[%s1526 + $0x70] sm:$0xf] %v1374
      %v1599 = vld [vmem:[%s1526 + $0x74] sm:$0x1]
      %v1600 = vsel %vm1535, %v1375, %v1599
      %1601 = vst [vmem:[%s1526 + $0x74] sm:$0x1] %v1600
      %v1602 = vld [vmem:[%s1526 + $0x78] sm:$0xf]
      %v1603 = vsel %vm1529, %v1382, %v1602
      %1604 = vst [vmem:[%s1526 + $0x78] sm:$0xf] %v1603
      %1605 = vst [vmem:[%s1526 + $0x7c] sm:$0xf] %v1391
      %v1606 = vld [vmem:[%s1526 + $0x80] sm:$0x1]
      %v1607 = vsel %vm1535, %v1392, %v1606
      %1608 = vst [vmem:[%s1526 + $0x80] sm:$0x1] %v1607
      %v1609 = vld [vmem:[%s1526 + $0x84] sm:$0xf]
      %v1610 = vsel %vm1529, %v1399, %v1609
      %1611 = vst [vmem:[%s1526 + $0x84] sm:$0xf] %v1610
      %1612 = vst [vmem:[%s1526 + $0x88] sm:$0xf] %v1408
      %v1613 = vld [vmem:[%s1526 + $0x8c] sm:$0x1]
      %v1614 = vsel %vm1535, %v1409, %v1613
      %1615 = vst [vmem:[%s1526 + $0x8c] sm:$0x1] %v1614
      %v1616 = vld [vmem:[%s1526 + $0x90] sm:$0xf]
      %v1617 = vsel %vm1529, %v1416, %v1616
      %1618 = vst [vmem:[%s1526 + $0x90] sm:$0xf] %v1617
      %1619 = vst [vmem:[%s1526 + $0x94] sm:$0xf] %v1425
      %v1620 = vld [vmem:[%s1526 + $0x98] sm:$0x1]
      %v1621 = vsel %vm1535, %v1426, %v1620
      %1622 = vst [vmem:[%s1526 + $0x98] sm:$0x1] %v1621
      %v1623 = vld [vmem:[%s1526 + $0x9c] sm:$0xf]
      %v1624 = vsel %vm1529, %v1433, %v1623
      %1625 = vst [vmem:[%s1526 + $0x9c] sm:$0xf] %v1624
      %1626 = vst [vmem:[%s1526 + $0xa0] sm:$0xf] %v1442
      %v1627 = vld [vmem:[%s1526 + $0xa4] sm:$0x1]
      %v1628 = vsel %vm1535, %v1443, %v1627
      %1629 = vst [vmem:[%s1526 + $0xa4] sm:$0x1] %v1628
      %v1630 = vld [vmem:[%s1526 + $0xa8] sm:$0xf]
      %v1631 = vsel %vm1529, %v1450, %v1630
      %1632 = vst [vmem:[%s1526 + $0xa8] sm:$0xf] %v1631
      %1633 = vst [vmem:[%s1526 + $0xac] sm:$0xf] %v1459
      %v1634 = vld [vmem:[%s1526 + $0xb0] sm:$0x1]
      %v1635 = vsel %vm1535, %v1460, %v1634
      %1636 = vst [vmem:[%s1526 + $0xb0] sm:$0x1] %v1635
      %v1637 = vld [vmem:[%s1526 + $0xb4] sm:$0xf]
      %v1638 = vsel %vm1529, %v1467, %v1637
      %1639 = vst [vmem:[%s1526 + $0xb4] sm:$0xf] %v1638
      %1640 = vst [vmem:[%s1526 + $0xb8] sm:$0xf] %v1476
      %v1641 = vld [vmem:[%s1526 + $0xbc] sm:$0x1]
      %v1642 = vsel %vm1535, %v1477, %v1641
      %1643 = vst [vmem:[%s1526 + $0xbc] sm:$0x1] %v1642
      %v1644 = vld [vmem:[#allocation2] sm:$0xf]
      %v1645 = vld [vmem:[#allocation2 + $0x4] sm:$0xf]
      %v1646 = vld [vmem:[#allocation2 + $0xc] sm:$0xf]
      %v1647 = vld [vmem:[#allocation2 + $0x10] sm:$0xf]
      %v1648 = vld [vmem:[#allocation2 + $0x18] sm:$0xf]
      %v1649 = vld [vmem:[#allocation2 + $0x1c] sm:$0xf]
      %v1650 = vld [vmem:[#allocation2 + $0x24] sm:$0xf]
      %v1651 = vld [vmem:[#allocation2 + $0x28] sm:$0xf]
      %v1652 = vld [vmem:[#allocation2 + $0x30] sm:$0xf]
      %v1653 = vld [vmem:[#allocation2 + $0x34] sm:$0xf]
      %v1654 = vld [vmem:[#allocation2 + $0x3c] sm:$0xf]
      %v1655 = vld [vmem:[#allocation2 + $0x40] sm:$0xf]
      %v1656 = vld [vmem:[#allocation2 + $0x48] sm:$0xf]
      %v1657 = vld [vmem:[#allocation2 + $0x4c] sm:$0xf]
      %v1658 = vld [vmem:[#allocation2 + $0x54] sm:$0xf]
      %v1659 = vld [vmem:[#allocation2 + $0x58] sm:$0xf]
      %v1660 = vld [vmem:[#allocation2 + $0x60] sm:$0xf]
      %v1661 = vld [vmem:[#allocation2 + $0x64] sm:$0xf]
      %v1662 = vld [vmem:[#allocation2 + $0x6c] sm:$0xf]
      %v1663 = vld [vmem:[#allocation2 + $0x70] sm:$0xf]
      %v1664 = vld [vmem:[#allocation2 + $0x78] sm:$0xf]
      %v1665 = vld [vmem:[#allocation2 + $0x7c] sm:$0xf]
      %v1666 = vld [vmem:[#allocation2 + $0x84] sm:$0xf]
      %v1667 = vld [vmem:[#allocation2 + $0x88] sm:$0xf]
      %v1668 = vld [vmem:[#allocation2 + $0x90] sm:$0xf]
      %v1669 = vld [vmem:[#allocation2 + $0x94] sm:$0xf]
      %v1670 = vld [vmem:[#allocation2 + $0x9c] sm:$0xf]
      %v1671 = vld [vmem:[#allocation2 + $0xa0] sm:$0xf]
      %v1672 = vld [vmem:[#allocation2 + $0xa8] sm:$0xf]
      %v1673 = vld [vmem:[#allocation2 + $0xac] sm:$0xf]
      %v1674 = vld [vmem:[#allocation2 + $0xb4] sm:$0xf]
      %v1675 = vld [vmem:[#allocation2 + $0xb8] sm:$0xf]
      %v1676 = vld [vmem:[#allocation2 + $0xc0] sm:$0xf]
      %v1677 = vld [vmem:[#allocation2 + $0xc4] sm:$0xf]
      %v1678 = vld [vmem:[#allocation2 + $0xcc] sm:$0xf]
      %v1679 = vld [vmem:[#allocation2 + $0xd0] sm:$0xf]
      %v1680 = vld [vmem:[#allocation2 + $0x8] sm:$0x1]
      %v1681 = vld [vmem:[#allocation2 + $0x14] sm:$0x1]
      %v1682 = vld [vmem:[#allocation2 + $0x20] sm:$0x1]
      %v1683 = vld [vmem:[#allocation2 + $0x2c] sm:$0x1]
      %v1684 = vld [vmem:[#allocation2 + $0x38] sm:$0x1]
      %v1685 = vld [vmem:[#allocation2 + $0x44] sm:$0x1]
      %v1686 = vld [vmem:[#allocation2 + $0x50] sm:$0x1]
      %v1687 = vld [vmem:[#allocation2 + $0x5c] sm:$0x1]
      %v1688 = vld [vmem:[#allocation2 + $0x68] sm:$0x1]
      %v1689 = vld [vmem:[#allocation2 + $0x74] sm:$0x1]
      %v1690 = vld [vmem:[#allocation2 + $0x80] sm:$0x1]
      %v1691 = vld [vmem:[#allocation2 + $0x8c] sm:$0x1]
      %v1692 = vld [vmem:[#allocation2 + $0x98] sm:$0x1]
      %v1693 = vld [vmem:[#allocation2 + $0xa4] sm:$0x1]
      %v1694 = vld [vmem:[#allocation2 + $0xb0] sm:$0x1]
      %v1695 = vld [vmem:[#allocation2 + $0xbc] sm:$0x1]
      %v1696 = vld [vmem:[#allocation2 + $0xc8] sm:$0x1]
      %v1697 = vld [vmem:[#allocation2 + $0xd4] sm:$0x1]
      %v1698 = vld [vmem:[#allocation2] sm:$0xe]
      %v1699 = vld [vmem:[#allocation2 + $0xc] sm:$0xe]
      %v1700 = vld [vmem:[#allocation2 + $0x18] sm:$0xe]
      %v1701 = vld [vmem:[#allocation2 + $0x24] sm:$0xe]
      %v1702 = vld [vmem:[#allocation2 + $0x30] sm:$0xe]
      %v1703 = vld [vmem:[#allocation2 + $0x3c] sm:$0xe]
      %v1704 = vld [vmem:[#allocation2 + $0x48] sm:$0xe]
      %v1705 = vld [vmem:[#allocation2 + $0x54] sm:$0xe]
      %v1706 = vld [vmem:[#allocation2 + $0x60] sm:$0xe]
      %v1707 = vld [vmem:[#allocation2 + $0x6c] sm:$0xe]
      %v1708 = vld [vmem:[#allocation2 + $0x78] sm:$0xe]
      %v1709 = vld [vmem:[#allocation2 + $0x84] sm:$0xe]
      %v1710 = vld [vmem:[#allocation2 + $0x90] sm:$0xe]
      %v1711 = vld [vmem:[#allocation2 + $0x9c] sm:$0xe]
      %v1712 = vld [vmem:[#allocation2 + $0xa8] sm:$0xe]
      %v1713 = vld [vmem:[#allocation2 + $0xb4] sm:$0xe]
      %v1714 = vld [vmem:[#allocation2 + $0xc0] sm:$0xe]
      %v1715 = vld [vmem:[#allocation2 + $0xcc] sm:$0xe]
      %v1752 = vunpack.c.l.b16 %v1644
      %v1753 = vunpack.c.l.b16 %v1645
      %v1754 = vunpack.c.l.b16 %v1646
      %v1755 = vunpack.c.l.b16 %v1647
      %v1756 = vunpack.c.l.b16 %v1648
      %v1757 = vunpack.c.l.b16 %v1649
      %v1758 = vunpack.c.l.b16 %v1650
      %v1759 = vunpack.c.l.b16 %v1651
      %v1760 = vunpack.c.l.b16 %v1652
      %v1761 = vunpack.c.l.b16 %v1653
      %v1762 = vunpack.c.l.b16 %v1654
      %v1763 = vunpack.c.l.b16 %v1655
      %v1764 = vunpack.c.l.b16 %v1656
      %v1765 = vunpack.c.l.b16 %v1657
      %v1766 = vunpack.c.l.b16 %v1658
      %v1767 = vunpack.c.l.b16 %v1659
      %v1768 = vunpack.c.l.b16 %v1660
      %v1769 = vunpack.c.l.b16 %v1661
      %v1770 = vunpack.c.l.b16 %v1662
      %v1771 = vunpack.c.l.b16 %v1663
      %v1772 = vunpack.c.l.b16 %v1664
      %v1773 = vunpack.c.l.b16 %v1665
      %v1774 = vunpack.c.l.b16 %v1666
      %v1775 = vunpack.c.l.b16 %v1667
      %v1776 = vunpack.c.l.b16 %v1668
      %v1777 = vunpack.c.l.b16 %v1669
      %v1778 = vunpack.c.l.b16 %v1670
      %v1779 = vunpack.c.l.b16 %v1671
      %v1780 = vunpack.c.l.b16 %v1672
      %v1781 = vunpack.c.l.b16 %v1673
      %v1782 = vunpack.c.l.b16 %v1674
      %v1783 = vunpack.c.l.b16 %v1675
      %v1784 = vunpack.c.l.b16 %v1676
      %v1785 = vunpack.c.l.b16 %v1677
      %v1786 = vunpack.c.l.b16 %v1678
      %v1787 = vunpack.c.l.b16 %v1679
      %v1788 = vpack.c.b16 %v1753, %v1752
      %v1789 = vpack.c.b16 %v1755, %v1754
      %v1790 = vpack.c.b16 %v1757, %v1756
      %v1791 = vpack.c.b16 %v1759, %v1758
      %v1792 = vpack.c.b16 %v1761, %v1760
      %v1793 = vpack.c.b16 %v1763, %v1762
      %v1794 = vpack.c.b16 %v1765, %v1764
      %v1795 = vpack.c.b16 %v1767, %v1766
      %v1796 = vpack.c.b16 %v1769, %v1768
      %v1797 = vpack.c.b16 %v1771, %v1770
      %v1798 = vpack.c.b16 %v1773, %v1772
      %v1799 = vpack.c.b16 %v1775, %v1774
      %v1800 = vpack.c.b16 %v1777, %v1776
      %v1801 = vpack.c.b16 %v1779, %v1778
      %v1802 = vpack.c.b16 %v1781, %v1780
      %v1803 = vpack.c.b16 %v1783, %v1782
      %v1804 = vpack.c.b16 %v1785, %v1784
      %v1805 = vpack.c.b16 %v1787, %v1786
      %v1842 = vunpack.c.l.b16 %v1680
      %v1843 = vunpack.c.l.b16 %v1681
      %v1844 = vunpack.c.l.b16 %v1682
      %v1845 = vunpack.c.l.b16 %v1683
      %v1846 = vunpack.c.l.b16 %v1684
      %v1847 = vunpack.c.l.b16 %v1685
      %v1848 = vunpack.c.l.b16 %v1686
      %v1849 = vunpack.c.l.b16 %v1687
      %v1850 = vunpack.c.l.b16 %v1688
      %v1851 = vunpack.c.l.b16 %v1689
      %v1852 = vunpack.c.l.b16 %v1690
      %v1853 = vunpack.c.l.b16 %v1691
      %v1854 = vunpack.c.l.b16 %v1692
      %v1855 = vunpack.c.l.b16 %v1693
      %v1856 = vunpack.c.l.b16 %v1694
      %v1857 = vunpack.c.l.b16 %v1695
      %v1858 = vunpack.c.l.b16 %v1696
      %v1859 = vunpack.c.l.b16 %v1697
      %v1860 = vpack.c.b16 %v1842, %v1842
      %v1861 = vpack.c.b16 %v1843, %v1843
      %v1862 = vpack.c.b16 %v1844, %v1844
      %v1863 = vpack.c.b16 %v1845, %v1845
      %v1864 = vpack.c.b16 %v1846, %v1846
      %v1865 = vpack.c.b16 %v1847, %v1847
      %v1866 = vpack.c.b16 %v1848, %v1848
      %v1867 = vpack.c.b16 %v1849, %v1849
      %v1868 = vpack.c.b16 %v1850, %v1850
      %v1869 = vpack.c.b16 %v1851, %v1851
      %v1870 = vpack.c.b16 %v1852, %v1852
      %v1871 = vpack.c.b16 %v1853, %v1853
      %v1872 = vpack.c.b16 %v1854, %v1854
      %v1873 = vpack.c.b16 %v1855, %v1855
      %v1874 = vpack.c.b16 %v1856, %v1856
      %v1875 = vpack.c.b16 %v1857, %v1857
      %v1876 = vpack.c.b16 %v1858, %v1858
      %v1877 = vpack.c.b16 %v1859, %v1859
      %vm1878 = vsmask.f32 7424
      %v1880 = vshrl.u32 %v1788, 16
      %v1882 = vshll.u32 %v1788, 16
      %v1884 = vrot.slane %v1882, 1
      %v1885 = vor.u32 %v1880, %v1884
      %v1887 = vshll.u32 %v1860, 16
      %v1889 = vrot.slane %v1887, 1
      %v1890 = vsel %vm1878, %v1885, %v1889
      %v1892 = vshrl.u32 %v1789, 16
      %v1894 = vshll.u32 %v1789, 16
      %v1896 = vrot.slane %v1894, 1
      %v1897 = vor.u32 %v1892, %v1896
      %v1899 = vshll.u32 %v1861, 16
      %v1901 = vrot.slane %v1899, 1
      %v1902 = vsel %vm1878, %v1897, %v1901
      %v1904 = vshrl.u32 %v1790, 16
      %v1906 = vshll.u32 %v1790, 16
      %v1908 = vrot.slane %v1906, 1
      %v1909 = vor.u32 %v1904, %v1908
      %v1911 = vshll.u32 %v1862, 16
      %v1913 = vrot.slane %v1911, 1
      %v1914 = vsel %vm1878, %v1909, %v1913
      %v1916 = vshrl.u32 %v1791, 16
      %v1918 = vshll.u32 %v1791, 16
      %v1920 = vrot.slane %v1918, 1
      %v1921 = vor.u32 %v1916, %v1920
      %v1923 = vshll.u32 %v1863, 16
      %v1925 = vrot.slane %v1923, 1
      %v1926 = vsel %vm1878, %v1921, %v1925
      %v1928 = vshrl.u32 %v1792, 16
      %v1930 = vshll.u32 %v1792, 16
      %v1932 = vrot.slane %v1930, 1
      %v1933 = vor.u32 %v1928, %v1932
      %v1935 = vshll.u32 %v1864, 16
      %v1937 = vrot.slane %v1935, 1
      %v1938 = vsel %vm1878, %v1933, %v1937
      %v1940 = vshrl.u32 %v1793, 16
      %v1942 = vshll.u32 %v1793, 16
      %v1944 = vrot.slane %v1942, 1
      %v1945 = vor.u32 %v1940, %v1944
      %v1947 = vshll.u32 %v1865, 16
      %v1949 = vrot.slane %v1947, 1
      %v1950 = vsel %vm1878, %v1945, %v1949
      %v1952 = vshrl.u32 %v1794, 16
      %v1954 = vshll.u32 %v1794, 16
      %v1956 = vrot.slane %v1954, 1
      %v1957 = vor.u32 %v1952, %v1956
      %v1959 = vshll.u32 %v1866, 16
      %v1961 = vrot.slane %v1959, 1
      %v1962 = vsel %vm1878, %v1957, %v1961
      %v1964 = vshrl.u32 %v1795, 16
      %v1966 = vshll.u32 %v1795, 16
      %v1968 = vrot.slane %v1966, 1
      %v1969 = vor.u32 %v1964, %v1968
      %v1971 = vshll.u32 %v1867, 16
      %v1973 = vrot.slane %v1971, 1
      %v1974 = vsel %vm1878, %v1969, %v1973
      %v1976 = vshrl.u32 %v1796, 16
      %v1978 = vshll.u32 %v1796, 16
      %v1980 = vrot.slane %v1978, 1
      %v1981 = vor.u32 %v1976, %v1980
      %v1983 = vshll.u32 %v1868, 16
      %v1985 = vrot.slane %v1983, 1
      %v1986 = vsel %vm1878, %v1981, %v1985
      %v1988 = vshrl.u32 %v1797, 16
      %v1990 = vshll.u32 %v1797, 16
      %v1992 = vrot.slane %v1990, 1
      %v1993 = vor.u32 %v1988, %v1992
      %v1995 = vshll.u32 %v1869, 16
      %v1997 = vrot.slane %v1995, 1
      %v1998 = vsel %vm1878, %v1993, %v1997
      %v2000 = vshrl.u32 %v1798, 16
      %v2002 = vshll.u32 %v1798, 16
      %v2004 = vrot.slane %v2002, 1
      %v2005 = vor.u32 %v2000, %v2004
      %v2007 = vshll.u32 %v1870, 16
      %v2009 = vrot.slane %v2007, 1
      %v2010 = vsel %vm1878, %v2005, %v2009
      %v2012 = vshrl.u32 %v1799, 16
      %v2014 = vshll.u32 %v1799, 16
      %v2016 = vrot.slane %v2014, 1
      %v2017 = vor.u32 %v2012, %v2016
      %v2019 = vshll.u32 %v1871, 16
      %v2021 = vrot.slane %v2019, 1
      %v2022 = vsel %vm1878, %v2017, %v2021
      %v2024 = vshrl.u32 %v1800, 16
      %v2026 = vshll.u32 %v1800, 16
      %v2028 = vrot.slane %v2026, 1
      %v2029 = vor.u32 %v2024, %v2028
      %v2031 = vshll.u32 %v1872, 16
      %v2033 = vrot.slane %v2031, 1
      %v2034 = vsel %vm1878, %v2029, %v2033
      %v2036 = vshrl.u32 %v1801, 16
      %v2038 = vshll.u32 %v1801, 16
      %v2040 = vrot.slane %v2038, 1
      %v2041 = vor.u32 %v2036, %v2040
      %v2043 = vshll.u32 %v1873, 16
      %v2045 = vrot.slane %v2043, 1
      %v2046 = vsel %vm1878, %v2041, %v2045
      %v2048 = vshrl.u32 %v1802, 16
      %v2050 = vshll.u32 %v1802, 16
      %v2052 = vrot.slane %v2050, 1
      %v2053 = vor.u32 %v2048, %v2052
      %v2055 = vshll.u32 %v1874, 16
      %v2057 = vrot.slane %v2055, 1
      %v2058 = vsel %vm1878, %v2053, %v2057
      %v2060 = vshrl.u32 %v1803, 16
      %v2062 = vshll.u32 %v1803, 16
      %v2064 = vrot.slane %v2062, 1
      %v2065 = vor.u32 %v2060, %v2064
      %v2067 = vshll.u32 %v1875, 16
      %v2069 = vrot.slane %v2067, 1
      %v2070 = vsel %vm1878, %v2065, %v2069
      %v2072 = vshrl.u32 %v1804, 16
      %v2074 = vshll.u32 %v1804, 16
      %v2076 = vrot.slane %v2074, 1
      %v2077 = vor.u32 %v2072, %v2076
      %v2079 = vshll.u32 %v1876, 16
      %v2081 = vrot.slane %v2079, 1
      %v2082 = vsel %vm1878, %v2077, %v2081
      %v2084 = vshrl.u32 %v1805, 16
      %v2086 = vshll.u32 %v1805, 16
      %v2088 = vrot.slane %v2086, 1
      %v2089 = vor.u32 %v2084, %v2088
      %v2091 = vshll.u32 %v1877, 16
      %v2093 = vrot.slane %v2091, 1
      %v2094 = vsel %vm1878, %v2089, %v2093
      %v2131 = vunpack.c.l.b16 %v1698
      %v2132 = vunpack.c.l.b16 %v1699
      %v2133 = vunpack.c.l.b16 %v1700
      %v2134 = vunpack.c.l.b16 %v1701
      %v2135 = vunpack.c.l.b16 %v1702
      %v2136 = vunpack.c.l.b16 %v1703
      %v2137 = vunpack.c.l.b16 %v1704
      %v2138 = vunpack.c.l.b16 %v1705
      %v2139 = vunpack.c.l.b16 %v1706
      %v2140 = vunpack.c.l.b16 %v1707
      %v2141 = vunpack.c.l.b16 %v1708
      %v2142 = vunpack.c.l.b16 %v1709
      %v2143 = vunpack.c.l.b16 %v1710
      %v2144 = vunpack.c.l.b16 %v1711
      %v2145 = vunpack.c.l.b16 %v1712
      %v2146 = vunpack.c.l.b16 %v1713
      %v2147 = vunpack.c.l.b16 %v1714
      %v2148 = vunpack.c.l.b16 %v1715
      %v2149 = vpack.c.b16 %v1753, %v2131
      %v2150 = vpack.c.b16 %v1755, %v2132
      %v2151 = vpack.c.b16 %v1757, %v2133
      %v2152 = vpack.c.b16 %v1759, %v2134
      %v2153 = vpack.c.b16 %v1761, %v2135
      %v2154 = vpack.c.b16 %v1763, %v2136
      %v2155 = vpack.c.b16 %v1765, %v2137
      %v2156 = vpack.c.b16 %v1767, %v2138
      %v2157 = vpack.c.b16 %v1769, %v2139
      %v2158 = vpack.c.b16 %v1771, %v2140
      %v2159 = vpack.c.b16 %v1773, %v2141
      %v2160 = vpack.c.b16 %v1775, %v2142
      %v2161 = vpack.c.b16 %v1777, %v2143
      %v2162 = vpack.c.b16 %v1779, %v2144
      %v2163 = vpack.c.b16 %v1781, %v2145
      %v2164 = vpack.c.b16 %v1783, %v2146
      %v2165 = vpack.c.b16 %v1785, %v2147
      %v2166 = vpack.c.b16 %v1787, %v2148
      %vm2167 = vcmask 1046528
      %v2168 = vrot.slane %v2149, 1
      %v2169 = vrot.slane %v1860, 1
      %v2170 = vsel %vm2167, %v2168, %v2169
      %v2171 = vrot.slane %v2150, 1
      %v2172 = vrot.slane %v1861, 1
      %v2173 = vsel %vm2167, %v2171, %v2172
      %v2174 = vrot.slane %v2151, 1
      %v2175 = vrot.slane %v1862, 1
      %v2176 = vsel %vm2167, %v2174, %v2175
      %v2177 = vrot.slane %v2152, 1
      %v2178 = vrot.slane %v1863, 1
      %v2179 = vsel %vm2167, %v2177, %v2178
      %v2180 = vrot.slane %v2153, 1
      %v2181 = vrot.slane %v1864, 1
      %v2182 = vsel %vm2167, %v2180, %v2181
      %v2183 = vrot.slane %v2154, 1
      %v2184 = vrot.slane %v1865, 1
      %v2185 = vsel %vm2167, %v2183, %v2184
      %v2186 = vrot.slane %v2155, 1
      %v2187 = vrot.slane %v1866, 1
      %v2188 = vsel %vm2167, %v2186, %v2187
      %v2189 = vrot.slane %v2156, 1
      %v2190 = vrot.slane %v1867, 1
      %v2191 = vsel %vm2167, %v2189, %v2190
      %v2192 = vrot.slane %v2157, 1
      %v2193 = vrot.slane %v1868, 1
      %v2194 = vsel %vm2167, %v2192, %v2193
      %v2195 = vrot.slane %v2158, 1
      %v2196 = vrot.slane %v1869, 1
      %v2197 = vsel %vm2167, %v2195, %v2196
      %v2198 = vrot.slane %v2159, 1
      %v2199 = vrot.slane %v1870, 1
      %v2200 = vsel %vm2167, %v2198, %v2199
      %v2201 = vrot.slane %v2160, 1
      %v2202 = vrot.slane %v1871, 1
      %v2203 = vsel %vm2167, %v2201, %v2202
      %v2204 = vrot.slane %v2161, 1
      %v2205 = vrot.slane %v1872, 1
      %v2206 = vsel %vm2167, %v2204, %v2205
      %v2207 = vrot.slane %v2162, 1
      %v2208 = vrot.slane %v1873, 1
      %v2209 = vsel %vm2167, %v2207, %v2208
      %v2210 = vrot.slane %v2163, 1
      %v2211 = vrot.slane %v1874, 1
      %v2212 = vsel %vm2167, %v2210, %v2211
      %v2213 = vrot.slane %v2164, 1
      %v2214 = vrot.slane %v1875, 1
      %v2215 = vsel %vm2167, %v2213, %v2214
      %v2216 = vrot.slane %v2165, 1
      %v2217 = vrot.slane %v1876, 1
      %v2218 = vsel %vm2167, %v2216, %v2217
      %v2219 = vrot.slane %v2166, 1
      %v2220 = vrot.slane %v1877, 1
      %v2221 = vsel %vm2167, %v2219, %v2220
      %v2240 = vld [vmem:[%s4] sm:$0xf]
      %v2241 = vld [vmem:[%s4 + $0x4] sm:$0xf]
      %v2242 = vld [vmem:[%s4 + $0x8] sm:$0xf]
      %v2243 = vld [vmem:[%s4 + $0xc] sm:$0xf]
      %v2244 = vld [vmem:[%s4 + $0x10] sm:$0xf]
      %v2245 = vld [vmem:[%s4 + $0x14] sm:$0xf]
      %v2246 = vld [vmem:[%s4 + $0x18] sm:$0xf]
      %v2247 = vld [vmem:[%s4 + $0x1c] sm:$0xf]
      %v2248 = vld [vmem:[%s4 + $0x20] sm:$0xf]
      %v2249 = vld [vmem:[%s4 + $0x24] sm:$0xf]
      %v2250 = vld [vmem:[%s4 + $0x28] sm:$0xf]
      %v2251 = vld [vmem:[%s4 + $0x2c] sm:$0xf]
      %v2252 = vld [vmem:[%s4 + $0x30] sm:$0xf]
      %v2253 = vld [vmem:[%s4 + $0x34] sm:$0xf]
      %v2254 = vld [vmem:[%s4 + $0x38] sm:$0xf]
      %v2255 = vld [vmem:[%s4 + $0x3c] sm:$0xf]
      %v2256 = vld [vmem:[%s4 + $0x40] sm:$0xf]
      %v2257 = vld [vmem:[%s4 + $0x44] sm:$0xf]
      %v2258 = vld [vmem:[%s4 + $0x48] sm:$0xf]
      %v2259 = vld [vmem:[%s4 + $0x4c] sm:$0xf]
      %v2260 = vld [vmem:[%s4 + $0x50] sm:$0xf]
      %v2261 = vld [vmem:[%s4 + $0x54] sm:$0xf]
      %v2262 = vld [vmem:[%s4 + $0x58] sm:$0xf]
      %v2263 = vld [vmem:[%s4 + $0x5c] sm:$0xf]
      %v2264 = vld [vmem:[%s4 + $0x60] sm:$0xf]
      %v2265 = vld [vmem:[%s4 + $0x64] sm:$0xf]
      %v2266 = vld [vmem:[%s4 + $0x68] sm:$0xf]
      %v2267 = vld [vmem:[%s4 + $0x6c] sm:$0xf]
      %v2268 = vld [vmem:[%s4 + $0x70] sm:$0xf]
      %v2269 = vld [vmem:[%s4 + $0x74] sm:$0xf]
      %v2270 = vld [vmem:[%s4 + $0x78] sm:$0xf]
      %v2271 = vld [vmem:[%s4 + $0x7c] sm:$0xf]
      %v2272 = vld [vmem:[%s4 + $0x80] sm:$0xf]
      %v2273 = vld [vmem:[%s4 + $0x84] sm:$0xf]
      %v2274 = vld [vmem:[%s4 + $0x88] sm:$0xf]
      %v2275 = vld [vmem:[%s4 + $0x8c] sm:$0xf]
      %v2276 = vld [vmem:[%s4 + $0x90] sm:$0xf]
      %v2277 = vld [vmem:[%s4 + $0x94] sm:$0xf]
      %v2278 = vld [vmem:[%s4 + $0x98] sm:$0xf]
      %v2279 = vld [vmem:[%s4 + $0x9c] sm:$0xf]
      %v2280 = vld [vmem:[%s4 + $0xa0] sm:$0xf]
      %v2281 = vld [vmem:[%s4 + $0xa4] sm:$0xf]
      %v2282 = vld [vmem:[%s4 + $0xa8] sm:$0xf]
      %v2283 = vld [vmem:[%s4 + $0xac] sm:$0xf]
      %v2284 = vld [vmem:[%s4 + $0xb0] sm:$0xf]
      %v2285 = vld [vmem:[%s4 + $0xb4] sm:$0xf]
      %v2286 = vld [vmem:[%s4 + $0xb8] sm:$0xf]
      %v2287 = vld [vmem:[%s4 + $0xbc] sm:$0xf]
      %s2288 = scalar_lea.vmem %s4, 192
      %v2289 = vld [vmem:[%s2288] sm:$0xf]
      %v2290 = vld [vmem:[%s2288 + $0x4] sm:$0xf]
      %v2291 = vld [vmem:[%s2288 + $0x8] sm:$0xf]
      %v2292 = vld [vmem:[%s2288 + $0xc] sm:$0xf]
      %v2293 = vld [vmem:[%s2288 + $0x10] sm:$0xf]
      %v2294 = vld [vmem:[%s2288 + $0x14] sm:$0xf]
      %v2295 = vld [vmem:[%s2288 + $0x18] sm:$0xf]
      %v2296 = vld [vmem:[%s2288 + $0x1c] sm:$0xf]
      %v2297 = vld [vmem:[%s2288 + $0x20] sm:$0xf]
      %v2298 = vld [vmem:[%s2288 + $0x24] sm:$0xf]
      %v2299 = vld [vmem:[%s2288 + $0x28] sm:$0xf]
      %v2300 = vld [vmem:[%s2288 + $0x2c] sm:$0xf]
      %v2301 = vld [vmem:[%s2288 + $0x30] sm:$0xf]
      %v2302 = vld [vmem:[%s2288 + $0x34] sm:$0xf]
      %v2303 = vld [vmem:[%s2288 + $0x38] sm:$0xf]
      %v2304 = vld [vmem:[%s2288 + $0x3c] sm:$0xf]
      %v2305 = vld [vmem:[%s2288 + $0x40] sm:$0xf]
      %v2306 = vld [vmem:[%s2288 + $0x44] sm:$0xf]
      %v2307 = vld [vmem:[%s2288 + $0x48] sm:$0xf]
      %v2308 = vld [vmem:[%s2288 + $0x4c] sm:$0xf]
      %v2309 = vld [vmem:[%s2288 + $0x50] sm:$0xf]
      %v2310 = vld [vmem:[%s2288 + $0x54] sm:$0xf]
      %v2311 = vld [vmem:[%s2288 + $0x58] sm:$0xf]
      %v2312 = vld [vmem:[%s2288 + $0x5c] sm:$0xf]
      %v2313 = vld [vmem:[%s2288 + $0x60] sm:$0xf]
      %v2314 = vld [vmem:[%s2288 + $0x64] sm:$0xf]
      %v2315 = vld [vmem:[%s2288 + $0x68] sm:$0xf]
      %v2316 = vld [vmem:[%s2288 + $0x6c] sm:$0xf]
      %v2317 = vld [vmem:[%s2288 + $0x70] sm:$0xf]
      %v2318 = vld [vmem:[%s2288 + $0x74] sm:$0xf]
      %v2319 = vld [vmem:[%s2288 + $0x78] sm:$0xf]
      %v2320 = vld [vmem:[%s2288 + $0x7c] sm:$0xf]
      %v2321 = vld [vmem:[%s2288 + $0x80] sm:$0xf]
      %v2322 = vld [vmem:[%s2288 + $0x84] sm:$0xf]
      %v2323 = vld [vmem:[%s2288 + $0x88] sm:$0xf]
      %v2324 = vld [vmem:[%s2288 + $0x8c] sm:$0xf]
      %v2325 = vld [vmem:[%s2288 + $0x90] sm:$0xf]
      %v2326 = vld [vmem:[%s2288 + $0x94] sm:$0xf]
      %v2327 = vld [vmem:[%s2288 + $0x98] sm:$0xf]
      %v2328 = vld [vmem:[%s2288 + $0x9c] sm:$0xf]
      %v2329 = vld [vmem:[%s2288 + $0xa0] sm:$0xf]
      %v2330 = vld [vmem:[%s2288 + $0xa4] sm:$0xf]
      %v2331 = vld [vmem:[%s2288 + $0xa8] sm:$0xf]
      %v2332 = vld [vmem:[%s2288 + $0xac] sm:$0xf]
      %v2333 = vld [vmem:[%s2288 + $0xb0] sm:$0xf]
      %v2334 = vld [vmem:[%s2288 + $0xb4] sm:$0xf]
      %v2335 = vld [vmem:[%s2288 + $0xb8] sm:$0xf]
      %v2336 = vld [vmem:[%s2288 + $0xbc] sm:$0xf]
      %v2385 = vunpack.c.l.b16 %v2289
      %v2386 = vunpack.c.l.b16 %v2290
      %v2387 = vunpack.c.l.b16 %v2291
      %v2388 = vunpack.c.l.b16 %v2292
      %v2389 = vunpack.c.l.b16 %v2293
      %v2390 = vunpack.c.l.b16 %v2294
      %v2391 = vunpack.c.l.b16 %v2295
      %v2392 = vunpack.c.l.b16 %v2296
      %v2393 = vunpack.c.l.b16 %v2297
      %v2394 = vunpack.c.l.b16 %v2298
      %v2395 = vunpack.c.l.b16 %v2299
      %v2396 = vunpack.c.l.b16 %v2300
      %v2397 = vunpack.c.l.b16 %v2301
      %v2398 = vunpack.c.l.b16 %v2302
      %v2399 = vunpack.c.l.b16 %v2303
      %v2400 = vunpack.c.l.b16 %v2304
      %v2401 = vunpack.c.l.b16 %v2305
      %v2402 = vunpack.c.l.b16 %v2306
      %v2403 = vunpack.c.l.b16 %v2307
      %v2404 = vunpack.c.l.b16 %v2308
      %v2405 = vunpack.c.l.b16 %v2309
      %v2406 = vunpack.c.l.b16 %v2310
      %v2407 = vunpack.c.l.b16 %v2311
      %v2408 = vunpack.c.l.b16 %v2312
      %v2409 = vunpack.c.l.b16 %v2313
      %v2410 = vunpack.c.l.b16 %v2314
      %v2411 = vunpack.c.l.b16 %v2315
      %v2412 = vunpack.c.l.b16 %v2316
      %v2413 = vunpack.c.l.b16 %v2317
      %v2414 = vunpack.c.l.b16 %v2318
      %v2415 = vunpack.c.l.b16 %v2319
      %v2416 = vunpack.c.l.b16 %v2320
      %v2417 = vunpack.c.l.b16 %v2321
      %v2418 = vunpack.c.l.b16 %v2322
      %v2419 = vunpack.c.l.b16 %v2323
      %v2420 = vunpack.c.l.b16 %v2324
      %v2421 = vunpack.c.l.b16 %v2325
      %v2422 = vunpack.c.l.b16 %v2326
      %v2423 = vunpack.c.l.b16 %v2327
      %v2424 = vunpack.c.l.b16 %v2328
      %v2425 = vunpack.c.l.b16 %v2329
      %v2426 = vunpack.c.l.b16 %v2330
      %v2427 = vunpack.c.l.b16 %v2331
      %v2428 = vunpack.c.l.b16 %v2332
      %v2429 = vunpack.c.l.b16 %v2333
      %v2430 = vunpack.c.l.b16 %v2334
      %v2431 = vunpack.c.l.b16 %v2335
      %v2432 = vunpack.c.l.b16 %v2336
      %v2433 = vpack.c.b16 %v2386, %v2385
      %v2434 = vpack.c.b16 %v2388, %v2387
      %v2435 = vpack.c.b16 %v2390, %v2389
      %v2436 = vpack.c.b16 %v2392, %v2391
      %v2437 = vpack.c.b16 %v2394, %v2393
      %v2438 = vpack.c.b16 %v2396, %v2395
      %v2439 = vpack.c.b16 %v2398, %v2397
      %v2440 = vpack.c.b16 %v2400, %v2399
      %v2441 = vpack.c.b16 %v2402, %v2401
      %v2442 = vpack.c.b16 %v2404, %v2403
      %v2443 = vpack.c.b16 %v2406, %v2405
      %v2444 = vpack.c.b16 %v2408, %v2407
      %v2445 = vpack.c.b16 %v2410, %v2409
      %v2446 = vpack.c.b16 %v2412, %v2411
      %v2447 = vpack.c.b16 %v2414, %v2413
      %v2448 = vpack.c.b16 %v2416, %v2415
      %v2449 = vpack.c.b16 %v2418, %v2417
      %v2450 = vpack.c.b16 %v2420, %v2419
      %v2451 = vpack.c.b16 %v2422, %v2421
      %v2452 = vpack.c.b16 %v2424, %v2423
      %v2453 = vpack.c.b16 %v2426, %v2425
      %v2454 = vpack.c.b16 %v2428, %v2427
      %v2455 = vpack.c.b16 %v2430, %v2429
      %v2456 = vpack.c.b16 %v2432, %v2431
      %2481 = vmatprep.subr.bf16.mxu0 0
      %2482 = vmatpush1.bf16.msra.mxu0 %v2433
      %2483 = vmatprep.subr.bf16.mxu0 0
      %2484 = vmatpush1.bf16.msra.mxu0 %v2434
      %2485 = vmatprep.subr.bf16.mxu0 0
      %2486 = vmatpush1.bf16.msra.mxu0 %v2435
      %2487 = vmatprep.subr.bf16.mxu0 0
      %2488 = vmatpush1.bf16.msra.mxu0 %v2436
      %2489 = vmatprep.subr.bf16.mxu0 0
      %2490 = vmatpush1.bf16.msra.mxu0 %v2437
      %2491 = vmatprep.subr.bf16.mxu0 0
      %2492 = vmatpush1.bf16.msra.mxu0 %v2438
      %2493 = vmatprep.subr.bf16.mxu0 0
      %2494 = vmatpush1.bf16.msra.mxu0 %v2439
      %2495 = vmatprep.subr.bf16.mxu0 0
      %2496 = vmatpush1.bf16.msra.mxu0 %v2440
      %2497 = vmatprep.subr.bf16.mxu0 0
      %2498 = vmatpush1.bf16.msra.mxu0 %v2441
      %2499 = vmatprep.subr.bf16.mxu0 0
      %2500 = vmatpush1.bf16.msra.mxu0 %v2442
      %2501 = vmatprep.subr.bf16.mxu0 0
      %2502 = vmatpush1.bf16.msra.mxu0 %v2443
      %2503 = vmatprep.subr.bf16.mxu0 0
      %2504 = vmatpush1.bf16.msra.mxu0 %v2444
      %2505 = vmatprep.subr.bf16.mxu0 0
      %2506 = vmatpush1.bf16.msra.mxu0 %v2445
      %2507 = vmatprep.subr.bf16.mxu0 0
      %2508 = vmatpush1.bf16.msra.mxu0 %v2446
      %2509 = vmatprep.subr.bf16.mxu0 0
      %2510 = vmatpush1.bf16.msra.mxu0 %v2447
      %2511 = vmatprep.subr.bf16.mxu0 0
      %2512 = vmatpush1.bf16.msra.mxu0 %v2448
      %2513 = vmatprep.mubr.bf16.mxu0 %v1902
      %2514 = vmatmul.mubr.bf16.gmra.mrb[0].mxu0 %v1789
      %v2515 = vpop.f32.mrb[0].mxu0
      %v2516 = vadd.f32 0.0, %v2515
      %v2517 = vpop.f32.mrb[0].mxu0
      %v2518 = vpop.f32.mrb[0].mxu0
      %v2519 = vadd.f32 0.0, %v2518
      %v2520 = vpop.f32.mrb[0].mxu0
      %2521 = vmatprep.mubr.bf16.mxu0 %v1914
      %2522 = vmatmul.mubr.bf16.gmra.mrb[0].mxu0 %v1790
      %v2523 = vpop.f32.mrb[0].mxu0
      %v2524 = vadd.f32 0.0, %v2523
      %v2525 = vpop.f32.mrb[0].mxu0
      %v2526 = vpop.f32.mrb[0].mxu0
      %v2527 = vadd.f32 0.0, %v2526
      %v2528 = vpop.f32.mrb[0].mxu0
      %2529 = vmatprep.mubr.bf16.mxu0 %v1926
      %2530 = vmatmul.mubr.bf16.gmra.mrb[0].mxu0 %v1791
      %v2531 = vpop.f32.mrb[0].mxu0
      %v2532 = vadd.f32 0.0, %v2531
      %v2533 = vpop.f32.mrb[0].mxu0
      %v2534 = vpop.f32.mrb[0].mxu0
      %v2535 = vadd.f32 0.0, %v2534
      %v2536 = vpop.f32.mrb[0].mxu0
      %2537 = vmatprep.mubr.bf16.mxu0 %v1938
      %2538 = vmatmul.mubr.bf16.gmra.mrb[0].mxu0 %v1792
      %v2539 = vpop.f32.mrb[0].mxu0
      %v2540 = vadd.f32 0.0, %v2539
      %v2541 = vpop.f32.mrb[0].mxu0
      %v2542 = vpop.f32.mrb[0].mxu0
      %v2543 = vadd.f32 0.0, %v2542
      %v2544 = vpop.f32.mrb[0].mxu0
      %2545 = vmatprep.mubr.bf16.mxu0 %v1950
      %2546 = vmatmul.mubr.bf16.gmra.mrb[0].mxu0 %v1793
      %v2547 = vpop.f32.mrb[0].mxu0
      %v2548 = vadd.f32 0.0, %v2547
      %v2549 = vpop.f32.mrb[0].mxu0
      %v2550 = vpop.f32.mrb[0].mxu0
      %v2551 = vadd.f32 0.0, %v2550
      %v2552 = vpop.f32.mrb[0].mxu0
      %2553 = vmatprep.mubr.bf16.mxu0 %v1962
      %2554 = vmatmul.mubr.bf16.gmra.mrb[0].mxu0 %v1794
      %v2555 = vpop.f32.mrb[0].mxu0
      %v2556 = vadd.f32 0.0, %v2555
      %v2557 = vpop.f32.mrb[0].mxu0
      %v2558 = vpop.f32.mrb[0].mxu0
      %v2559 = vadd.f32 0.0, %v2558
      %v2560 = vpop.f32.mrb[0].mxu0
      %2561 = vmatprep.mubr.bf16.mxu0 %v1974
      %2562 = vmatmul.mubr.bf16.gmra.mrb[0].mxu0 %v1795
      %v2563 = vpop.f32.mrb[0].mxu0
      %v2564 = vadd.f32 0.0, %v2563
      %v2565 = vpop.f32.mrb[0].mxu0
      %v2566 = vpop.f32.mrb[0].mxu0
      %v2567 = vadd.f32 0.0, %v2566
      %v2568 = vpop.f32.mrb[0].mxu0
      %2569 = vmatprep.mubr.bf16.mxu0 %v1986
      %2570 = vmatmul.mubr.bf16.gmra.mrb[0].mxu0 %v1796
      %v2571 = vpop.f32.mrb[0].mxu0
      %v2572 = vadd.f32 0.0, %v2571
      %v2573 = vpop.f32.mrb[0].mxu0
      %v2574 = vpop.f32.mrb[0].mxu0
      %v2575 = vadd.f32 0.0, %v2574
      %v2576 = vpop.f32.mrb[0].mxu0
      %2577 = vmatprep.mubr.bf16.mxu0 %v1998
      %2578 = vmatmul.mubr.bf16.gmra.mrb[0].mxu0 %v1797
      %v2579 = vpop.f32.mrb[0].mxu0
      %v2580 = vadd.f32 0.0, %v2579
      %v2581 = vpop.f32.mrb[0].mxu0
      %v2582 = vpop.f32.mrb[0].mxu0
      %v2583 = vadd.f32 0.0, %v2582
      %v2584 = vpop.f32.mrb[0].mxu0
      %2585 = vmatprep.mubr.bf16.mxu0 %v2010
      %2586 = vmatmul.mubr.bf16.gmra.mrb[0].mxu0 %v1798
      %v2587 = vpop.f32.mrb[0].mxu0
      %v2588 = vadd.f32 0.0, %v2587
      %v2589 = vpop.f32.mrb[0].mxu0
      %v2590 = vpop.f32.mrb[0].mxu0
      %v2591 = vadd.f32 0.0, %v2590
      %v2592 = vpop.f32.mrb[0].mxu0
      %2593 = vmatprep.mubr.bf16.mxu0 %v2022
      %2594 = vmatmul.mubr.bf16.gmra.mrb[0].mxu0 %v1799
      %v2595 = vpop.f32.mrb[0].mxu0
      %v2596 = vadd.f32 0.0, %v2595
      %v2597 = vpop.f32.mrb[0].mxu0
      %v2598 = vpop.f32.mrb[0].mxu0
      %v2599 = vadd.f32 0.0, %v2598
      %v2600 = vpop.f32.mrb[0].mxu0
      %2601 = vmatprep.mubr.bf16.mxu0 %v2034
      %2602 = vmatmul.mubr.bf16.gmra.mrb[0].mxu0 %v1800
      %v2603 = vpop.f32.mrb[0].mxu0
      %v2604 = vadd.f32 0.0, %v2603
      %v2605 = vpop.f32.mrb[0].mxu0
      %v2606 = vpop.f32.mrb[0].mxu0
      %v2607 = vadd.f32 0.0, %v2606
      %v2608 = vpop.f32.mrb[0].mxu0
      %2609 = vmatprep.mubr.bf16.mxu0 %v2046
      %2610 = vmatmul.mubr.bf16.gmra.mrb[0].mxu0 %v1801
      %v2611 = vpop.f32.mrb[0].mxu0
      %v2612 = vadd.f32 0.0, %v2611
      %v2613 = vpop.f32.mrb[0].mxu0
      %v2614 = vpop.f32.mrb[0].mxu0
      %v2615 = vadd.f32 0.0, %v2614
      %v2616 = vpop.f32.mrb[0].mxu0
      %2617 = vmatprep.mubr.bf16.mxu0 %v2058
      %2618 = vmatmul.mubr.bf16.gmra.mrb[0].mxu0 %v1802
      %v2619 = vpop.f32.mrb[0].mxu0
      %v2620 = vadd.f32 0.0, %v2619
      %v2621 = vpop.f32.mrb[0].mxu0
      %v2622 = vpop.f32.mrb[0].mxu0
      %v2623 = vadd.f32 0.0, %v2622
      %v2624 = vpop.f32.mrb[0].mxu0
      %2625 = vmatprep.mubr.bf16.mxu0 %v2070
      %2626 = vmatmul.mubr.bf16.gmra.mrb[0].mxu0 %v1803
      %v2627 = vpop.f32.mrb[0].mxu0
      %v2628 = vadd.f32 0.0, %v2627
      %v2629 = vpop.f32.mrb[0].mxu0
      %v2630 = vpop.f32.mrb[0].mxu0
      %v2631 = vadd.f32 0.0, %v2630
      %v2632 = vpop.f32.mrb[0].mxu0
      %2633 = vmatprep.mubr.bf16.mxu0 %v2082
      %2634 = vmatmul.mubr.bf16.gmra.mrb[0].mxu0 %v1804
      %v2635 = vpop.f32.mrb[0].mxu0
      %v2636 = vadd.f32 0.0, %v2635
      %v2637 = vpop.f32.mrb[0].mxu0
      %v2638 = vpop.f32.mrb[0].mxu0
      %v2639 = vadd.f32 0.0, %v2638
      %v2640 = vpop.f32.mrb[0].mxu0
      %2641 = vdwg.mxu0
      %2642 = vmatprep.subr.bf16.mxu0 0
      %2643 = vmatpush1.bf16.msra.mxu0 %v2449
      %2644 = vmatprep.subr.bf16.mxu0 0
      %2645 = vmatpush1.bf16.msra.mxu0 %v2450
      %2646 = vmatprep.subr.bf16.mxu0 0
      %2647 = vmatpush1.bf16.msra.mxu0 %v2451
      %2648 = vmatprep.subr.bf16.mxu0 0
      %2649 = vmatpush1.bf16.msra.mxu0 %v2452
      %2650 = vmatprep.subr.bf16.mxu0 0
      %2651 = vmatpush1.bf16.msra.mxu0 %v2453
      %2652 = vmatprep.subr.bf16.mxu0 0
      %2653 = vmatpush1.bf16.msra.mxu0 %v2454
      %2654 = vmatprep.subr.bf16.mxu0 0
      %2655 = vmatpush1.bf16.msra.mxu0 %v2455
      %2656 = vmatprep.subr.bf16.mxu0 0
      %2657 = vmatpush1.bf16.msra.mxu0 %v2456
      %2658 = vmatprep.subr.bf16.mxu0 0
      %2659 = vmatpush1.bf16.msra.mxu0 0
      %2660 = vmatprep.subr.bf16.mxu0 0
      %2661 = vmatpush1.bf16.msra.mxu0 0
      %2662 = vmatprep.subr.bf16.mxu0 0
      %2663 = vmatpush1.bf16.msra.mxu0 0
      %2664 = vmatprep.subr.bf16.mxu0 0
      %2665 = vmatpush1.bf16.msra.mxu0 0
      %2666 = vmatprep.subr.bf16.mxu0 0
      %2667 = vmatpush1.bf16.msra.mxu0 0
      %2668 = vmatprep.subr.bf16.mxu0 0
      %2669 = vmatpush1.bf16.msra.mxu0 0
      %2670 = vmatprep.subr.bf16.mxu0 0
      %2671 = vmatpush1.bf16.msra.mxu0 0
      %2672 = vmatprep.subr.bf16.mxu0 0
      %2673 = vmatpush1.bf16.msra.mxu0 0
      %2674 = vmatprep.mubr.bf16.mxu0 0
      %2675 = vmatmul.mubr.bf16.gmra.mrb[0].mxu0 %v2173
      %v2676 = vpop.f32.mrb[0].mxu0
      %v2677 = vadd.f32 %v2516, %v2676
      %v2678 = vpop.f32.mrb[0].mxu0
      %v2679 = vpop.f32.mrb[0].mxu0
      %v2680 = vadd.f32 %v2519, %v2679
      %v2681 = vpop.f32.mrb[0].mxu0
      %2682 = vmatprep.mubr.bf16.mxu0 0
      %2683 = vmatmul.mubr.bf16.gmra.mrb[0].mxu0 %v2176
      %v2684 = vpop.f32.mrb[0].mxu0
      %v2685 = vadd.f32 %v2524, %v2684
      %v2686 = vpop.f32.mrb[0].mxu0
      %v2687 = vpop.f32.mrb[0].mxu0
      %v2688 = vadd.f32 %v2527, %v2687
      %v2689 = vpop.f32.mrb[0].mxu0
      %2690 = vmatprep.mubr.bf16.mxu0 0
      %2691 = vmatmul.mubr.bf16.gmra.mrb[0].mxu0 %v2179
      %v2692 = vpop.f32.mrb[0].mxu0
      %v2693 = vadd.f32 %v2532, %v2692
      %v2694 = vpop.f32.mrb[0].mxu0
      %v2695 = vpop.f32.mrb[0].mxu0
      %v2696 = vadd.f32 %v2535, %v2695
      %v2697 = vpop.f32.mrb[0].mxu0
      %2698 = vmatprep.mubr.bf16.mxu0 0
      %2699 = vmatmul.mubr.bf16.gmra.mrb[0].mxu0 %v2182
      %v2700 = vpop.f32.mrb[0].mxu0
      %v2701 = vadd.f32 %v2540, %v2700
      %v2702 = vpop.f32.mrb[0].mxu0
      %v2703 = vpop.f32.mrb[0].mxu0
      %v2704 = vadd.f32 %v2543, %v2703
      %v2705 = vpop.f32.mrb[0].mxu0
      %2706 = vmatprep.mubr.bf16.mxu0 0
      %2707 = vmatmul.mubr.bf16.gmra.mrb[0].mxu0 %v2185
      %v2708 = vpop.f32.mrb[0].mxu0
      %v2709 = vadd.f32 %v2548, %v2708
      %v2710 = vpop.f32.mrb[0].mxu0
      %v2711 = vpop.f32.mrb[0].mxu0
      %v2712 = vadd.f32 %v2551, %v2711
      %v2713 = vpop.f32.mrb[0].mxu0
      %2714 = vmatprep.mubr.bf16.mxu0 0
      %2715 = vmatmul.mubr.bf16.gmra.mrb[0].mxu0 %v2188
      %v2716 = vpop.f32.mrb[0].mxu0
      %v2717 = vadd.f32 %v2556, %v2716
      %v2718 = vpop.f32.mrb[0].mxu0
      %v2719 = vpop.f32.mrb[0].mxu0
      %v2720 = vadd.f32 %v2559, %v2719
      %v2721 = vpop.f32.mrb[0].mxu0
      %2722 = vmatprep.mubr.bf16.mxu0 0
      %2723 = vmatmul.mubr.bf16.gmra.mrb[0].mxu0 %v2191
      %v2724 = vpop.f32.mrb[0].mxu0
      %v2725 = vadd.f32 %v2564, %v2724
      %v2726 = vpop.f32.mrb[0].mxu0
      %v2727 = vpop.f32.mrb[0].mxu0
      %v2728 = vadd.f32 %v2567, %v2727
      %v2729 = vpop.f32.mrb[0].mxu0
      %2730 = vmatprep.mubr.bf16.mxu0 0
      %2731 = vmatmul.mubr.bf16.gmra.mrb[0].mxu0 %v2194
      %v2732 = vpop.f32.mrb[0].mxu0
      %v2733 = vadd.f32 %v2572, %v2732
      %v2734 = vpop.f32.mrb[0].mxu0
      %v2735 = vpop.f32.mrb[0].mxu0
      %v2736 = vadd.f32 %v2575, %v2735
      %v2737 = vpop.f32.mrb[0].mxu0
      %2738 = vmatprep.mubr.bf16.mxu0 0
      %2739 = vmatmul.mubr.bf16.gmra.mrb[0].mxu0 %v2197
      %v2740 = vpop.f32.mrb[0].mxu0
      %v2741 = vadd.f32 %v2580, %v2740
      %v2742 = vpop.f32.mrb[0].mxu0
      %v2743 = vpop.f32.mrb[0].mxu0
      %v2744 = vadd.f32 %v2583, %v2743
      %v2745 = vpop.f32.mrb[0].mxu0
      %2746 = vmatprep.mubr.bf16.mxu0 0
      %2747 = vmatmul.mubr.bf16.gmra.mrb[0].mxu0 %v2200
      %v2748 = vpop.f32.mrb[0].mxu0
      %v2749 = vadd.f32 %v2588, %v2748
      %v2750 = vpop.f32.mrb[0].mxu0
      %v2751 = vpop.f32.mrb[0].mxu0
      %v2752 = vadd.f32 %v2591, %v2751
      %v2753 = vpop.f32.mrb[0].mxu0
      %2754 = vmatprep.mubr.bf16.mxu0 0
      %2755 = vmatmul.mubr.bf16.gmra.mrb[0].mxu0 %v2203
      %v2756 = vpop.f32.mrb[0].mxu0
      %v2757 = vadd.f32 %v2596, %v2756
      %v2758 = vpop.f32.mrb[0].mxu0
      %v2759 = vpop.f32.mrb[0].mxu0
      %v2760 = vadd.f32 %v2599, %v2759
      %v2761 = vpop.f32.mrb[0].mxu0
      %2762 = vmatprep.mubr.bf16.mxu0 0
      %2763 = vmatmul.mubr.bf16.gmra.mrb[0].mxu0 %v2206
      %v2764 = vpop.f32.mrb[0].mxu0
      %v2765 = vadd.f32 %v2604, %v2764
      %v2766 = vpop.f32.mrb[0].mxu0
      %v2767 = vpop.f32.mrb[0].mxu0
      %v2768 = vadd.f32 %v2607, %v2767
      %v2769 = vpop.f32.mrb[0].mxu0
      %2770 = vmatprep.mubr.bf16.mxu0 0
      %2771 = vmatmul.mubr.bf16.gmra.mrb[0].mxu0 %v2209
      %v2772 = vpop.f32.mrb[0].mxu0
      %v2773 = vadd.f32 %v2612, %v2772
      %v2774 = vpop.f32.mrb[0].mxu0
      %v2775 = vpop.f32.mrb[0].mxu0
      %v2776 = vadd.f32 %v2615, %v2775
      %v2777 = vpop.f32.mrb[0].mxu0
      %2778 = vmatprep.mubr.bf16.mxu0 0
      %2779 = vmatmul.mubr.bf16.gmra.mrb[0].mxu0 %v2212
      %v2780 = vpop.f32.mrb[0].mxu0
      %v2781 = vadd.f32 %v2620, %v2780
      %v2782 = vpop.f32.mrb[0].mxu0
      %v2783 = vpop.f32.mrb[0].mxu0
      %v2784 = vadd.f32 %v2623, %v2783
      %v2785 = vpop.f32.mrb[0].mxu0
      %2786 = vmatprep.mubr.bf16.mxu0 0
      %2787 = vmatmul.mubr.bf16.gmra.mrb[0].mxu0 %v2215
      %v2788 = vpop.f32.mrb[0].mxu0
      %v2789 = vadd.f32 %v2628, %v2788
      %v2790 = vpop.f32.mrb[0].mxu0
      %v2791 = vpop.f32.mrb[0].mxu0
      %v2792 = vadd.f32 %v2631, %v2791
      %v2793 = vpop.f32.mrb[0].mxu0
      %2794 = vmatprep.mubr.bf16.mxu0 0
      %2795 = vmatmul.mubr.bf16.gmra.mrb[0].mxu0 %v2218
      %v2796 = vpop.f32.mrb[0].mxu0
      %v2797 = vadd.f32 %v2636, %v2796
      %v2798 = vpop.f32.mrb[0].mxu0
      %v2799 = vpop.f32.mrb[0].mxu0
      %v2800 = vadd.f32 %v2639, %v2799
      %v2801 = vpop.f32.mrb[0].mxu0
      %2802 = vdwg.mxu0
      %v2851 = vunpack.c.l.b16 %v2240
      %v2852 = vunpack.c.l.b16 %v2241
      %v2853 = vunpack.c.l.b16 %v2242
      %v2854 = vunpack.c.l.b16 %v2243
      %v2855 = vunpack.c.l.b16 %v2244
      %v2856 = vunpack.c.l.b16 %v2245
      %v2857 = vunpack.c.l.b16 %v2246
      %v2858 = vunpack.c.l.b16 %v2247
      %v2859 = vunpack.c.l.b16 %v2248
      %v2860 = vunpack.c.l.b16 %v2249
      %v2861 = vunpack.c.l.b16 %v2250
      %v2862 = vunpack.c.l.b16 %v2251
      %v2863 = vunpack.c.l.b16 %v2252
      %v2864 = vunpack.c.l.b16 %v2253
      %v2865 = vunpack.c.l.b16 %v2254
      %v2866 = vunpack.c.l.b16 %v2255
      %v2867 = vunpack.c.l.b16 %v2256
      %v2868 = vunpack.c.l.b16 %v2257
      %v2869 = vunpack.c.l.b16 %v2258
      %v2870 = vunpack.c.l.b16 %v2259
      %v2871 = vunpack.c.l.b16 %v2260
      %v2872 = vunpack.c.l.b16 %v2261
      %v2873 = vunpack.c.l.b16 %v2262
      %v2874 = vunpack.c.l.b16 %v2263
      %v2875 = vunpack.c.l.b16 %v2264
      %v2876 = vunpack.c.l.b16 %v2265
      %v2877 = vunpack.c.l.b16 %v2266
      %v2878 = vunpack.c.l.b16 %v2267
      %v2879 = vunpack.c.l.b16 %v2268
      %v2880 = vunpack.c.l.b16 %v2269
      %v2881 = vunpack.c.l.b16 %v2270
      %v2882 = vunpack.c.l.b16 %v2271
      %v2883 = vunpack.c.l.b16 %v2272
      %v2884 = vunpack.c.l.b16 %v2273
      %v2885 = vunpack.c.l.b16 %v2274
      %v2886 = vunpack.c.l.b16 %v2275
      %v2887 = vunpack.c.l.b16 %v2276
      %v2888 = vunpack.c.l.b16 %v2277
      %v2889 = vunpack.c.l.b16 %v2278
      %v2890 = vunpack.c.l.b16 %v2279
      %v2891 = vunpack.c.l.b16 %v2280
      %v2892 = vunpack.c.l.b16 %v2281
      %v2893 = vunpack.c.l.b16 %v2282
      %v2894 = vunpack.c.l.b16 %v2283
      %v2895 = vunpack.c.l.b16 %v2284
      %v2896 = vunpack.c.l.b16 %v2285
      %v2897 = vunpack.c.l.b16 %v2286
      %v2898 = vunpack.c.l.b16 %v2287
      %v2899 = vpack.c.b16 %v2852, %v2851
      %v2900 = vpack.c.b16 %v2854, %v2853
      %v2901 = vpack.c.b16 %v2856, %v2855
      %v2902 = vpack.c.b16 %v2858, %v2857
      %v2903 = vpack.c.b16 %v2860, %v2859
      %v2904 = vpack.c.b16 %v2862, %v2861
      %v2905 = vpack.c.b16 %v2864, %v2863
      %v2906 = vpack.c.b16 %v2866, %v2865
      %v2907 = vpack.c.b16 %v2868, %v2867
      %v2908 = vpack.c.b16 %v2870, %v2869
      %v2909 = vpack.c.b16 %v2872, %v2871
      %v2910 = vpack.c.b16 %v2874, %v2873
      %v2911 = vpack.c.b16 %v2876, %v2875
      %v2912 = vpack.c.b16 %v2878, %v2877
      %v2913 = vpack.c.b16 %v2880, %v2879
      %v2914 = vpack.c.b16 %v2882, %v2881
      %v2915 = vpack.c.b16 %v2884, %v2883
      %v2916 = vpack.c.b16 %v2886, %v2885
      %v2917 = vpack.c.b16 %v2888, %v2887
      %v2918 = vpack.c.b16 %v2890, %v2889
      %v2919 = vpack.c.b16 %v2892, %v2891
      %v2920 = vpack.c.b16 %v2894, %v2893
      %v2921 = vpack.c.b16 %v2896, %v2895
      %v2922 = vpack.c.b16 %v2898, %v2897
      %2947 = vmatprep.subr.bf16.mxu0 0
      %2948 = vmatpush1.bf16.msra.mxu0 %v2899
      %2949 = vmatprep.subr.bf16.mxu0 0
      %2950 = vmatpush1.bf16.msra.mxu0 %v2900
      %2951 = vmatprep.subr.bf16.mxu0 0
      %2952 = vmatpush1.bf16.msra.mxu0 %v2901
      %2953 = vmatprep.subr.bf16.mxu0 0
      %2954 = vmatpush1.bf16.msra.mxu0 %v2902
      %2955 = vmatprep.subr.bf16.mxu0 0
      %2956 = vmatpush1.bf16.msra.mxu0 %v2903
      %2957 = vmatprep.subr.bf16.mxu0 0
      %2958 = vmatpush1.bf16.msra.mxu0 %v2904
      %2959 = vmatprep.subr.bf16.mxu0 0
      %2960 = vmatpush1.bf16.msra.mxu0 %v2905
      %2961 = vmatprep.subr.bf16.mxu0 0
      %2962 = vmatpush1.bf16.msra.mxu0 %v2906
      %2963 = vmatprep.subr.bf16.mxu0 0
      %2964 = vmatpush1.bf16.msra.mxu0 %v2907
      %2965 = vmatprep.subr.bf16.mxu0 0
      %2966 = vmatpush1.bf16.msra.mxu0 %v2908
      %2967 = vmatprep.subr.bf16.mxu0 0
      %2968 = vmatpush1.bf16.msra.mxu0 %v2909
      %2969 = vmatprep.subr.bf16.mxu0 0
      %2970 = vmatpush1.bf16.msra.mxu0 %v2910
      %2971 = vmatprep.subr.bf16.mxu0 0
      %2972 = vmatpush1.bf16.msra.mxu0 %v2911
      %2973 = vmatprep.subr.bf16.mxu0 0
      %2974 = vmatpush1.bf16.msra.mxu0 %v2912
      %2975 = vmatprep.subr.bf16.mxu0 0
      %2976 = vmatpush1.bf16.msra.mxu0 %v2913
      %2977 = vmatprep.subr.bf16.mxu0 0
      %2978 = vmatpush1.bf16.msra.mxu0 %v2914
      %2979 = vmatprep.mubr.bf16.mxu0 %v1890
      %2980 = vmatmul.mubr.bf16.gmra.mrb[0].mxu0 %v1788
      %v2981 = vpop.f32.mrb[0].mxu0
      %v2982 = vadd.f32 %v2677, %v2981
      %v2983 = vpop.f32.mrb[0].mxu0
      %v2984 = vpop.f32.mrb[0].mxu0
      %v2985 = vadd.f32 %v2680, %v2984
      %v2986 = vpop.f32.mrb[0].mxu0
      %2987 = vmatprep.mubr.bf16.mxu0 %v1902
      %2988 = vmatmul.mubr.bf16.gmra.mrb[0].mxu0 %v1789
      %v2989 = vpop.f32.mrb[0].mxu0
      %v2990 = vadd.f32 %v2685, %v2989
      %v2991 = vpop.f32.mrb[0].mxu0
      %v2992 = vpop.f32.mrb[0].mxu0
      %v2993 = vadd.f32 %v2688, %v2992
      %v2994 = vpop.f32.mrb[0].mxu0
      %2995 = vmatprep.mubr.bf16.mxu0 %v1914
      %2996 = vmatmul.mubr.bf16.gmra.mrb[0].mxu0 %v1790
      %v2997 = vpop.f32.mrb[0].mxu0
      %v2998 = vadd.f32 %v2693, %v2997
      %v2999 = vpop.f32.mrb[0].mxu0
      %v3000 = vpop.f32.mrb[0].mxu0
      %v3001 = vadd.f32 %v2696, %v3000
      %v3002 = vpop.f32.mrb[0].mxu0
      %3003 = vmatprep.mubr.bf16.mxu0 %v1926
      %3004 = vmatmul.mubr.bf16.gmra.mrb[0].mxu0 %v1791
      %v3005 = vpop.f32.mrb[0].mxu0
      %v3006 = vadd.f32 %v2701, %v3005
      %v3007 = vpop.f32.mrb[0].mxu0
      %v3008 = vpop.f32.mrb[0].mxu0
      %v3009 = vadd.f32 %v2704, %v3008
      %v3010 = vpop.f32.mrb[0].mxu0
      %3011 = vmatprep.mubr.bf16.mxu0 %v1938
      %3012 = vmatmul.mubr.bf16.gmra.mrb[0].mxu0 %v1792
      %v3013 = vpop.f32.mrb[0].mxu0
      %v3014 = vadd.f32 %v2709, %v3013
      %v3015 = vpop.f32.mrb[0].mxu0
      %v3016 = vpop.f32.mrb[0].mxu0
      %v3017 = vadd.f32 %v2712, %v3016
      %v3018 = vpop.f32.mrb[0].mxu0
      %3019 = vmatprep.mubr.bf16.mxu0 %v1950
      %3020 = vmatmul.mubr.bf16.gmra.mrb[0].mxu0 %v1793
      %v3021 = vpop.f32.mrb[0].mxu0
      %v3022 = vadd.f32 %v2717, %v3021
      %v3023 = vpop.f32.mrb[0].mxu0
      %v3024 = vpop.f32.mrb[0].mxu0
      %v3025 = vadd.f32 %v2720, %v3024
      %v3026 = vpop.f32.mrb[0].mxu0
      %3027 = vmatprep.mubr.bf16.mxu0 %v1962
      %3028 = vmatmul.mubr.bf16.gmra.mrb[0].mxu0 %v1794
      %v3029 = vpop.f32.mrb[0].mxu0
      %v3030 = vadd.f32 %v2725, %v3029
      %v3031 = vpop.f32.mrb[0].mxu0
      %v3032 = vpop.f32.mrb[0].mxu0
      %v3033 = vadd.f32 %v2728, %v3032
      %v3034 = vpop.f32.mrb[0].mxu0
      %3035 = vmatprep.mubr.bf16.mxu0 %v1974
      %3036 = vmatmul.mubr.bf16.gmra.mrb[0].mxu0 %v1795
      %v3037 = vpop.f32.mrb[0].mxu0
      %v3038 = vadd.f32 %v2733, %v3037
      %v3039 = vpop.f32.mrb[0].mxu0
      %v3040 = vpop.f32.mrb[0].mxu0
      %v3041 = vadd.f32 %v2736, %v3040
      %v3042 = vpop.f32.mrb[0].mxu0
      %3043 = vmatprep.mubr.bf16.mxu0 %v1986
      %3044 = vmatmul.mubr.bf16.gmra.mrb[0].mxu0 %v1796
      %v3045 = vpop.f32.mrb[0].mxu0
      %v3046 = vadd.f32 %v2741, %v3045
      %v3047 = vpop.f32.mrb[0].mxu0
      %v3048 = vpop.f32.mrb[0].mxu0
      %v3049 = vadd.f32 %v2744, %v3048
      %v3050 = vpop.f32.mrb[0].mxu0
      %3051 = vmatprep.mubr.bf16.mxu0 %v1998
      %3052 = vmatmul.mubr.bf16.gmra.mrb[0].mxu0 %v1797
      %v3053 = vpop.f32.mrb[0].mxu0
      %v3054 = vadd.f32 %v2749, %v3053
      %v3055 = vpop.f32.mrb[0].mxu0
      %v3056 = vpop.f32.mrb[0].mxu0
      %v3057 = vadd.f32 %v2752, %v3056
      %v3058 = vpop.f32.mrb[0].mxu0
      %3059 = vmatprep.mubr.bf16.mxu0 %v2010
      %3060 = vmatmul.mubr.bf16.gmra.mrb[0].mxu0 %v1798
      %v3061 = vpop.f32.mrb[0].mxu0
      %v3062 = vadd.f32 %v2757, %v3061
      %v3063 = vpop.f32.mrb[0].mxu0
      %v3064 = vpop.f32.mrb[0].mxu0
      %v3065 = vadd.f32 %v2760, %v3064
      %v3066 = vpop.f32.mrb[0].mxu0
      %3067 = vmatprep.mubr.bf16.mxu0 %v2022
      %3068 = vmatmul.mubr.bf16.gmra.mrb[0].mxu0 %v1799
      %v3069 = vpop.f32.mrb[0].mxu0
      %v3070 = vadd.f32 %v2765, %v3069
      %v3071 = vpop.f32.mrb[0].mxu0
      %v3072 = vpop.f32.mrb[0].mxu0
      %v3073 = vadd.f32 %v2768, %v3072
      %v3074 = vpop.f32.mrb[0].mxu0
      %3075 = vmatprep.mubr.bf16.mxu0 %v2034
      %3076 = vmatmul.mubr.bf16.gmra.mrb[0].mxu0 %v1800
      %v3077 = vpop.f32.mrb[0].mxu0
      %v3078 = vadd.f32 %v2773, %v3077
      %v3079 = vpop.f32.mrb[0].mxu0
      %v3080 = vpop.f32.mrb[0].mxu0
      %v3081 = vadd.f32 %v2776, %v3080
      %v3082 = vpop.f32.mrb[0].mxu0
      %3083 = vmatprep.mubr.bf16.mxu0 %v2046
      %3084 = vmatmul.mubr.bf16.gmra.mrb[0].mxu0 %v1801
      %v3085 = vpop.f32.mrb[0].mxu0
      %v3086 = vadd.f32 %v2781, %v3085
      %v3087 = vpop.f32.mrb[0].mxu0
      %v3088 = vpop.f32.mrb[0].mxu0
      %v3089 = vadd.f32 %v2784, %v3088
      %v3090 = vpop.f32.mrb[0].mxu0
      %3091 = vmatprep.mubr.bf16.mxu0 %v2058
      %3092 = vmatmul.mubr.bf16.gmra.mrb[0].mxu0 %v1802
      %v3093 = vpop.f32.mrb[0].mxu0
      %v3094 = vadd.f32 %v2789, %v3093
      %v3095 = vpop.f32.mrb[0].mxu0
      %v3096 = vpop.f32.mrb[0].mxu0
      %v3097 = vadd.f32 %v2792, %v3096
      %v3098 = vpop.f32.mrb[0].mxu0
      %3099 = vmatprep.mubr.bf16.mxu0 %v2070
      %3100 = vmatmul.mubr.bf16.gmra.mrb[0].mxu0 %v1803
      %v3101 = vpop.f32.mrb[0].mxu0
      %v3102 = vadd.f32 %v2797, %v3101
      %v3103 = vpop.f32.mrb[0].mxu0
      %v3104 = vpop.f32.mrb[0].mxu0
      %v3105 = vadd.f32 %v2800, %v3104
      %v3106 = vpop.f32.mrb[0].mxu0
      %3107 = vdwg.mxu0
      %3108 = vmatprep.subr.bf16.mxu0 0
      %3109 = vmatpush1.bf16.msra.mxu0 %v2915
      %3110 = vmatprep.subr.bf16.mxu0 0
      %3111 = vmatpush1.bf16.msra.mxu0 %v2916
      %3112 = vmatprep.subr.bf16.mxu0 0
      %3113 = vmatpush1.bf16.msra.mxu0 %v2917
      %3114 = vmatprep.subr.bf16.mxu0 0
      %3115 = vmatpush1.bf16.msra.mxu0 %v2918
      %3116 = vmatprep.subr.bf16.mxu0 0
      %3117 = vmatpush1.bf16.msra.mxu0 %v2919
      %3118 = vmatprep.subr.bf16.mxu0 0
      %3119 = vmatpush1.bf16.msra.mxu0 %v2920
      %3120 = vmatprep.subr.bf16.mxu0 0
      %3121 = vmatpush1.bf16.msra.mxu0 %v2921
      %3122 = vmatprep.subr.bf16.mxu0 0
      %3123 = vmatpush1.bf16.msra.mxu0 %v2922
      %3124 = vmatprep.subr.bf16.mxu0 0
      %3125 = vmatpush1.bf16.msra.mxu0 0
      %3126 = vmatprep.subr.bf16.mxu0 0
      %3127 = vmatpush1.bf16.msra.mxu0 0
      %3128 = vmatprep.subr.bf16.mxu0 0
      %3129 = vmatpush1.bf16.msra.mxu0 0
      %3130 = vmatprep.subr.bf16.mxu0 0
      %3131 = vmatpush1.bf16.msra.mxu0 0
      %3132 = vmatprep.subr.bf16.mxu0 0
      %3133 = vmatpush1.bf16.msra.mxu0 0
      %3134 = vmatprep.subr.bf16.mxu0 0
      %3135 = vmatpush1.bf16.msra.mxu0 0
      %3136 = vmatprep.subr.bf16.mxu0 0
      %3137 = vmatpush1.bf16.msra.mxu0 0
      %3138 = vmatprep.subr.bf16.mxu0 0
      %3139 = vmatpush1.bf16.msra.mxu0 0
      %3140 = vmatprep.mubr.bf16.mxu0 0
      %3141 = vmatmul.mubr.bf16.gmra.mrb[0].mxu0 %v2170
      %v3142 = vpop.f32.mrb[0].mxu0
      %v3143 = vadd.f32 %v2982, %v3142
      %v3144 = vpop.f32.mrb[0].mxu0
      %v3145 = vpop.f32.mrb[0].mxu0
      %v3146 = vadd.f32 %v2985, %v3145
      %v3147 = vpop.f32.mrb[0].mxu0
      %3148 = vmatprep.mubr.bf16.mxu0 0
      %3149 = vmatmul.mubr.bf16.gmra.mrb[0].mxu0 %v2173
      %v3150 = vpop.f32.mrb[0].mxu0
      %v3151 = vadd.f32 %v2990, %v3150
      %v3152 = vpop.f32.mrb[0].mxu0
      %v3153 = vpop.f32.mrb[0].mxu0
      %v3154 = vadd.f32 %v2993, %v3153
      %v3155 = vpop.f32.mrb[0].mxu0
      %3156 = vmatprep.mubr.bf16.mxu0 0
      %3157 = vmatmul.mubr.bf16.gmra.mrb[0].mxu0 %v2176
      %v3158 = vpop.f32.mrb[0].mxu0
      %v3159 = vadd.f32 %v2998, %v3158
      %v3160 = vpop.f32.mrb[0].mxu0
      %v3161 = vpop.f32.mrb[0].mxu0
      %v3162 = vadd.f32 %v3001, %v3161
      %v3163 = vpop.f32.mrb[0].mxu0
      %3164 = vmatprep.mubr.bf16.mxu0 0
      %3165 = vmatmul.mubr.bf16.gmra.mrb[0].mxu0 %v2179
      %v3166 = vpop.f32.mrb[0].mxu0
      %v3167 = vadd.f32 %v3006, %v3166
      %v3168 = vpop.f32.mrb[0].mxu0
      %v3169 = vpop.f32.mrb[0].mxu0
      %v3170 = vadd.f32 %v3009, %v3169
      %v3171 = vpop.f32.mrb[0].mxu0
      %3172 = vmatprep.mubr.bf16.mxu0 0
      %3173 = vmatmul.mubr.bf16.gmra.mrb[0].mxu0 %v2182
      %v3174 = vpop.f32.mrb[0].mxu0
      %v3175 = vadd.f32 %v3014, %v3174
      %v3176 = vpop.f32.mrb[0].mxu0
      %v3177 = vpop.f32.mrb[0].mxu0
      %v3178 = vadd.f32 %v3017, %v3177
      %v3179 = vpop.f32.mrb[0].mxu0
      %3180 = vmatprep.mubr.bf16.mxu0 0
      %3181 = vmatmul.mubr.bf16.gmra.mrb[0].mxu0 %v2185
      %v3182 = vpop.f32.mrb[0].mxu0
      %v3183 = vadd.f32 %v3022, %v3182
      %v3184 = vpop.f32.mrb[0].mxu0
      %v3185 = vpop.f32.mrb[0].mxu0
      %v3186 = vadd.f32 %v3025, %v3185
      %v3187 = vpop.f32.mrb[0].mxu0
      %3188 = vmatprep.mubr.bf16.mxu0 0
      %3189 = vmatmul.mubr.bf16.gmra.mrb[0].mxu0 %v2188
      %v3190 = vpop.f32.mrb[0].mxu0
      %v3191 = vadd.f32 %v3030, %v3190
      %v3192 = vpop.f32.mrb[0].mxu0
      %v3193 = vpop.f32.mrb[0].mxu0
      %v3194 = vadd.f32 %v3033, %v3193
      %v3195 = vpop.f32.mrb[0].mxu0
      %3196 = vmatprep.mubr.bf16.mxu0 0
      %3197 = vmatmul.mubr.bf16.gmra.mrb[0].mxu0 %v2191
      %v3198 = vpop.f32.mrb[0].mxu0
      %v3199 = vadd.f32 %v3038, %v3198
      %v3200 = vpop.f32.mrb[0].mxu0
      %v3201 = vpop.f32.mrb[0].mxu0
      %v3202 = vadd.f32 %v3041, %v3201
      %v3203 = vpop.f32.mrb[0].mxu0
      %3204 = vmatprep.mubr.bf16.mxu0 0
      %3205 = vmatmul.mubr.bf16.gmra.mrb[0].mxu0 %v2194
      %v3206 = vpop.f32.mrb[0].mxu0
      %v3207 = vadd.f32 %v3046, %v3206
      %v3208 = vpop.f32.mrb[0].mxu0
      %v3209 = vpop.f32.mrb[0].mxu0
      %v3210 = vadd.f32 %v3049, %v3209
      %v3211 = vpop.f32.mrb[0].mxu0
      %3212 = vmatprep.mubr.bf16.mxu0 0
      %3213 = vmatmul.mubr.bf16.gmra.mrb[0].mxu0 %v2197
      %v3214 = vpop.f32.mrb[0].mxu0
      %v3215 = vadd.f32 %v3054, %v3214
      %v3216 = vpop.f32.mrb[0].mxu0
      %v3217 = vpop.f32.mrb[0].mxu0
      %v3218 = vadd.f32 %v3057, %v3217
      %v3219 = vpop.f32.mrb[0].mxu0
      %3220 = vmatprep.mubr.bf16.mxu0 0
      %3221 = vmatmul.mubr.bf16.gmra.mrb[0].mxu0 %v2200
      %v3222 = vpop.f32.mrb[0].mxu0
      %v3223 = vadd.f32 %v3062, %v3222
      %v3224 = vpop.f32.mrb[0].mxu0
      %v3225 = vpop.f32.mrb[0].mxu0
      %v3226 = vadd.f32 %v3065, %v3225
      %v3227 = vpop.f32.mrb[0].mxu0
      %3228 = vmatprep.mubr.bf16.mxu0 0
      %3229 = vmatmul.mubr.bf16.gmra.mrb[0].mxu0 %v2203
      %v3230 = vpop.f32.mrb[0].mxu0
      %v3231 = vadd.f32 %v3070, %v3230
      %v3232 = vpop.f32.mrb[0].mxu0
      %v3233 = vpop.f32.mrb[0].mxu0
      %v3234 = vadd.f32 %v3073, %v3233
      %v3235 = vpop.f32.mrb[0].mxu0
      %3236 = vmatprep.mubr.bf16.mxu0 0
      %3237 = vmatmul.mubr.bf16.gmra.mrb[0].mxu0 %v2206
      %v3238 = vpop.f32.mrb[0].mxu0
      %v3239 = vadd.f32 %v3078, %v3238
      %v3240 = vpop.f32.mrb[0].mxu0
      %v3241 = vpop.f32.mrb[0].mxu0
      %v3242 = vadd.f32 %v3081, %v3241
      %v3243 = vpop.f32.mrb[0].mxu0
      %3244 = vmatprep.mubr.bf16.mxu0 0
      %3245 = vmatmul.mubr.bf16.gmra.mrb[0].mxu0 %v2209
      %v3246 = vpop.f32.mrb[0].mxu0
      %v3247 = vadd.f32 %v3086, %v3246
      %v3248 = vpop.f32.mrb[0].mxu0
      %v3249 = vpop.f32.mrb[0].mxu0
      %v3250 = vadd.f32 %v3089, %v3249
      %v3251 = vpop.f32.mrb[0].mxu0
      %3252 = vmatprep.mubr.bf16.mxu0 0
      %3253 = vmatmul.mubr.bf16.gmra.mrb[0].mxu0 %v2212
      %v3254 = vpop.f32.mrb[0].mxu0
      %v3255 = vadd.f32 %v3094, %v3254
      %v3256 = vpop.f32.mrb[0].mxu0
      %v3257 = vpop.f32.mrb[0].mxu0
      %v3258 = vadd.f32 %v3097, %v3257
      %v3259 = vpop.f32.mrb[0].mxu0
      %3260 = vmatprep.mubr.bf16.mxu0 0
      %3261 = vmatmul.mubr.bf16.gmra.mrb[0].mxu0 %v2215
      %v3262 = vpop.f32.mrb[0].mxu0
      %v3263 = vadd.f32 %v3102, %v3262
      %v3264 = vpop.f32.mrb[0].mxu0
      %v3265 = vpop.f32.mrb[0].mxu0
      %v3266 = vadd.f32 %v3105, %v3265
      %v3267 = vpop.f32.mrb[0].mxu0
      %3268 = vdwg.mxu0
      %s3269 = scalar_lea.vmem %s4, 384
      %v3270 = vld [vmem:[%s3269] sm:$0xf]
      %v3271 = vld [vmem:[%s3269 + $0x4] sm:$0xf]
      %v3272 = vld [vmem:[%s3269 + $0x8] sm:$0xf]
      %v3273 = vld [vmem:[%s3269 + $0xc] sm:$0xf]
      %v3274 = vld [vmem:[%s3269 + $0x10] sm:$0xf]
      %v3275 = vld [vmem:[%s3269 + $0x14] sm:$0xf]
      %v3276 = vld [vmem:[%s3269 + $0x18] sm:$0xf]
      %v3277 = vld [vmem:[%s3269 + $0x1c] sm:$0xf]
      %v3278 = vld [vmem:[%s3269 + $0x20] sm:$0xf]
      %v3279 = vld [vmem:[%s3269 + $0x24] sm:$0xf]
      %v3280 = vld [vmem:[%s3269 + $0x28] sm:$0xf]
      %v3281 = vld [vmem:[%s3269 + $0x2c] sm:$0xf]
      %v3282 = vld [vmem:[%s3269 + $0x30] sm:$0xf]
      %v3283 = vld [vmem:[%s3269 + $0x34] sm:$0xf]
      %v3284 = vld [vmem:[%s3269 + $0x38] sm:$0xf]
      %v3285 = vld [vmem:[%s3269 + $0x3c] sm:$0xf]
      %v3286 = vld [vmem:[%s3269 + $0x40] sm:$0xf]
      %v3287 = vld [vmem:[%s3269 + $0x44] sm:$0xf]
      %v3288 = vld [vmem:[%s3269 + $0x48] sm:$0xf]
      %v3289 = vld [vmem:[%s3269 + $0x4c] sm:$0xf]
      %v3290 = vld [vmem:[%s3269 + $0x50] sm:$0xf]
      %v3291 = vld [vmem:[%s3269 + $0x54] sm:$0xf]
      %v3292 = vld [vmem:[%s3269 + $0x58] sm:$0xf]
      %v3293 = vld [vmem:[%s3269 + $0x5c] sm:$0xf]
      %v3294 = vld [vmem:[%s3269 + $0x60] sm:$0xf]
      %v3295 = vld [vmem:[%s3269 + $0x64] sm:$0xf]
      %v3296 = vld [vmem:[%s3269 + $0x68] sm:$0xf]
      %v3297 = vld [vmem:[%s3269 + $0x6c] sm:$0xf]
      %v3298 = vld [vmem:[%s3269 + $0x70] sm:$0xf]
      %v3299 = vld [vmem:[%s3269 + $0x74] sm:$0xf]
      %v3300 = vld [vmem:[%s3269 + $0x78] sm:$0xf]
      %v3301 = vld [vmem:[%s3269 + $0x7c] sm:$0xf]
      %v3302 = vld [vmem:[%s3269 + $0x80] sm:$0xf]
      %v3303 = vld [vmem:[%s3269 + $0x84] sm:$0xf]
      %v3304 = vld [vmem:[%s3269 + $0x88] sm:$0xf]
      %v3305 = vld [vmem:[%s3269 + $0x8c] sm:$0xf]
      %v3306 = vld [vmem:[%s3269 + $0x90] sm:$0xf]
      %v3307 = vld [vmem:[%s3269 + $0x94] sm:$0xf]
      %v3308 = vld [vmem:[%s3269 + $0x98] sm:$0xf]
      %v3309 = vld [vmem:[%s3269 + $0x9c] sm:$0xf]
      %v3310 = vld [vmem:[%s3269 + $0xa0] sm:$0xf]
      %v3311 = vld [vmem:[%s3269 + $0xa4] sm:$0xf]
      %v3312 = vld [vmem:[%s3269 + $0xa8] sm:$0xf]
      %v3313 = vld [vmem:[%s3269 + $0xac] sm:$0xf]
      %v3314 = vld [vmem:[%s3269 + $0xb0] sm:$0xf]
      %v3315 = vld [vmem:[%s3269 + $0xb4] sm:$0xf]
      %v3316 = vld [vmem:[%s3269 + $0xb8] sm:$0xf]
      %v3317 = vld [vmem:[%s3269 + $0xbc] sm:$0xf]
      %v3366 = vunpack.c.l.b16 %v3270
      %v3367 = vunpack.c.l.b16 %v3271
      %v3368 = vunpack.c.l.b16 %v3272
      %v3369 = vunpack.c.l.b16 %v3273
      %v3370 = vunpack.c.l.b16 %v3274
      %v3371 = vunpack.c.l.b16 %v3275
      %v3372 = vunpack.c.l.b16 %v3276
      %v3373 = vunpack.c.l.b16 %v3277
      %v3374 = vunpack.c.l.b16 %v3278
      %v3375 = vunpack.c.l.b16 %v3279
      %v3376 = vunpack.c.l.b16 %v3280
      %v3377 = vunpack.c.l.b16 %v3281
      %v3378 = vunpack.c.l.b16 %v3282
      %v3379 = vunpack.c.l.b16 %v3283
      %v3380 = vunpack.c.l.b16 %v3284
      %v3381 = vunpack.c.l.b16 %v3285
      %v3382 = vunpack.c.l.b16 %v3286
      %v3383 = vunpack.c.l.b16 %v3287
      %v3384 = vunpack.c.l.b16 %v3288
      %v3385 = vunpack.c.l.b16 %v3289
      %v3386 = vunpack.c.l.b16 %v3290
      %v3387 = vunpack.c.l.b16 %v3291
      %v3388 = vunpack.c.l.b16 %v3292
      %v3389 = vunpack.c.l.b16 %v3293
      %v3390 = vunpack.c.l.b16 %v3294
      %v3391 = vunpack.c.l.b16 %v3295
      %v3392 = vunpack.c.l.b16 %v3296
      %v3393 = vunpack.c.l.b16 %v3297
      %v3394 = vunpack.c.l.b16 %v3298
      %v3395 = vunpack.c.l.b16 %v3299
      %v3396 = vunpack.c.l.b16 %v3300
      %v3397 = vunpack.c.l.b16 %v3301
      %v3398 = vunpack.c.l.b16 %v3302
      %v3399 = vunpack.c.l.b16 %v3303
      %v3400 = vunpack.c.l.b16 %v3304
      %v3401 = vunpack.c.l.b16 %v3305
      %v3402 = vunpack.c.l.b16 %v3306
      %v3403 = vunpack.c.l.b16 %v3307
      %v3404 = vunpack.c.l.b16 %v3308
      %v3405 = vunpack.c.l.b16 %v3309
      %v3406 = vunpack.c.l.b16 %v3310
      %v3407 = vunpack.c.l.b16 %v3311
      %v3408 = vunpack.c.l.b16 %v3312
      %v3409 = vunpack.c.l.b16 %v3313
      %v3410 = vunpack.c.l.b16 %v3314
      %v3411 = vunpack.c.l.b16 %v3315
      %v3412 = vunpack.c.l.b16 %v3316
      %v3413 = vunpack.c.l.b16 %v3317
      %v3414 = vpack.c.b16 %v3367, %v3366
      %v3415 = vpack.c.b16 %v3369, %v3368
      %v3416 = vpack.c.b16 %v3371, %v3370
      %v3417 = vpack.c.b16 %v3373, %v3372
      %v3418 = vpack.c.b16 %v3375, %v3374
      %v3419 = vpack.c.b16 %v3377, %v3376
      %v3420 = vpack.c.b16 %v3379, %v3378
      %v3421 = vpack.c.b16 %v3381, %v3380
      %v3422 = vpack.c.b16 %v3383, %v3382
      %v3423 = vpack.c.b16 %v3385, %v3384
      %v3424 = vpack.c.b16 %v3387, %v3386
      %v3425 = vpack.c.b16 %v3389, %v3388
      %v3426 = vpack.c.b16 %v3391, %v3390
      %v3427 = vpack.c.b16 %v3393, %v3392
      %v3428 = vpack.c.b16 %v3395, %v3394
      %v3429 = vpack.c.b16 %v3397, %v3396
      %v3430 = vpack.c.b16 %v3399, %v3398
      %v3431 = vpack.c.b16 %v3401, %v3400
      %v3432 = vpack.c.b16 %v3403, %v3402
      %v3433 = vpack.c.b16 %v3405, %v3404
      %v3434 = vpack.c.b16 %v3407, %v3406
      %v3435 = vpack.c.b16 %v3409, %v3408
      %v3436 = vpack.c.b16 %v3411, %v3410
      %v3437 = vpack.c.b16 %v3413, %v3412
      %3462 = vmatprep.subr.bf16.mxu0 0
      %3463 = vmatpush1.bf16.msra.mxu0 %v3414
      %3464 = vmatprep.subr.bf16.mxu0 0
      %3465 = vmatpush1.bf16.msra.mxu0 %v3415
      %3466 = vmatprep.subr.bf16.mxu0 0
      %3467 = vmatpush1.bf16.msra.mxu0 %v3416
      %3468 = vmatprep.subr.bf16.mxu0 0
      %3469 = vmatpush1.bf16.msra.mxu0 %v3417
      %3470 = vmatprep.subr.bf16.mxu0 0
      %3471 = vmatpush1.bf16.msra.mxu0 %v3418
      %3472 = vmatprep.subr.bf16.mxu0 0
      %3473 = vmatpush1.bf16.msra.mxu0 %v3419
      %3474 = vmatprep.subr.bf16.mxu0 0
      %3475 = vmatpush1.bf16.msra.mxu0 %v3420
      %3476 = vmatprep.subr.bf16.mxu0 0
      %3477 = vmatpush1.bf16.msra.mxu0 %v3421
      %3478 = vmatprep.subr.bf16.mxu0 0
      %3479 = vmatpush1.bf16.msra.mxu0 %v3422
      %3480 = vmatprep.subr.bf16.mxu0 0
      %3481 = vmatpush1.bf16.msra.mxu0 %v3423
      %3482 = vmatprep.subr.bf16.mxu0 0
      %3483 = vmatpush1.bf16.msra.mxu0 %v3424
      %3484 = vmatprep.subr.bf16.mxu0 0
      %3485 = vmatpush1.bf16.msra.mxu0 %v3425
      %3486 = vmatprep.subr.bf16.mxu0 0
      %3487 = vmatpush1.bf16.msra.mxu0 %v3426
      %3488 = vmatprep.subr.bf16.mxu0 0
      %3489 = vmatpush1.bf16.msra.mxu0 %v3427
      %3490 = vmatprep.subr.bf16.mxu0 0
      %3491 = vmatpush1.bf16.msra.mxu0 %v3428
      %3492 = vmatprep.subr.bf16.mxu0 0
      %3493 = vmatpush1.bf16.msra.mxu0 %v3429
      %3494 = vmatprep.mubr.bf16.mxu0 %v1914
      %3495 = vmatmul.mubr.bf16.gmra.mrb[0].mxu0 %v1790
      %v3496 = vpop.f32.mrb[0].mxu0
      %v3497 = vadd.f32 0.0, %v3496
      %v3498 = vpop.f32.mrb[0].mxu0
      %v3499 = vpop.f32.mrb[0].mxu0
      %v3500 = vadd.f32 0.0, %v3499
      %v3501 = vpop.f32.mrb[0].mxu0
      %3502 = vmatprep.mubr.bf16.mxu0 %v1926
      %3503 = vmatmul.mubr.bf16.gmra.mrb[0].mxu0 %v1791
      %v3504 = vpop.f32.mrb[0].mxu0
      %v3505 = vadd.f32 0.0, %v3504
      %v3506 = vpop.f32.mrb[0].mxu0
      %v3507 = vpop.f32.mrb[0].mxu0
      %v3508 = vadd.f32 0.0, %v3507
      %v3509 = vpop.f32.mrb[0].mxu0
      %3510 = vmatprep.mubr.bf16.mxu0 %v1938
      %3511 = vmatmul.mubr.bf16.gmra.mrb[0].mxu0 %v1792
      %v3512 = vpop.f32.mrb[0].mxu0
      %v3513 = vadd.f32 0.0, %v3512
      %v3514 = vpop.f32.mrb[0].mxu0
      %v3515 = vpop.f32.mrb[0].mxu0
      %v3516 = vadd.f32 0.0, %v3515
      %v3517 = vpop.f32.mrb[0].mxu0
      %3518 = vmatprep.mubr.bf16.mxu0 %v1950
      %3519 = vmatmul.mubr.bf16.gmra.mrb[0].mxu0 %v1793
      %v3520 = vpop.f32.mrb[0].mxu0
      %v3521 = vadd.f32 0.0, %v3520
      %v3522 = vpop.f32.mrb[0].mxu0
      %v3523 = vpop.f32.mrb[0].mxu0
      %v3524 = vadd.f32 0.0, %v3523
      %v3525 = vpop.f32.mrb[0].mxu0
      %3526 = vmatprep.mubr.bf16.mxu0 %v1962
      %3527 = vmatmul.mubr.bf16.gmra.mrb[0].mxu0 %v1794
      %v3528 = vpop.f32.mrb[0].mxu0
      %v3529 = vadd.f32 0.0, %v3528
      %v3530 = vpop.f32.mrb[0].mxu0
      %v3531 = vpop.f32.mrb[0].mxu0
      %v3532 = vadd.f32 0.0, %v3531
      %v3533 = vpop.f32.mrb[0].mxu0
      %3534 = vmatprep.mubr.bf16.mxu0 %v1974
      %3535 = vmatmul.mubr.bf16.gmra.mrb[0].mxu0 %v1795
      %v3536 = vpop.f32.mrb[0].mxu0
      %v3537 = vadd.f32 0.0, %v3536
      %v3538 = vpop.f32.mrb[0].mxu0
      %v3539 = vpop.f32.mrb[0].mxu0
      %v3540 = vadd.f32 0.0, %v3539
      %v3541 = vpop.f32.mrb[0].mxu0
      %3542 = vmatprep.mubr.bf16.mxu0 %v1986
      %3543 = vmatmul.mubr.bf16.gmra.mrb[0].mxu0 %v1796
      %v3544 = vpop.f32.mrb[0].mxu0
      %v3545 = vadd.f32 0.0, %v3544
      %v3546 = vpop.f32.mrb[0].mxu0
      %v3547 = vpop.f32.mrb[0].mxu0
      %v3548 = vadd.f32 0.0, %v3547
      %v3549 = vpop.f32.mrb[0].mxu0
      %3550 = vmatprep.mubr.bf16.mxu0 %v1998
      %3551 = vmatmul.mubr.bf16.gmra.mrb[0].mxu0 %v1797
      %v3552 = vpop.f32.mrb[0].mxu0
      %v3553 = vadd.f32 0.0, %v3552
      %v3554 = vpop.f32.mrb[0].mxu0
      %v3555 = vpop.f32.mrb[0].mxu0
      %v3556 = vadd.f32 0.0, %v3555
      %v3557 = vpop.f32.mrb[0].mxu0
      %3558 = vmatprep.mubr.bf16.mxu0 %v2010
      %3559 = vmatmul.mubr.bf16.gmra.mrb[0].mxu0 %v1798
      %v3560 = vpop.f32.mrb[0].mxu0
      %v3561 = vadd.f32 0.0, %v3560
      %v3562 = vpop.f32.mrb[0].mxu0
      %v3563 = vpop.f32.mrb[0].mxu0
      %v3564 = vadd.f32 0.0, %v3563
      %v3565 = vpop.f32.mrb[0].mxu0
      %3566 = vmatprep.mubr.bf16.mxu0 %v2022
      %3567 = vmatmul.mubr.bf16.gmra.mrb[0].mxu0 %v1799
      %v3568 = vpop.f32.mrb[0].mxu0
      %v3569 = vadd.f32 0.0, %v3568
      %v3570 = vpop.f32.mrb[0].mxu0
      %v3571 = vpop.f32.mrb[0].mxu0
      %v3572 = vadd.f32 0.0, %v3571
      %v3573 = vpop.f32.mrb[0].mxu0
      %3574 = vmatprep.mubr.bf16.mxu0 %v2034
      %3575 = vmatmul.mubr.bf16.gmra.mrb[0].mxu0 %v1800
      %v3576 = vpop.f32.mrb[0].mxu0
      %v3577 = vadd.f32 0.0, %v3576
      %v3578 = vpop.f32.mrb[0].mxu0
      %v3579 = vpop.f32.mrb[0].mxu0
      %v3580 = vadd.f32 0.0, %v3579
      %v3581 = vpop.f32.mrb[0].mxu0
      %3582 = vmatprep.mubr.bf16.mxu0 %v2046
      %3583 = vmatmul.mubr.bf16.gmra.mrb[0].mxu0 %v1801
      %v3584 = vpop.f32.mrb[0].mxu0
      %v3585 = vadd.f32 0.0, %v3584
      %v3586 = vpop.f32.mrb[0].mxu0
      %v3587 = vpop.f32.mrb[0].mxu0
      %v3588 = vadd.f32 0.0, %v3587
      %v3589 = vpop.f32.mrb[0].mxu0
      %3590 = vmatprep.mubr.bf16.mxu0 %v2058
      %3591 = vmatmul.mubr.bf16.gmra.mrb[0].mxu0 %v1802
      %v3592 = vpop.f32.mrb[0].mxu0
      %v3593 = vadd.f32 0.0, %v3592
      %v3594 = vpop.f32.mrb[0].mxu0
      %v3595 = vpop.f32.mrb[0].mxu0
      %v3596 = vadd.f32 0.0, %v3595
      %v3597 = vpop.f32.mrb[0].mxu0
      %3598 = vmatprep.mubr.bf16.mxu0 %v2070
      %3599 = vmatmul.mubr.bf16.gmra.mrb[0].mxu0 %v1803
      %v3600 = vpop.f32.mrb[0].mxu0
      %v3601 = vadd.f32 0.0, %v3600
      %v3602 = vpop.f32.mrb[0].mxu0
      %v3603 = vpop.f32.mrb[0].mxu0
      %v3604 = vadd.f32 0.0, %v3603
      %v3605 = vpop.f32.mrb[0].mxu0
      %3606 = vmatprep.mubr.bf16.mxu0 %v2082
      %3607 = vmatmul.mubr.bf16.gmra.mrb[0].mxu0 %v1804
      %v3608 = vpop.f32.mrb[0].mxu0
      %v3609 = vadd.f32 0.0, %v3608
      %v3610 = vpop.f32.mrb[0].mxu0
      %v3611 = vpop.f32.mrb[0].mxu0
      %v3612 = vadd.f32 0.0, %v3611
      %v3613 = vpop.f32.mrb[0].mxu0
      %3614 = vmatprep.mubr.bf16.mxu0 %v2094
      %3615 = vmatmul.mubr.bf16.gmra.mrb[0].mxu0 %v1805
      %v3616 = vpop.f32.mrb[0].mxu0
      %v3617 = vadd.f32 0.0, %v3616
      %v3618 = vpop.f32.mrb[0].mxu0
      %v3619 = vpop.f32.mrb[0].mxu0
      %v3620 = vadd.f32 0.0, %v3619
      %v3621 = vpop.f32.mrb[0].mxu0
      %3622 = vdwg.mxu0
      %3623 = vmatprep.subr.bf16.mxu0 0
      %3624 = vmatpush1.bf16.msra.mxu0 %v3430
      %3625 = vmatprep.subr.bf16.mxu0 0
      %3626 = vmatpush1.bf16.msra.mxu0 %v3431
      %3627 = vmatprep.subr.bf16.mxu0 0
      %3628 = vmatpush1.bf16.msra.mxu0 %v3432
      %3629 = vmatprep.subr.bf16.mxu0 0
      %3630 = vmatpush1.bf16.msra.mxu0 %v3433
      %3631 = vmatprep.subr.bf16.mxu0 0
      %3632 = vmatpush1.bf16.msra.mxu0 %v3434
      %3633 = vmatprep.subr.bf16.mxu0 0
      %3634 = vmatpush1.bf16.msra.mxu0 %v3435
      %3635 = vmatprep.subr.bf16.mxu0 0
      %3636 = vmatpush1.bf16.msra.mxu0 %v3436
      %3637 = vmatprep.subr.bf16.mxu0 0
      %3638 = vmatpush1.bf16.msra.mxu0 %v3437
      %3639 = vmatprep.subr.bf16.mxu0 0
      %3640 = vmatpush1.bf16.msra.mxu0 0
      %3641 = vmatprep.subr.bf16.mxu0 0
      %3642 = vmatpush1.bf16.msra.mxu0 0
      %3643 = vmatprep.subr.bf16.mxu0 0
      %3644 = vmatpush1.bf16.msra.mxu0 0
      %3645 = vmatprep.subr.bf16.mxu0 0
      %3646 = vmatpush1.bf16.msra.mxu0 0
      %3647 = vmatprep.subr.bf16.mxu0 0
      %3648 = vmatpush1.bf16.msra.mxu0 0
      %3649 = vmatprep.subr.bf16.mxu0 0
      %3650 = vmatpush1.bf16.msra.mxu0 0
      %3651 = vmatprep.subr.bf16.mxu0 0
      %3652 = vmatpush1.bf16.msra.mxu0 0
      %3653 = vmatprep.subr.bf16.mxu0 0
      %3654 = vmatpush1.bf16.msra.mxu0 0
      %3655 = vmatprep.mubr.bf16.mxu0 0
      %3656 = vmatmul.mubr.bf16.gmra.mrb[0].mxu0 %v2176
      %v3657 = vpop.f32.mrb[0].mxu0
      %v3658 = vadd.f32 %v3497, %v3657
      %v3659 = vpop.f32.mrb[0].mxu0
      %v3660 = vpop.f32.mrb[0].mxu0
      %v3661 = vadd.f32 %v3500, %v3660
      %v3662 = vpop.f32.mrb[0].mxu0
      %3663 = vmatprep.mubr.bf16.mxu0 0
      %3664 = vmatmul.mubr.bf16.gmra.mrb[0].mxu0 %v2179
      %v3665 = vpop.f32.mrb[0].mxu0
      %v3666 = vadd.f32 %v3505, %v3665
      %v3667 = vpop.f32.mrb[0].mxu0
      %v3668 = vpop.f32.mrb[0].mxu0
      %v3669 = vadd.f32 %v3508, %v3668
      %v3670 = vpop.f32.mrb[0].mxu0
      %3671 = vmatprep.mubr.bf16.mxu0 0
      %3672 = vmatmul.mubr.bf16.gmra.mrb[0].mxu0 %v2182
      %v3673 = vpop.f32.mrb[0].mxu0
      %v3674 = vadd.f32 %v3513, %v3673
      %v3675 = vpop.f32.mrb[0].mxu0
      %v3676 = vpop.f32.mrb[0].mxu0
      %v3677 = vadd.f32 %v3516, %v3676
      %v3678 = vpop.f32.mrb[0].mxu0
      %3679 = vmatprep.mubr.bf16.mxu0 0
      %3680 = vmatmul.mubr.bf16.gmra.mrb[0].mxu0 %v2185
      %v3681 = vpop.f32.mrb[0].mxu0
      %v3682 = vadd.f32 %v3521, %v3681
      %v3683 = vpop.f32.mrb[0].mxu0
      %v3684 = vpop.f32.mrb[0].mxu0
      %v3685 = vadd.f32 %v3524, %v3684
      %v3686 = vpop.f32.mrb[0].mxu0
      %3687 = vmatprep.mubr.bf16.mxu0 0
      %3688 = vmatmul.mubr.bf16.gmra.mrb[0].mxu0 %v2188
      %v3689 = vpop.f32.mrb[0].mxu0
      %v3690 = vadd.f32 %v3529, %v3689
      %v3691 = vpop.f32.mrb[0].mxu0
      %v3692 = vpop.f32.mrb[0].mxu0
      %v3693 = vadd.f32 %v3532, %v3692
      %v3694 = vpop.f32.mrb[0].mxu0
      %3695 = vmatprep.mubr.bf16.mxu0 0
      %3696 = vmatmul.mubr.bf16.gmra.mrb[0].mxu0 %v2191
      %v3697 = vpop.f32.mrb[0].mxu0
      %v3698 = vadd.f32 %v3537, %v3697
      %v3699 = vpop.f32.mrb[0].mxu0
      %v3700 = vpop.f32.mrb[0].mxu0
      %v3701 = vadd.f32 %v3540, %v3700
      %v3702 = vpop.f32.mrb[0].mxu0
      %3703 = vmatprep.mubr.bf16.mxu0 0
      %3704 = vmatmul.mubr.bf16.gmra.mrb[0].mxu0 %v2194
      %v3705 = vpop.f32.mrb[0].mxu0
      %v3706 = vadd.f32 %v3545, %v3705
      %v3707 = vpop.f32.mrb[0].mxu0
      %v3708 = vpop.f32.mrb[0].mxu0
      %v3709 = vadd.f32 %v3548, %v3708
      %v3710 = vpop.f32.mrb[0].mxu0
      %3711 = vmatprep.mubr.bf16.mxu0 0
      %3712 = vmatmul.mubr.bf16.gmra.mrb[0].mxu0 %v2197
      %v3713 = vpop.f32.mrb[0].mxu0
      %v3714 = vadd.f32 %v3553, %v3713
      %v3715 = vpop.f32.mrb[0].mxu0
      %v3716 = vpop.f32.mrb[0].mxu0
      %v3717 = vadd.f32 %v3556, %v3716
      %v3718 = vpop.f32.mrb[0].mxu0
      %3719 = vmatprep.mubr.bf16.mxu0 0
      %3720 = vmatmul.mubr.bf16.gmra.mrb[0].mxu0 %v2200
      %v3721 = vpop.f32.mrb[0].mxu0
      %v3722 = vadd.f32 %v3561, %v3721
      %v3723 = vpop.f32.mrb[0].mxu0
      %v3724 = vpop.f32.mrb[0].mxu0
      %v3725 = vadd.f32 %v3564, %v3724
      %v3726 = vpop.f32.mrb[0].mxu0
      %3727 = vmatprep.mubr.bf16.mxu0 0
      %3728 = vmatmul.mubr.bf16.gmra.mrb[0].mxu0 %v2203
      %v3729 = vpop.f32.mrb[0].mxu0
      %v3730 = vadd.f32 %v3569, %v3729
      %v3731 = vpop.f32.mrb[0].mxu0
      %v3732 = vpop.f32.mrb[0].mxu0
      %v3733 = vadd.f32 %v3572, %v3732
      %v3734 = vpop.f32.mrb[0].mxu0
      %3735 = vmatprep.mubr.bf16.mxu0 0
      %3736 = vmatmul.mubr.bf16.gmra.mrb[0].mxu0 %v2206
      %v3737 = vpop.f32.mrb[0].mxu0
      %v3738 = vadd.f32 %v3577, %v3737
      %v3739 = vpop.f32.mrb[0].mxu0
      %v3740 = vpop.f32.mrb[0].mxu0
      %v3741 = vadd.f32 %v3580, %v3740
      %v3742 = vpop.f32.mrb[0].mxu0
      %3743 = vmatprep.mubr.bf16.mxu0 0
      %3744 = vmatmul.mubr.bf16.gmra.mrb[0].mxu0 %v2209
      %v3745 = vpop.f32.mrb[0].mxu0
      %v3746 = vadd.f32 %v3585, %v3745
      %v3747 = vpop.f32.mrb[0].mxu0
      %v3748 = vpop.f32.mrb[0].mxu0
      %v3749 = vadd.f32 %v3588, %v3748
      %v3750 = vpop.f32.mrb[0].mxu0
      %3751 = vmatprep.mubr.bf16.mxu0 0
      %3752 = vmatmul.mubr.bf16.gmra.mrb[0].mxu0 %v2212
      %v3753 = vpop.f32.mrb[0].mxu0
      %v3754 = vadd.f32 %v3593, %v3753
      %v3755 = vpop.f32.mrb[0].mxu0
      %v3756 = vpop.f32.mrb[0].mxu0
      %v3757 = vadd.f32 %v3596, %v3756
      %v3758 = vpop.f32.mrb[0].mxu0
      %3759 = vmatprep.mubr.bf16.mxu0 0
      %3760 = vmatmul.mubr.bf16.gmra.mrb[0].mxu0 %v2215
      %v3761 = vpop.f32.mrb[0].mxu0
      %v3762 = vadd.f32 %v3601, %v3761
      %v3763 = vpop.f32.mrb[0].mxu0
      %v3764 = vpop.f32.mrb[0].mxu0
      %v3765 = vadd.f32 %v3604, %v3764
      %v3766 = vpop.f32.mrb[0].mxu0
      %3767 = vmatprep.mubr.bf16.mxu0 0
      %3768 = vmatmul.mubr.bf16.gmra.mrb[0].mxu0 %v2218
      %v3769 = vpop.f32.mrb[0].mxu0
      %v3770 = vadd.f32 %v3609, %v3769
      %v3771 = vpop.f32.mrb[0].mxu0
      %v3772 = vpop.f32.mrb[0].mxu0
      %v3773 = vadd.f32 %v3612, %v3772
      %v3774 = vpop.f32.mrb[0].mxu0
      %3775 = vmatprep.mubr.bf16.mxu0 0
      %3776 = vmatmul.mubr.bf16.gmra.mrb[0].mxu0 %v2221
      %v3777 = vpop.f32.mrb[0].mxu0
      %v3778 = vadd.f32 %v3617, %v3777
      %v3779 = vpop.f32.mrb[0].mxu0
      %v3780 = vpop.f32.mrb[0].mxu0
      %v3781 = vadd.f32 %v3620, %v3780
      %v3782 = vpop.f32.mrb[0].mxu0
      %3783 = vdwg.mxu0
      %v3784 = vadd.f32 %v3143, %v3658
      %v3785 = vadd.f32 %v3146, %v3661
      %v3786 = vadd.f32 %v3151, %v3666
      %v3787 = vadd.f32 %v3154, %v3669
      %v3788 = vadd.f32 %v3159, %v3674
      %v3789 = vadd.f32 %v3162, %v3677
      %v3790 = vadd.f32 %v3167, %v3682
      %v3791 = vadd.f32 %v3170, %v3685
      %v3792 = vadd.f32 %v3175, %v3690
      %v3793 = vadd.f32 %v3178, %v3693
      %v3794 = vadd.f32 %v3183, %v3698
      %v3795 = vadd.f32 %v3186, %v3701
      %v3796 = vadd.f32 %v3191, %v3706
      %v3797 = vadd.f32 %v3194, %v3709
      %v3798 = vadd.f32 %v3199, %v3714
      %v3799 = vadd.f32 %v3202, %v3717
      %v3800 = vadd.f32 %v3207, %v3722
      %v3801 = vadd.f32 %v3210, %v3725
      %v3802 = vadd.f32 %v3215, %v3730
      %v3803 = vadd.f32 %v3218, %v3733
      %v3804 = vadd.f32 %v3223, %v3738
      %v3805 = vadd.f32 %v3226, %v3741
      %v3806 = vadd.f32 %v3231, %v3746
      %v3807 = vadd.f32 %v3234, %v3749
      %v3808 = vadd.f32 %v3239, %v3754
      %v3809 = vadd.f32 %v3242, %v3757
      %v3810 = vadd.f32 %v3247, %v3762
      %v3811 = vadd.f32 %v3250, %v3765
      %v3812 = vadd.f32 %v3255, %v3770
      %v3813 = vadd.f32 %v3258, %v3773
      %v3814 = vadd.f32 %v3263, %v3778
      %v3815 = vadd.f32 %v3266, %v3781
      %v3816 = vld [vmem:[%s5] sm:$0x1]
      %v3818 = vlaneseq
      %v3819 = vshrl.u32 %v3818, 7
      %v3820 = vsub.s32 0, %v3819
      %v3821 = vrot.slane %v3816, %v3820
      %v3823 = vadd.f32 %v3784, %v3821
      %v3824 = vadd.f32 %v3785, %v3821
      %v3825 = vadd.f32 %v3786, %v3821
      %v3826 = vadd.f32 %v3787, %v3821
      %v3827 = vadd.f32 %v3788, %v3821
      %v3828 = vadd.f32 %v3789, %v3821
      %v3829 = vadd.f32 %v3790, %v3821
      %v3830 = vadd.f32 %v3791, %v3821
      %v3831 = vadd.f32 %v3792, %v3821
      %v3832 = vadd.f32 %v3793, %v3821
      %v3833 = vadd.f32 %v3794, %v3821
      %v3834 = vadd.f32 %v3795, %v3821
      %v3835 = vadd.f32 %v3796, %v3821
      %v3836 = vadd.f32 %v3797, %v3821
      %v3837 = vadd.f32 %v3798, %v3821
      %v3838 = vadd.f32 %v3799, %v3821
      %v3839 = vadd.f32 %v3800, %v3821
      %v3840 = vadd.f32 %v3801, %v3821
      %v3841 = vadd.f32 %v3802, %v3821
      %v3842 = vadd.f32 %v3803, %v3821
      %v3843 = vadd.f32 %v3804, %v3821
      %v3844 = vadd.f32 %v3805, %v3821
      %v3845 = vadd.f32 %v3806, %v3821
      %v3846 = vadd.f32 %v3807, %v3821
      %v3847 = vadd.f32 %v3808, %v3821
      %v3848 = vadd.f32 %v3809, %v3821
      %v3849 = vadd.f32 %v3810, %v3821
      %v3850 = vadd.f32 %v3811, %v3821
      %v3851 = vadd.f32 %v3812, %v3821
      %v3852 = vadd.f32 %v3813, %v3821
      %v3853 = vadd.f32 %v3814, %v3821
      %v3854 = vadd.f32 %v3815, %v3821
      %v3855 = vxor.u32 %v3823, 2147483648
      %v3856 = vxor.u32 %v3824, 2147483648
      %v3857 = vxor.u32 %v3825, 2147483648
      %v3858 = vxor.u32 %v3826, 2147483648
      %v3859 = vxor.u32 %v3827, 2147483648
      %v3860 = vxor.u32 %v3828, 2147483648
      %v3861 = vxor.u32 %v3829, 2147483648
      %v3862 = vxor.u32 %v3830, 2147483648
      %v3863 = vxor.u32 %v3831, 2147483648
      %v3864 = vxor.u32 %v3832, 2147483648
      %v3865 = vxor.u32 %v3833, 2147483648
      %v3866 = vxor.u32 %v3834, 2147483648
      %v3867 = vxor.u32 %v3835, 2147483648
      %v3868 = vxor.u32 %v3836, 2147483648
      %v3869 = vxor.u32 %v3837, 2147483648
      %v3870 = vxor.u32 %v3838, 2147483648
      %v3871 = vxor.u32 %v3839, 2147483648
      %v3872 = vxor.u32 %v3840, 2147483648
      %v3873 = vxor.u32 %v3841, 2147483648
      %v3874 = vxor.u32 %v3842, 2147483648
      %v3875 = vxor.u32 %v3843, 2147483648
      %v3876 = vxor.u32 %v3844, 2147483648
      %v3877 = vxor.u32 %v3845, 2147483648
      %v3878 = vxor.u32 %v3846, 2147483648
      %v3879 = vxor.u32 %v3847, 2147483648
      %v3880 = vxor.u32 %v3848, 2147483648
      %v3881 = vxor.u32 %v3849, 2147483648
      %v3882 = vxor.u32 %v3850, 2147483648
      %v3883 = vxor.u32 %v3851, 2147483648
      %v3884 = vxor.u32 %v3852, 2147483648
      %v3885 = vxor.u32 %v3853, 2147483648
      %v3886 = vxor.u32 %v3854, 2147483648
      %v3887 = vmul.f32 %v3855, 1.442695
      %v3888 = vpow.pop %v3887
      %v3889 = vmul.f32 %v3856, 1.442695
      %v3890 = vpow.pop %v3889
      %v3891 = vmul.f32 %v3857, 1.442695
      %v3892 = vpow.pop %v3891
      %v3893 = vmul.f32 %v3858, 1.442695
      %v3894 = vpow.pop %v3893
      %v3895 = vmul.f32 %v3859, 1.442695
      %v3896 = vpow.pop %v3895
      %v3897 = vmul.f32 %v3860, 1.442695
      %v3898 = vpow.pop %v3897
      %v3899 = vmul.f32 %v3861, 1.442695
      %v3900 = vpow.pop %v3899
      %v3901 = vmul.f32 %v3862, 1.442695
      %v3902 = vpow.pop %v3901
      %v3903 = vmul.f32 %v3863, 1.442695
      %v3904 = vpow.pop %v3903
      %v3905 = vmul.f32 %v3864, 1.442695
      %v3906 = vpow.pop %v3905
      %v3907 = vmul.f32 %v3865, 1.442695
      %v3908 = vpow.pop %v3907
      %v3909 = vmul.f32 %v3866, 1.442695
      %v3910 = vpow.pop %v3909
      %v3911 = vmul.f32 %v3867, 1.442695
      %v3912 = vpow.pop %v3911
      %v3913 = vmul.f32 %v3868, 1.442695
      %v3914 = vpow.pop %v3913
      %v3915 = vmul.f32 %v3869, 1.442695
      %v3916 = vpow.pop %v3915
      %v3917 = vmul.f32 %v3870, 1.442695
      %v3918 = vpow.pop %v3917
      %v3919 = vmul.f32 %v3871, 1.442695
      %v3920 = vpow.pop %v3919
      %v3921 = vmul.f32 %v3872, 1.442695
      %v3922 = vpow.pop %v3921
      %v3923 = vmul.f32 %v3873, 1.442695
      %v3924 = vpow.pop %v3923
      %v3925 = vmul.f32 %v3874, 1.442695
      %v3926 = vpow.pop %v3925
      %v3927 = vmul.f32 %v3875, 1.442695
      %v3928 = vpow.pop %v3927
      %v3929 = vmul.f32 %v3876, 1.442695
      %v3930 = vpow.pop %v3929
      %v3931 = vmul.f32 %v3877, 1.442695
      %v3932 = vpow.pop %v3931
      %v3933 = vmul.f32 %v3878, 1.442695
      %v3934 = vpow.pop %v3933
      %v3935 = vmul.f32 %v3879, 1.442695
      %v3936 = vpow.pop %v3935
      %v3937 = vmul.f32 %v3880, 1.442695
      %v3938 = vpow.pop %v3937
      %v3939 = vmul.f32 %v3881, 1.442695
      %v3940 = vpow.pop %v3939
      %v3941 = vmul.f32 %v3882, 1.442695
      %v3942 = vpow.pop %v3941
      %v3943 = vmul.f32 %v3883, 1.442695
      %v3944 = vpow.pop %v3943
      %v3945 = vmul.f32 %v3884, 1.442695
      %v3946 = vpow.pop %v3945
      %v3947 = vmul.f32 %v3885, 1.442695
      %v3948 = vpow.pop %v3947
      %v3949 = vmul.f32 %v3886, 1.442695
      %v3950 = vpow.pop %v3949
      %v3951 = vadd.f32 %v3888, 1.0
      %v3952 = vadd.f32 %v3890, 1.0
      %v3953 = vadd.f32 %v3892, 1.0
      %v3954 = vadd.f32 %v3894, 1.0
      %v3955 = vadd.f32 %v3896, 1.0
      %v3956 = vadd.f32 %v3898, 1.0
      %v3957 = vadd.f32 %v3900, 1.0
      %v3958 = vadd.f32 %v3902, 1.0
      %v3959 = vadd.f32 %v3904, 1.0
      %v3960 = vadd.f32 %v3906, 1.0
      %v3961 = vadd.f32 %v3908, 1.0
      %v3962 = vadd.f32 %v3910, 1.0
      %v3963 = vadd.f32 %v3912, 1.0
      %v3964 = vadd.f32 %v3914, 1.0
      %v3965 = vadd.f32 %v3916, 1.0
      %v3966 = vadd.f32 %v3918, 1.0
      %v3967 = vadd.f32 %v3920, 1.0
      %v3968 = vadd.f32 %v3922, 1.0
      %v3969 = vadd.f32 %v3924, 1.0
      %v3970 = vadd.f32 %v3926, 1.0
      %v3971 = vadd.f32 %v3928, 1.0
      %v3972 = vadd.f32 %v3930, 1.0
      %v3973 = vadd.f32 %v3932, 1.0
      %v3974 = vadd.f32 %v3934, 1.0
      %v3975 = vadd.f32 %v3936, 1.0
      %v3976 = vadd.f32 %v3938, 1.0
      %v3977 = vadd.f32 %v3940, 1.0
      %v3978 = vadd.f32 %v3942, 1.0
      %v3979 = vadd.f32 %v3944, 1.0
      %v3980 = vadd.f32 %v3946, 1.0
      %v3981 = vadd.f32 %v3948, 1.0
      %v3982 = vadd.f32 %v3950, 1.0
      %v3983 = vrcp.pop %v3951
      %v3984 = vmul.f32 1.0, %v3983
      %v3985 = vrcp.pop %v3952
      %v3986 = vmul.f32 1.0, %v3985
      %v3987 = vrcp.pop %v3953
      %v3988 = vmul.f32 1.0, %v3987
      %v3989 = vrcp.pop %v3954
      %v3990 = vmul.f32 1.0, %v3989
      %v3991 = vrcp.pop %v3955
      %v3992 = vmul.f32 1.0, %v3991
      %v3993 = vrcp.pop %v3956
      %v3994 = vmul.f32 1.0, %v3993
      %v3995 = vrcp.pop %v3957
      %v3996 = vmul.f32 1.0, %v3995
      %v3997 = vrcp.pop %v3958
      %v3998 = vmul.f32 1.0, %v3997
      %v3999 = vrcp.pop %v3959
      %v4000 = vmul.f32 1.0, %v3999
      %v4001 = vrcp.pop %v3960
      %v4002 = vmul.f32 1.0, %v4001
      %v4003 = vrcp.pop %v3961
      %v4004 = vmul.f32 1.0, %v4003
      %v4005 = vrcp.pop %v3962
      %v4006 = vmul.f32 1.0, %v4005
      %v4007 = vrcp.pop %v3963
      %v4008 = vmul.f32 1.0, %v4007
      %v4009 = vrcp.pop %v3964
      %v4010 = vmul.f32 1.0, %v4009
      %v4011 = vrcp.pop %v3965
      %v4012 = vmul.f32 1.0, %v4011
      %v4013 = vrcp.pop %v3966
      %v4014 = vmul.f32 1.0, %v4013
      %v4015 = vrcp.pop %v3967
      %v4016 = vmul.f32 1.0, %v4015
      %v4017 = vrcp.pop %v3968
      %v4018 = vmul.f32 1.0, %v4017
      %v4019 = vrcp.pop %v3969
      %v4020 = vmul.f32 1.0, %v4019
      %v4021 = vrcp.pop %v3970
      %v4022 = vmul.f32 1.0, %v4021
      %v4023 = vrcp.pop %v3971
      %v4024 = vmul.f32 1.0, %v4023
      %v4025 = vrcp.pop %v3972
      %v4026 = vmul.f32 1.0, %v4025
      %v4027 = vrcp.pop %v3973
      %v4028 = vmul.f32 1.0, %v4027
      %v4029 = vrcp.pop %v3974
      %v4030 = vmul.f32 1.0, %v4029
      %v4031 = vrcp.pop %v3975
      %v4032 = vmul.f32 1.0, %v4031
      %v4033 = vrcp.pop %v3976
      %v4034 = vmul.f32 1.0, %v4033
      %v4035 = vrcp.pop %v3977
      %v4036 = vmul.f32 1.0, %v4035
      %v4037 = vrcp.pop %v3978
      %v4038 = vmul.f32 1.0, %v4037
      %v4039 = vrcp.pop %v3979
      %v4040 = vmul.f32 1.0, %v4039
      %v4041 = vrcp.pop %v3980
      %v4042 = vmul.f32 1.0, %v4041
      %v4043 = vrcp.pop %v3981
      %v4044 = vmul.f32 1.0, %v4043
      %v4045 = vrcp.pop %v3982
      %v4046 = vmul.f32 1.0, %v4045
      %v4047 = vmul.f32 %v3823, %v3984
      %v4048 = vmul.f32 %v3824, %v3986
      %v4049 = vmul.f32 %v3825, %v3988
      %v4050 = vmul.f32 %v3826, %v3990
      %v4051 = vmul.f32 %v3827, %v3992
      %v4052 = vmul.f32 %v3828, %v3994
      %v4053 = vmul.f32 %v3829, %v3996
      %v4054 = vmul.f32 %v3830, %v3998
      %v4055 = vmul.f32 %v3831, %v4000
      %v4056 = vmul.f32 %v3832, %v4002
      %v4057 = vmul.f32 %v3833, %v4004
      %v4058 = vmul.f32 %v3834, %v4006
      %v4059 = vmul.f32 %v3835, %v4008
      %v4060 = vmul.f32 %v3836, %v4010
      %v4061 = vmul.f32 %v3837, %v4012
      %v4062 = vmul.f32 %v3838, %v4014
      %v4063 = vmul.f32 %v3839, %v4016
      %v4064 = vmul.f32 %v3840, %v4018
      %v4065 = vmul.f32 %v3841, %v4020
      %v4066 = vmul.f32 %v3842, %v4022
      %v4067 = vmul.f32 %v3843, %v4024
      %v4068 = vmul.f32 %v3844, %v4026
      %v4069 = vmul.f32 %v3845, %v4028
      %v4070 = vmul.f32 %v3846, %v4030
      %v4071 = vmul.f32 %v3847, %v4032
      %v4072 = vmul.f32 %v3848, %v4034
      %v4073 = vmul.f32 %v3849, %v4036
      %v4074 = vmul.f32 %v3850, %v4038
      %v4075 = vmul.f32 %v3851, %v4040
      %v4076 = vmul.f32 %v3852, %v4042
      %v4077 = vmul.f32 %v3853, %v4044
      %v4078 = vmul.f32 %v3854, %v4046
      %v4079 = vpack.c.bf16 %v4048, %v4047
      %v4080 = vpack.c.bf16 %v4050, %v4049
      %v4081 = vpack.c.bf16 %v4052, %v4051
      %v4082 = vpack.c.bf16 %v4054, %v4053
      %v4083 = vpack.c.bf16 %v4056, %v4055
      %v4084 = vpack.c.bf16 %v4058, %v4057
      %v4085 = vpack.c.bf16 %v4060, %v4059
      %v4086 = vpack.c.bf16 %v4062, %v4061
      %v4087 = vpack.c.bf16 %v4064, %v4063
      %v4088 = vpack.c.bf16 %v4066, %v4065
      %v4089 = vpack.c.bf16 %v4068, %v4067
      %v4090 = vpack.c.bf16 %v4070, %v4069
      %v4091 = vpack.c.bf16 %v4072, %v4071
      %v4092 = vpack.c.bf16 %v4074, %v4073
      %v4093 = vpack.c.bf16 %v4076, %v4075
      %v4094 = vpack.c.bf16 %v4078, %v4077
      %v4095 = vld [vmem:[%s6] sm:$0xf]
      %v4096 = vld [vmem:[%s6 + $0x4] sm:$0xf]
      %v4097 = vld [vmem:[%s6 + $0x8] sm:$0xf]
      %v4098 = vld [vmem:[%s6 + $0xc] sm:$0xf]
      %v4099 = vld [vmem:[%s6 + $0x10] sm:$0xf]
      %v4100 = vld [vmem:[%s6 + $0x14] sm:$0xf]
      %v4101 = vld [vmem:[%s6 + $0x18] sm:$0xf]
      %v4102 = vld [vmem:[%s6 + $0x1c] sm:$0xf]
      %v4103 = vld [vmem:[%s6 + $0x20] sm:$0xf]
      %v4104 = vld [vmem:[%s6 + $0x24] sm:$0xf]
      %v4105 = vld [vmem:[%s6 + $0x28] sm:$0xf]
      %v4106 = vld [vmem:[%s6 + $0x2c] sm:$0xf]
      %v4107 = vld [vmem:[%s6 + $0x30] sm:$0xf]
      %v4108 = vld [vmem:[%s6 + $0x34] sm:$0xf]
      %v4109 = vld [vmem:[%s6 + $0x38] sm:$0xf]
      %v4110 = vld [vmem:[%s6 + $0x3c] sm:$0xf]
      %v4111 = vld [vmem:[%s7] sm:$0x1]
      %v4113 = vlaneseq
      %v4114 = vshrl.u32 %v4113, 7
      %v4115 = vsub.s32 0, %v4114
      %v4116 = vrot.slane %v4111, %v4115
      %v4134 = vunpack.c.l.b16 %v4095
      %v4135 = vunpack.c.l.b16 %v4096
      %v4136 = vunpack.c.l.b16 %v4097
      %v4137 = vunpack.c.l.b16 %v4098
      %v4138 = vunpack.c.l.b16 %v4099
      %v4139 = vunpack.c.l.b16 %v4100
      %v4140 = vunpack.c.l.b16 %v4101
      %v4141 = vunpack.c.l.b16 %v4102
      %v4142 = vunpack.c.l.b16 %v4103
      %v4143 = vunpack.c.l.b16 %v4104
      %v4144 = vunpack.c.l.b16 %v4105
      %v4145 = vunpack.c.l.b16 %v4106
      %v4146 = vunpack.c.l.b16 %v4107
      %v4147 = vunpack.c.l.b16 %v4108
      %v4148 = vunpack.c.l.b16 %v4109
      %v4149 = vunpack.c.l.b16 %v4110
      %v4150 = vpack.c.b16 %v4135, %v4134
      %v4151 = vpack.c.b16 %v4137, %v4136
      %v4152 = vpack.c.b16 %v4139, %v4138
      %v4153 = vpack.c.b16 %v4141, %v4140
      %v4154 = vpack.c.b16 %v4143, %v4142
      %v4155 = vpack.c.b16 %v4145, %v4144
      %v4156 = vpack.c.b16 %v4147, %v4146
      %v4157 = vpack.c.b16 %v4149, %v4148
      %4166 = vmatprep.subr.bf16.mxu0 0
      %4167 = vmatpush1.bf16.msra.mxu0 %v4150
      %4168 = vmatprep.subr.bf16.mxu0 0
      %4169 = vmatpush1.bf16.msra.mxu0 %v4151
      %4170 = vmatprep.subr.bf16.mxu0 0
      %4171 = vmatpush1.bf16.msra.mxu0 %v4152
      %4172 = vmatprep.subr.bf16.mxu0 0
      %4173 = vmatpush1.bf16.msra.mxu0 %v4153
      %4174 = vmatprep.subr.bf16.mxu0 0
      %4175 = vmatpush1.bf16.msra.mxu0 %v4154
      %4176 = vmatprep.subr.bf16.mxu0 0
      %4177 = vmatpush1.bf16.msra.mxu0 %v4155
      %4178 = vmatprep.subr.bf16.mxu0 0
      %4179 = vmatpush1.bf16.msra.mxu0 %v4156
      %4180 = vmatprep.subr.bf16.mxu0 0
      %4181 = vmatpush1.bf16.msra.mxu0 %v4157
      %4182 = vmatprep.subr.bf16.mxu0 0
      %4183 = vmatpush1.bf16.msra.mxu0 0
      %4184 = vmatprep.subr.bf16.mxu0 0
      %4185 = vmatpush1.bf16.msra.mxu0 0
      %4186 = vmatprep.subr.bf16.mxu0 0
      %4187 = vmatpush1.bf16.msra.mxu0 0
      %4188 = vmatprep.subr.bf16.mxu0 0
      %4189 = vmatpush1.bf16.msra.mxu0 0
      %4190 = vmatprep.subr.bf16.mxu0 0
      %4191 = vmatpush1.bf16.msra.mxu0 0
      %4192 = vmatprep.subr.bf16.mxu0 0
      %4193 = vmatpush1.bf16.msra.mxu0 0
      %4194 = vmatprep.subr.bf16.mxu0 0
      %4195 = vmatpush1.bf16.msra.mxu0 0
      %4196 = vmatprep.subr.bf16.mxu0 0
      %4197 = vmatpush1.bf16.msra.mxu0 0
      %4198 = vmatprep.mubr.bf16.mxu0 0
      %4199 = vmatmul.mubr.bf16.gmra.mrb[0].mxu0 %v4079
      %v4200 = vpop.f32.mrb[0].mxu0
      %v4201 = vadd.f32 %v4116, %v4200
      %v4202 = vpop.f32.mrb[0].mxu0
      %v4203 = vpop.f32.mrb[0].mxu0
      %v4204 = vadd.f32 %v4116, %v4203
      %v4205 = vpop.f32.mrb[0].mxu0
      %4206 = vmatprep.mubr.bf16.mxu0 0
      %4207 = vmatmul.mubr.bf16.gmra.mrb[0].mxu0 %v4080
      %v4208 = vpop.f32.mrb[0].mxu0
      %v4209 = vadd.f32 %v4116, %v4208
      %v4210 = vpop.f32.mrb[0].mxu0
      %v4211 = vpop.f32.mrb[0].mxu0
      %v4212 = vadd.f32 %v4116, %v4211
      %v4213 = vpop.f32.mrb[0].mxu0
      %4214 = vmatprep.mubr.bf16.mxu0 0
      %4215 = vmatmul.mubr.bf16.gmra.mrb[0].mxu0 %v4081
      %v4216 = vpop.f32.mrb[0].mxu0
      %v4217 = vadd.f32 %v4116, %v4216
      %v4218 = vpop.f32.mrb[0].mxu0
      %v4219 = vpop.f32.mrb[0].mxu0
      %v4220 = vadd.f32 %v4116, %v4219
      %v4221 = vpop.f32.mrb[0].mxu0
      %4222 = vmatprep.mubr.bf16.mxu0 0
      %4223 = vmatmul.mubr.bf16.gmra.mrb[0].mxu0 %v4082
      %v4224 = vpop.f32.mrb[0].mxu0
      %v4225 = vadd.f32 %v4116, %v4224
      %v4226 = vpop.f32.mrb[0].mxu0
      %v4227 = vpop.f32.mrb[0].mxu0
      %v4228 = vadd.f32 %v4116, %v4227
      %v4229 = vpop.f32.mrb[0].mxu0
      %4230 = vmatprep.mubr.bf16.mxu0 0
      %4231 = vmatmul.mubr.bf16.gmra.mrb[0].mxu0 %v4083
      %v4232 = vpop.f32.mrb[0].mxu0
      %v4233 = vadd.f32 %v4116, %v4232
      %v4234 = vpop.f32.mrb[0].mxu0
      %v4235 = vpop.f32.mrb[0].mxu0
      %v4236 = vadd.f32 %v4116, %v4235
      %v4237 = vpop.f32.mrb[0].mxu0
      %4238 = vmatprep.mubr.bf16.mxu0 0
      %4239 = vmatmul.mubr.bf16.gmra.mrb[0].mxu0 %v4084
      %v4240 = vpop.f32.mrb[0].mxu0
      %v4241 = vadd.f32 %v4116, %v4240
      %v4242 = vpop.f32.mrb[0].mxu0
      %v4243 = vpop.f32.mrb[0].mxu0
      %v4244 = vadd.f32 %v4116, %v4243
      %v4245 = vpop.f32.mrb[0].mxu0
      %4246 = vmatprep.mubr.bf16.mxu0 0
      %4247 = vmatmul.mubr.bf16.gmra.mrb[0].mxu0 %v4085
      %v4248 = vpop.f32.mrb[0].mxu0
      %v4249 = vadd.f32 %v4116, %v4248
      %v4250 = vpop.f32.mrb[0].mxu0
      %v4251 = vpop.f32.mrb[0].mxu0
      %v4252 = vadd.f32 %v4116, %v4251
      %v4253 = vpop.f32.mrb[0].mxu0
      %4254 = vmatprep.mubr.bf16.mxu0 0
      %4255 = vmatmul.mubr.bf16.gmra.mrb[0].mxu0 %v4086
      %v4256 = vpop.f32.mrb[0].mxu0
      %v4257 = vadd.f32 %v4116, %v4256
      %v4258 = vpop.f32.mrb[0].mxu0
      %v4259 = vpop.f32.mrb[0].mxu0
      %v4260 = vadd.f32 %v4116, %v4259
      %v4261 = vpop.f32.mrb[0].mxu0
      %4262 = vmatprep.mubr.bf16.mxu0 0
      %4263 = vmatmul.mubr.bf16.gmra.mrb[0].mxu0 %v4087
      %v4264 = vpop.f32.mrb[0].mxu0
      %v4265 = vadd.f32 %v4116, %v4264
      %v4266 = vpop.f32.mrb[0].mxu0
      %v4267 = vpop.f32.mrb[0].mxu0
      %v4268 = vadd.f32 %v4116, %v4267
      %v4269 = vpop.f32.mrb[0].mxu0
      %4270 = vmatprep.mubr.bf16.mxu0 0
      %4271 = vmatmul.mubr.bf16.gmra.mrb[0].mxu0 %v4088
      %v4272 = vpop.f32.mrb[0].mxu0
      %v4273 = vadd.f32 %v4116, %v4272
      %v4274 = vpop.f32.mrb[0].mxu0
      %v4275 = vpop.f32.mrb[0].mxu0
      %v4276 = vadd.f32 %v4116, %v4275
      %v4277 = vpop.f32.mrb[0].mxu0
      %4278 = vmatprep.mubr.bf16.mxu0 0
      %4279 = vmatmul.mubr.bf16.gmra.mrb[0].mxu0 %v4089
      %v4280 = vpop.f32.mrb[0].mxu0
      %v4281 = vadd.f32 %v4116, %v4280
      %v4282 = vpop.f32.mrb[0].mxu0
      %v4283 = vpop.f32.mrb[0].mxu0
      %v4284 = vadd.f32 %v4116, %v4283
      %v4285 = vpop.f32.mrb[0].mxu0
      %4286 = vmatprep.mubr.bf16.mxu0 0
      %4287 = vmatmul.mubr.bf16.gmra.mrb[0].mxu0 %v4090
      %v4288 = vpop.f32.mrb[0].mxu0
      %v4289 = vadd.f32 %v4116, %v4288
      %v4290 = vpop.f32.mrb[0].mxu0
      %v4291 = vpop.f32.mrb[0].mxu0
      %v4292 = vadd.f32 %v4116, %v4291
      %v4293 = vpop.f32.mrb[0].mxu0
      %4294 = vmatprep.mubr.bf16.mxu0 0
      %4295 = vmatmul.mubr.bf16.gmra.mrb[0].mxu0 %v4091
      %v4296 = vpop.f32.mrb[0].mxu0
      %v4297 = vadd.f32 %v4116, %v4296
      %v4298 = vpop.f32.mrb[0].mxu0
      %v4299 = vpop.f32.mrb[0].mxu0
      %v4300 = vadd.f32 %v4116, %v4299
      %v4301 = vpop.f32.mrb[0].mxu0
      %4302 = vmatprep.mubr.bf16.mxu0 0
      %4303 = vmatmul.mubr.bf16.gmra.mrb[0].mxu0 %v4092
      %v4304 = vpop.f32.mrb[0].mxu0
      %v4305 = vadd.f32 %v4116, %v4304
      %v4306 = vpop.f32.mrb[0].mxu0
      %v4307 = vpop.f32.mrb[0].mxu0
      %v4308 = vadd.f32 %v4116, %v4307
      %v4309 = vpop.f32.mrb[0].mxu0
      %4310 = vmatprep.mubr.bf16.mxu0 0
      %4311 = vmatmul.mubr.bf16.gmra.mrb[0].mxu0 %v4093
      %v4312 = vpop.f32.mrb[0].mxu0
      %v4313 = vadd.f32 %v4116, %v4312
      %v4314 = vpop.f32.mrb[0].mxu0
      %v4315 = vpop.f32.mrb[0].mxu0
      %v4316 = vadd.f32 %v4116, %v4315
      %v4317 = vpop.f32.mrb[0].mxu0
      %4318 = vmatprep.mubr.bf16.mxu0 0
      %4319 = vmatmul.mubr.bf16.gmra.mrb[0].mxu0 %v4094
      %v4320 = vpop.f32.mrb[0].mxu0
      %v4321 = vadd.f32 %v4116, %v4320
      %v4322 = vpop.f32.mrb[0].mxu0
      %v4323 = vpop.f32.mrb[0].mxu0
      %v4324 = vadd.f32 %v4116, %v4323
      %v4325 = vpop.f32.mrb[0].mxu0
      %4326 = vdwg.mxu0
      %v4327 = vadd.f32 %v4201, %v1021
      %v4328 = vadd.f32 %v4204, %v1022
      %v4329 = vadd.f32 %v4209, %v1023
      %v4330 = vadd.f32 %v4212, %v1024
      %v4331 = vadd.f32 %v4217, %v1025
      %v4332 = vadd.f32 %v4220, %v1026
      %v4333 = vadd.f32 %v4225, %v1027
      %v4334 = vadd.f32 %v4228, %v1028
      %v4335 = vadd.f32 %v4233, %v1029
      %v4336 = vadd.f32 %v4236, %v1030
      %v4337 = vadd.f32 %v4241, %v1031
      %v4338 = vadd.f32 %v4244, %v1032
      %v4339 = vadd.f32 %v4249, %v1033
      %v4340 = vadd.f32 %v4252, %v1034
      %v4341 = vadd.f32 %v4257, %v1035
      %v4342 = vadd.f32 %v4260, %v1036
      %v4343 = vadd.f32 %v4265, %v1037
      %v4344 = vadd.f32 %v4268, %v1038
      %v4345 = vadd.f32 %v4273, %v1039
      %v4346 = vadd.f32 %v4276, %v1040
      %v4347 = vadd.f32 %v4281, %v1041
      %v4348 = vadd.f32 %v4284, %v1042
      %v4349 = vadd.f32 %v4289, %v1043
      %v4350 = vadd.f32 %v4292, %v1044
      %v4351 = vadd.f32 %v4297, %v1045
      %v4352 = vadd.f32 %v4300, %v1046
      %v4353 = vadd.f32 %v4305, %v1047
      %v4354 = vadd.f32 %v4308, %v1048
      %v4355 = vadd.f32 %v4313, %v1049
      %v4356 = vadd.f32 %v4316, %v1050
      %v4357 = vadd.f32 %v4321, %v1051
      %v4358 = vadd.f32 %v4324, %v1052
      %v4359 = vpack.c.bf16 %v4328, %v4327
      %v4360 = vpack.c.bf16 %v4330, %v4329
      %v4361 = vpack.c.bf16 %v4332, %v4331
      %v4362 = vpack.c.bf16 %v4334, %v4333
      %v4363 = vpack.c.bf16 %v4336, %v4335
      %v4364 = vpack.c.bf16 %v4338, %v4337
      %v4365 = vpack.c.bf16 %v4340, %v4339
      %v4366 = vpack.c.bf16 %v4342, %v4341
      %v4367 = vpack.c.bf16 %v4344, %v4343
      %v4368 = vpack.c.bf16 %v4346, %v4345
      %v4369 = vpack.c.bf16 %v4348, %v4347
      %v4370 = vpack.c.bf16 %v4350, %v4349
      %v4371 = vpack.c.bf16 %v4352, %v4351
      %v4372 = vpack.c.bf16 %v4354, %v4353
      %v4373 = vpack.c.bf16 %v4356, %v4355
      %v4374 = vpack.c.bf16 %v4358, %v4357
      %v4391 = vunpack.c.l.b16 %v4359
      %v4392 = vunpack.c.h.b16 %v4359
      %v4393 = vunpack.c.l.b16 %v4360
      %v4394 = vunpack.c.h.b16 %v4360
      %v4395 = vunpack.c.l.b16 %v4361
      %v4396 = vunpack.c.h.b16 %v4361
      %v4397 = vunpack.c.l.b16 %v4362
      %v4398 = vunpack.c.h.b16 %v4362
      %v4399 = vunpack.c.l.b16 %v4363
      %v4400 = vunpack.c.h.b16 %v4363
      %v4401 = vunpack.c.l.b16 %v4364
      %v4402 = vunpack.c.h.b16 %v4364
      %v4403 = vunpack.c.l.b16 %v4365
      %v4404 = vunpack.c.h.b16 %v4365
      %v4405 = vunpack.c.l.b16 %v4366
      %v4406 = vunpack.c.h.b16 %v4366
      %v4407 = vunpack.c.l.b16 %v4367
      %v4408 = vunpack.c.h.b16 %v4367
      %v4409 = vunpack.c.l.b16 %v4368
      %v4410 = vunpack.c.h.b16 %v4368
      %v4411 = vunpack.c.l.b16 %v4369
      %v4412 = vunpack.c.h.b16 %v4369
      %v4413 = vunpack.c.l.b16 %v4370
      %v4414 = vunpack.c.h.b16 %v4370
      %v4415 = vunpack.c.l.b16 %v4371
      %v4416 = vunpack.c.h.b16 %v4371
      %v4417 = vunpack.c.l.b16 %v4372
      %v4418 = vunpack.c.h.b16 %v4372
      %v4419 = vunpack.c.l.b16 %v4373
      %v4420 = vunpack.c.h.b16 %v4373
      %v4421 = vunpack.c.l.b16 %v4374
      %v4422 = vunpack.c.h.b16 %v4374
      %v4423 = vpack.c.b16 %v4391, %v4391
      %v4424 = vpack.c.b16 %v4392, %v4392
      %v4425 = vpack.c.b16 %v4393, %v4393
      %v4426 = vpack.c.b16 %v4394, %v4394
      %v4427 = vpack.c.b16 %v4395, %v4395
      %v4428 = vpack.c.b16 %v4396, %v4396
      %v4429 = vpack.c.b16 %v4397, %v4397
      %v4430 = vpack.c.b16 %v4398, %v4398
      %v4431 = vpack.c.b16 %v4399, %v4399
      %v4432 = vpack.c.b16 %v4400, %v4400
      %v4433 = vpack.c.b16 %v4401, %v4401
      %v4434 = vpack.c.b16 %v4402, %v4402
      %v4435 = vpack.c.b16 %v4403, %v4403
      %v4436 = vpack.c.b16 %v4404, %v4404
      %v4437 = vpack.c.b16 %v4405, %v4405
      %v4438 = vpack.c.b16 %v4406, %v4406
      %v4439 = vpack.c.b16 %v4407, %v4407
      %v4440 = vpack.c.b16 %v4408, %v4408
      %v4441 = vpack.c.b16 %v4409, %v4409
      %v4442 = vpack.c.b16 %v4410, %v4410
      %v4443 = vpack.c.b16 %v4411, %v4411
      %v4444 = vpack.c.b16 %v4412, %v4412
      %v4445 = vpack.c.b16 %v4413, %v4413
      %v4446 = vpack.c.b16 %v4414, %v4414
      %v4447 = vpack.c.b16 %v4415, %v4415
      %v4448 = vpack.c.b16 %v4416, %v4416
      %v4449 = vpack.c.b16 %v4417, %v4417
      %v4450 = vpack.c.b16 %v4418, %v4418
      %v4451 = vpack.c.b16 %v4419, %v4419
      %v4452 = vpack.c.b16 %v4420, %v4420
      %v4453 = vpack.c.b16 %v4421, %v4421
      %v4454 = vpack.c.b16 %v4422, %v4422
      %v4456 = vshrl.u32 %v4423, 16
      %v4458 = vrot.slane %v4456, 7
      %v4459 = vshll.u32 %v4423, 16
      %v4461 = vor.u32 %v4458, %v4459
      %v4462 = vrot.slane %v4458, 4
      %v4464 = vshrl.u32 %v4424, 16
      %v4466 = vrot.slane %v4464, 7
      %v4467 = vshll.u32 %v4424, 16
      %v4469 = vor.u32 %v4466, %v4467
      %v4470 = vsel %vm1205, %v4462, %v4469
      %v4471 = vrot.slane %v4466, 4
      %v4473 = vshrl.u32 %v4425, 16
      %v4475 = vrot.slane %v4473, 7
      %v4476 = vshll.u32 %v4425, 16
      %v4478 = vor.u32 %v4475, %v4476
      %v4479 = vrot.slane %v4475, 4
      %v4481 = vshrl.u32 %v4426, 16
      %v4483 = vrot.slane %v4481, 7
      %v4484 = vshll.u32 %v4426, 16
      %v4486 = vor.u32 %v4483, %v4484
      %v4487 = vsel %vm1205, %v4479, %v4486
      %v4488 = vrot.slane %v4483, 4
      %v4490 = vshrl.u32 %v4427, 16
      %v4492 = vrot.slane %v4490, 7
      %v4493 = vshll.u32 %v4427, 16
      %v4495 = vor.u32 %v4492, %v4493
      %v4496 = vrot.slane %v4492, 4
      %v4498 = vshrl.u32 %v4428, 16
      %v4500 = vrot.slane %v4498, 7
      %v4501 = vshll.u32 %v4428, 16
      %v4503 = vor.u32 %v4500, %v4501
      %v4504 = vsel %vm1205, %v4496, %v4503
      %v4505 = vrot.slane %v4500, 4
      %v4507 = vshrl.u32 %v4429, 16
      %v4509 = vrot.slane %v4507, 7
      %v4510 = vshll.u32 %v4429, 16
      %v4512 = vor.u32 %v4509, %v4510
      %v4513 = vrot.slane %v4509, 4
      %v4515 = vshrl.u32 %v4430, 16
      %v4517 = vrot.slane %v4515, 7
      %v4518 = vshll.u32 %v4430, 16
      %v4520 = vor.u32 %v4517, %v4518
      %v4521 = vsel %vm1205, %v4513, %v4520
      %v4522 = vrot.slane %v4517, 4
      %v4524 = vshrl.u32 %v4431, 16
      %v4526 = vrot.slane %v4524, 7
      %v4527 = vshll.u32 %v4431, 16
      %v4529 = vor.u32 %v4526, %v4527
      %v4530 = vrot.slane %v4526, 4
      %v4532 = vshrl.u32 %v4432, 16
      %v4534 = vrot.slane %v4532, 7
      %v4535 = vshll.u32 %v4432, 16
      %v4537 = vor.u32 %v4534, %v4535
      %v4538 = vsel %vm1205, %v4530, %v4537
      %v4539 = vrot.slane %v4534, 4
      %v4541 = vshrl.u32 %v4433, 16
      %v4543 = vrot.slane %v4541, 7
      %v4544 = vshll.u32 %v4433, 16
      %v4546 = vor.u32 %v4543, %v4544
      %v4547 = vrot.slane %v4543, 4
      %v4549 = vshrl.u32 %v4434, 16
      %v4551 = vrot.slane %v4549, 7
      %v4552 = vshll.u32 %v4434, 16
      %v4554 = vor.u32 %v4551, %v4552
      %v4555 = vsel %vm1205, %v4547, %v4554
      %v4556 = vrot.slane %v4551, 4
      %v4558 = vshrl.u32 %v4435, 16
      %v4560 = vrot.slane %v4558, 7
      %v4561 = vshll.u32 %v4435, 16
      %v4563 = vor.u32 %v4560, %v4561
      %v4564 = vrot.slane %v4560, 4
      %v4566 = vshrl.u32 %v4436, 16
      %v4568 = vrot.slane %v4566, 7
      %v4569 = vshll.u32 %v4436, 16
      %v4571 = vor.u32 %v4568, %v4569
      %v4572 = vsel %vm1205, %v4564, %v4571
      %v4573 = vrot.slane %v4568, 4
      %v4575 = vshrl.u32 %v4437, 16
      %v4577 = vrot.slane %v4575, 7
      %v4578 = vshll.u32 %v4437, 16
      %v4580 = vor.u32 %v4577, %v4578
      %v4581 = vrot.slane %v4577, 4
      %v4583 = vshrl.u32 %v4438, 16
      %v4585 = vrot.slane %v4583, 7
      %v4586 = vshll.u32 %v4438, 16
      %v4588 = vor.u32 %v4585, %v4586
      %v4589 = vsel %vm1205, %v4581, %v4588
      %v4590 = vrot.slane %v4585, 4
      %v4592 = vshrl.u32 %v4439, 16
      %v4594 = vrot.slane %v4592, 7
      %v4595 = vshll.u32 %v4439, 16
      %v4597 = vor.u32 %v4594, %v4595
      %v4598 = vrot.slane %v4594, 4
      %v4600 = vshrl.u32 %v4440, 16
      %v4602 = vrot.slane %v4600, 7
      %v4603 = vshll.u32 %v4440, 16
      %v4605 = vor.u32 %v4602, %v4603
      %v4606 = vsel %vm1205, %v4598, %v4605
      %v4607 = vrot.slane %v4602, 4
      %v4609 = vshrl.u32 %v4441, 16
      %v4611 = vrot.slane %v4609, 7
      %v4612 = vshll.u32 %v4441, 16
      %v4614 = vor.u32 %v4611, %v4612
      %v4615 = vrot.slane %v4611, 4
      %v4617 = vshrl.u32 %v4442, 16
      %v4619 = vrot.slane %v4617, 7
      %v4620 = vshll.u32 %v4442, 16
      %v4622 = vor.u32 %v4619, %v4620
      %v4623 = vsel %vm1205, %v4615, %v4622
      %v4624 = vrot.slane %v4619, 4
      %v4626 = vshrl.u32 %v4443, 16
      %v4628 = vrot.slane %v4626, 7
      %v4629 = vshll.u32 %v4443, 16
      %v4631 = vor.u32 %v4628, %v4629
      %v4632 = vrot.slane %v4628, 4
      %v4634 = vshrl.u32 %v4444, 16
      %v4636 = vrot.slane %v4634, 7
      %v4637 = vshll.u32 %v4444, 16
      %v4639 = vor.u32 %v4636, %v4637
      %v4640 = vsel %vm1205, %v4632, %v4639
      %v4641 = vrot.slane %v4636, 4
      %v4643 = vshrl.u32 %v4445, 16
      %v4645 = vrot.slane %v4643, 7
      %v4646 = vshll.u32 %v4445, 16
      %v4648 = vor.u32 %v4645, %v4646
      %v4649 = vrot.slane %v4645, 4
      %v4651 = vshrl.u32 %v4446, 16
      %v4653 = vrot.slane %v4651, 7
      %v4654 = vshll.u32 %v4446, 16
      %v4656 = vor.u32 %v4653, %v4654
      %v4657 = vsel %vm1205, %v4649, %v4656
      %v4658 = vrot.slane %v4653, 4
      %v4660 = vshrl.u32 %v4447, 16
      %v4662 = vrot.slane %v4660, 7
      %v4663 = vshll.u32 %v4447, 16
      %v4665 = vor.u32 %v4662, %v4663
      %v4666 = vrot.slane %v4662, 4
      %v4668 = vshrl.u32 %v4448, 16
      %v4670 = vrot.slane %v4668, 7
      %v4671 = vshll.u32 %v4448, 16
      %v4673 = vor.u32 %v4670, %v4671
      %v4674 = vsel %vm1205, %v4666, %v4673
      %v4675 = vrot.slane %v4670, 4
      %v4677 = vshrl.u32 %v4449, 16
      %v4679 = vrot.slane %v4677, 7
      %v4680 = vshll.u32 %v4449, 16
      %v4682 = vor.u32 %v4679, %v4680
      %v4683 = vrot.slane %v4679, 4
      %v4685 = vshrl.u32 %v4450, 16
      %v4687 = vrot.slane %v4685, 7
      %v4688 = vshll.u32 %v4450, 16
      %v4690 = vor.u32 %v4687, %v4688
      %v4691 = vsel %vm1205, %v4683, %v4690
      %v4692 = vrot.slane %v4687, 4
      %v4694 = vshrl.u32 %v4451, 16
      %v4696 = vrot.slane %v4694, 7
      %v4697 = vshll.u32 %v4451, 16
      %v4699 = vor.u32 %v4696, %v4697
      %v4700 = vrot.slane %v4696, 4
      %v4702 = vshrl.u32 %v4452, 16
      %v4704 = vrot.slane %v4702, 7
      %v4705 = vshll.u32 %v4452, 16
      %v4707 = vor.u32 %v4704, %v4705
      %v4708 = vsel %vm1205, %v4700, %v4707
      %v4709 = vrot.slane %v4704, 4
      %v4711 = vshrl.u32 %v4453, 16
      %v4713 = vrot.slane %v4711, 7
      %v4714 = vshll.u32 %v4453, 16
      %v4716 = vor.u32 %v4713, %v4714
      %v4717 = vrot.slane %v4713, 4
      %v4719 = vshrl.u32 %v4454, 16
      %v4721 = vrot.slane %v4719, 7
      %v4722 = vshll.u32 %v4454, 16
      %v4724 = vor.u32 %v4721, %v4722
      %v4725 = vsel %vm1205, %v4717, %v4724
      %v4726 = vrot.slane %v4721, 4
      %v4775 = vld [vmem:[%s1526] sm:$0xf]
      %v4776 = vsel %vm1529, %v4461, %v4775
      %4777 = vst [vmem:[%s1526] sm:$0xf] %v4776
      %4778 = vst [vmem:[%s1526 + $0x4] sm:$0xf] %v4470
      %v4779 = vld [vmem:[%s1526 + $0x8] sm:$0x1]
      %v4780 = vsel %vm1535, %v4471, %v4779
      %4781 = vst [vmem:[%s1526 + $0x8] sm:$0x1] %v4780
      %v4782 = vld [vmem:[%s1526 + $0xc] sm:$0xf]
      %v4783 = vsel %vm1529, %v4478, %v4782
      %4784 = vst [vmem:[%s1526 + $0xc] sm:$0xf] %v4783
      %4785 = vst [vmem:[%s1526 + $0x10] sm:$0xf] %v4487
      %v4786 = vld [vmem:[%s1526 + $0x14] sm:$0x1]
      %v4787 = vsel %vm1535, %v4488, %v4786
      %4788 = vst [vmem:[%s1526 + $0x14] sm:$0x1] %v4787
      %v4789 = vld [vmem:[%s1526 + $0x18] sm:$0xf]
      %v4790 = vsel %vm1529, %v4495, %v4789
      %4791 = vst [vmem:[%s1526 + $0x18] sm:$0xf] %v4790
      %4792 = vst [vmem:[%s1526 + $0x1c] sm:$0xf] %v4504
      %v4793 = vld [vmem:[%s1526 + $0x20] sm:$0x1]
      %v4794 = vsel %vm1535, %v4505, %v4793
      %4795 = vst [vmem:[%s1526 + $0x20] sm:$0x1] %v4794
      %v4796 = vld [vmem:[%s1526 + $0x24] sm:$0xf]
      %v4797 = vsel %vm1529, %v4512, %v4796
      %4798 = vst [vmem:[%s1526 + $0x24] sm:$0xf] %v4797
      %4799 = vst [vmem:[%s1526 + $0x28] sm:$0xf] %v4521
      %v4800 = vld [vmem:[%s1526 + $0x2c] sm:$0x1]
      %v4801 = vsel %vm1535, %v4522, %v4800
      %4802 = vst [vmem:[%s1526 + $0x2c] sm:$0x1] %v4801
      %v4803 = vld [vmem:[%s1526 + $0x30] sm:$0xf]
      %v4804 = vsel %vm1529, %v4529, %v4803
      %4805 = vst [vmem:[%s1526 + $0x30] sm:$0xf] %v4804
      %4806 = vst [vmem:[%s1526 + $0x34] sm:$0xf] %v4538
      %v4807 = vld [vmem:[%s1526 + $0x38] sm:$0x1]
      %v4808 = vsel %vm1535, %v4539, %v4807
      %4809 = vst [vmem:[%s1526 + $0x38] sm:$0x1] %v4808
      %v4810 = vld [vmem:[%s1526 + $0x3c] sm:$0xf]
      %v4811 = vsel %vm1529, %v4546, %v4810
      %4812 = vst [vmem:[%s1526 + $0x3c] sm:$0xf] %v4811
      %4813 = vst [vmem:[%s1526 + $0x40] sm:$0xf] %v4555
      %v4814 = vld [vmem:[%s1526 + $0x44] sm:$0x1]
      %v4815 = vsel %vm1535, %v4556, %v4814
      %4816 = vst [vmem:[%s1526 + $0x44] sm:$0x1] %v4815
      %v4817 = vld [vmem:[%s1526 + $0x48] sm:$0xf]
      %v4818 = vsel %vm1529, %v4563, %v4817
      %4819 = vst [vmem:[%s1526 + $0x48] sm:$0xf] %v4818
      %4820 = vst [vmem:[%s1526 + $0x4c] sm:$0xf] %v4572
      %v4821 = vld [vmem:[%s1526 + $0x50] sm:$0x1]
      %v4822 = vsel %vm1535, %v4573, %v4821
      %4823 = vst [vmem:[%s1526 + $0x50] sm:$0x1] %v4822
      %v4824 = vld [vmem:[%s1526 + $0x54] sm:$0xf]
      %v4825 = vsel %vm1529, %v4580, %v4824
      %4826 = vst [vmem:[%s1526 + $0x54] sm:$0xf] %v4825
      %4827 = vst [vmem:[%s1526 + $0x58] sm:$0xf] %v4589
      %v4828 = vld [vmem:[%s1526 + $0x5c] sm:$0x1]
      %v4829 = vsel %vm1535, %v4590, %v4828
      %4830 = vst [vmem:[%s1526 + $0x5c] sm:$0x1] %v4829
      %v4831 = vld [vmem:[%s1526 + $0x60] sm:$0xf]
      %v4832 = vsel %vm1529, %v4597, %v4831
      %4833 = vst [vmem:[%s1526 + $0x60] sm:$0xf] %v4832
      %4834 = vst [vmem:[%s1526 + $0x64] sm:$0xf] %v4606
      %v4835 = vld [vmem:[%s1526 + $0x68] sm:$0x1]
      %v4836 = vsel %vm1535, %v4607, %v4835
      %4837 = vst [vmem:[%s1526 + $0x68] sm:$0x1] %v4836
      %v4838 = vld [vmem:[%s1526 + $0x6c] sm:$0xf]
      %v4839 = vsel %vm1529, %v4614, %v4838
      %4840 = vst [vmem:[%s1526 + $0x6c] sm:$0xf] %v4839
      %4841 = vst [vmem:[%s1526 + $0x70] sm:$0xf] %v4623
      %v4842 = vld [vmem:[%s1526 + $0x74] sm:$0x1]
      %v4843 = vsel %vm1535, %v4624, %v4842
      %4844 = vst [vmem:[%s1526 + $0x74] sm:$0x1] %v4843
      %v4845 = vld [vmem:[%s1526 + $0x78] sm:$0xf]
      %v4846 = vsel %vm1529, %v4631, %v4845
      %4847 = vst [vmem:[%s1526 + $0x78] sm:$0xf] %v4846
      %4848 = vst [vmem:[%s1526 + $0x7c] sm:$0xf] %v4640
      %v4849 = vld [vmem:[%s1526 + $0x80] sm:$0x1]
      %v4850 = vsel %vm1535, %v4641, %v4849
      %4851 = vst [vmem:[%s1526 + $0x80] sm:$0x1] %v4850
      %v4852 = vld [vmem:[%s1526 + $0x84] sm:$0xf]
      %v4853 = vsel %vm1529, %v4648, %v4852
      %4854 = vst [vmem:[%s1526 + $0x84] sm:$0xf] %v4853
      %4855 = vst [vmem:[%s1526 + $0x88] sm:$0xf] %v4657
      %v4856 = vld [vmem:[%s1526 + $0x8c] sm:$0x1]
      %v4857 = vsel %vm1535, %v4658, %v4856
      %4858 = vst [vmem:[%s1526 + $0x8c] sm:$0x1] %v4857
      %v4859 = vld [vmem:[%s1526 + $0x90] sm:$0xf]
      %v4860 = vsel %vm1529, %v4665, %v4859
      %4861 = vst [vmem:[%s1526 + $0x90] sm:$0xf] %v4860
      %4862 = vst [vmem:[%s1526 + $0x94] sm:$0xf] %v4674
      %v4863 = vld [vmem:[%s1526 + $0x98] sm:$0x1]
      %v4864 = vsel %vm1535, %v4675, %v4863
      %4865 = vst [vmem:[%s1526 + $0x98] sm:$0x1] %v4864
      %v4866 = vld [vmem:[%s1526 + $0x9c] sm:$0xf]
      %v4867 = vsel %vm1529, %v4682, %v4866
      %4868 = vst [vmem:[%s1526 + $0x9c] sm:$0xf] %v4867
      %4869 = vst [vmem:[%s1526 + $0xa0] sm:$0xf] %v4691
      %v4870 = vld [vmem:[%s1526 + $0xa4] sm:$0x1]
      %v4871 = vsel %vm1535, %v4692, %v4870
      %4872 = vst [vmem:[%s1526 + $0xa4] sm:$0x1] %v4871
      %v4873 = vld [vmem:[%s1526 + $0xa8] sm:$0xf]
      %v4874 = vsel %vm1529, %v4699, %v4873
      %4875 = vst [vmem:[%s1526 + $0xa8] sm:$0xf] %v4874
      %4876 = vst [vmem:[%s1526 + $0xac] sm:$0xf] %v4708
      %v4877 = vld [vmem:[%s1526 + $0xb0] sm:$0x1]
      %v4878 = vsel %vm1535, %v4709, %v4877
      %4879 = vst [vmem:[%s1526 + $0xb0] sm:$0x1] %v4878
      %v4880 = vld [vmem:[%s1526 + $0xb4] sm:$0xf]
      %v4881 = vsel %vm1529, %v4716, %v4880
      %4882 = vst [vmem:[%s1526 + $0xb4] sm:$0xf] %v4881
      %4883 = vst [vmem:[%s1526 + $0xb8] sm:$0xf] %v4725
      %v4884 = vld [vmem:[%s1526 + $0xbc] sm:$0x1]
      %v4885 = vsel %vm1535, %v4726, %v4884
      %4886 = vst [vmem:[%s1526 + $0xbc] sm:$0x1] %v4885
      %v4887 = vld [vmem:[#allocation2] sm:$0xf]
      %v4888 = vld [vmem:[#allocation2 + $0x4] sm:$0xf]
      %v4889 = vld [vmem:[#allocation2 + $0xc] sm:$0xf]
      %v4890 = vld [vmem:[#allocation2 + $0x10] sm:$0xf]
      %v4891 = vld [vmem:[#allocation2 + $0x18] sm:$0xf]
      %v4892 = vld [vmem:[#allocation2 + $0x1c] sm:$0xf]
      %v4893 = vld [vmem:[#allocation2 + $0x24] sm:$0xf]
      %v4894 = vld [vmem:[#allocation2 + $0x28] sm:$0xf]
      %v4895 = vld [vmem:[#allocation2 + $0x30] sm:$0xf]
      %v4896 = vld [vmem:[#allocation2 + $0x34] sm:$0xf]
      %v4897 = vld [vmem:[#allocation2 + $0x3c] sm:$0xf]
      %v4898 = vld [vmem:[#allocation2 + $0x40] sm:$0xf]
      %v4899 = vld [vmem:[#allocation2 + $0x48] sm:$0xf]
      %v4900 = vld [vmem:[#allocation2 + $0x4c] sm:$0xf]
      %v4901 = vld [vmem:[#allocation2 + $0x54] sm:$0xf]
      %v4902 = vld [vmem:[#allocation2 + $0x58] sm:$0xf]
      %v4903 = vld [vmem:[#allocation2 + $0x60] sm:$0xf]
      %v4904 = vld [vmem:[#allocation2 + $0x64] sm:$0xf]
      %v4905 = vld [vmem:[#allocation2 + $0x6c] sm:$0xf]
      %v4906 = vld [vmem:[#allocation2 + $0x70] sm:$0xf]
      %v4907 = vld [vmem:[#allocation2 + $0x78] sm:$0xf]
      %v4908 = vld [vmem:[#allocation2 + $0x7c] sm:$0xf]
      %v4909 = vld [vmem:[#allocation2 + $0x84] sm:$0xf]
      %v4910 = vld [vmem:[#allocation2 + $0x88] sm:$0xf]
      %v4911 = vld [vmem:[#allocation2 + $0x90] sm:$0xf]
      %v4912 = vld [vmem:[#allocation2 + $0x94] sm:$0xf]
      %v4913 = vld [vmem:[#allocation2 + $0x9c] sm:$0xf]
      %v4914 = vld [vmem:[#allocation2 + $0xa0] sm:$0xf]
      %v4915 = vld [vmem:[#allocation2 + $0xa8] sm:$0xf]
      %v4916 = vld [vmem:[#allocation2 + $0xac] sm:$0xf]
      %v4917 = vld [vmem:[#allocation2 + $0xb4] sm:$0xf]
      %v4918 = vld [vmem:[#allocation2 + $0xb8] sm:$0xf]
      %v4919 = vld [vmem:[#allocation2 + $0xc0] sm:$0xf]
      %v4920 = vld [vmem:[#allocation2 + $0xc4] sm:$0xf]
      %v4921 = vld [vmem:[#allocation2 + $0xcc] sm:$0xf]
      %v4922 = vld [vmem:[#allocation2 + $0xd0] sm:$0xf]
      %v4923 = vld [vmem:[#allocation2 + $0x8] sm:$0x1]
      %v4924 = vld [vmem:[#allocation2 + $0x14] sm:$0x1]
      %v4925 = vld [vmem:[#allocation2 + $0x20] sm:$0x1]
      %v4926 = vld [vmem:[#allocation2 + $0x2c] sm:$0x1]
      %v4927 = vld [vmem:[#allocation2 + $0x38] sm:$0x1]
      %v4928 = vld [vmem:[#allocation2 + $0x44] sm:$0x1]
      %v4929 = vld [vmem:[#allocation2 + $0x50] sm:$0x1]
      %v4930 = vld [vmem:[#allocation2 + $0x5c] sm:$0x1]
      %v4931 = vld [vmem:[#allocation2 + $0x68] sm:$0x1]
      %v4932 = vld [vmem:[#allocation2 + $0x74] sm:$0x1]
      %v4933 = vld [vmem:[#allocation2 + $0x80] sm:$0x1]
      %v4934 = vld [vmem:[#allocation2 + $0x8c] sm:$0x1]
      %v4935 = vld [vmem:[#allocation2 + $0x98] sm:$0x1]
      %v4936 = vld [vmem:[#allocation2 + $0xa4] sm:$0x1]
      %v4937 = vld [vmem:[#allocation2 + $0xb0] sm:$0x1]
      %v4938 = vld [vmem:[#allocation2 + $0xbc] sm:$0x1]
      %v4939 = vld [vmem:[#allocation2 + $0xc8] sm:$0x1]
      %v4940 = vld [vmem:[#allocation2 + $0xd4] sm:$0x1]
      %v4941 = vld [vmem:[#allocation2] sm:$0xe]
      %v4942 = vld [vmem:[#allocation2 + $0xc] sm:$0xe]
      %v4943 = vld [vmem:[#allocation2 + $0x18] sm:$0xe]
      %v4944 = vld [vmem:[#allocation2 + $0x24] sm:$0xe]
      %v4945 = vld [vmem:[#allocation2 + $0x30] sm:$0xe]
      %v4946 = vld [vmem:[#allocation2 + $0x3c] sm:$0xe]
      %v4947 = vld [vmem:[#allocation2 + $0x48] sm:$0xe]
      %v4948 = vld [vmem:[#allocation2 + $0x54] sm:$0xe]
      %v4949 = vld [vmem:[#allocation2 + $0x60] sm:$0xe]
      %v4950 = vld [vmem:[#allocation2 + $0x6c] sm:$0xe]
      %v4951 = vld [vmem:[#allocation2 + $0x78] sm:$0xe]
      %v4952 = vld [vmem:[#allocation2 + $0x84] sm:$0xe]
      %v4953 = vld [vmem:[#allocation2 + $0x90] sm:$0xe]
      %v4954 = vld [vmem:[#allocation2 + $0x9c] sm:$0xe]
      %v4955 = vld [vmem:[#allocation2 + $0xa8] sm:$0xe]
      %v4956 = vld [vmem:[#allocation2 + $0xb4] sm:$0xe]
      %v4957 = vld [vmem:[#allocation2 + $0xc0] sm:$0xe]
      %v4958 = vld [vmem:[#allocation2 + $0xcc] sm:$0xe]
      %v4995 = vunpack.c.l.b16 %v4887
      %v4996 = vunpack.c.l.b16 %v4888
      %v4997 = vunpack.c.l.b16 %v4889
      %v4998 = vunpack.c.l.b16 %v4890
      %v4999 = vunpack.c.l.b16 %v4891
      %v5000 = vunpack.c.l.b16 %v4892
      %v5001 = vunpack.c.l.b16 %v4893
      %v5002 = vunpack.c.l.b16 %v4894
      %v5003 = vunpack.c.l.b16 %v4895
      %v5004 = vunpack.c.l.b16 %v4896
      %v5005 = vunpack.c.l.b16 %v4897
      %v5006 = vunpack.c.l.b16 %v4898
      %v5007 = vunpack.c.l.b16 %v4899
      %v5008 = vunpack.c.l.b16 %v4900
      %v5009 = vunpack.c.l.b16 %v4901
      %v5010 = vunpack.c.l.b16 %v4902
      %v5011 = vunpack.c.l.b16 %v4903
      %v5012 = vunpack.c.l.b16 %v4904
      %v5013 = vunpack.c.l.b16 %v4905
      %v5014 = vunpack.c.l.b16 %v4906
      %v5015 = vunpack.c.l.b16 %v4907
      %v5016 = vunpack.c.l.b16 %v4908
      %v5017 = vunpack.c.l.b16 %v4909
      %v5018 = vunpack.c.l.b16 %v4910
      %v5019 = vunpack.c.l.b16 %v4911
      %v5020 = vunpack.c.l.b16 %v4912
      %v5021 = vunpack.c.l.b16 %v4913
      %v5022 = vunpack.c.l.b16 %v4914
      %v5023 = vunpack.c.l.b16 %v4915
      %v5024 = vunpack.c.l.b16 %v4916
      %v5025 = vunpack.c.l.b16 %v4917
      %v5026 = vunpack.c.l.b16 %v4918
      %v5027 = vunpack.c.l.b16 %v4919
      %v5028 = vunpack.c.l.b16 %v4920
      %v5029 = vunpack.c.l.b16 %v4921
      %v5030 = vunpack.c.l.b16 %v4922
      %v5031 = vpack.c.b16 %v4996, %v4995
      %v5032 = vpack.c.b16 %v4998, %v4997
      %v5033 = vpack.c.b16 %v5000, %v4999
      %v5034 = vpack.c.b16 %v5002, %v5001
      %v5035 = vpack.c.b16 %v5004, %v5003
      %v5036 = vpack.c.b16 %v5006, %v5005
      %v5037 = vpack.c.b16 %v5008, %v5007
      %v5038 = vpack.c.b16 %v5010, %v5009
      %v5039 = vpack.c.b16 %v5012, %v5011
      %v5040 = vpack.c.b16 %v5014, %v5013
      %v5041 = vpack.c.b16 %v5016, %v5015
      %v5042 = vpack.c.b16 %v5018, %v5017
      %v5043 = vpack.c.b16 %v5020, %v5019
      %v5044 = vpack.c.b16 %v5022, %v5021
      %v5045 = vpack.c.b16 %v5024, %v5023
      %v5046 = vpack.c.b16 %v5026, %v5025
      %v5047 = vpack.c.b16 %v5028, %v5027
      %v5048 = vpack.c.b16 %v5030, %v5029
      %v5085 = vunpack.c.l.b16 %v4923
      %v5086 = vunpack.c.l.b16 %v4924
      %v5087 = vunpack.c.l.b16 %v4925
      %v5088 = vunpack.c.l.b16 %v4926
      %v5089 = vunpack.c.l.b16 %v4927
      %v5090 = vunpack.c.l.b16 %v4928
      %v5091 = vunpack.c.l.b16 %v4929
      %v5092 = vunpack.c.l.b16 %v4930
      %v5093 = vunpack.c.l.b16 %v4931
      %v5094 = vunpack.c.l.b16 %v4932
      %v5095 = vunpack.c.l.b16 %v4933
      %v5096 = vunpack.c.l.b16 %v4934
      %v5097 = vunpack.c.l.b16 %v4935
      %v5098 = vunpack.c.l.b16 %v4936
      %v5099 = vunpack.c.l.b16 %v4937
      %v5100 = vunpack.c.l.b16 %v4938
      %v5101 = vunpack.c.l.b16 %v4939
      %v5102 = vunpack.c.l.b16 %v4940
      %v5103 = vpack.c.b16 %v5085, %v5085
      %v5104 = vpack.c.b16 %v5086, %v5086
      %v5105 = vpack.c.b16 %v5087, %v5087
      %v5106 = vpack.c.b16 %v5088, %v5088
      %v5107 = vpack.c.b16 %v5089, %v5089
      %v5108 = vpack.c.b16 %v5090, %v5090
      %v5109 = vpack.c.b16 %v5091, %v5091
      %v5110 = vpack.c.b16 %v5092, %v5092
      %v5111 = vpack.c.b16 %v5093, %v5093
      %v5112 = vpack.c.b16 %v5094, %v5094
      %v5113 = vpack.c.b16 %v5095, %v5095
      %v5114 = vpack.c.b16 %v5096, %v5096
      %v5115 = vpack.c.b16 %v5097, %v5097
      %v5116 = vpack.c.b16 %v5098, %v5098
      %v5117 = vpack.c.b16 %v5099, %v5099
      %v5118 = vpack.c.b16 %v5100, %v5100
      %v5119 = vpack.c.b16 %v5101, %v5101
      %v5120 = vpack.c.b16 %v5102, %v5102
      %v5122 = vshrl.u32 %v5031, 16
      %v5124 = vshll.u32 %v5031, 16
      %v5126 = vrot.slane %v5124, 1
      %v5127 = vor.u32 %v5122, %v5126
      %v5129 = vshll.u32 %v5103, 16
      %v5131 = vrot.slane %v5129, 1
      %v5132 = vsel %vm1878, %v5127, %v5131
      %v5134 = vshrl.u32 %v5032, 16
      %v5136 = vshll.u32 %v5032, 16
      %v5138 = vrot.slane %v5136, 1
      %v5139 = vor.u32 %v5134, %v5138
      %v5141 = vshll.u32 %v5104, 16
      %v5143 = vrot.slane %v5141, 1
      %v5144 = vsel %vm1878, %v5139, %v5143
      %v5146 = vshrl.u32 %v5033, 16
      %v5148 = vshll.u32 %v5033, 16
      %v5150 = vrot.slane %v5148, 1
      %v5151 = vor.u32 %v5146, %v5150
      %v5153 = vshll.u32 %v5105, 16
      %v5155 = vrot.slane %v5153, 1
      %v5156 = vsel %vm1878, %v5151, %v5155
      %v5158 = vshrl.u32 %v5034, 16
      %v5160 = vshll.u32 %v5034, 16
      %v5162 = vrot.slane %v5160, 1
      %v5163 = vor.u32 %v5158, %v5162
      %v5165 = vshll.u32 %v5106, 16
      %v5167 = vrot.slane %v5165, 1
      %v5168 = vsel %vm1878, %v5163, %v5167
      %v5170 = vshrl.u32 %v5035, 16
      %v5172 = vshll.u32 %v5035, 16
      %v5174 = vrot.slane %v5172, 1
      %v5175 = vor.u32 %v5170, %v5174
      %v5177 = vshll.u32 %v5107, 16
      %v5179 = vrot.slane %v5177, 1
      %v5180 = vsel %vm1878, %v5175, %v5179
      %v5182 = vshrl.u32 %v5036, 16
      %v5184 = vshll.u32 %v5036, 16
      %v5186 = vrot.slane %v5184, 1
      %v5187 = vor.u32 %v5182, %v5186
      %v5189 = vshll.u32 %v5108, 16
      %v5191 = vrot.slane %v5189, 1
      %v5192 = vsel %vm1878, %v5187, %v5191
      %v5194 = vshrl.u32 %v5037, 16
      %v5196 = vshll.u32 %v5037, 16
      %v5198 = vrot.slane %v5196, 1
      %v5199 = vor.u32 %v5194, %v5198
      %v5201 = vshll.u32 %v5109, 16
      %v5203 = vrot.slane %v5201, 1
      %v5204 = vsel %vm1878, %v5199, %v5203
      %v5206 = vshrl.u32 %v5038, 16
      %v5208 = vshll.u32 %v5038, 16
      %v5210 = vrot.slane %v5208, 1
      %v5211 = vor.u32 %v5206, %v5210
      %v5213 = vshll.u32 %v5110, 16
      %v5215 = vrot.slane %v5213, 1
      %v5216 = vsel %vm1878, %v5211, %v5215
      %v5218 = vshrl.u32 %v5039, 16
      %v5220 = vshll.u32 %v5039, 16
      %v5222 = vrot.slane %v5220, 1
      %v5223 = vor.u32 %v5218, %v5222
      %v5225 = vshll.u32 %v5111, 16
      %v5227 = vrot.slane %v5225, 1
      %v5228 = vsel %vm1878, %v5223, %v5227
      %v5230 = vshrl.u32 %v5040, 16
      %v5232 = vshll.u32 %v5040, 16
      %v5234 = vrot.slane %v5232, 1
      %v5235 = vor.u32 %v5230, %v5234
      %v5237 = vshll.u32 %v5112, 16
      %v5239 = vrot.slane %v5237, 1
      %v5240 = vsel %vm1878, %v5235, %v5239
      %v5242 = vshrl.u32 %v5041, 16
      %v5244 = vshll.u32 %v5041, 16
      %v5246 = vrot.slane %v5244, 1
      %v5247 = vor.u32 %v5242, %v5246
      %v5249 = vshll.u32 %v5113, 16
      %v5251 = vrot.slane %v5249, 1
      %v5252 = vsel %vm1878, %v5247, %v5251
      %v5254 = vshrl.u32 %v5042, 16
      %v5256 = vshll.u32 %v5042, 16
      %v5258 = vrot.slane %v5256, 1
      %v5259 = vor.u32 %v5254, %v5258
      %v5261 = vshll.u32 %v5114, 16
      %v5263 = vrot.slane %v5261, 1
      %v5264 = vsel %vm1878, %v5259, %v5263
      %v5266 = vshrl.u32 %v5043, 16
      %v5268 = vshll.u32 %v5043, 16
      %v5270 = vrot.slane %v5268, 1
      %v5271 = vor.u32 %v5266, %v5270
      %v5273 = vshll.u32 %v5115, 16
      %v5275 = vrot.slane %v5273, 1
      %v5276 = vsel %vm1878, %v5271, %v5275
      %v5278 = vshrl.u32 %v5044, 16
      %v5280 = vshll.u32 %v5044, 16
      %v5282 = vrot.slane %v5280, 1
      %v5283 = vor.u32 %v5278, %v5282
      %v5285 = vshll.u32 %v5116, 16
      %v5287 = vrot.slane %v5285, 1
      %v5288 = vsel %vm1878, %v5283, %v5287
      %v5290 = vshrl.u32 %v5045, 16
      %v5292 = vshll.u32 %v5045, 16
      %v5294 = vrot.slane %v5292, 1
      %v5295 = vor.u32 %v5290, %v5294
      %v5297 = vshll.u32 %v5117, 16
      %v5299 = vrot.slane %v5297, 1
      %v5300 = vsel %vm1878, %v5295, %v5299
      %v5302 = vshrl.u32 %v5046, 16
      %v5304 = vshll.u32 %v5046, 16
      %v5306 = vrot.slane %v5304, 1
      %v5307 = vor.u32 %v5302, %v5306
      %v5309 = vshll.u32 %v5118, 16
      %v5311 = vrot.slane %v5309, 1
      %v5312 = vsel %vm1878, %v5307, %v5311
      %v5314 = vshrl.u32 %v5047, 16
      %v5316 = vshll.u32 %v5047, 16
      %v5318 = vrot.slane %v5316, 1
      %v5319 = vor.u32 %v5314, %v5318
      %v5321 = vshll.u32 %v5119, 16
      %v5323 = vrot.slane %v5321, 1
      %v5324 = vsel %vm1878, %v5319, %v5323
      %v5326 = vshrl.u32 %v5048, 16
      %v5328 = vshll.u32 %v5048, 16
      %v5330 = vrot.slane %v5328, 1
      %v5331 = vor.u32 %v5326, %v5330
      %v5333 = vshll.u32 %v5120, 16
      %v5335 = vrot.slane %v5333, 1
      %v5336 = vsel %vm1878, %v5331, %v5335
      %v5373 = vunpack.c.l.b16 %v4941
      %v5374 = vunpack.c.l.b16 %v4942
      %v5375 = vunpack.c.l.b16 %v4943
      %v5376 = vunpack.c.l.b16 %v4944
      %v5377 = vunpack.c.l.b16 %v4945
      %v5378 = vunpack.c.l.b16 %v4946
      %v5379 = vunpack.c.l.b16 %v4947
      %v5380 = vunpack.c.l.b16 %v4948
      %v5381 = vunpack.c.l.b16 %v4949
      %v5382 = vunpack.c.l.b16 %v4950
      %v5383 = vunpack.c.l.b16 %v4951
      %v5384 = vunpack.c.l.b16 %v4952
      %v5385 = vunpack.c.l.b16 %v4953
      %v5386 = vunpack.c.l.b16 %v4954
      %v5387 = vunpack.c.l.b16 %v4955
      %v5388 = vunpack.c.l.b16 %v4956
      %v5389 = vunpack.c.l.b16 %v4957
      %v5390 = vunpack.c.l.b16 %v4958
      %v5391 = vpack.c.b16 %v4996, %v5373
      %v5392 = vpack.c.b16 %v4998, %v5374
      %v5393 = vpack.c.b16 %v5000, %v5375
      %v5394 = vpack.c.b16 %v5002, %v5376
      %v5395 = vpack.c.b16 %v5004, %v5377
      %v5396 = vpack.c.b16 %v5006, %v5378
      %v5397 = vpack.c.b16 %v5008, %v5379
      %v5398 = vpack.c.b16 %v5010, %v5380
      %v5399 = vpack.c.b16 %v5012, %v5381
      %v5400 = vpack.c.b16 %v5014, %v5382
      %v5401 = vpack.c.b16 %v5016, %v5383
      %v5402 = vpack.c.b16 %v5018, %v5384
      %v5403 = vpack.c.b16 %v5020, %v5385
      %v5404 = vpack.c.b16 %v5022, %v5386
      %v5405 = vpack.c.b16 %v5024, %v5387
      %v5406 = vpack.c.b16 %v5026, %v5388
      %v5407 = vpack.c.b16 %v5028, %v5389
      %v5408 = vpack.c.b16 %v5030, %v5390
      %v5409 = vrot.slane %v5391, 1
      %v5410 = vrot.slane %v5103, 1
      %v5411 = vsel %vm2167, %v5409, %v5410
      %v5412 = vrot.slane %v5392, 1
      %v5413 = vrot.slane %v5104, 1
      %v5414 = vsel %vm2167, %v5412, %v5413
      %v5415 = vrot.slane %v5393, 1
      %v5416 = vrot.slane %v5105, 1
      %v5417 = vsel %vm2167, %v5415, %v5416
      %v5418 = vrot.slane %v5394, 1
      %v5419 = vrot.slane %v5106, 1
      %v5420 = vsel %vm2167, %v5418, %v5419
      %v5421 = vrot.slane %v5395, 1
      %v5422 = vrot.slane %v5107, 1
      %v5423 = vsel %vm2167, %v5421, %v5422
      %v5424 = vrot.slane %v5396, 1
      %v5425 = vrot.slane %v5108, 1
      %v5426 = vsel %vm2167, %v5424, %v5425
      %v5427 = vrot.slane %v5397, 1
      %v5428 = vrot.slane %v5109, 1
      %v5429 = vsel %vm2167, %v5427, %v5428
      %v5430 = vrot.slane %v5398, 1
      %v5431 = vrot.slane %v5110, 1
      %v5432 = vsel %vm2167, %v5430, %v5431
      %v5433 = vrot.slane %v5399, 1
      %v5434 = vrot.slane %v5111, 1
      %v5435 = vsel %vm2167, %v5433, %v5434
      %v5436 = vrot.slane %v5400, 1
      %v5437 = vrot.slane %v5112, 1
      %v5438 = vsel %vm2167, %v5436, %v5437
      %v5439 = vrot.slane %v5401, 1
      %v5440 = vrot.slane %v5113, 1
      %v5441 = vsel %vm2167, %v5439, %v5440
      %v5442 = vrot.slane %v5402, 1
      %v5443 = vrot.slane %v5114, 1
      %v5444 = vsel %vm2167, %v5442, %v5443
      %v5445 = vrot.slane %v5403, 1
      %v5446 = vrot.slane %v5115, 1
      %v5447 = vsel %vm2167, %v5445, %v5446
      %v5448 = vrot.slane %v5404, 1
      %v5449 = vrot.slane %v5116, 1
      %v5450 = vsel %vm2167, %v5448, %v5449
      %v5451 = vrot.slane %v5405, 1
      %v5452 = vrot.slane %v5117, 1
      %v5453 = vsel %vm2167, %v5451, %v5452
      %v5454 = vrot.slane %v5406, 1
      %v5455 = vrot.slane %v5118, 1
      %v5456 = vsel %vm2167, %v5454, %v5455
      %v5457 = vrot.slane %v5407, 1
      %v5458 = vrot.slane %v5119, 1
      %v5459 = vsel %vm2167, %v5457, %v5458
      %v5460 = vrot.slane %v5408, 1
      %v5461 = vrot.slane %v5120, 1
      %v5462 = vsel %vm2167, %v5460, %v5461
      %v5481 = vld [vmem:[%s8] sm:$0xf]
      %v5482 = vld [vmem:[%s8 + $0x4] sm:$0xf]
      %v5483 = vld [vmem:[%s8 + $0x8] sm:$0xf]
      %v5484 = vld [vmem:[%s8 + $0xc] sm:$0xf]
      %v5485 = vld [vmem:[%s8 + $0x10] sm:$0xf]
      %v5486 = vld [vmem:[%s8 + $0x14] sm:$0xf]
      %v5487 = vld [vmem:[%s8 + $0x18] sm:$0xf]
      %v5488 = vld [vmem:[%s8 + $0x1c] sm:$0xf]
      %v5489 = vld [vmem:[%s8 + $0x20] sm:$0xf]
      %v5490 = vld [vmem:[%s8 + $0x24] sm:$0xf]
      %v5491 = vld [vmem:[%s8 + $0x28] sm:$0xf]
      %v5492 = vld [vmem:[%s8 + $0x2c] sm:$0xf]
      %v5493 = vld [vmem:[%s8 + $0x30] sm:$0xf]
      %v5494 = vld [vmem:[%s8 + $0x34] sm:$0xf]
      %v5495 = vld [vmem:[%s8 + $0x38] sm:$0xf]
      %v5496 = vld [vmem:[%s8 + $0x3c] sm:$0xf]
      %v5497 = vld [vmem:[%s8 + $0x40] sm:$0xf]
      %v5498 = vld [vmem:[%s8 + $0x44] sm:$0xf]
      %v5499 = vld [vmem:[%s8 + $0x48] sm:$0xf]
      %v5500 = vld [vmem:[%s8 + $0x4c] sm:$0xf]
      %v5501 = vld [vmem:[%s8 + $0x50] sm:$0xf]
      %v5502 = vld [vmem:[%s8 + $0x54] sm:$0xf]
      %v5503 = vld [vmem:[%s8 + $0x58] sm:$0xf]
      %v5504 = vld [vmem:[%s8 + $0x5c] sm:$0xf]
      %v5505 = vld [vmem:[%s8 + $0x60] sm:$0xf]
      %v5506 = vld [vmem:[%s8 + $0x64] sm:$0xf]
      %v5507 = vld [vmem:[%s8 + $0x68] sm:$0xf]
      %v5508 = vld [vmem:[%s8 + $0x6c] sm:$0xf]
      %v5509 = vld [vmem:[%s8 + $0x70] sm:$0xf]
      %v5510 = vld [vmem:[%s8 + $0x74] sm:$0xf]
      %v5511 = vld [vmem:[%s8 + $0x78] sm:$0xf]
      %v5512 = vld [vmem:[%s8 + $0x7c] sm:$0xf]
      %v5513 = vld [vmem:[%s8 + $0x80] sm:$0xf]
      %v5514 = vld [vmem:[%s8 + $0x84] sm:$0xf]
      %v5515 = vld [vmem:[%s8 + $0x88] sm:$0xf]
      %v5516 = vld [vmem:[%s8 + $0x8c] sm:$0xf]
      %v5517 = vld [vmem:[%s8 + $0x90] sm:$0xf]
      %v5518 = vld [vmem:[%s8 + $0x94] sm:$0xf]
      %v5519 = vld [vmem:[%s8 + $0x98] sm:$0xf]
      %v5520 = vld [vmem:[%s8 + $0x9c] sm:$0xf]
      %v5521 = vld [vmem:[%s8 + $0xa0] sm:$0xf]
      %v5522 = vld [vmem:[%s8 + $0xa4] sm:$0xf]
      %v5523 = vld [vmem:[%s8 + $0xa8] sm:$0xf]
      %v5524 = vld [vmem:[%s8 + $0xac] sm:$0xf]
      %v5525 = vld [vmem:[%s8 + $0xb0] sm:$0xf]
      %v5526 = vld [vmem:[%s8 + $0xb4] sm:$0xf]
      %v5527 = vld [vmem:[%s8 + $0xb8] sm:$0xf]
      %v5528 = vld [vmem:[%s8 + $0xbc] sm:$0xf]
      %s5529 = scalar_lea.vmem %s8, 192
      %v5530 = vld [vmem:[%s5529] sm:$0xf]
      %v5531 = vld [vmem:[%s5529 + $0x4] sm:$0xf]
      %v5532 = vld [vmem:[%s5529 + $0x8] sm:$0xf]
      %v5533 = vld [vmem:[%s5529 + $0xc] sm:$0xf]
      %v5534 = vld [vmem:[%s5529 + $0x10] sm:$0xf]
      %v5535 = vld [vmem:[%s5529 + $0x14] sm:$0xf]
      %v5536 = vld [vmem:[%s5529 + $0x18] sm:$0xf]
      %v5537 = vld [vmem:[%s5529 + $0x1c] sm:$0xf]
      %v5538 = vld [vmem:[%s5529 + $0x20] sm:$0xf]
      %v5539 = vld [vmem:[%s5529 + $0x24] sm:$0xf]
      %v5540 = vld [vmem:[%s5529 + $0x28] sm:$0xf]
      %v5541 = vld [vmem:[%s5529 + $0x2c] sm:$0xf]
      %v5542 = vld [vmem:[%s5529 + $0x30] sm:$0xf]
      %v5543 = vld [vmem:[%s5529 + $0x34] sm:$0xf]
      %v5544 = vld [vmem:[%s5529 + $0x38] sm:$0xf]
      %v5545 = vld [vmem:[%s5529 + $0x3c] sm:$0xf]
      %v5546 = vld [vmem:[%s5529 + $0x40] sm:$0xf]
      %v5547 = vld [vmem:[%s5529 + $0x44] sm:$0xf]
      %v5548 = vld [vmem:[%s5529 + $0x48] sm:$0xf]
      %v5549 = vld [vmem:[%s5529 + $0x4c] sm:$0xf]
      %v5550 = vld [vmem:[%s5529 + $0x50] sm:$0xf]
      %v5551 = vld [vmem:[%s5529 + $0x54] sm:$0xf]
      %v5552 = vld [vmem:[%s5529 + $0x58] sm:$0xf]
      %v5553 = vld [vmem:[%s5529 + $0x5c] sm:$0xf]
      %v5554 = vld [vmem:[%s5529 + $0x60] sm:$0xf]
      %v5555 = vld [vmem:[%s5529 + $0x64] sm:$0xf]
      %v5556 = vld [vmem:[%s5529 + $0x68] sm:$0xf]
      %v5557 = vld [vmem:[%s5529 + $0x6c] sm:$0xf]
      %v5558 = vld [vmem:[%s5529 + $0x70] sm:$0xf]
      %v5559 = vld [vmem:[%s5529 + $0x74] sm:$0xf]
      %v5560 = vld [vmem:[%s5529 + $0x78] sm:$0xf]
      %v5561 = vld [vmem:[%s5529 + $0x7c] sm:$0xf]
      %v5562 = vld [vmem:[%s5529 + $0x80] sm:$0xf]
      %v5563 = vld [vmem:[%s5529 + $0x84] sm:$0xf]
      %v5564 = vld [vmem:[%s5529 + $0x88] sm:$0xf]
      %v5565 = vld [vmem:[%s5529 + $0x8c] sm:$0xf]
      %v5566 = vld [vmem:[%s5529 + $0x90] sm:$0xf]
      %v5567 = vld [vmem:[%s5529 + $0x94] sm:$0xf]
      %v5568 = vld [vmem:[%s5529 + $0x98] sm:$0xf]
      %v5569 = vld [vmem:[%s5529 + $0x9c] sm:$0xf]
      %v5570 = vld [vmem:[%s5529 + $0xa0] sm:$0xf]
      %v5571 = vld [vmem:[%s5529 + $0xa4] sm:$0xf]
      %v5572 = vld [vmem:[%s5529 + $0xa8] sm:$0xf]
      %v5573 = vld [vmem:[%s5529 + $0xac] sm:$0xf]
      %v5574 = vld [vmem:[%s5529 + $0xb0] sm:$0xf]
      %v5575 = vld [vmem:[%s5529 + $0xb4] sm:$0xf]
      %v5576 = vld [vmem:[%s5529 + $0xb8] sm:$0xf]
      %v5577 = vld [vmem:[%s5529 + $0xbc] sm:$0xf]
      %v5626 = vunpack.c.l.b16 %v5530
      %v5627 = vunpack.c.l.b16 %v5531
      %v5628 = vunpack.c.l.b16 %v5532
      %v5629 = vunpack.c.l.b16 %v5533
      %v5630 = vunpack.c.l.b16 %v5534
      %v5631 = vunpack.c.l.b16 %v5535
      %v5632 = vunpack.c.l.b16 %v5536
      %v5633 = vunpack.c.l.b16 %v5537
      %v5634 = vunpack.c.l.b16 %v5538
      %v5635 = vunpack.c.l.b16 %v5539
      %v5636 = vunpack.c.l.b16 %v5540
      %v5637 = vunpack.c.l.b16 %v5541
      %v5638 = vunpack.c.l.b16 %v5542
      %v5639 = vunpack.c.l.b16 %v5543
      %v5640 = vunpack.c.l.b16 %v5544
      %v5641 = vunpack.c.l.b16 %v5545
      %v5642 = vunpack.c.l.b16 %v5546
      %v5643 = vunpack.c.l.b16 %v5547
      %v5644 = vunpack.c.l.b16 %v5548
      %v5645 = vunpack.c.l.b16 %v5549
      %v5646 = vunpack.c.l.b16 %v5550
      %v5647 = vunpack.c.l.b16 %v5551
      %v5648 = vunpack.c.l.b16 %v5552
      %v5649 = vunpack.c.l.b16 %v5553
      %v5650 = vunpack.c.l.b16 %v5554
      %v5651 = vunpack.c.l.b16 %v5555
      %v5652 = vunpack.c.l.b16 %v5556
      %v5653 = vunpack.c.l.b16 %v5557
      %v5654 = vunpack.c.l.b16 %v5558
      %v5655 = vunpack.c.l.b16 %v5559
      %v5656 = vunpack.c.l.b16 %v5560
      %v5657 = vunpack.c.l.b16 %v5561
      %v5658 = vunpack.c.l.b16 %v5562
      %v5659 = vunpack.c.l.b16 %v5563
      %v5660 = vunpack.c.l.b16 %v5564
      %v5661 = vunpack.c.l.b16 %v5565
      %v5662 = vunpack.c.l.b16 %v5566
      %v5663 = vunpack.c.l.b16 %v5567
      %v5664 = vunpack.c.l.b16 %v5568
      %v5665 = vunpack.c.l.b16 %v5569
      %v5666 = vunpack.c.l.b16 %v5570
      %v5667 = vunpack.c.l.b16 %v5571
      %v5668 = vunpack.c.l.b16 %v5572
      %v5669 = vunpack.c.l.b16 %v5573
      %v5670 = vunpack.c.l.b16 %v5574
      %v5671 = vunpack.c.l.b16 %v5575
      %v5672 = vunpack.c.l.b16 %v5576
      %v5673 = vunpack.c.l.b16 %v5577
      %v5674 = vpack.c.b16 %v5627, %v5626
      %v5675 = vpack.c.b16 %v5629, %v5628
      %v5676 = vpack.c.b16 %v5631, %v5630
      %v5677 = vpack.c.b16 %v5633, %v5632
      %v5678 = vpack.c.b16 %v5635, %v5634
      %v5679 = vpack.c.b16 %v5637, %v5636
      %v5680 = vpack.c.b16 %v5639, %v5638
      %v5681 = vpack.c.b16 %v5641, %v5640
      %v5682 = vpack.c.b16 %v5643, %v5642
      %v5683 = vpack.c.b16 %v5645, %v5644
      %v5684 = vpack.c.b16 %v5647, %v5646
      %v5685 = vpack.c.b16 %v5649, %v5648
      %v5686 = vpack.c.b16 %v5651, %v5650
      %v5687 = vpack.c.b16 %v5653, %v5652
      %v5688 = vpack.c.b16 %v5655, %v5654
      %v5689 = vpack.c.b16 %v5657, %v5656
      %v5690 = vpack.c.b16 %v5659, %v5658
      %v5691 = vpack.c.b16 %v5661, %v5660
      %v5692 = vpack.c.b16 %v5663, %v5662
      %v5693 = vpack.c.b16 %v5665, %v5664
      %v5694 = vpack.c.b16 %v5667, %v5666
      %v5695 = vpack.c.b16 %v5669, %v5668
      %v5696 = vpack.c.b16 %v5671, %v5670
      %v5697 = vpack.c.b16 %v5673, %v5672
      %5722 = vmatprep.subr.bf16.mxu0 0
      %5723 = vmatpush1.bf16.msra.mxu0 %v5674
      %5724 = vmatprep.subr.bf16.mxu0 0
      %5725 = vmatpush1.bf16.msra.mxu0 %v5675
      %5726 = vmatprep.subr.bf16.mxu0 0
      %5727 = vmatpush1.bf16.msra.mxu0 %v5676
      %5728 = vmatprep.subr.bf16.mxu0 0
      %5729 = vmatpush1.bf16.msra.mxu0 %v5677
      %5730 = vmatprep.subr.bf16.mxu0 0
      %5731 = vmatpush1.bf16.msra.mxu0 %v5678
      %5732 = vmatprep.subr.bf16.mxu0 0
      %5733 = vmatpush1.bf16.msra.mxu0 %v5679
      %5734 = vmatprep.subr.bf16.mxu0 0
      %5735 = vmatpush1.bf16.msra.mxu0 %v5680
      %5736 = vmatprep.subr.bf16.mxu0 0
      %5737 = vmatpush1.bf16.msra.mxu0 %v5681
      %5738 = vmatprep.subr.bf16.mxu0 0
      %5739 = vmatpush1.bf16.msra.mxu0 %v5682
      %5740 = vmatprep.subr.bf16.mxu0 0
      %5741 = vmatpush1.bf16.msra.mxu0 %v5683
      %5742 = vmatprep.subr.bf16.mxu0 0
      %5743 = vmatpush1.bf16.msra.mxu0 %v5684
      %5744 = vmatprep.subr.bf16.mxu0 0
      %5745 = vmatpush1.bf16.msra.mxu0 %v5685
      %5746 = vmatprep.subr.bf16.mxu0 0
      %5747 = vmatpush1.bf16.msra.mxu0 %v5686
      %5748 = vmatprep.subr.bf16.mxu0 0
      %5749 = vmatpush1.bf16.msra.mxu0 %v5687
      %5750 = vmatprep.subr.bf16.mxu0 0
      %5751 = vmatpush1.bf16.msra.mxu0 %v5688
      %5752 = vmatprep.subr.bf16.mxu0 0
      %5753 = vmatpush1.bf16.msra.mxu0 %v5689
      %5754 = vmatprep.mubr.bf16.mxu0 %v5144
      %5755 = vmatmul.mubr.bf16.gmra.mrb[0].mxu0 %v5032
      %v5756 = vpop.f32.mrb[0].mxu0
      %v5757 = vadd.f32 0.0, %v5756
      %v5758 = vpop.f32.mrb[0].mxu0
      %v5759 = vpop.f32.mrb[0].mxu0
      %v5760 = vadd.f32 0.0, %v5759
      %v5761 = vpop.f32.mrb[0].mxu0
      %5762 = vmatprep.mubr.bf16.mxu0 %v5156
      %5763 = vmatmul.mubr.bf16.gmra.mrb[0].mxu0 %v5033
      %v5764 = vpop.f32.mrb[0].mxu0
      %v5765 = vadd.f32 0.0, %v5764
      %v5766 = vpop.f32.mrb[0].mxu0
      %v5767 = vpop.f32.mrb[0].mxu0
      %v5768 = vadd.f32 0.0, %v5767
      %v5769 = vpop.f32.mrb[0].mxu0
      %5770 = vmatprep.mubr.bf16.mxu0 %v5168
      %5771 = vmatmul.mubr.bf16.gmra.mrb[0].mxu0 %v5034
      %v5772 = vpop.f32.mrb[0].mxu0
      %v5773 = vadd.f32 0.0, %v5772
      %v5774 = vpop.f32.mrb[0].mxu0
      %v5775 = vpop.f32.mrb[0].mxu0
      %v5776 = vadd.f32 0.0, %v5775
      %v5777 = vpop.f32.mrb[0].mxu0
      %5778 = vmatprep.mubr.bf16.mxu0 %v5180
      %5779 = vmatmul.mubr.bf16.gmra.mrb[0].mxu0 %v5035
      %v5780 = vpop.f32.mrb[0].mxu0
      %v5781 = vadd.f32 0.0, %v5780
      %v5782 = vpop.f32.mrb[0].mxu0
      %v5783 = vpop.f32.mrb[0].mxu0
      %v5784 = vadd.f32 0.0, %v5783
      %v5785 = vpop.f32.mrb[0].mxu0
      %5786 = vmatprep.mubr.bf16.mxu0 %v5192
      %5787 = vmatmul.mubr.bf16.gmra.mrb[0].mxu0 %v5036
      %v5788 = vpop.f32.mrb[0].mxu0
      %v5789 = vadd.f32 0.0, %v5788
      %v5790 = vpop.f32.mrb[0].mxu0
      %v5791 = vpop.f32.mrb[0].mxu0
      %v5792 = vadd.f32 0.0, %v5791
      %v5793 = vpop.f32.mrb[0].mxu0
      %5794 = vmatprep.mubr.bf16.mxu0 %v5204
      %5795 = vmatmul.mubr.bf16.gmra.mrb[0].mxu0 %v5037
      %v5796 = vpop.f32.mrb[0].mxu0
      %v5797 = vadd.f32 0.0, %v5796
      %v5798 = vpop.f32.mrb[0].mxu0
      %v5799 = vpop.f32.mrb[0].mxu0
      %v5800 = vadd.f32 0.0, %v5799
      %v5801 = vpop.f32.mrb[0].mxu0
      %5802 = vmatprep.mubr.bf16.mxu0 %v5216
      %5803 = vmatmul.mubr.bf16.gmra.mrb[0].mxu0 %v5038
      %v5804 = vpop.f32.mrb[0].mxu0
      %v5805 = vadd.f32 0.0, %v5804
      %v5806 = vpop.f32.mrb[0].mxu0
      %v5807 = vpop.f32.mrb[0].mxu0
      %v5808 = vadd.f32 0.0, %v5807
      %v5809 = vpop.f32.mrb[0].mxu0
      %5810 = vmatprep.mubr.bf16.mxu0 %v5228
      %5811 = vmatmul.mubr.bf16.gmra.mrb[0].mxu0 %v5039
      %v5812 = vpop.f32.mrb[0].mxu0
      %v5813 = vadd.f32 0.0, %v5812
      %v5814 = vpop.f32.mrb[0].mxu0
      %v5815 = vpop.f32.mrb[0].mxu0
      %v5816 = vadd.f32 0.0, %v5815
      %v5817 = vpop.f32.mrb[0].mxu0
      %5818 = vmatprep.mubr.bf16.mxu0 %v5240
      %5819 = vmatmul.mubr.bf16.gmra.mrb[0].mxu0 %v5040
      %v5820 = vpop.f32.mrb[0].mxu0
      %v5821 = vadd.f32 0.0, %v5820
      %v5822 = vpop.f32.mrb[0].mxu0
      %v5823 = vpop.f32.mrb[0].mxu0
      %v5824 = vadd.f32 0.0, %v5823
      %v5825 = vpop.f32.mrb[0].mxu0
      %5826 = vmatprep.mubr.bf16.mxu0 %v5252
      %5827 = vmatmul.mubr.bf16.gmra.mrb[0].mxu0 %v5041
      %v5828 = vpop.f32.mrb[0].mxu0
      %v5829 = vadd.f32 0.0, %v5828
      %v5830 = vpop.f32.mrb[0].mxu0
      %v5831 = vpop.f32.mrb[0].mxu0
      %v5832 = vadd.f32 0.0, %v5831
      %v5833 = vpop.f32.mrb[0].mxu0
      %5834 = vmatprep.mubr.bf16.mxu0 %v5264
      %5835 = vmatmul.mubr.bf16.gmra.mrb[0].mxu0 %v5042
      %v5836 = vpop.f32.mrb[0].mxu0
      %v5837 = vadd.f32 0.0, %v5836
      %v5838 = vpop.f32.mrb[0].mxu0
      %v5839 = vpop.f32.mrb[0].mxu0
      %v5840 = vadd.f32 0.0, %v5839
      %v5841 = vpop.f32.mrb[0].mxu0
      %5842 = vmatprep.mubr.bf16.mxu0 %v5276
      %5843 = vmatmul.mubr.bf16.gmra.mrb[0].mxu0 %v5043
      %v5844 = vpop.f32.mrb[0].mxu0
      %v5845 = vadd.f32 0.0, %v5844
      %v5846 = vpop.f32.mrb[0].mxu0
      %v5847 = vpop.f32.mrb[0].mxu0
      %v5848 = vadd.f32 0.0, %v5847
      %v5849 = vpop.f32.mrb[0].mxu0
      %5850 = vmatprep.mubr.bf16.mxu0 %v5288
      %5851 = vmatmul.mubr.bf16.gmra.mrb[0].mxu0 %v5044
      %v5852 = vpop.f32.mrb[0].mxu0
      %v5853 = vadd.f32 0.0, %v5852
      %v5854 = vpop.f32.mrb[0].mxu0
      %v5855 = vpop.f32.mrb[0].mxu0
      %v5856 = vadd.f32 0.0, %v5855
      %v5857 = vpop.f32.mrb[0].mxu0
      %5858 = vmatprep.mubr.bf16.mxu0 %v5300
      %5859 = vmatmul.mubr.bf16.gmra.mrb[0].mxu0 %v5045
      %v5860 = vpop.f32.mrb[0].mxu0
      %v5861 = vadd.f32 0.0, %v5860
      %v5862 = vpop.f32.mrb[0].mxu0
      %v5863 = vpop.f32.mrb[0].mxu0
      %v5864 = vadd.f32 0.0, %v5863
      %v5865 = vpop.f32.mrb[0].mxu0
      %5866 = vmatprep.mubr.bf16.mxu0 %v5312
      %5867 = vmatmul.mubr.bf16.gmra.mrb[0].mxu0 %v5046
      %v5868 = vpop.f32.mrb[0].mxu0
      %v5869 = vadd.f32 0.0, %v5868
      %v5870 = vpop.f32.mrb[0].mxu0
      %v5871 = vpop.f32.mrb[0].mxu0
      %v5872 = vadd.f32 0.0, %v5871
      %v5873 = vpop.f32.mrb[0].mxu0
      %5874 = vmatprep.mubr.bf16.mxu0 %v5324
      %5875 = vmatmul.mubr.bf16.gmra.mrb[0].mxu0 %v5047
      %v5876 = vpop.f32.mrb[0].mxu0
      %v5877 = vadd.f32 0.0, %v5876
      %v5878 = vpop.f32.mrb[0].mxu0
      %v5879 = vpop.f32.mrb[0].mxu0
      %v5880 = vadd.f32 0.0, %v5879
      %v5881 = vpop.f32.mrb[0].mxu0
      %5882 = vdwg.mxu0
      %5883 = vmatprep.subr.bf16.mxu0 0
      %5884 = vmatpush1.bf16.msra.mxu0 %v5690
      %5885 = vmatprep.subr.bf16.mxu0 0
      %5886 = vmatpush1.bf16.msra.mxu0 %v5691
      %5887 = vmatprep.subr.bf16.mxu0 0
      %5888 = vmatpush1.bf16.msra.mxu0 %v5692
      %5889 = vmatprep.subr.bf16.mxu0 0
      %5890 = vmatpush1.bf16.msra.mxu0 %v5693
      %5891 = vmatprep.subr.bf16.mxu0 0
      %5892 = vmatpush1.bf16.msra.mxu0 %v5694
      %5893 = vmatprep.subr.bf16.mxu0 0
      %5894 = vmatpush1.bf16.msra.mxu0 %v5695
      %5895 = vmatprep.subr.bf16.mxu0 0
      %5896 = vmatpush1.bf16.msra.mxu0 %v5696
      %5897 = vmatprep.subr.bf16.mxu0 0
      %5898 = vmatpush1.bf16.msra.mxu0 %v5697
      %5899 = vmatprep.subr.bf16.mxu0 0
      %5900 = vmatpush1.bf16.msra.mxu0 0
      %5901 = vmatprep.subr.bf16.mxu0 0
      %5902 = vmatpush1.bf16.msra.mxu0 0
      %5903 = vmatprep.subr.bf16.mxu0 0
      %5904 = vmatpush1.bf16.msra.mxu0 0
      %5905 = vmatprep.subr.bf16.mxu0 0
      %5906 = vmatpush1.bf16.msra.mxu0 0
      %5907 = vmatprep.subr.bf16.mxu0 0
      %5908 = vmatpush1.bf16.msra.mxu0 0
      %5909 = vmatprep.subr.bf16.mxu0 0
      %5910 = vmatpush1.bf16.msra.mxu0 0
      %5911 = vmatprep.subr.bf16.mxu0 0
      %5912 = vmatpush1.bf16.msra.mxu0 0
      %5913 = vmatprep.subr.bf16.mxu0 0
      %5914 = vmatpush1.bf16.msra.mxu0 0
      %5915 = vmatprep.mubr.bf16.mxu0 0
      %5916 = vmatmul.mubr.bf16.gmra.mrb[0].mxu0 %v5414
      %v5917 = vpop.f32.mrb[0].mxu0
      %v5918 = vadd.f32 %v5757, %v5917
      %v5919 = vpop.f32.mrb[0].mxu0
      %v5920 = vpop.f32.mrb[0].mxu0
      %v5921 = vadd.f32 %v5760, %v5920
      %v5922 = vpop.f32.mrb[0].mxu0
      %5923 = vmatprep.mubr.bf16.mxu0 0
      %5924 = vmatmul.mubr.bf16.gmra.mrb[0].mxu0 %v5417
      %v5925 = vpop.f32.mrb[0].mxu0
      %v5926 = vadd.f32 %v5765, %v5925
      %v5927 = vpop.f32.mrb[0].mxu0
      %v5928 = vpop.f32.mrb[0].mxu0
      %v5929 = vadd.f32 %v5768, %v5928
      %v5930 = vpop.f32.mrb[0].mxu0
      %5931 = vmatprep.mubr.bf16.mxu0 0
      %5932 = vmatmul.mubr.bf16.gmra.mrb[0].mxu0 %v5420
      %v5933 = vpop.f32.mrb[0].mxu0
      %v5934 = vadd.f32 %v5773, %v5933
      %v5935 = vpop.f32.mrb[0].mxu0
      %v5936 = vpop.f32.mrb[0].mxu0
      %v5937 = vadd.f32 %v5776, %v5936
      %v5938 = vpop.f32.mrb[0].mxu0
      %5939 = vmatprep.mubr.bf16.mxu0 0
      %5940 = vmatmul.mubr.bf16.gmra.mrb[0].mxu0 %v5423
      %v5941 = vpop.f32.mrb[0].mxu0
      %v5942 = vadd.f32 %v5781, %v5941
      %v5943 = vpop.f32.mrb[0].mxu0
      %v5944 = vpop.f32.mrb[0].mxu0
      %v5945 = vadd.f32 %v5784, %v5944
      %v5946 = vpop.f32.mrb[0].mxu0
      %5947 = vmatprep.mubr.bf16.mxu0 0
      %5948 = vmatmul.mubr.bf16.gmra.mrb[0].mxu0 %v5426
      %v5949 = vpop.f32.mrb[0].mxu0
      %v5950 = vadd.f32 %v5789, %v5949
      %v5951 = vpop.f32.mrb[0].mxu0
      %v5952 = vpop.f32.mrb[0].mxu0
      %v5953 = vadd.f32 %v5792, %v5952
      %v5954 = vpop.f32.mrb[0].mxu0
      %5955 = vmatprep.mubr.bf16.mxu0 0
      %5956 = vmatmul.mubr.bf16.gmra.mrb[0].mxu0 %v5429
      %v5957 = vpop.f32.mrb[0].mxu0
      %v5958 = vadd.f32 %v5797, %v5957
      %v5959 = vpop.f32.mrb[0].mxu0
      %v5960 = vpop.f32.mrb[0].mxu0
      %v5961 = vadd.f32 %v5800, %v5960
      %v5962 = vpop.f32.mrb[0].mxu0
      %5963 = vmatprep.mubr.bf16.mxu0 0
      %5964 = vmatmul.mubr.bf16.gmra.mrb[0].mxu0 %v5432
      %v5965 = vpop.f32.mrb[0].mxu0
      %v5966 = vadd.f32 %v5805, %v5965
      %v5967 = vpop.f32.mrb[0].mxu0
      %v5968 = vpop.f32.mrb[0].mxu0
      %v5969 = vadd.f32 %v5808, %v5968
      %v5970 = vpop.f32.mrb[0].mxu0
      %5971 = vmatprep.mubr.bf16.mxu0 0
      %5972 = vmatmul.mubr.bf16.gmra.mrb[0].mxu0 %v5435
      %v5973 = vpop.f32.mrb[0].mxu0
      %v5974 = vadd.f32 %v5813, %v5973
      %v5975 = vpop.f32.mrb[0].mxu0
      %v5976 = vpop.f32.mrb[0].mxu0
      %v5977 = vadd.f32 %v5816, %v5976
      %v5978 = vpop.f32.mrb[0].mxu0
      %5979 = vmatprep.mubr.bf16.mxu0 0
      %5980 = vmatmul.mubr.bf16.gmra.mrb[0].mxu0 %v5438
      %v5981 = vpop.f32.mrb[0].mxu0
      %v5982 = vadd.f32 %v5821, %v5981
      %v5983 = vpop.f32.mrb[0].mxu0
      %v5984 = vpop.f32.mrb[0].mxu0
      %v5985 = vadd.f32 %v5824, %v5984
      %v5986 = vpop.f32.mrb[0].mxu0
      %5987 = vmatprep.mubr.bf16.mxu0 0
      %5988 = vmatmul.mubr.bf16.gmra.mrb[0].mxu0 %v5441
      %v5989 = vpop.f32.mrb[0].mxu0
      %v5990 = vadd.f32 %v5829, %v5989
      %v5991 = vpop.f32.mrb[0].mxu0
      %v5992 = vpop.f32.mrb[0].mxu0
      %v5993 = vadd.f32 %v5832, %v5992
      %v5994 = vpop.f32.mrb[0].mxu0
      %5995 = vmatprep.mubr.bf16.mxu0 0
      %5996 = vmatmul.mubr.bf16.gmra.mrb[0].mxu0 %v5444
      %v5997 = vpop.f32.mrb[0].mxu0
      %v5998 = vadd.f32 %v5837, %v5997
      %v5999 = vpop.f32.mrb[0].mxu0
      %v6000 = vpop.f32.mrb[0].mxu0
      %v6001 = vadd.f32 %v5840, %v6000
      %v6002 = vpop.f32.mrb[0].mxu0
      %6003 = vmatprep.mubr.bf16.mxu0 0
      %6004 = vmatmul.mubr.bf16.gmra.mrb[0].mxu0 %v5447
      %v6005 = vpop.f32.mrb[0].mxu0
      %v6006 = vadd.f32 %v5845, %v6005
      %v6007 = vpop.f32.mrb[0].mxu0
      %v6008 = vpop.f32.mrb[0].mxu0
      %v6009 = vadd.f32 %v5848, %v6008
      %v6010 = vpop.f32.mrb[0].mxu0
      %6011 = vmatprep.mubr.bf16.mxu0 0
      %6012 = vmatmul.mubr.bf16.gmra.mrb[0].mxu0 %v5450
      %v6013 = vpop.f32.mrb[0].mxu0
      %v6014 = vadd.f32 %v5853, %v6013
      %v6015 = vpop.f32.mrb[0].mxu0
      %v6016 = vpop.f32.mrb[0].mxu0
      %v6017 = vadd.f32 %v5856, %v6016
      %v6018 = vpop.f32.mrb[0].mxu0
      %6019 = vmatprep.mubr.bf16.mxu0 0
      %6020 = vmatmul.mubr.bf16.gmra.mrb[0].mxu0 %v5453
      %v6021 = vpop.f32.mrb[0].mxu0
      %v6022 = vadd.f32 %v5861, %v6021
      %v6023 = vpop.f32.mrb[0].mxu0
      %v6024 = vpop.f32.mrb[0].mxu0
      %v6025 = vadd.f32 %v5864, %v6024
      %v6026 = vpop.f32.mrb[0].mxu0
      %6027 = vmatprep.mubr.bf16.mxu0 0
      %6028 = vmatmul.mubr.bf16.gmra.mrb[0].mxu0 %v5456
      %v6029 = vpop.f32.mrb[0].mxu0
      %v6030 = vadd.f32 %v5869, %v6029
      %v6031 = vpop.f32.mrb[0].mxu0
      %v6032 = vpop.f32.mrb[0].mxu0
      %v6033 = vadd.f32 %v5872, %v6032
      %v6034 = vpop.f32.mrb[0].mxu0
      %6035 = vmatprep.mubr.bf16.mxu0 0
      %6036 = vmatmul.mubr.bf16.gmra.mrb[0].mxu0 %v5459
      %v6037 = vpop.f32.mrb[0].mxu0
      %v6038 = vadd.f32 %v5877, %v6037
      %v6039 = vpop.f32.mrb[0].mxu0
      %v6040 = vpop.f32.mrb[0].mxu0
      %v6041 = vadd.f32 %v5880, %v6040
      %v6042 = vpop.f32.mrb[0].mxu0
      %6043 = vdwg.mxu0
      %v6092 = vunpack.c.l.b16 %v5481
      %v6093 = vunpack.c.l.b16 %v5482
      %v6094 = vunpack.c.l.b16 %v5483
      %v6095 = vunpack.c.l.b16 %v5484
      %v6096 = vunpack.c.l.b16 %v5485
      %v6097 = vunpack.c.l.b16 %v5486
      %v6098 = vunpack.c.l.b16 %v5487
      %v6099 = vunpack.c.l.b16 %v5488
      %v6100 = vunpack.c.l.b16 %v5489
      %v6101 = vunpack.c.l.b16 %v5490
      %v6102 = vunpack.c.l.b16 %v5491
      %v6103 = vunpack.c.l.b16 %v5492
      %v6104 = vunpack.c.l.b16 %v5493
      %v6105 = vunpack.c.l.b16 %v5494
      %v6106 = vunpack.c.l.b16 %v5495
      %v6107 = vunpack.c.l.b16 %v5496
      %v6108 = vunpack.c.l.b16 %v5497
      %v6109 = vunpack.c.l.b16 %v5498
      %v6110 = vunpack.c.l.b16 %v5499
      %v6111 = vunpack.c.l.b16 %v5500
      %v6112 = vunpack.c.l.b16 %v5501
      %v6113 = vunpack.c.l.b16 %v5502
      %v6114 = vunpack.c.l.b16 %v5503
      %v6115 = vunpack.c.l.b16 %v5504
      %v6116 = vunpack.c.l.b16 %v5505
      %v6117 = vunpack.c.l.b16 %v5506
      %v6118 = vunpack.c.l.b16 %v5507
      %v6119 = vunpack.c.l.b16 %v5508
      %v6120 = vunpack.c.l.b16 %v5509
      %v6121 = vunpack.c.l.b16 %v5510
      %v6122 = vunpack.c.l.b16 %v5511
      %v6123 = vunpack.c.l.b16 %v5512
      %v6124 = vunpack.c.l.b16 %v5513
      %v6125 = vunpack.c.l.b16 %v5514
      %v6126 = vunpack.c.l.b16 %v5515
      %v6127 = vunpack.c.l.b16 %v5516
      %v6128 = vunpack.c.l.b16 %v5517
      %v6129 = vunpack.c.l.b16 %v5518
      %v6130 = vunpack.c.l.b16 %v5519
      %v6131 = vunpack.c.l.b16 %v5520
      %v6132 = vunpack.c.l.b16 %v5521
      %v6133 = vunpack.c.l.b16 %v5522
      %v6134 = vunpack.c.l.b16 %v5523
      %v6135 = vunpack.c.l.b16 %v5524
      %v6136 = vunpack.c.l.b16 %v5525
      %v6137 = vunpack.c.l.b16 %v5526
      %v6138 = vunpack.c.l.b16 %v5527
      %v6139 = vunpack.c.l.b16 %v5528
      %v6140 = vpack.c.b16 %v6093, %v6092
      %v6141 = vpack.c.b16 %v6095, %v6094
      %v6142 = vpack.c.b16 %v6097, %v6096
      %v6143 = vpack.c.b16 %v6099, %v6098
      %v6144 = vpack.c.b16 %v6101, %v6100
      %v6145 = vpack.c.b16 %v6103, %v6102
      %v6146 = vpack.c.b16 %v6105, %v6104
      %v6147 = vpack.c.b16 %v6107, %v6106
      %v6148 = vpack.c.b16 %v6109, %v6108
      %v6149 = vpack.c.b16 %v6111, %v6110
      %v6150 = vpack.c.b16 %v6113, %v6112
      %v6151 = vpack.c.b16 %v6115, %v6114
      %v6152 = vpack.c.b16 %v6117, %v6116
      %v6153 = vpack.c.b16 %v6119, %v6118
      %v6154 = vpack.c.b16 %v6121, %v6120
      %v6155 = vpack.c.b16 %v6123, %v6122
      %v6156 = vpack.c.b16 %v6125, %v6124
      %v6157 = vpack.c.b16 %v6127, %v6126
      %v6158 = vpack.c.b16 %v6129, %v6128
      %v6159 = vpack.c.b16 %v6131, %v6130
      %v6160 = vpack.c.b16 %v6133, %v6132
      %v6161 = vpack.c.b16 %v6135, %v6134
      %v6162 = vpack.c.b16 %v6137, %v6136
      %v6163 = vpack.c.b16 %v6139, %v6138
      %6188 = vmatprep.subr.bf16.mxu0 0
      %6189 = vmatpush1.bf16.msra.mxu0 %v6140
      %6190 = vmatprep.subr.bf16.mxu0 0
      %6191 = vmatpush1.bf16.msra.mxu0 %v6141
      %6192 = vmatprep.subr.bf16.mxu0 0
      %6193 = vmatpush1.bf16.msra.mxu0 %v6142
      %6194 = vmatprep.subr.bf16.mxu0 0
      %6195 = vmatpush1.bf16.msra.mxu0 %v6143
      %6196 = vmatprep.subr.bf16.mxu0 0
      %6197 = vmatpush1.bf16.msra.mxu0 %v6144
      %6198 = vmatprep.subr.bf16.mxu0 0
      %6199 = vmatpush1.bf16.msra.mxu0 %v6145
      %6200 = vmatprep.subr.bf16.mxu0 0
      %6201 = vmatpush1.bf16.msra.mxu0 %v6146
      %6202 = vmatprep.subr.bf16.mxu0 0
      %6203 = vmatpush1.bf16.msra.mxu0 %v6147
      %6204 = vmatprep.subr.bf16.mxu0 0
      %6205 = vmatpush1.bf16.msra.mxu0 %v6148
      %6206 = vmatprep.subr.bf16.mxu0 0
      %6207 = vmatpush1.bf16.msra.mxu0 %v6149
      %6208 = vmatprep.subr.bf16.mxu0 0
      %6209 = vmatpush1.bf16.msra.mxu0 %v6150
      %6210 = vmatprep.subr.bf16.mxu0 0
      %6211 = vmatpush1.bf16.msra.mxu0 %v6151
      %6212 = vmatprep.subr.bf16.mxu0 0
      %6213 = vmatpush1.bf16.msra.mxu0 %v6152
      %6214 = vmatprep.subr.bf16.mxu0 0
      %6215 = vmatpush1.bf16.msra.mxu0 %v6153
      %6216 = vmatprep.subr.bf16.mxu0 0
      %6217 = vmatpush1.bf16.msra.mxu0 %v6154
      %6218 = vmatprep.subr.bf16.mxu0 0
      %6219 = vmatpush1.bf16.msra.mxu0 %v6155
      %6220 = vmatprep.mubr.bf16.mxu0 %v5132
      %6221 = vmatmul.mubr.bf16.gmra.mrb[0].mxu0 %v5031
      %v6222 = vpop.f32.mrb[0].mxu0
      %v6223 = vadd.f32 %v5918, %v6222
      %v6224 = vpop.f32.mrb[0].mxu0
      %v6225 = vpop.f32.mrb[0].mxu0
      %v6226 = vadd.f32 %v5921, %v6225
      %v6227 = vpop.f32.mrb[0].mxu0
      %6228 = vmatprep.mubr.bf16.mxu0 %v5144
      %6229 = vmatmul.mubr.bf16.gmra.mrb[0].mxu0 %v5032
      %v6230 = vpop.f32.mrb[0].mxu0
      %v6231 = vadd.f32 %v5926, %v6230
      %v6232 = vpop.f32.mrb[0].mxu0
      %v6233 = vpop.f32.mrb[0].mxu0
      %v6234 = vadd.f32 %v5929, %v6233
      %v6235 = vpop.f32.mrb[0].mxu0
      %6236 = vmatprep.mubr.bf16.mxu0 %v5156
      %6237 = vmatmul.mubr.bf16.gmra.mrb[0].mxu0 %v5033
      %v6238 = vpop.f32.mrb[0].mxu0
      %v6239 = vadd.f32 %v5934, %v6238
      %v6240 = vpop.f32.mrb[0].mxu0
      %v6241 = vpop.f32.mrb[0].mxu0
      %v6242 = vadd.f32 %v5937, %v6241
      %v6243 = vpop.f32.mrb[0].mxu0
      %6244 = vmatprep.mubr.bf16.mxu0 %v5168
      %6245 = vmatmul.mubr.bf16.gmra.mrb[0].mxu0 %v5034
      %v6246 = vpop.f32.mrb[0].mxu0
      %v6247 = vadd.f32 %v5942, %v6246
      %v6248 = vpop.f32.mrb[0].mxu0
      %v6249 = vpop.f32.mrb[0].mxu0
      %v6250 = vadd.f32 %v5945, %v6249
      %v6251 = vpop.f32.mrb[0].mxu0
      %6252 = vmatprep.mubr.bf16.mxu0 %v5180
      %6253 = vmatmul.mubr.bf16.gmra.mrb[0].mxu0 %v5035
      %v6254 = vpop.f32.mrb[0].mxu0
      %v6255 = vadd.f32 %v5950, %v6254
      %v6256 = vpop.f32.mrb[0].mxu0
      %v6257 = vpop.f32.mrb[0].mxu0
      %v6258 = vadd.f32 %v5953, %v6257
      %v6259 = vpop.f32.mrb[0].mxu0
      %6260 = vmatprep.mubr.bf16.mxu0 %v5192
      %6261 = vmatmul.mubr.bf16.gmra.mrb[0].mxu0 %v5036
      %v6262 = vpop.f32.mrb[0].mxu0
      %v6263 = vadd.f32 %v5958, %v6262
      %v6264 = vpop.f32.mrb[0].mxu0
      %v6265 = vpop.f32.mrb[0].mxu0
      %v6266 = vadd.f32 %v5961, %v6265
      %v6267 = vpop.f32.mrb[0].mxu0
      %6268 = vmatprep.mubr.bf16.mxu0 %v5204
      %6269 = vmatmul.mubr.bf16.gmra.mrb[0].mxu0 %v5037
      %v6270 = vpop.f32.mrb[0].mxu0
      %v6271 = vadd.f32 %v5966, %v6270
      %v6272 = vpop.f32.mrb[0].mxu0
      %v6273 = vpop.f32.mrb[0].mxu0
      %v6274 = vadd.f32 %v5969, %v6273
      %v6275 = vpop.f32.mrb[0].mxu0
      %6276 = vmatprep.mubr.bf16.mxu0 %v5216
      %6277 = vmatmul.mubr.bf16.gmra.mrb[0].mxu0 %v5038
      %v6278 = vpop.f32.mrb[0].mxu0
      %v6279 = vadd.f32 %v5974, %v6278
      %v6280 = vpop.f32.mrb[0].mxu0
      %v6281 = vpop.f32.mrb[0].mxu0
      %v6282 = vadd.f32 %v5977, %v6281
      %v6283 = vpop.f32.mrb[0].mxu0
      %6284 = vmatprep.mubr.bf16.mxu0 %v5228
      %6285 = vmatmul.mubr.bf16.gmra.mrb[0].mxu0 %v5039
      %v6286 = vpop.f32.mrb[0].mxu0
      %v6287 = vadd.f32 %v5982, %v6286
      %v6288 = vpop.f32.mrb[0].mxu0
      %v6289 = vpop.f32.mrb[0].mxu0
      %v6290 = vadd.f32 %v5985, %v6289
      %v6291 = vpop.f32.mrb[0].mxu0
      %6292 = vmatprep.mubr.bf16.mxu0 %v5240
      %6293 = vmatmul.mubr.bf16.gmra.mrb[0].mxu0 %v5040
      %v6294 = vpop.f32.mrb[0].mxu0
      %v6295 = vadd.f32 %v5990, %v6294
      %v6296 = vpop.f32.mrb[0].mxu0
      %v6297 = vpop.f32.mrb[0].mxu0
      %v6298 = vadd.f32 %v5993, %v6297
      %v6299 = vpop.f32.mrb[0].mxu0
      %6300 = vmatprep.mubr.bf16.mxu0 %v5252
      %6301 = vmatmul.mubr.bf16.gmra.mrb[0].mxu0 %v5041
      %v6302 = vpop.f32.mrb[0].mxu0
      %v6303 = vadd.f32 %v5998, %v6302
      %v6304 = vpop.f32.mrb[0].mxu0
      %v6305 = vpop.f32.mrb[0].mxu0
      %v6306 = vadd.f32 %v6001, %v6305
      %v6307 = vpop.f32.mrb[0].mxu0
      %6308 = vmatprep.mubr.bf16.mxu0 %v5264
      %6309 = vmatmul.mubr.bf16.gmra.mrb[0].mxu0 %v5042
      %v6310 = vpop.f32.mrb[0].mxu0
      %v6311 = vadd.f32 %v6006, %v6310
      %v6312 = vpop.f32.mrb[0].mxu0
      %v6313 = vpop.f32.mrb[0].mxu0
      %v6314 = vadd.f32 %v6009, %v6313
      %v6315 = vpop.f32.mrb[0].mxu0
      %6316 = vmatprep.mubr.bf16.mxu0 %v5276
      %6317 = vmatmul.mubr.bf16.gmra.mrb[0].mxu0 %v5043
      %v6318 = vpop.f32.mrb[0].mxu0
      %v6319 = vadd.f32 %v6014, %v6318
      %v6320 = vpop.f32.mrb[0].mxu0
      %v6321 = vpop.f32.mrb[0].mxu0
      %v6322 = vadd.f32 %v6017, %v6321
      %v6323 = vpop.f32.mrb[0].mxu0
      %6324 = vmatprep.mubr.bf16.mxu0 %v5288
      %6325 = vmatmul.mubr.bf16.gmra.mrb[0].mxu0 %v5044
      %v6326 = vpop.f32.mrb[0].mxu0
      %v6327 = vadd.f32 %v6022, %v6326
      %v6328 = vpop.f32.mrb[0].mxu0
      %v6329 = vpop.f32.mrb[0].mxu0
      %v6330 = vadd.f32 %v6025, %v6329
      %v6331 = vpop.f32.mrb[0].mxu0
      %6332 = vmatprep.mubr.bf16.mxu0 %v5300
      %6333 = vmatmul.mubr.bf16.gmra.mrb[0].mxu0 %v5045
      %v6334 = vpop.f32.mrb[0].mxu0
      %v6335 = vadd.f32 %v6030, %v6334
      %v6336 = vpop.f32.mrb[0].mxu0
      %v6337 = vpop.f32.mrb[0].mxu0
      %v6338 = vadd.f32 %v6033, %v6337
      %v6339 = vpop.f32.mrb[0].mxu0
      %6340 = vmatprep.mubr.bf16.mxu0 %v5312
      %6341 = vmatmul.mubr.bf16.gmra.mrb[0].mxu0 %v5046
      %v6342 = vpop.f32.mrb[0].mxu0
      %v6343 = vadd.f32 %v6038, %v6342
      %v6344 = vpop.f32.mrb[0].mxu0
      %v6345 = vpop.f32.mrb[0].mxu0
      %v6346 = vadd.f32 %v6041, %v6345
      %v6347 = vpop.f32.mrb[0].mxu0
      %6348 = vdwg.mxu0
      %6349 = vmatprep.subr.bf16.mxu0 0
      %6350 = vmatpush1.bf16.msra.mxu0 %v6156
      %6351 = vmatprep.subr.bf16.mxu0 0
      %6352 = vmatpush1.bf16.msra.mxu0 %v6157
      %6353 = vmatprep.subr.bf16.mxu0 0
      %6354 = vmatpush1.bf16.msra.mxu0 %v6158
      %6355 = vmatprep.subr.bf16.mxu0 0
      %6356 = vmatpush1.bf16.msra.mxu0 %v6159
      %6357 = vmatprep.subr.bf16.mxu0 0
      %6358 = vmatpush1.bf16.msra.mxu0 %v6160
      %6359 = vmatprep.subr.bf16.mxu0 0
      %6360 = vmatpush1.bf16.msra.mxu0 %v6161
      %6361 = vmatprep.subr.bf16.mxu0 0
      %6362 = vmatpush1.bf16.msra.mxu0 %v6162
      %6363 = vmatprep.subr.bf16.mxu0 0
      %6364 = vmatpush1.bf16.msra.mxu0 %v6163
      %6365 = vmatprep.subr.bf16.mxu0 0
      %6366 = vmatpush1.bf16.msra.mxu0 0
      %6367 = vmatprep.subr.bf16.mxu0 0
      %6368 = vmatpush1.bf16.msra.mxu0 0
      %6369 = vmatprep.subr.bf16.mxu0 0
      %6370 = vmatpush1.bf16.msra.mxu0 0
      %6371 = vmatprep.subr.bf16.mxu0 0
      %6372 = vmatpush1.bf16.msra.mxu0 0
      %6373 = vmatprep.subr.bf16.mxu0 0
      %6374 = vmatpush1.bf16.msra.mxu0 0
      %6375 = vmatprep.subr.bf16.mxu0 0
      %6376 = vmatpush1.bf16.msra.mxu0 0
      %6377 = vmatprep.subr.bf16.mxu0 0
      %6378 = vmatpush1.bf16.msra.mxu0 0
      %6379 = vmatprep.subr.bf16.mxu0 0
      %6380 = vmatpush1.bf16.msra.mxu0 0
      %6381 = vmatprep.mubr.bf16.mxu0 0
      %6382 = vmatmul.mubr.bf16.gmra.mrb[0].mxu0 %v5411
      %v6383 = vpop.f32.mrb[0].mxu0
      %v6384 = vadd.f32 %v6223, %v6383
      %v6385 = vpop.f32.mrb[0].mxu0
      %v6386 = vpop.f32.mrb[0].mxu0
      %v6387 = vadd.f32 %v6226, %v6386
      %v6388 = vpop.f32.mrb[0].mxu0
      %6389 = vmatprep.mubr.bf16.mxu0 0
      %6390 = vmatmul.mubr.bf16.gmra.mrb[0].mxu0 %v5414
      %v6391 = vpop.f32.mrb[0].mxu0
      %v6392 = vadd.f32 %v6231, %v6391
      %v6393 = vpop.f32.mrb[0].mxu0
      %v6394 = vpop.f32.mrb[0].mxu0
      %v6395 = vadd.f32 %v6234, %v6394
      %v6396 = vpop.f32.mrb[0].mxu0
      %6397 = vmatprep.mubr.bf16.mxu0 0
      %6398 = vmatmul.mubr.bf16.gmra.mrb[0].mxu0 %v5417
      %v6399 = vpop.f32.mrb[0].mxu0
      %v6400 = vadd.f32 %v6239, %v6399
      %v6401 = vpop.f32.mrb[0].mxu0
      %v6402 = vpop.f32.mrb[0].mxu0
      %v6403 = vadd.f32 %v6242, %v6402
      %v6404 = vpop.f32.mrb[0].mxu0
      %6405 = vmatprep.mubr.bf16.mxu0 0
      %6406 = vmatmul.mubr.bf16.gmra.mrb[0].mxu0 %v5420
      %v6407 = vpop.f32.mrb[0].mxu0
      %v6408 = vadd.f32 %v6247, %v6407
      %v6409 = vpop.f32.mrb[0].mxu0
      %v6410 = vpop.f32.mrb[0].mxu0
      %v6411 = vadd.f32 %v6250, %v6410
      %v6412 = vpop.f32.mrb[0].mxu0
      %6413 = vmatprep.mubr.bf16.mxu0 0
      %6414 = vmatmul.mubr.bf16.gmra.mrb[0].mxu0 %v5423
      %v6415 = vpop.f32.mrb[0].mxu0
      %v6416 = vadd.f32 %v6255, %v6415
      %v6417 = vpop.f32.mrb[0].mxu0
      %v6418 = vpop.f32.mrb[0].mxu0
      %v6419 = vadd.f32 %v6258, %v6418
      %v6420 = vpop.f32.mrb[0].mxu0
      %6421 = vmatprep.mubr.bf16.mxu0 0
      %6422 = vmatmul.mubr.bf16.gmra.mrb[0].mxu0 %v5426
      %v6423 = vpop.f32.mrb[0].mxu0
      %v6424 = vadd.f32 %v6263, %v6423
      %v6425 = vpop.f32.mrb[0].mxu0
      %v6426 = vpop.f32.mrb[0].mxu0
      %v6427 = vadd.f32 %v6266, %v6426
      %v6428 = vpop.f32.mrb[0].mxu0
      %6429 = vmatprep.mubr.bf16.mxu0 0
      %6430 = vmatmul.mubr.bf16.gmra.mrb[0].mxu0 %v5429
      %v6431 = vpop.f32.mrb[0].mxu0
      %v6432 = vadd.f32 %v6271, %v6431
      %v6433 = vpop.f32.mrb[0].mxu0
      %v6434 = vpop.f32.mrb[0].mxu0
      %v6435 = vadd.f32 %v6274, %v6434
      %v6436 = vpop.f32.mrb[0].mxu0
      %6437 = vmatprep.mubr.bf16.mxu0 0
      %6438 = vmatmul.mubr.bf16.gmra.mrb[0].mxu0 %v5432
      %v6439 = vpop.f32.mrb[0].mxu0
      %v6440 = vadd.f32 %v6279, %v6439
      %v6441 = vpop.f32.mrb[0].mxu0
      %v6442 = vpop.f32.mrb[0].mxu0
      %v6443 = vadd.f32 %v6282, %v6442
      %v6444 = vpop.f32.mrb[0].mxu0
      %6445 = vmatprep.mubr.bf16.mxu0 0
      %6446 = vmatmul.mubr.bf16.gmra.mrb[0].mxu0 %v5435
      %v6447 = vpop.f32.mrb[0].mxu0
      %v6448 = vadd.f32 %v6287, %v6447
      %v6449 = vpop.f32.mrb[0].mxu0
      %v6450 = vpop.f32.mrb[0].mxu0
      %v6451 = vadd.f32 %v6290, %v6450
      %v6452 = vpop.f32.mrb[0].mxu0
      %6453 = vmatprep.mubr.bf16.mxu0 0
      %6454 = vmatmul.mubr.bf16.gmra.mrb[0].mxu0 %v5438
      %v6455 = vpop.f32.mrb[0].mxu0
      %v6456 = vadd.f32 %v6295, %v6455
      %v6457 = vpop.f32.mrb[0].mxu0
      %v6458 = vpop.f32.mrb[0].mxu0
      %v6459 = vadd.f32 %v6298, %v6458
      %v6460 = vpop.f32.mrb[0].mxu0
      %6461 = vmatprep.mubr.bf16.mxu0 0
      %6462 = vmatmul.mubr.bf16.gmra.mrb[0].mxu0 %v5441
      %v6463 = vpop.f32.mrb[0].mxu0
      %v6464 = vadd.f32 %v6303, %v6463
      %v6465 = vpop.f32.mrb[0].mxu0
      %v6466 = vpop.f32.mrb[0].mxu0
      %v6467 = vadd.f32 %v6306, %v6466
      %v6468 = vpop.f32.mrb[0].mxu0
      %6469 = vmatprep.mubr.bf16.mxu0 0
      %6470 = vmatmul.mubr.bf16.gmra.mrb[0].mxu0 %v5444
      %v6471 = vpop.f32.mrb[0].mxu0
      %v6472 = vadd.f32 %v6311, %v6471
      %v6473 = vpop.f32.mrb[0].mxu0
      %v6474 = vpop.f32.mrb[0].mxu0
      %v6475 = vadd.f32 %v6314, %v6474
      %v6476 = vpop.f32.mrb[0].mxu0
      %6477 = vmatprep.mubr.bf16.mxu0 0
      %6478 = vmatmul.mubr.bf16.gmra.mrb[0].mxu0 %v5447
      %v6479 = vpop.f32.mrb[0].mxu0
      %v6480 = vadd.f32 %v6319, %v6479
      %v6481 = vpop.f32.mrb[0].mxu0
      %v6482 = vpop.f32.mrb[0].mxu0
      %v6483 = vadd.f32 %v6322, %v6482
      %v6484 = vpop.f32.mrb[0].mxu0
      %6485 = vmatprep.mubr.bf16.mxu0 0
      %6486 = vmatmul.mubr.bf16.gmra.mrb[0].mxu0 %v5450
      %v6487 = vpop.f32.mrb[0].mxu0
      %v6488 = vadd.f32 %v6327, %v6487
      %v6489 = vpop.f32.mrb[0].mxu0
      %v6490 = vpop.f32.mrb[0].mxu0
      %v6491 = vadd.f32 %v6330, %v6490
      %v6492 = vpop.f32.mrb[0].mxu0
      %6493 = vmatprep.mubr.bf16.mxu0 0
      %6494 = vmatmul.mubr.bf16.gmra.mrb[0].mxu0 %v5453
      %v6495 = vpop.f32.mrb[0].mxu0
      %v6496 = vadd.f32 %v6335, %v6495
      %v6497 = vpop.f32.mrb[0].mxu0
      %v6498 = vpop.f32.mrb[0].mxu0
      %v6499 = vadd.f32 %v6338, %v6498
      %v6500 = vpop.f32.mrb[0].mxu0
      %6501 = vmatprep.mubr.bf16.mxu0 0
      %6502 = vmatmul.mubr.bf16.gmra.mrb[0].mxu0 %v5456
      %v6503 = vpop.f32.mrb[0].mxu0
      %v6504 = vadd.f32 %v6343, %v6503
      %v6505 = vpop.f32.mrb[0].mxu0
      %v6506 = vpop.f32.mrb[0].mxu0
      %v6507 = vadd.f32 %v6346, %v6506
      %v6508 = vpop.f32.mrb[0].mxu0
      %6509 = vdwg.mxu0
      %s6510 = scalar_lea.vmem %s8, 384
      %v6511 = vld [vmem:[%s6510] sm:$0xf]
      %v6512 = vld [vmem:[%s6510 + $0x4] sm:$0xf]
      %v6513 = vld [vmem:[%s6510 + $0x8] sm:$0xf]
      %v6514 = vld [vmem:[%s6510 + $0xc] sm:$0xf]
      %v6515 = vld [vmem:[%s6510 + $0x10] sm:$0xf]
      %v6516 = vld [vmem:[%s6510 + $0x14] sm:$0xf]
      %v6517 = vld [vmem:[%s6510 + $0x18] sm:$0xf]
      %v6518 = vld [vmem:[%s6510 + $0x1c] sm:$0xf]
      %v6519 = vld [vmem:[%s6510 + $0x20] sm:$0xf]
      %v6520 = vld [vmem:[%s6510 + $0x24] sm:$0xf]
      %v6521 = vld [vmem:[%s6510 + $0x28] sm:$0xf]
      %v6522 = vld [vmem:[%s6510 + $0x2c] sm:$0xf]
      %v6523 = vld [vmem:[%s6510 + $0x30] sm:$0xf]
      %v6524 = vld [vmem:[%s6510 + $0x34] sm:$0xf]
      %v6525 = vld [vmem:[%s6510 + $0x38] sm:$0xf]
      %v6526 = vld [vmem:[%s6510 + $0x3c] sm:$0xf]
      %v6527 = vld [vmem:[%s6510 + $0x40] sm:$0xf]
      %v6528 = vld [vmem:[%s6510 + $0x44] sm:$0xf]
      %v6529 = vld [vmem:[%s6510 + $0x48] sm:$0xf]
      %v6530 = vld [vmem:[%s6510 + $0x4c] sm:$0xf]
      %v6531 = vld [vmem:[%s6510 + $0x50] sm:$0xf]
      %v6532 = vld [vmem:[%s6510 + $0x54] sm:$0xf]
      %v6533 = vld [vmem:[%s6510 + $0x58] sm:$0xf]
      %v6534 = vld [vmem:[%s6510 + $0x5c] sm:$0xf]
      %v6535 = vld [vmem:[%s6510 + $0x60] sm:$0xf]
      %v6536 = vld [vmem:[%s6510 + $0x64] sm:$0xf]
      %v6537 = vld [vmem:[%s6510 + $0x68] sm:$0xf]
      %v6538 = vld [vmem:[%s6510 + $0x6c] sm:$0xf]
      %v6539 = vld [vmem:[%s6510 + $0x70] sm:$0xf]
      %v6540 = vld [vmem:[%s6510 + $0x74] sm:$0xf]
      %v6541 = vld [vmem:[%s6510 + $0x78] sm:$0xf]
      %v6542 = vld [vmem:[%s6510 + $0x7c] sm:$0xf]
      %v6543 = vld [vmem:[%s6510 + $0x80] sm:$0xf]
      %v6544 = vld [vmem:[%s6510 + $0x84] sm:$0xf]
      %v6545 = vld [vmem:[%s6510 + $0x88] sm:$0xf]
      %v6546 = vld [vmem:[%s6510 + $0x8c] sm:$0xf]
      %v6547 = vld [vmem:[%s6510 + $0x90] sm:$0xf]
      %v6548 = vld [vmem:[%s6510 + $0x94] sm:$0xf]
      %v6549 = vld [vmem:[%s6510 + $0x98] sm:$0xf]
      %v6550 = vld [vmem:[%s6510 + $0x9c] sm:$0xf]
      %v6551 = vld [vmem:[%s6510 + $0xa0] sm:$0xf]
      %v6552 = vld [vmem:[%s6510 + $0xa4] sm:$0xf]
      %v6553 = vld [vmem:[%s6510 + $0xa8] sm:$0xf]
      %v6554 = vld [vmem:[%s6510 + $0xac] sm:$0xf]
      %v6555 = vld [vmem:[%s6510 + $0xb0] sm:$0xf]
      %v6556 = vld [vmem:[%s6510 + $0xb4] sm:$0xf]
      %v6557 = vld [vmem:[%s6510 + $0xb8] sm:$0xf]
      %v6558 = vld [vmem:[%s6510 + $0xbc] sm:$0xf]
      %v6607 = vunpack.c.l.b16 %v6511
      %v6608 = vunpack.c.l.b16 %v6512
      %v6609 = vunpack.c.l.b16 %v6513
      %v6610 = vunpack.c.l.b16 %v6514
      %v6611 = vunpack.c.l.b16 %v6515
      %v6612 = vunpack.c.l.b16 %v6516
      %v6613 = vunpack.c.l.b16 %v6517
      %v6614 = vunpack.c.l.b16 %v6518
      %v6615 = vunpack.c.l.b16 %v6519
      %v6616 = vunpack.c.l.b16 %v6520
      %v6617 = vunpack.c.l.b16 %v6521
      %v6618 = vunpack.c.l.b16 %v6522
      %v6619 = vunpack.c.l.b16 %v6523
      %v6620 = vunpack.c.l.b16 %v6524
      %v6621 = vunpack.c.l.b16 %v6525
      %v6622 = vunpack.c.l.b16 %v6526
      %v6623 = vunpack.c.l.b16 %v6527
      %v6624 = vunpack.c.l.b16 %v6528
      %v6625 = vunpack.c.l.b16 %v6529
      %v6626 = vunpack.c.l.b16 %v6530
      %v6627 = vunpack.c.l.b16 %v6531
      %v6628 = vunpack.c.l.b16 %v6532
      %v6629 = vunpack.c.l.b16 %v6533
      %v6630 = vunpack.c.l.b16 %v6534
      %v6631 = vunpack.c.l.b16 %v6535
      %v6632 = vunpack.c.l.b16 %v6536
      %v6633 = vunpack.c.l.b16 %v6537
      %v6634 = vunpack.c.l.b16 %v6538
      %v6635 = vunpack.c.l.b16 %v6539
      %v6636 = vunpack.c.l.b16 %v6540
      %v6637 = vunpack.c.l.b16 %v6541
      %v6638 = vunpack.c.l.b16 %v6542
      %v6639 = vunpack.c.l.b16 %v6543
      %v6640 = vunpack.c.l.b16 %v6544
      %v6641 = vunpack.c.l.b16 %v6545
      %v6642 = vunpack.c.l.b16 %v6546
      %v6643 = vunpack.c.l.b16 %v6547
      %v6644 = vunpack.c.l.b16 %v6548
      %v6645 = vunpack.c.l.b16 %v6549
      %v6646 = vunpack.c.l.b16 %v6550
      %v6647 = vunpack.c.l.b16 %v6551
      %v6648 = vunpack.c.l.b16 %v6552
      %v6649 = vunpack.c.l.b16 %v6553
      %v6650 = vunpack.c.l.b16 %v6554
      %v6651 = vunpack.c.l.b16 %v6555
      %v6652 = vunpack.c.l.b16 %v6556
      %v6653 = vunpack.c.l.b16 %v6557
      %v6654 = vunpack.c.l.b16 %v6558
      %v6655 = vpack.c.b16 %v6608, %v6607
      %v6656 = vpack.c.b16 %v6610, %v6609
      %v6657 = vpack.c.b16 %v6612, %v6611
      %v6658 = vpack.c.b16 %v6614, %v6613
      %v6659 = vpack.c.b16 %v6616, %v6615
      %v6660 = vpack.c.b16 %v6618, %v6617
      %v6661 = vpack.c.b16 %v6620, %v6619
      %v6662 = vpack.c.b16 %v6622, %v6621
      %v6663 = vpack.c.b16 %v6624, %v6623
      %v6664 = vpack.c.b16 %v6626, %v6625
      %v6665 = vpack.c.b16 %v6628, %v6627
      %v6666 = vpack.c.b16 %v6630, %v6629
      %v6667 = vpack.c.b16 %v6632, %v6631
      %v6668 = vpack.c.b16 %v6634, %v6633
      %v6669 = vpack.c.b16 %v6636, %v6635
      %v6670 = vpack.c.b16 %v6638, %v6637
      %v6671 = vpack.c.b16 %v6640, %v6639
      %v6672 = vpack.c.b16 %v6642, %v6641
      %v6673 = vpack.c.b16 %v6644, %v6643
      %v6674 = vpack.c.b16 %v6646, %v6645
      %v6675 = vpack.c.b16 %v6648, %v6647
      %v6676 = vpack.c.b16 %v6650, %v6649
      %v6677 = vpack.c.b16 %v6652, %v6651
      %v6678 = vpack.c.b16 %v6654, %v6653
      %6703 = vmatprep.subr.bf16.mxu0 0
      %6704 = vmatpush1.bf16.msra.mxu0 %v6655
      %6705 = vmatprep.subr.bf16.mxu0 0
      %6706 = vmatpush1.bf16.msra.mxu0 %v6656
      %6707 = vmatprep.subr.bf16.mxu0 0
      %6708 = vmatpush1.bf16.msra.mxu0 %v6657
      %6709 = vmatprep.subr.bf16.mxu0 0
      %6710 = vmatpush1.bf16.msra.mxu0 %v6658
      %6711 = vmatprep.subr.bf16.mxu0 0
      %6712 = vmatpush1.bf16.msra.mxu0 %v6659
      %6713 = vmatprep.subr.bf16.mxu0 0
      %6714 = vmatpush1.bf16.msra.mxu0 %v6660
      %6715 = vmatprep.subr.bf16.mxu0 0
      %6716 = vmatpush1.bf16.msra.mxu0 %v6661
      %6717 = vmatprep.subr.bf16.mxu0 0
      %6718 = vmatpush1.bf16.msra.mxu0 %v6662
      %6719 = vmatprep.subr.bf16.mxu0 0
      %6720 = vmatpush1.bf16.msra.mxu0 %v6663
      %6721 = vmatprep.subr.bf16.mxu0 0
      %6722 = vmatpush1.bf16.msra.mxu0 %v6664
      %6723 = vmatprep.subr.bf16.mxu0 0
      %6724 = vmatpush1.bf16.msra.mxu0 %v6665
      %6725 = vmatprep.subr.bf16.mxu0 0
      %6726 = vmatpush1.bf16.msra.mxu0 %v6666
      %6727 = vmatprep.subr.bf16.mxu0 0
      %6728 = vmatpush1.bf16.msra.mxu0 %v6667
      %6729 = vmatprep.subr.bf16.mxu0 0
      %6730 = vmatpush1.bf16.msra.mxu0 %v6668
      %6731 = vmatprep.subr.bf16.mxu0 0
      %6732 = vmatpush1.bf16.msra.mxu0 %v6669
      %6733 = vmatprep.subr.bf16.mxu0 0
      %6734 = vmatpush1.bf16.msra.mxu0 %v6670
      %6735 = vmatprep.mubr.bf16.mxu0 %v5156
      %6736 = vmatmul.mubr.bf16.gmra.mrb[0].mxu0 %v5033
      %v6737 = vpop.f32.mrb[0].mxu0
      %v6738 = vadd.f32 0.0, %v6737
      %v6739 = vpop.f32.mrb[0].mxu0
      %v6740 = vpop.f32.mrb[0].mxu0
      %v6741 = vadd.f32 0.0, %v6740
      %v6742 = vpop.f32.mrb[0].mxu0
      %6743 = vmatprep.mubr.bf16.mxu0 %v5168
      %6744 = vmatmul.mubr.bf16.gmra.mrb[0].mxu0 %v5034
      %v6745 = vpop.f32.mrb[0].mxu0
      %v6746 = vadd.f32 0.0, %v6745
      %v6747 = vpop.f32.mrb[0].mxu0
      %v6748 = vpop.f32.mrb[0].mxu0
      %v6749 = vadd.f32 0.0, %v6748
      %v6750 = vpop.f32.mrb[0].mxu0
      %6751 = vmatprep.mubr.bf16.mxu0 %v5180
      %6752 = vmatmul.mubr.bf16.gmra.mrb[0].mxu0 %v5035
      %v6753 = vpop.f32.mrb[0].mxu0
      %v6754 = vadd.f32 0.0, %v6753
      %v6755 = vpop.f32.mrb[0].mxu0
      %v6756 = vpop.f32.mrb[0].mxu0
      %v6757 = vadd.f32 0.0, %v6756
      %v6758 = vpop.f32.mrb[0].mxu0
      %6759 = vmatprep.mubr.bf16.mxu0 %v5192
      %6760 = vmatmul.mubr.bf16.gmra.mrb[0].mxu0 %v5036
      %v6761 = vpop.f32.mrb[0].mxu0
      %v6762 = vadd.f32 0.0, %v6761
      %v6763 = vpop.f32.mrb[0].mxu0
      %v6764 = vpop.f32.mrb[0].mxu0
      %v6765 = vadd.f32 0.0, %v6764
      %v6766 = vpop.f32.mrb[0].mxu0
      %6767 = vmatprep.mubr.bf16.mxu0 %v5204
      %6768 = vmatmul.mubr.bf16.gmra.mrb[0].mxu0 %v5037
      %v6769 = vpop.f32.mrb[0].mxu0
      %v6770 = vadd.f32 0.0, %v6769
      %v6771 = vpop.f32.mrb[0].mxu0
      %v6772 = vpop.f32.mrb[0].mxu0
      %v6773 = vadd.f32 0.0, %v6772
      %v6774 = vpop.f32.mrb[0].mxu0
      %6775 = vmatprep.mubr.bf16.mxu0 %v5216
      %6776 = vmatmul.mubr.bf16.gmra.mrb[0].mxu0 %v5038
      %v6777 = vpop.f32.mrb[0].mxu0
      %v6778 = vadd.f32 0.0, %v6777
      %v6779 = vpop.f32.mrb[0].mxu0
      %v6780 = vpop.f32.mrb[0].mxu0
      %v6781 = vadd.f32 0.0, %v6780
      %v6782 = vpop.f32.mrb[0].mxu0
      %6783 = vmatprep.mubr.bf16.mxu0 %v5228
      %6784 = vmatmul.mubr.bf16.gmra.mrb[0].mxu0 %v5039
      %v6785 = vpop.f32.mrb[0].mxu0
      %v6786 = vadd.f32 0.0, %v6785
      %v6787 = vpop.f32.mrb[0].mxu0
      %v6788 = vpop.f32.mrb[0].mxu0
      %v6789 = vadd.f32 0.0, %v6788
      %v6790 = vpop.f32.mrb[0].mxu0
      %6791 = vmatprep.mubr.bf16.mxu0 %v5240
      %6792 = vmatmul.mubr.bf16.gmra.mrb[0].mxu0 %v5040
      %v6793 = vpop.f32.mrb[0].mxu0
      %v6794 = vadd.f32 0.0, %v6793
      %v6795 = vpop.f32.mrb[0].mxu0
      %v6796 = vpop.f32.mrb[0].mxu0
      %v6797 = vadd.f32 0.0, %v6796
      %v6798 = vpop.f32.mrb[0].mxu0
      %6799 = vmatprep.mubr.bf16.mxu0 %v5252
      %6800 = vmatmul.mubr.bf16.gmra.mrb[0].mxu0 %v5041
      %v6801 = vpop.f32.mrb[0].mxu0
      %v6802 = vadd.f32 0.0, %v6801
      %v6803 = vpop.f32.mrb[0].mxu0
      %v6804 = vpop.f32.mrb[0].mxu0
      %v6805 = vadd.f32 0.0, %v6804
      %v6806 = vpop.f32.mrb[0].mxu0
      %6807 = vmatprep.mubr.bf16.mxu0 %v5264
      %6808 = vmatmul.mubr.bf16.gmra.mrb[0].mxu0 %v5042
      %v6809 = vpop.f32.mrb[0].mxu0
      %v6810 = vadd.f32 0.0, %v6809
      %v6811 = vpop.f32.mrb[0].mxu0
      %v6812 = vpop.f32.mrb[0].mxu0
      %v6813 = vadd.f32 0.0, %v6812
      %v6814 = vpop.f32.mrb[0].mxu0
      %6815 = vmatprep.mubr.bf16.mxu0 %v5276
      %6816 = vmatmul.mubr.bf16.gmra.mrb[0].mxu0 %v5043
      %v6817 = vpop.f32.mrb[0].mxu0
      %v6818 = vadd.f32 0.0, %v6817
      %v6819 = vpop.f32.mrb[0].mxu0
      %v6820 = vpop.f32.mrb[0].mxu0
      %v6821 = vadd.f32 0.0, %v6820
      %v6822 = vpop.f32.mrb[0].mxu0
      %6823 = vmatprep.mubr.bf16.mxu0 %v5288
      %6824 = vmatmul.mubr.bf16.gmra.mrb[0].mxu0 %v5044
      %v6825 = vpop.f32.mrb[0].mxu0
      %v6826 = vadd.f32 0.0, %v6825
      %v6827 = vpop.f32.mrb[0].mxu0
      %v6828 = vpop.f32.mrb[0].mxu0
      %v6829 = vadd.f32 0.0, %v6828
      %v6830 = vpop.f32.mrb[0].mxu0
      %6831 = vmatprep.mubr.bf16.mxu0 %v5300
      %6832 = vmatmul.mubr.bf16.gmra.mrb[0].mxu0 %v5045
      %v6833 = vpop.f32.mrb[0].mxu0
      %v6834 = vadd.f32 0.0, %v6833
      %v6835 = vpop.f32.mrb[0].mxu0
      %v6836 = vpop.f32.mrb[0].mxu0
      %v6837 = vadd.f32 0.0, %v6836
      %v6838 = vpop.f32.mrb[0].mxu0
      %6839 = vmatprep.mubr.bf16.mxu0 %v5312
      %6840 = vmatmul.mubr.bf16.gmra.mrb[0].mxu0 %v5046
      %v6841 = vpop.f32.mrb[0].mxu0
      %v6842 = vadd.f32 0.0, %v6841
      %v6843 = vpop.f32.mrb[0].mxu0
      %v6844 = vpop.f32.mrb[0].mxu0
      %v6845 = vadd.f32 0.0, %v6844
      %v6846 = vpop.f32.mrb[0].mxu0
      %6847 = vmatprep.mubr.bf16.mxu0 %v5324
      %6848 = vmatmul.mubr.bf16.gmra.mrb[0].mxu0 %v5047
      %v6849 = vpop.f32.mrb[0].mxu0
      %v6850 = vadd.f32 0.0, %v6849
      %v6851 = vpop.f32.mrb[0].mxu0
      %v6852 = vpop.f32.mrb[0].mxu0
      %v6853 = vadd.f32 0.0, %v6852
      %v6854 = vpop.f32.mrb[0].mxu0
      %6855 = vmatprep.mubr.bf16.mxu0 %v5336
      %6856 = vmatmul.mubr.bf16.gmra.mrb[0].mxu0 %v5048
      %v6857 = vpop.f32.mrb[0].mxu0
      %v6858 = vadd.f32 0.0, %v6857
      %v6859 = vpop.f32.mrb[0].mxu0
      %v6860 = vpop.f32.mrb[0].mxu0
      %v6861 = vadd.f32 0.0, %v6860
      %v6862 = vpop.f32.mrb[0].mxu0
      %6863 = vdwg.mxu0
      %6864 = vmatprep.subr.bf16.mxu0 0
      %6865 = vmatpush1.bf16.msra.mxu0 %v6671
      %6866 = vmatprep.subr.bf16.mxu0 0
      %6867 = vmatpush1.bf16.msra.mxu0 %v6672
      %6868 = vmatprep.subr.bf16.mxu0 0
      %6869 = vmatpush1.bf16.msra.mxu0 %v6673
      %6870 = vmatprep.subr.bf16.mxu0 0
      %6871 = vmatpush1.bf16.msra.mxu0 %v6674
      %6872 = vmatprep.subr.bf16.mxu0 0
      %6873 = vmatpush1.bf16.msra.mxu0 %v6675
      %6874 = vmatprep.subr.bf16.mxu0 0
      %6875 = vmatpush1.bf16.msra.mxu0 %v6676
      %6876 = vmatprep.subr.bf16.mxu0 0
      %6877 = vmatpush1.bf16.msra.mxu0 %v6677
      %6878 = vmatprep.subr.bf16.mxu0 0
      %6879 = vmatpush1.bf16.msra.mxu0 %v6678
      %6880 = vmatprep.subr.bf16.mxu0 0
      %6881 = vmatpush1.bf16.msra.mxu0 0
      %6882 = vmatprep.subr.bf16.mxu0 0
      %6883 = vmatpush1.bf16.msra.mxu0 0
      %6884 = vmatprep.subr.bf16.mxu0 0
      %6885 = vmatpush1.bf16.msra.mxu0 0
      %6886 = vmatprep.subr.bf16.mxu0 0
      %6887 = vmatpush1.bf16.msra.mxu0 0
      %6888 = vmatprep.subr.bf16.mxu0 0
      %6889 = vmatpush1.bf16.msra.mxu0 0
      %6890 = vmatprep.subr.bf16.mxu0 0
      %6891 = vmatpush1.bf16.msra.mxu0 0
      %6892 = vmatprep.subr.bf16.mxu0 0
      %6893 = vmatpush1.bf16.msra.mxu0 0
      %6894 = vmatprep.subr.bf16.mxu0 0
      %6895 = vmatpush1.bf16.msra.mxu0 0
      %6896 = vmatprep.mubr.bf16.mxu0 0
      %6897 = vmatmul.mubr.bf16.gmra.mrb[0].mxu0 %v5417
      %v6898 = vpop.f32.mrb[0].mxu0
      %v6899 = vadd.f32 %v6738, %v6898
      %v6900 = vpop.f32.mrb[0].mxu0
      %v6901 = vpop.f32.mrb[0].mxu0
      %v6902 = vadd.f32 %v6741, %v6901
      %v6903 = vpop.f32.mrb[0].mxu0
      %6904 = vmatprep.mubr.bf16.mxu0 0
      %6905 = vmatmul.mubr.bf16.gmra.mrb[0].mxu0 %v5420
      %v6906 = vpop.f32.mrb[0].mxu0
      %v6907 = vadd.f32 %v6746, %v6906
      %v6908 = vpop.f32.mrb[0].mxu0
      %v6909 = vpop.f32.mrb[0].mxu0
      %v6910 = vadd.f32 %v6749, %v6909
      %v6911 = vpop.f32.mrb[0].mxu0
      %6912 = vmatprep.mubr.bf16.mxu0 0
      %6913 = vmatmul.mubr.bf16.gmra.mrb[0].mxu0 %v5423
      %v6914 = vpop.f32.mrb[0].mxu0
      %v6915 = vadd.f32 %v6754, %v6914
      %v6916 = vpop.f32.mrb[0].mxu0
      %v6917 = vpop.f32.mrb[0].mxu0
      %v6918 = vadd.f32 %v6757, %v6917
      %v6919 = vpop.f32.mrb[0].mxu0
      %6920 = vmatprep.mubr.bf16.mxu0 0
      %6921 = vmatmul.mubr.bf16.gmra.mrb[0].mxu0 %v5426
      %v6922 = vpop.f32.mrb[0].mxu0
      %v6923 = vadd.f32 %v6762, %v6922
      %v6924 = vpop.f32.mrb[0].mxu0
      %v6925 = vpop.f32.mrb[0].mxu0
      %v6926 = vadd.f32 %v6765, %v6925
      %v6927 = vpop.f32.mrb[0].mxu0
      %6928 = vmatprep.mubr.bf16.mxu0 0
      %6929 = vmatmul.mubr.bf16.gmra.mrb[0].mxu0 %v5429
      %v6930 = vpop.f32.mrb[0].mxu0
      %v6931 = vadd.f32 %v6770, %v6930
      %v6932 = vpop.f32.mrb[0].mxu0
      %v6933 = vpop.f32.mrb[0].mxu0
      %v6934 = vadd.f32 %v6773, %v6933
      %v6935 = vpop.f32.mrb[0].mxu0
      %6936 = vmatprep.mubr.bf16.mxu0 0
      %6937 = vmatmul.mubr.bf16.gmra.mrb[0].mxu0 %v5432
      %v6938 = vpop.f32.mrb[0].mxu0
      %v6939 = vadd.f32 %v6778, %v6938
      %v6940 = vpop.f32.mrb[0].mxu0
      %v6941 = vpop.f32.mrb[0].mxu0
      %v6942 = vadd.f32 %v6781, %v6941
      %v6943 = vpop.f32.mrb[0].mxu0
      %6944 = vmatprep.mubr.bf16.mxu0 0
      %6945 = vmatmul.mubr.bf16.gmra.mrb[0].mxu0 %v5435
      %v6946 = vpop.f32.mrb[0].mxu0
      %v6947 = vadd.f32 %v6786, %v6946
      %v6948 = vpop.f32.mrb[0].mxu0
      %v6949 = vpop.f32.mrb[0].mxu0
      %v6950 = vadd.f32 %v6789, %v6949
      %v6951 = vpop.f32.mrb[0].mxu0
      %6952 = vmatprep.mubr.bf16.mxu0 0
      %6953 = vmatmul.mubr.bf16.gmra.mrb[0].mxu0 %v5438
      %v6954 = vpop.f32.mrb[0].mxu0
      %v6955 = vadd.f32 %v6794, %v6954
      %v6956 = vpop.f32.mrb[0].mxu0
      %v6957 = vpop.f32.mrb[0].mxu0
      %v6958 = vadd.f32 %v6797, %v6957
      %v6959 = vpop.f32.mrb[0].mxu0
      %6960 = vmatprep.mubr.bf16.mxu0 0
      %6961 = vmatmul.mubr.bf16.gmra.mrb[0].mxu0 %v5441
      %v6962 = vpop.f32.mrb[0].mxu0
      %v6963 = vadd.f32 %v6802, %v6962
      %v6964 = vpop.f32.mrb[0].mxu0
      %v6965 = vpop.f32.mrb[0].mxu0
      %v6966 = vadd.f32 %v6805, %v6965
      %v6967 = vpop.f32.mrb[0].mxu0
      %6968 = vmatprep.mubr.bf16.mxu0 0
      %6969 = vmatmul.mubr.bf16.gmra.mrb[0].mxu0 %v5444
      %v6970 = vpop.f32.mrb[0].mxu0
      %v6971 = vadd.f32 %v6810, %v6970
      %v6972 = vpop.f32.mrb[0].mxu0
      %v6973 = vpop.f32.mrb[0].mxu0
      %v6974 = vadd.f32 %v6813, %v6973
      %v6975 = vpop.f32.mrb[0].mxu0
      %6976 = vmatprep.mubr.bf16.mxu0 0
      %6977 = vmatmul.mubr.bf16.gmra.mrb[0].mxu0 %v5447
      %v6978 = vpop.f32.mrb[0].mxu0
      %v6979 = vadd.f32 %v6818, %v6978
      %v6980 = vpop.f32.mrb[0].mxu0
      %v6981 = vpop.f32.mrb[0].mxu0
      %v6982 = vadd.f32 %v6821, %v6981
      %v6983 = vpop.f32.mrb[0].mxu0
      %6984 = vmatprep.mubr.bf16.mxu0 0
      %6985 = vmatmul.mubr.bf16.gmra.mrb[0].mxu0 %v5450
      %v6986 = vpop.f32.mrb[0].mxu0
      %v6987 = vadd.f32 %v6826, %v6986
      %v6988 = vpop.f32.mrb[0].mxu0
      %v6989 = vpop.f32.mrb[0].mxu0
      %v6990 = vadd.f32 %v6829, %v6989
      %v6991 = vpop.f32.mrb[0].mxu0
      %6992 = vmatprep.mubr.bf16.mxu0 0
      %6993 = vmatmul.mubr.bf16.gmra.mrb[0].mxu0 %v5453
      %v6994 = vpop.f32.mrb[0].mxu0
      %v6995 = vadd.f32 %v6834, %v6994
      %v6996 = vpop.f32.mrb[0].mxu0
      %v6997 = vpop.f32.mrb[0].mxu0
      %v6998 = vadd.f32 %v6837, %v6997
      %v6999 = vpop.f32.mrb[0].mxu0
      %7000 = vmatprep.mubr.bf16.mxu0 0
      %7001 = vmatmul.mubr.bf16.gmra.mrb[0].mxu0 %v5456
      %v7002 = vpop.f32.mrb[0].mxu0
      %v7003 = vadd.f32 %v6842, %v7002
      %v7004 = vpop.f32.mrb[0].mxu0
      %v7005 = vpop.f32.mrb[0].mxu0
      %v7006 = vadd.f32 %v6845, %v7005
      %v7007 = vpop.f32.mrb[0].mxu0
      %7008 = vmatprep.mubr.bf16.mxu0 0
      %7009 = vmatmul.mubr.bf16.gmra.mrb[0].mxu0 %v5459
      %v7010 = vpop.f32.mrb[0].mxu0
      %v7011 = vadd.f32 %v6850, %v7010
      %v7012 = vpop.f32.mrb[0].mxu0
      %v7013 = vpop.f32.mrb[0].mxu0
      %v7014 = vadd.f32 %v6853, %v7013
      %v7015 = vpop.f32.mrb[0].mxu0
      %7016 = vmatprep.mubr.bf16.mxu0 0
      %7017 = vmatmul.mubr.bf16.gmra.mrb[0].mxu0 %v5462
      %v7018 = vpop.f32.mrb[0].mxu0
      %v7019 = vadd.f32 %v6858, %v7018
      %v7020 = vpop.f32.mrb[0].mxu0
      %v7021 = vpop.f32.mrb[0].mxu0
      %v7022 = vadd.f32 %v6861, %v7021
      %v7023 = vpop.f32.mrb[0].mxu0
      %7024 = vdwg.mxu0
      %v7025 = vadd.f32 %v6384, %v6899
      %v7026 = vadd.f32 %v6387, %v6902
      %v7027 = vadd.f32 %v6392, %v6907
      %v7028 = vadd.f32 %v6395, %v6910
      %v7029 = vadd.f32 %v6400, %v6915
      %v7030 = vadd.f32 %v6403, %v6918
      %v7031 = vadd.f32 %v6408, %v6923
      %v7032 = vadd.f32 %v6411, %v6926
      %v7033 = vadd.f32 %v6416, %v6931
      %v7034 = vadd.f32 %v6419, %v6934
      %v7035 = vadd.f32 %v6424, %v6939
      %v7036 = vadd.f32 %v6427, %v6942
      %v7037 = vadd.f32 %v6432, %v6947
      %v7038 = vadd.f32 %v6435, %v6950
      %v7039 = vadd.f32 %v6440, %v6955
      %v7040 = vadd.f32 %v6443, %v6958
      %v7041 = vadd.f32 %v6448, %v6963
      %v7042 = vadd.f32 %v6451, %v6966
      %v7043 = vadd.f32 %v6456, %v6971
      %v7044 = vadd.f32 %v6459, %v6974
      %v7045 = vadd.f32 %v6464, %v6979
      %v7046 = vadd.f32 %v6467, %v6982
      %v7047 = vadd.f32 %v6472, %v6987
      %v7048 = vadd.f32 %v6475, %v6990
      %v7049 = vadd.f32 %v6480, %v6995
      %v7050 = vadd.f32 %v6483, %v6998
      %v7051 = vadd.f32 %v6488, %v7003
      %v7052 = vadd.f32 %v6491, %v7006
      %v7053 = vadd.f32 %v6496, %v7011
      %v7054 = vadd.f32 %v6499, %v7014
      %v7055 = vadd.f32 %v6504, %v7019
      %v7056 = vadd.f32 %v6507, %v7022
      %v7057 = vld [vmem:[%s9] sm:$0x1]
      %v7059 = vlaneseq
      %v7060 = vshrl.u32 %v7059, 7
      %v7061 = vsub.s32 0, %v7060
      %v7062 = vrot.slane %v7057, %v7061
      %v7064 = vadd.f32 %v7025, %v7062
      %v7065 = vadd.f32 %v7026, %v7062
      %v7066 = vadd.f32 %v7027, %v7062
      %v7067 = vadd.f32 %v7028, %v7062
      %v7068 = vadd.f32 %v7029, %v7062
      %v7069 = vadd.f32 %v7030, %v7062
      %v7070 = vadd.f32 %v7031, %v7062
      %v7071 = vadd.f32 %v7032, %v7062
      %v7072 = vadd.f32 %v7033, %v7062
      %v7073 = vadd.f32 %v7034, %v7062
      %v7074 = vadd.f32 %v7035, %v7062
      %v7075 = vadd.f32 %v7036, %v7062
      %v7076 = vadd.f32 %v7037, %v7062
      %v7077 = vadd.f32 %v7038, %v7062
      %v7078 = vadd.f32 %v7039, %v7062
      %v7079 = vadd.f32 %v7040, %v7062
      %v7080 = vadd.f32 %v7041, %v7062
      %v7081 = vadd.f32 %v7042, %v7062
      %v7082 = vadd.f32 %v7043, %v7062
      %v7083 = vadd.f32 %v7044, %v7062
      %v7084 = vadd.f32 %v7045, %v7062
      %v7085 = vadd.f32 %v7046, %v7062
      %v7086 = vadd.f32 %v7047, %v7062
      %v7087 = vadd.f32 %v7048, %v7062
      %v7088 = vadd.f32 %v7049, %v7062
      %v7089 = vadd.f32 %v7050, %v7062
      %v7090 = vadd.f32 %v7051, %v7062
      %v7091 = vadd.f32 %v7052, %v7062
      %v7092 = vadd.f32 %v7053, %v7062
      %v7093 = vadd.f32 %v7054, %v7062
      %v7094 = vadd.f32 %v7055, %v7062
      %v7095 = vadd.f32 %v7056, %v7062
      %v7096 = vxor.u32 %v7064, 2147483648
      %v7097 = vxor.u32 %v7065, 2147483648
      %v7098 = vxor.u32 %v7066, 2147483648
      %v7099 = vxor.u32 %v7067, 2147483648
      %v7100 = vxor.u32 %v7068, 2147483648
      %v7101 = vxor.u32 %v7069, 2147483648
      %v7102 = vxor.u32 %v7070, 2147483648
      %v7103 = vxor.u32 %v7071, 2147483648
      %v7104 = vxor.u32 %v7072, 2147483648
      %v7105 = vxor.u32 %v7073, 2147483648
      %v7106 = vxor.u32 %v7074, 2147483648
      %v7107 = vxor.u32 %v7075, 2147483648
      %v7108 = vxor.u32 %v7076, 2147483648
      %v7109 = vxor.u32 %v7077, 2147483648
      %v7110 = vxor.u32 %v7078, 2147483648
      %v7111 = vxor.u32 %v7079, 2147483648
      %v7112 = vxor.u32 %v7080, 2147483648
      %v7113 = vxor.u32 %v7081, 2147483648
      %v7114 = vxor.u32 %v7082, 2147483648
      %v7115 = vxor.u32 %v7083, 2147483648
      %v7116 = vxor.u32 %v7084, 2147483648
      %v7117 = vxor.u32 %v7085, 2147483648
      %v7118 = vxor.u32 %v7086, 2147483648
      %v7119 = vxor.u32 %v7087, 2147483648
      %v7120 = vxor.u32 %v7088, 2147483648
      %v7121 = vxor.u32 %v7089, 2147483648
      %v7122 = vxor.u32 %v7090, 2147483648
      %v7123 = vxor.u32 %v7091, 2147483648
      %v7124 = vxor.u32 %v7092, 2147483648
      %v7125 = vxor.u32 %v7093, 2147483648
      %v7126 = vxor.u32 %v7094, 2147483648
      %v7127 = vxor.u32 %v7095, 2147483648
      %v7128 = vmul.f32 %v7096, 1.442695
      %v7129 = vpow.pop %v7128
      %v7130 = vmul.f32 %v7097, 1.442695
      %v7131 = vpow.pop %v7130
      %v7132 = vmul.f32 %v7098, 1.442695
      %v7133 = vpow.pop %v7132
      %v7134 = vmul.f32 %v7099, 1.442695
      %v7135 = vpow.pop %v7134
      %v7136 = vmul.f32 %v7100, 1.442695
      %v7137 = vpow.pop %v7136
      %v7138 = vmul.f32 %v7101, 1.442695
      %v7139 = vpow.pop %v7138
      %v7140 = vmul.f32 %v7102, 1.442695
      %v7141 = vpow.pop %v7140
      %v7142 = vmul.f32 %v7103, 1.442695
      %v7143 = vpow.pop %v7142
      %v7144 = vmul.f32 %v7104, 1.442695
      %v7145 = vpow.pop %v7144
      %v7146 = vmul.f32 %v7105, 1.442695
      %v7147 = vpow.pop %v7146
      %v7148 = vmul.f32 %v7106, 1.442695
      %v7149 = vpow.pop %v7148
      %v7150 = vmul.f32 %v7107, 1.442695
      %v7151 = vpow.pop %v7150
      %v7152 = vmul.f32 %v7108, 1.442695
      %v7153 = vpow.pop %v7152
      %v7154 = vmul.f32 %v7109, 1.442695
      %v7155 = vpow.pop %v7154
      %v7156 = vmul.f32 %v7110, 1.442695
      %v7157 = vpow.pop %v7156
      %v7158 = vmul.f32 %v7111, 1.442695
      %v7159 = vpow.pop %v7158
      %v7160 = vmul.f32 %v7112, 1.442695
      %v7161 = vpow.pop %v7160
      %v7162 = vmul.f32 %v7113, 1.442695
      %v7163 = vpow.pop %v7162
      %v7164 = vmul.f32 %v7114, 1.442695
      %v7165 = vpow.pop %v7164
      %v7166 = vmul.f32 %v7115, 1.442695
      %v7167 = vpow.pop %v7166
      %v7168 = vmul.f32 %v7116, 1.442695
      %v7169 = vpow.pop %v7168
      %v7170 = vmul.f32 %v7117, 1.442695
      %v7171 = vpow.pop %v7170
      %v7172 = vmul.f32 %v7118, 1.442695
      %v7173 = vpow.pop %v7172
      %v7174 = vmul.f32 %v7119, 1.442695
      %v7175 = vpow.pop %v7174
      %v7176 = vmul.f32 %v7120, 1.442695
      %v7177 = vpow.pop %v7176
      %v7178 = vmul.f32 %v7121, 1.442695
      %v7179 = vpow.pop %v7178
      %v7180 = vmul.f32 %v7122, 1.442695
      %v7181 = vpow.pop %v7180
      %v7182 = vmul.f32 %v7123, 1.442695
      %v7183 = vpow.pop %v7182
      %v7184 = vmul.f32 %v7124, 1.442695
      %v7185 = vpow.pop %v7184
      %v7186 = vmul.f32 %v7125, 1.442695
      %v7187 = vpow.pop %v7186
      %v7188 = vmul.f32 %v7126, 1.442695
      %v7189 = vpow.pop %v7188
      %v7190 = vmul.f32 %v7127, 1.442695
      %v7191 = vpow.pop %v7190
      %v7192 = vadd.f32 %v7129, 1.0
      %v7193 = vadd.f32 %v7131, 1.0
      %v7194 = vadd.f32 %v7133, 1.0
      %v7195 = vadd.f32 %v7135, 1.0
      %v7196 = vadd.f32 %v7137, 1.0
      %v7197 = vadd.f32 %v7139, 1.0
      %v7198 = vadd.f32 %v7141, 1.0
      %v7199 = vadd.f32 %v7143, 1.0
      %v7200 = vadd.f32 %v7145, 1.0
      %v7201 = vadd.f32 %v7147, 1.0
      %v7202 = vadd.f32 %v7149, 1.0
      %v7203 = vadd.f32 %v7151, 1.0
      %v7204 = vadd.f32 %v7153, 1.0
      %v7205 = vadd.f32 %v7155, 1.0
      %v7206 = vadd.f32 %v7157, 1.0
      %v7207 = vadd.f32 %v7159, 1.0
      %v7208 = vadd.f32 %v7161, 1.0
      %v7209 = vadd.f32 %v7163, 1.0
      %v7210 = vadd.f32 %v7165, 1.0
      %v7211 = vadd.f32 %v7167, 1.0
      %v7212 = vadd.f32 %v7169, 1.0
      %v7213 = vadd.f32 %v7171, 1.0
      %v7214 = vadd.f32 %v7173, 1.0
      %v7215 = vadd.f32 %v7175, 1.0
      %v7216 = vadd.f32 %v7177, 1.0
      %v7217 = vadd.f32 %v7179, 1.0
      %v7218 = vadd.f32 %v7181, 1.0
      %v7219 = vadd.f32 %v7183, 1.0
      %v7220 = vadd.f32 %v7185, 1.0
      %v7221 = vadd.f32 %v7187, 1.0
      %v7222 = vadd.f32 %v7189, 1.0
      %v7223 = vadd.f32 %v7191, 1.0
      %v7224 = vrcp.pop %v7192
      %v7225 = vmul.f32 1.0, %v7224
      %v7226 = vrcp.pop %v7193
      %v7227 = vmul.f32 1.0, %v7226
      %v7228 = vrcp.pop %v7194
      %v7229 = vmul.f32 1.0, %v7228
      %v7230 = vrcp.pop %v7195
      %v7231 = vmul.f32 1.0, %v7230
      %v7232 = vrcp.pop %v7196
      %v7233 = vmul.f32 1.0, %v7232
      %v7234 = vrcp.pop %v7197
      %v7235 = vmul.f32 1.0, %v7234
      %v7236 = vrcp.pop %v7198
      %v7237 = vmul.f32 1.0, %v7236
      %v7238 = vrcp.pop %v7199
      %v7239 = vmul.f32 1.0, %v7238
      %v7240 = vrcp.pop %v7200
      %v7241 = vmul.f32 1.0, %v7240
      %v7242 = vrcp.pop %v7201
      %v7243 = vmul.f32 1.0, %v7242
      %v7244 = vrcp.pop %v7202
      %v7245 = vmul.f32 1.0, %v7244
      %v7246 = vrcp.pop %v7203
      %v7247 = vmul.f32 1.0, %v7246
      %v7248 = vrcp.pop %v7204
      %v7249 = vmul.f32 1.0, %v7248
      %v7250 = vrcp.pop %v7205
      %v7251 = vmul.f32 1.0, %v7250
      %v7252 = vrcp.pop %v7206
      %v7253 = vmul.f32 1.0, %v7252
      %v7254 = vrcp.pop %v7207
      %v7255 = vmul.f32 1.0, %v7254
      %v7256 = vrcp.pop %v7208
      %v7257 = vmul.f32 1.0, %v7256
      %v7258 = vrcp.pop %v7209
      %v7259 = vmul.f32 1.0, %v7258
      %v7260 = vrcp.pop %v7210
      %v7261 = vmul.f32 1.0, %v7260
      %v7262 = vrcp.pop %v7211
      %v7263 = vmul.f32 1.0, %v7262
      %v7264 = vrcp.pop %v7212
      %v7265 = vmul.f32 1.0, %v7264
      %v7266 = vrcp.pop %v7213
      %v7267 = vmul.f32 1.0, %v7266
      %v7268 = vrcp.pop %v7214
      %v7269 = vmul.f32 1.0, %v7268
      %v7270 = vrcp.pop %v7215
      %v7271 = vmul.f32 1.0, %v7270
      %v7272 = vrcp.pop %v7216
      %v7273 = vmul.f32 1.0, %v7272
      %v7274 = vrcp.pop %v7217
      %v7275 = vmul.f32 1.0, %v7274
      %v7276 = vrcp.pop %v7218
      %v7277 = vmul.f32 1.0, %v7276
      %v7278 = vrcp.pop %v7219
      %v7279 = vmul.f32 1.0, %v7278
      %v7280 = vrcp.pop %v7220
      %v7281 = vmul.f32 1.0, %v7280
      %v7282 = vrcp.pop %v7221
      %v7283 = vmul.f32 1.0, %v7282
      %v7284 = vrcp.pop %v7222
      %v7285 = vmul.f32 1.0, %v7284
      %v7286 = vrcp.pop %v7223
      %v7287 = vmul.f32 1.0, %v7286
      %v7288 = vmul.f32 %v7064, %v7225
      %v7289 = vmul.f32 %v7065, %v7227
      %v7290 = vmul.f32 %v7066, %v7229
      %v7291 = vmul.f32 %v7067, %v7231
      %v7292 = vmul.f32 %v7068, %v7233
      %v7293 = vmul.f32 %v7069, %v7235
      %v7294 = vmul.f32 %v7070, %v7237
      %v7295 = vmul.f32 %v7071, %v7239
      %v7296 = vmul.f32 %v7072, %v7241
      %v7297 = vmul.f32 %v7073, %v7243
      %v7298 = vmul.f32 %v7074, %v7245
      %v7299 = vmul.f32 %v7075, %v7247
      %v7300 = vmul.f32 %v7076, %v7249
      %v7301 = vmul.f32 %v7077, %v7251
      %v7302 = vmul.f32 %v7078, %v7253
      %v7303 = vmul.f32 %v7079, %v7255
      %v7304 = vmul.f32 %v7080, %v7257
      %v7305 = vmul.f32 %v7081, %v7259
      %v7306 = vmul.f32 %v7082, %v7261
      %v7307 = vmul.f32 %v7083, %v7263
      %v7308 = vmul.f32 %v7084, %v7265
      %v7309 = vmul.f32 %v7085, %v7267
      %v7310 = vmul.f32 %v7086, %v7269
      %v7311 = vmul.f32 %v7087, %v7271
      %v7312 = vmul.f32 %v7088, %v7273
      %v7313 = vmul.f32 %v7089, %v7275
      %v7314 = vmul.f32 %v7090, %v7277
      %v7315 = vmul.f32 %v7091, %v7279
      %v7316 = vmul.f32 %v7092, %v7281
      %v7317 = vmul.f32 %v7093, %v7283
      %v7318 = vmul.f32 %v7094, %v7285
      %v7319 = vmul.f32 %v7095, %v7287
      %v7320 = vld [vmem:[%s1] sm:$0xff]
      %v7321 = vld [vmem:[%s1 + $0x8] sm:$0xff]
      %v7322 = vld [vmem:[%s1 + $0x10] sm:$0xff]
      %v7323 = vld [vmem:[%s1 + $0x18] sm:$0xff]
      %v7324 = vld [vmem:[%s1 + $0x20] sm:$0xff]
      %v7325 = vld [vmem:[%s1 + $0x28] sm:$0xff]
      %v7326 = vld [vmem:[%s1 + $0x30] sm:$0xff]
      %v7327 = vld [vmem:[%s1 + $0x38] sm:$0xff]
      %v7328 = vpack.c.bf16 %v7289, %v7288
      %v7329 = vpack.c.bf16 %v7291, %v7290
      %v7330 = vpack.c.bf16 %v7293, %v7292
      %v7331 = vpack.c.bf16 %v7295, %v7294
      %v7332 = vpack.c.bf16 %v7297, %v7296
      %v7333 = vpack.c.bf16 %v7299, %v7298
      %v7334 = vpack.c.bf16 %v7301, %v7300
      %v7335 = vpack.c.bf16 %v7303, %v7302
      %v7336 = vpack.c.bf16 %v7305, %v7304
      %v7337 = vpack.c.bf16 %v7307, %v7306
      %v7338 = vpack.c.bf16 %v7309, %v7308
      %v7339 = vpack.c.bf16 %v7311, %v7310
      %v7340 = vpack.c.bf16 %v7313, %v7312
      %v7341 = vpack.c.bf16 %v7315, %v7314
      %v7342 = vpack.c.bf16 %v7317, %v7316
      %v7343 = vpack.c.bf16 %v7319, %v7318
      %v7352 = vunpack.c.l.b16 %v7320
      %v7353 = vunpack.c.h.b16 %v7320
      %v7354 = vunpack.c.l.b16 %v7321
      %v7355 = vunpack.c.h.b16 %v7321
      %v7356 = vunpack.c.l.b16 %v7322
      %v7357 = vunpack.c.h.b16 %v7322
      %v7358 = vunpack.c.l.b16 %v7323
      %v7359 = vunpack.c.h.b16 %v7323
      %v7360 = vunpack.c.l.b16 %v7324
      %v7361 = vunpack.c.h.b16 %v7324
      %v7362 = vunpack.c.l.b16 %v7325
      %v7363 = vunpack.c.h.b16 %v7325
      %v7364 = vunpack.c.l.b16 %v7326
      %v7365 = vunpack.c.h.b16 %v7326
      %v7366 = vunpack.c.l.b16 %v7327
      %v7367 = vunpack.c.h.b16 %v7327
      %v7368 = vpack.c.b16 %v7354, %v7352
      %v7369 = vpack.c.b16 %v7355, %v7353
      %v7370 = vpack.c.b16 %v7358, %v7356
      %v7371 = vpack.c.b16 %v7359, %v7357
      %v7372 = vpack.c.b16 %v7362, %v7360
      %v7373 = vpack.c.b16 %v7363, %v7361
      %v7374 = vpack.c.b16 %v7366, %v7364
      %v7375 = vpack.c.b16 %v7367, %v7365
      %7384 = vmatprep.subr.bf16.mxu0 0
      %7385 = vmatpush1.bf16.msra.mxu0 %v7328
      %7386 = vmatprep.subr.bf16.mxu0 0
      %7387 = vmatpush1.bf16.msra.mxu0 %v7329
      %7388 = vmatprep.subr.bf16.mxu0 0
      %7389 = vmatpush1.bf16.msra.mxu0 %v7330
      %7390 = vmatprep.subr.bf16.mxu0 0
      %7391 = vmatpush1.bf16.msra.mxu0 %v7331
      %7392 = vmatprep.subr.bf16.mxu0 0
      %7393 = vmatpush1.bf16.msra.mxu0 %v7332
      %7394 = vmatprep.subr.bf16.mxu0 0
      %7395 = vmatpush1.bf16.msra.mxu0 %v7333
      %7396 = vmatprep.subr.bf16.mxu0 0
      %7397 = vmatpush1.bf16.msra.mxu0 %v7334
      %7398 = vmatprep.subr.bf16.mxu0 0
      %7399 = vmatpush1.bf16.msra.mxu0 %v7335
      %7400 = vmatprep.subr.bf16.mxu0 0
      %7401 = vmatpush1.bf16.msra.mxu0 %v7336
      %7402 = vmatprep.subr.bf16.mxu0 0
      %7403 = vmatpush1.bf16.msra.mxu0 %v7337
      %7404 = vmatprep.subr.bf16.mxu0 0
      %7405 = vmatpush1.bf16.msra.mxu0 %v7338
      %7406 = vmatprep.subr.bf16.mxu0 0
      %7407 = vmatpush1.bf16.msra.mxu0 %v7339
      %7408 = vmatprep.subr.bf16.mxu0 0
      %7409 = vmatpush1.bf16.msra.mxu0 %v7340
      %7410 = vmatprep.subr.bf16.mxu0 0
      %7411 = vmatpush1.bf16.msra.mxu0 %v7341
      %7412 = vmatprep.subr.bf16.mxu0 0
      %7413 = vmatpush1.bf16.msra.mxu0 %v7342
      %7414 = vmatprep.subr.bf16.mxu0 0
      %7415 = vmatpush1.bf16.msra.mxu0 %v7343
      %7416 = vmatprep.mubr.bf16.mxu0 %v7369
      %7417 = vmatmul.mubr.bf16.gmra.mrb[0].mxu0 %v7368
      %v7418 = vpop.f32.mrb[0].mxu0
      %v7419 = vadd.f32 0.0, %v7418
      %v7420 = vpop.f32.mrb[0].mxu0
      %v7421 = vpop.f32.mrb[0].mxu0
      %v7422 = vadd.f32 0.0, %v7421
      %v7423 = vpop.f32.mrb[0].mxu0
      %7424 = vmatprep.mubr.bf16.mxu0 %v7371
      %7425 = vmatmul.mubr.bf16.gmra.mrb[0].mxu0 %v7370
      %v7426 = vpop.f32.mrb[0].mxu0
      %v7427 = vadd.f32 0.0, %v7426
      %v7428 = vpop.f32.mrb[0].mxu0
      %v7429 = vpop.f32.mrb[0].mxu0
      %v7430 = vadd.f32 0.0, %v7429
      %v7431 = vpop.f32.mrb[0].mxu0
      %7432 = vmatprep.mubr.bf16.mxu0 %v7373
      %7433 = vmatmul.mubr.bf16.gmra.mrb[0].mxu0 %v7372
      %v7434 = vpop.f32.mrb[0].mxu0
      %v7435 = vadd.f32 0.0, %v7434
      %v7436 = vpop.f32.mrb[0].mxu0
      %v7437 = vpop.f32.mrb[0].mxu0
      %v7438 = vadd.f32 0.0, %v7437
      %v7439 = vpop.f32.mrb[0].mxu0
      %7440 = vmatprep.mubr.bf16.mxu0 %v7375
      %7441 = vmatmul.mubr.bf16.gmra.mrb[0].mxu0 %v7374
      %v7442 = vpop.f32.mrb[0].mxu0
      %v7443 = vadd.f32 0.0, %v7442
      %v7444 = vpop.f32.mrb[0].mxu0
      %v7445 = vpop.f32.mrb[0].mxu0
      %v7446 = vadd.f32 0.0, %v7445
      %v7447 = vpop.f32.mrb[0].mxu0
      %7448 = vdwg.mxu0
      %v7449 = vpack.c.bf16 %v7422, %v7419
      %v7450 = vpack.c.bf16 %v7430, %v7427
      %v7451 = vpack.c.bf16 %v7438, %v7435
      %v7452 = vpack.c.bf16 %v7446, %v7443
      %v7453 = vld [vmem:[%s10] sm:$0xf]
      %v7454 = vld [vmem:[%s10 + $0x4] sm:$0xf]
      %v7455 = vld [vmem:[%s10 + $0x8] sm:$0xf]
      %v7456 = vld [vmem:[%s10 + $0xc] sm:$0xf]
      %v7457 = vld [vmem:[%s10 + $0x10] sm:$0xf]
      %v7458 = vld [vmem:[%s10 + $0x14] sm:$0xf]
      %v7459 = vld [vmem:[%s10 + $0x18] sm:$0xf]
      %v7460 = vld [vmem:[%s10 + $0x1c] sm:$0xf]
      %v7461 = vld [vmem:[%s10 + $0x20] sm:$0xf]
      %v7462 = vld [vmem:[%s10 + $0x24] sm:$0xf]
      %v7463 = vld [vmem:[%s10 + $0x28] sm:$0xf]
      %v7464 = vld [vmem:[%s10 + $0x2c] sm:$0xf]
      %v7465 = vld [vmem:[%s10 + $0x30] sm:$0xf]
      %v7466 = vld [vmem:[%s10 + $0x34] sm:$0xf]
      %v7467 = vld [vmem:[%s10 + $0x38] sm:$0xf]
      %v7468 = vld [vmem:[%s10 + $0x3c] sm:$0xf]
      %v7469 = vld [vmem:[%s11] sm:$0x1]
      %v7471 = vlaneseq
      %v7472 = vshrl.u32 %v7471, 7
      %v7473 = vsub.s32 0, %v7472
      %v7474 = vrot.slane %v7469, %v7473
      %v7492 = vunpack.c.l.b16 %v7453
      %v7493 = vunpack.c.l.b16 %v7454
      %v7494 = vunpack.c.l.b16 %v7455
      %v7495 = vunpack.c.l.b16 %v7456
      %v7496 = vunpack.c.l.b16 %v7457
      %v7497 = vunpack.c.l.b16 %v7458
      %v7498 = vunpack.c.l.b16 %v7459
      %v7499 = vunpack.c.l.b16 %v7460
      %v7500 = vunpack.c.l.b16 %v7461
      %v7501 = vunpack.c.l.b16 %v7462
      %v7502 = vunpack.c.l.b16 %v7463
      %v7503 = vunpack.c.l.b16 %v7464
      %v7504 = vunpack.c.l.b16 %v7465
      %v7505 = vunpack.c.l.b16 %v7466
      %v7506 = vunpack.c.l.b16 %v7467
      %v7507 = vunpack.c.l.b16 %v7468
      %v7508 = vpack.c.b16 %v7493, %v7492
      %v7509 = vpack.c.b16 %v7495, %v7494
      %v7510 = vpack.c.b16 %v7497, %v7496
      %v7511 = vpack.c.b16 %v7499, %v7498
      %v7512 = vpack.c.b16 %v7501, %v7500
      %v7513 = vpack.c.b16 %v7503, %v7502
      %v7514 = vpack.c.b16 %v7505, %v7504
      %v7515 = vpack.c.b16 %v7507, %v7506
      %7524 = vmatprep.subr.bf16.mxu0 0
      %7525 = vmatpush1.bf16.msra.mxu0 %v7508
      %7526 = vmatprep.subr.bf16.mxu0 0
      %7527 = vmatpush1.bf16.msra.mxu0 %v7509
      %7528 = vmatprep.subr.bf16.mxu0 0
      %7529 = vmatpush1.bf16.msra.mxu0 %v7510
      %7530 = vmatprep.subr.bf16.mxu0 0
      %7531 = vmatpush1.bf16.msra.mxu0 %v7511
      %7532 = vmatprep.subr.bf16.mxu0 0
      %7533 = vmatpush1.bf16.msra.mxu0 %v7512
      %7534 = vmatprep.subr.bf16.mxu0 0
      %7535 = vmatpush1.bf16.msra.mxu0 %v7513
      %7536 = vmatprep.subr.bf16.mxu0 0
      %7537 = vmatpush1.bf16.msra.mxu0 %v7514
      %7538 = vmatprep.subr.bf16.mxu0 0
      %7539 = vmatpush1.bf16.msra.mxu0 %v7515
      %7540 = vmatprep.subr.bf16.mxu0 0
      %7541 = vmatpush1.bf16.msra.mxu0 0
      %7542 = vmatprep.subr.bf16.mxu0 0
      %7543 = vmatpush1.bf16.msra.mxu0 0
      %7544 = vmatprep.subr.bf16.mxu0 0
      %7545 = vmatpush1.bf16.msra.mxu0 0
      %7546 = vmatprep.subr.bf16.mxu0 0
      %7547 = vmatpush1.bf16.msra.mxu0 0
      %7548 = vmatprep.subr.bf16.mxu0 0
      %7549 = vmatpush1.bf16.msra.mxu0 0
      %7550 = vmatprep.subr.bf16.mxu0 0
      %7551 = vmatpush1.bf16.msra.mxu0 0
      %7552 = vmatprep.subr.bf16.mxu0 0
      %7553 = vmatpush1.bf16.msra.mxu0 0
      %7554 = vmatprep.subr.bf16.mxu0 0
      %7555 = vmatpush1.bf16.msra.mxu0 0
      %7556 = vmatprep.mubr.bf16.mxu0 0
      %7557 = vmatmul.mubr.bf16.gmra.mrb[0].mxu0 %v7449
      %v7558 = vpop.f32.mrb[0].mxu0
      %v7559 = vadd.f32 %v7474, %v7558
      %v7560 = vpop.f32.mrb[0].mxu0
      %v7561 = vpop.f32.mrb[0].mxu0
      %v7562 = vadd.f32 %v7474, %v7561
      %v7563 = vpop.f32.mrb[0].mxu0
      %7564 = vmatprep.mubr.bf16.mxu0 0
      %7565 = vmatmul.mubr.bf16.gmra.mrb[0].mxu0 %v7450
      %v7566 = vpop.f32.mrb[0].mxu0
      %v7567 = vadd.f32 %v7474, %v7566
      %v7568 = vpop.f32.mrb[0].mxu0
      %v7569 = vpop.f32.mrb[0].mxu0
      %v7570 = vadd.f32 %v7474, %v7569
      %v7571 = vpop.f32.mrb[0].mxu0
      %7572 = vmatprep.mubr.bf16.mxu0 0
      %7573 = vmatmul.mubr.bf16.gmra.mrb[0].mxu0 %v7451
      %v7574 = vpop.f32.mrb[0].mxu0
      %v7575 = vadd.f32 %v7474, %v7574
      %v7576 = vpop.f32.mrb[0].mxu0
      %v7577 = vpop.f32.mrb[0].mxu0
      %v7578 = vadd.f32 %v7474, %v7577
      %v7579 = vpop.f32.mrb[0].mxu0
      %7580 = vmatprep.mubr.bf16.mxu0 0
      %7581 = vmatmul.mubr.bf16.gmra.mrb[0].mxu0 %v7452
      %v7582 = vpop.f32.mrb[0].mxu0
      %v7583 = vadd.f32 %v7474, %v7582
      %v7584 = vpop.f32.mrb[0].mxu0
      %v7585 = vpop.f32.mrb[0].mxu0
      %v7586 = vadd.f32 %v7474, %v7585
      %v7587 = vpop.f32.mrb[0].mxu0
      %7588 = vdwg.mxu0
      %v7589 = vpack.c.bf16 %v7562, %v7559
      %v7590 = vpack.c.bf16 %v7570, %v7567
      %v7591 = vpack.c.bf16 %v7578, %v7575
      %v7592 = vpack.c.bf16 %v7586, %v7583
      %v7593 = vld [vmem:[%s12] sm:$0xf]
      %v7594 = vld [vmem:[%s12 + $0x4] sm:$0xf]
      %v7595 = vld [vmem:[%s12 + $0x8] sm:$0xf]
      %v7596 = vld [vmem:[%s12 + $0xc] sm:$0xf]
      %v7597 = vld [vmem:[%s12 + $0x10] sm:$0xf]
      %v7598 = vld [vmem:[%s12 + $0x14] sm:$0xf]
      %v7599 = vld [vmem:[%s12 + $0x18] sm:$0xf]
      %v7600 = vld [vmem:[%s12 + $0x1c] sm:$0xf]
      %v7601 = vld [vmem:[%s12 + $0x20] sm:$0xf]
      %v7602 = vld [vmem:[%s12 + $0x24] sm:$0xf]
      %v7603 = vld [vmem:[%s12 + $0x28] sm:$0xf]
      %v7604 = vld [vmem:[%s12 + $0x2c] sm:$0xf]
      %v7605 = vld [vmem:[%s12 + $0x30] sm:$0xf]
      %v7606 = vld [vmem:[%s12 + $0x34] sm:$0xf]
      %v7607 = vld [vmem:[%s12 + $0x38] sm:$0xf]
      %v7608 = vld [vmem:[%s12 + $0x3c] sm:$0xf]
      %v7609 = vld [vmem:[%s13] sm:$0x1]
      %v7611 = vlaneseq
      %v7612 = vshrl.u32 %v7611, 7
      %v7613 = vsub.s32 0, %v7612
      %v7614 = vrot.slane %v7609, %v7613
      %v7632 = vunpack.c.l.b16 %v7593
      %v7633 = vunpack.c.l.b16 %v7594
      %v7634 = vunpack.c.l.b16 %v7595
      %v7635 = vunpack.c.l.b16 %v7596
      %v7636 = vunpack.c.l.b16 %v7597
      %v7637 = vunpack.c.l.b16 %v7598
      %v7638 = vunpack.c.l.b16 %v7599
      %v7639 = vunpack.c.l.b16 %v7600
      %v7640 = vunpack.c.l.b16 %v7601
      %v7641 = vunpack.c.l.b16 %v7602
      %v7642 = vunpack.c.l.b16 %v7603
      %v7643 = vunpack.c.l.b16 %v7604
      %v7644 = vunpack.c.l.b16 %v7605
      %v7645 = vunpack.c.l.b16 %v7606
      %v7646 = vunpack.c.l.b16 %v7607
      %v7647 = vunpack.c.l.b16 %v7608
      %v7648 = vpack.c.b16 %v7633, %v7632
      %v7649 = vpack.c.b16 %v7635, %v7634
      %v7650 = vpack.c.b16 %v7637, %v7636
      %v7651 = vpack.c.b16 %v7639, %v7638
      %v7652 = vpack.c.b16 %v7641, %v7640
      %v7653 = vpack.c.b16 %v7643, %v7642
      %v7654 = vpack.c.b16 %v7645, %v7644
      %v7655 = vpack.c.b16 %v7647, %v7646
      %7664 = vmatprep.subr.bf16.mxu0 0
      %7665 = vmatpush1.bf16.msra.mxu0 %v7648
      %7666 = vmatprep.subr.bf16.mxu0 0
      %7667 = vmatpush1.bf16.msra.mxu0 %v7649
      %7668 = vmatprep.subr.bf16.mxu0 0
      %7669 = vmatpush1.bf16.msra.mxu0 %v7650
      %7670 = vmatprep.subr.bf16.mxu0 0
      %7671 = vmatpush1.bf16.msra.mxu0 %v7651
      %7672 = vmatprep.subr.bf16.mxu0 0
      %7673 = vmatpush1.bf16.msra.mxu0 %v7652
      %7674 = vmatprep.subr.bf16.mxu0 0
      %7675 = vmatpush1.bf16.msra.mxu0 %v7653
      %7676 = vmatprep.subr.bf16.mxu0 0
      %7677 = vmatpush1.bf16.msra.mxu0 %v7654
      %7678 = vmatprep.subr.bf16.mxu0 0
      %7679 = vmatpush1.bf16.msra.mxu0 %v7655
      %7680 = vmatprep.subr.bf16.mxu0 0
      %7681 = vmatpush1.bf16.msra.mxu0 0
      %7682 = vmatprep.subr.bf16.mxu0 0
      %7683 = vmatpush1.bf16.msra.mxu0 0
      %7684 = vmatprep.subr.bf16.mxu0 0
      %7685 = vmatpush1.bf16.msra.mxu0 0
      %7686 = vmatprep.subr.bf16.mxu0 0
      %7687 = vmatpush1.bf16.msra.mxu0 0
      %7688 = vmatprep.subr.bf16.mxu0 0
      %7689 = vmatpush1.bf16.msra.mxu0 0
      %7690 = vmatprep.subr.bf16.mxu0 0
      %7691 = vmatpush1.bf16.msra.mxu0 0
      %7692 = vmatprep.subr.bf16.mxu0 0
      %7693 = vmatpush1.bf16.msra.mxu0 0
      %7694 = vmatprep.subr.bf16.mxu0 0
      %7695 = vmatpush1.bf16.msra.mxu0 0
      %7696 = vmatprep.mubr.bf16.mxu0 0
      %7697 = vmatmul.mubr.bf16.gmra.mrb[0].mxu0 %v7589
      %v7698 = vpop.f32.mrb[0].mxu0
      %v7699 = vadd.f32 %v7614, %v7698
      %v7700 = vpop.f32.mrb[0].mxu0
      %v7701 = vpop.f32.mrb[0].mxu0
      %v7702 = vadd.f32 %v7614, %v7701
      %v7703 = vpop.f32.mrb[0].mxu0
      %7704 = vmatprep.mubr.bf16.mxu0 0
      %7705 = vmatmul.mubr.bf16.gmra.mrb[0].mxu0 %v7590
      %v7706 = vpop.f32.mrb[0].mxu0
      %v7707 = vadd.f32 %v7614, %v7706
      %v7708 = vpop.f32.mrb[0].mxu0
      %v7709 = vpop.f32.mrb[0].mxu0
      %v7710 = vadd.f32 %v7614, %v7709
      %v7711 = vpop.f32.mrb[0].mxu0
      %7712 = vmatprep.mubr.bf16.mxu0 0
      %7713 = vmatmul.mubr.bf16.gmra.mrb[0].mxu0 %v7591
      %v7714 = vpop.f32.mrb[0].mxu0
      %v7715 = vadd.f32 %v7614, %v7714
      %v7716 = vpop.f32.mrb[0].mxu0
      %v7717 = vpop.f32.mrb[0].mxu0
      %v7718 = vadd.f32 %v7614, %v7717
      %v7719 = vpop.f32.mrb[0].mxu0
      %7720 = vmatprep.mubr.bf16.mxu0 0
      %7721 = vmatmul.mubr.bf16.gmra.mrb[0].mxu0 %v7592
      %v7722 = vpop.f32.mrb[0].mxu0
      %v7723 = vadd.f32 %v7614, %v7722
      %v7724 = vpop.f32.mrb[0].mxu0
      %v7725 = vpop.f32.mrb[0].mxu0
      %v7726 = vadd.f32 %v7614, %v7725
      %v7727 = vpop.f32.mrb[0].mxu0
      %7728 = vdwg.mxu0
      %v7729 = vxor.u32 %v7699, 2147483648
      %v7730 = vxor.u32 %v7702, 2147483648
      %v7731 = vxor.u32 %v7707, 2147483648
      %v7732 = vxor.u32 %v7710, 2147483648
      %v7733 = vxor.u32 %v7715, 2147483648
      %v7734 = vxor.u32 %v7718, 2147483648
      %v7735 = vxor.u32 %v7723, 2147483648
      %v7736 = vxor.u32 %v7726, 2147483648
      %v7737 = vmul.f32 %v7729, 1.442695
      %v7738 = vpow.pop %v7737
      %v7739 = vmul.f32 %v7730, 1.442695
      %v7740 = vpow.pop %v7739
      %v7741 = vmul.f32 %v7731, 1.442695
      %v7742 = vpow.pop %v7741
      %v7743 = vmul.f32 %v7732, 1.442695
      %v7744 = vpow.pop %v7743
      %v7745 = vmul.f32 %v7733, 1.442695
      %v7746 = vpow.pop %v7745
      %v7747 = vmul.f32 %v7734, 1.442695
      %v7748 = vpow.pop %v7747
      %v7749 = vmul.f32 %v7735, 1.442695
      %v7750 = vpow.pop %v7749
      %v7751 = vmul.f32 %v7736, 1.442695
      %v7752 = vpow.pop %v7751
      %v7753 = vadd.f32 %v7738, 1.0
      %v7754 = vadd.f32 %v7740, 1.0
      %v7755 = vadd.f32 %v7742, 1.0
      %v7756 = vadd.f32 %v7744, 1.0
      %v7757 = vadd.f32 %v7746, 1.0
      %v7758 = vadd.f32 %v7748, 1.0
      %v7759 = vadd.f32 %v7750, 1.0
      %v7760 = vadd.f32 %v7752, 1.0
      %v7761 = vrcp.pop %v7753
      %v7762 = vmul.f32 1.0, %v7761
      %v7763 = vrcp.pop %v7754
      %v7764 = vmul.f32 1.0, %v7763
      %v7765 = vrcp.pop %v7755
      %v7766 = vmul.f32 1.0, %v7765
      %v7767 = vrcp.pop %v7756
      %v7768 = vmul.f32 1.0, %v7767
      %v7769 = vrcp.pop %v7757
      %v7770 = vmul.f32 1.0, %v7769
      %v7771 = vrcp.pop %v7758
      %v7772 = vmul.f32 1.0, %v7771
      %v7773 = vrcp.pop %v7759
      %v7774 = vmul.f32 1.0, %v7773
      %v7775 = vrcp.pop %v7760
      %v7776 = vmul.f32 1.0, %v7775
      %v7777 = vmul.f32 %v7699, %v7762
      %v7778 = vmul.f32 %v7702, %v7764
      %v7779 = vmul.f32 %v7707, %v7766
      %v7780 = vmul.f32 %v7710, %v7768
      %v7781 = vmul.f32 %v7715, %v7770
      %v7782 = vmul.f32 %v7718, %v7772
      %v7783 = vmul.f32 %v7723, %v7774
      %v7784 = vmul.f32 %v7726, %v7776
      %7785 = vst [vmem:[%s467] sm:$0xff] %v7777
      %7786 = vst [vmem:[%s467 + $0x8] sm:$0xff] %v7778
      %7787 = vst [vmem:[%s467 + $0x10] sm:$0xff] %v7779
      %7788 = vst [vmem:[%s467 + $0x18] sm:$0xff] %v7780
      %7789 = vst [vmem:[%s467 + $0x20] sm:$0xff] %v7781
      %7790 = vst [vmem:[%s467 + $0x28] sm:$0xff] %v7782
      %7791 = vst [vmem:[%s467 + $0x30] sm:$0xff] %v7783
      %7792 = vst [vmem:[%s467 + $0x38] sm:$0xff] %v7784
      %p7793 = scmp.lt.s32.totalorder %s25, 1
      %s7794 = scalar_select %p7793, %s25, 1
      %s7795 = smul.addr %s7794, 8
      %s7796 = smul.addr %s7795, 8
      %s7797 = scalar_lea.vmem %s14, %s7796
      // Predicated region
      $region77: #{timm_wrapper_forward.1} parent=75 // pred_check
        %p7798 = pneg %p342
      $region78: #{timm_wrapper_forward.1} parent=75 // pred_check_branch
        %7800 = sbr.rel (%p7798) target = $region80
      $region79: #{timm_wrapper_forward.1} parent=75 // pred_region
        _
      $region80: #{timm_wrapper_forward.1} parent=75 // pred_fallthru
        _
    $region76: #{timm_wrapper_forward.1} parent=5 // pred_fallthru
      _
    %p7801 = scmp.le.s32.totalorder 2, %s20
    // Predicated region
    $region81: #{timm_wrapper_forward.1} parent=5 // pred_check
      %p7802 = pneg %p7801
    $region82: #{timm_wrapper_forward.1} parent=5 // pred_check_branch
      %7804 = sbr.rel (%p7802) target = $region84
    $region83: #{timm_wrapper_forward.1} parent=5 // pred_region
      %s7805 = ssub.s32 %s20, 2
      // Predicated region
      $region85: #{timm_wrapper_forward.1} parent=83 // pred_check
        %p7806 = pneg %p348
      $region86: #{timm_wrapper_forward.1} parent=83 // pred_check_branch
        %7808 = sbr.rel (%p7806) target = $region88
      $region87: #{timm_wrapper_forward.1} parent=83 // pred_region
        %p7809 = scmp.lt.s32.totalorder %s26, 1
        %s7810 = scalar_select %p7809, %s26, 1
        %s7811 = smul.addr %s7810, 8
        %s7812 = smul.addr %s7811, 8
        %s7813 = scalar_lea.vmem %s14, %s7812
      $region88: #{timm_wrapper_forward.1} parent=83 // pred_fallthru
        _
    $region84: #{timm_wrapper_forward.1} parent=5 // pred_fallthru
      _
  $region6: #{timm_wrapper_forward.1} parent=0 // loop_footer
    %s24 = sadd.s32 1, %s20
  $region7: #{timm_wrapper_forward.1} parent=0 // loop_footer_branch
    %19 = sbr.rel target = $region3
  $region8: #{timm_wrapper_forward.1} parent=0 // loop_exit
    _

</llo_original>
